<compile_context>
chip_gen: v7x
topology: tpu7x:2x2x1
jax: 0.10.0
libtpu: 0.0.40
codegen_flags: <defaults>
</compile_context>

<pallas_src>
import jax
import jax.numpy as jnp
from jax import lax
from jax.experimental import pallas as pl
from jax.experimental.pallas import tpu as pltpu

EPS = 1e-5


# ---------------- Pallas kernels ----------------

def _make_conv_stats_kernel(K, TD, OH, OW, CIN_P, CPAD):
    """Conv3d (valid, stride 1) for one row-chunk of TD output D-slices.

    Per grid step (n, r):
      x_ref  : (1, D, H, W, CIN_P)   bf16 channels-last activation (resident)
      w_ref  : (K^3*CIN_P, CPAD)     bf16 folded weights (kd, kh, kw, cin)
      b_ref  : (1, CPAD)             f32 conv bias
      y_ref  : (1, ROWS, CPAD)       bf16 conv output rows of this chunk
      s_ref  : (1, 1, 1, CPAD)       f32 partial per-channel sum   (pre-bias)
      ss_ref : (1, 1, 1, CPAD)       f32 partial per-channel sum^2 (pre-bias)
      lhs_ref: (ROWS, K^3*CIN_P)     bf16 VMEM im2col scratch
    """
    ROWS = TD * OH * OW

    def kernel(x_ref, w_ref, b_ref, y_ref, s_ref, ss_ref, lhs_ref):
        r = pl.program_id(1)
        d0 = pl.multiple_of(r * TD, TD)
        # Build the im2col slab ONCE (taps folded into contraction columns).
        for kd in range(K):
            for kh in range(K):
                for kw in range(K):
                    t = (kd * K + kh) * K + kw
                    win = x_ref[0, pl.ds(d0 + kd, TD),
                                kh:kh + OH, kw:kw + OW, :]
                    lhs_ref[:, t * CIN_P:(t + 1) * CIN_P] = win.reshape(
                        ROWS, CIN_P)
        # Single MXU matmul, contraction depth K^3*CIN_P, f32 accumulation.
        acc = jnp.dot(lhs_ref[...], w_ref[...],
                      preferred_element_type=jnp.float32)     # (ROWS, CPAD)
        # BN partial statistics from the f32 accumulator, PRE-bias (variance
        # is invariant to the per-channel shift; mean fixed up on the host).
        s_ref[0, 0] = jnp.sum(acc, axis=0, keepdims=True)
        ss_ref[0, 0] = jnp.sum(acc * acc, axis=0, keepdims=True)
        # Bias add in f32, downcast once on the final store.
        y_ref[0] = (acc + b_ref[...]).astype(jnp.bfloat16)

    return kernel


def _make_bn_relu_pool_kernel(P, PH, PW, CPAD):
    """BN affine + ReLU + MaxPool for one pool-plane of P conv D-slices.

      sc_ref, sh_ref : (1, CPAD)           precomputed scale / shift (f32)
      y_ref          : (1, P, OH, OW, CPAD) bf16 conv rows (lane/sublane dense)
      o_ref          : (1, 1, PH, PW, CPAD) f32 pooled output plane
    """
    OHc, OWc = PH * P, PW * P

    def kernel(sc_ref, sh_ref, y_ref, o_ref):
        y = y_ref[0, :, :OHc, :OWc, :].astype(jnp.float32)    # (P,OHc,OWc,C)
        y = jnp.maximum(y * sc_ref[...] + sh_ref[...], 0.0)   # BN + ReLU (f32)
        y = jnp.max(y, axis=0)                                 # pool D
        y = jnp.max(y.reshape(PH, P, OWc, CPAD), axis=1)       # pool H
        y = jnp.max(y.reshape(PH, PW, P, CPAD), axis=2)        # pool W
        o_ref[0, 0] = y

    return kernel


# ---------------- wrapper ----------------

def _pick_td(OD, OH, OW, target_rows=256):
    """Largest divisor TD of OD with TD*OH*OW rows per step within target
    (rows must be a multiple of 8 unless TD == OD)."""
    plane = OH * OW
    best = OD                                   # rows == full dim: always legal
    for td in range(1, OD + 1):
        if OD % td:
            continue
        rows = td * plane
        if td != OD and rows % 8:
            continue
        if rows <= max(target_rows, plane):
            best = td
    return best


def unit_forward(x_ncdhw, w, b, gamma, beta, kernel_size, pool_size):
    N, Cin, D, H, W = x_ncdhw.shape
    Cout = w.shape[0]
    K = kernel_size
    P = pool_size
    OD, OH, OW = D - K + 1, H - K + 1, W - K + 1
    PD, PH, PW = OD // P, OH // P, OW // P
    MROW = OD * OH * OW
    KKK = K * K * K

    CPAD = ((Cout + 127) // 128) * 128          # lane-dense output channels
    CIN_P = ((Cin + 7) // 8) * 8                # sublane-friendly input chans
    KC = KKK * CIN_P                            # folded contraction depth

    TD = _pick_td(OD, OH, OW)                   # D-slices per row chunk
    NR = OD // TD
    ROWS = TD * OH * OW

    # ---- host-side (in-jit) layout prep: small transposes / pads, bf16 ----
    x = jnp.transpose(x_ncdhw, (0, 2, 3, 4, 1)).astype(jnp.float32)
    x = jnp.pad(x, ((0, 0),) * 4 + ((0, CIN_P - Cin),)).astype(jnp.bfloat16)
    wt = jnp.transpose(w, (2, 3, 4, 1, 0)).astype(jnp.float32)  # (K,K,K,Ci,Co)
    wt = jnp.pad(wt, ((0, 0),) * 3 + ((0, CIN_P - Cin), (0, CPAD - Cout)))
    wt = wt.reshape(KC, CPAD).astype(jnp.bfloat16)
    b2 = jnp.pad(b.astype(jnp.float32), (0, CPAD - Cout)).reshape(1, CPAD)

    # ---- kernel 1: in-VMEM im2col + single folded MXU matmul + BN partials --
    conv_out, psum, psumsq = pl.pallas_call(
        _make_conv_stats_kernel(K, TD, OH, OW, CIN_P, CPAD),
        out_shape=(
            jax.ShapeDtypeStruct((N, MROW, CPAD), jnp.bfloat16),
            jax.ShapeDtypeStruct((N, NR, 1, CPAD), jnp.float32),
            jax.ShapeDtypeStruct((N, NR, 1, CPAD), jnp.float32),
        ),
        grid=(N, NR),
        in_specs=[
            pl.BlockSpec((1, D, H, W, CIN_P), lambda n, r: (n, 0, 0, 0, 0)),
            pl.BlockSpec((KC, CPAD), lambda n, r: (0, 0)),
            pl.BlockSpec((1, CPAD), lambda n, r: (0, 0)),
        ],
        out_specs=(
            pl.BlockSpec((1, ROWS, CPAD), lambda n, r: (n, r, 0)),
            pl.BlockSpec((1, 1, 1, CPAD), lambda n, r: (n, r, 0, 0)),
            pl.BlockSpec((1, 1, 1, CPAD), lambda n, r: (n, r, 0, 0)),
        ),
        scratch_shapes=[pltpu.VMEM((ROWS, KC), jnp.bfloat16)],
        compiler_params=pltpu.CompilerParams(
            dimension_semantics=("parallel", "parallel")),
    )(x, wt, b2)

    # ---- BN finalization hoisted to plain JAX (tiny (CPAD,) math) ----------
    cnt = float(N * MROW)
    s = jnp.sum(psum, axis=(0, 1, 2))
    ss = jnp.sum(psumsq, axis=(0, 1, 2))
    mean_nob = s / cnt
    var = ss / cnt - mean_nob * mean_nob          # biased var (torch training)
    mean = mean_nob + b2[0]                       # add conv bias back to mean
    g2 = jnp.pad(gamma.astype(jnp.float32), (0, CPAD - Cout))
    be2 = jnp.pad(beta.astype(jnp.float32), (0, CPAD - Cout))
    inv = lax.rsqrt(var + EPS)
    scale = (g2 * inv).reshape(1, CPAD)
    shift = (be2 - mean * g2 * inv).reshape(1, CPAD)

    # Free metadata reshape only between the two kernels.
    conv5 = conv_out.reshape(N, OD, OH, OW, CPAD)

    # ---- kernel 2: BN affine + ReLU + MaxPool on a (N, PD) grid ------------
    pooled = pl.pallas_call(
        _make_bn_relu_pool_kernel(P, PH, PW, CPAD),
        out_shape=jax.ShapeDtypeStruct((N, PD, PH, PW, CPAD), jnp.float32),
        grid=(N, PD),
        in_specs=[
            pl.BlockSpec((1, CPAD), lambda n, i: (0, 0)),
            pl.BlockSpec((1, CPAD), lambda n, i: (0, 0)),
            pl.BlockSpec((1, P, OH, OW, CPAD), lambda n, i: (n, i, 0, 0, 0)),
        ],
        out_specs=pl.BlockSpec((1, 1, PH, PW, CPAD),
                               lambda n, i: (n, i, 0, 0, 0)),
        compiler_params=pltpu.CompilerParams(
            dimension_semantics=("parallel", "parallel")),
    )(scale, shift, conv5)

    out = pooled[..., :Cout]                       # drop channel padding
    return jnp.transpose(out, (0, 4, 1, 2, 3))     # back to NCDHW


unit_forward_jit = jax.jit(unit_forward, static_argnums=(5, 6))


# ---------------- pure-JAX reference (torch semantics, f32) ----------------

def unit_reference(x, w, b, gamma, beta, pool_size):
    conv = lax.conv_general_dilated(
        x, w, window_strides=(1, 1, 1), padding="VALID",
        dimension_numbers=("NCDHW", "OIDHW", "NCDHW"),
        precision=lax.Precision.HIGHEST)
    conv = conv + b[None, :, None, None, None]
    mean = jnp.mean(conv, axis=(0, 2, 3, 4), keepdims=True)
    var = jnp.var(conv, axis=(0, 2, 3, 4), keepdims=True)        # biased
    bn = (conv - mean) / jnp.sqrt(var + EPS)
    bn = bn * gamma[None, :, None, None, None] + beta[None, :, None, None, None]
    r = jnp.maximum(bn, 0.0)
    p = pool_size
    return lax.reduce_window(r, -jnp.inf, lax.max,
                             (1, 1, p, p, p), (1, 1, p, p, p), "VALID")


if __name__ == "__main__":
    # Small shapes consistent with the module.
    N, Cin, Cout = 2, 4, 8
    K, P = 3, 2
    D = H = W = 10                      # conv out 8^3 -> pool out 4^3

    key = jax.random.PRNGKey(0)
    kx, kw, kb = jax.random.split(key, 3)
    x = jax.random.normal(kx, (N, Cin, D, H, W), dtype=jnp.float32)
    w = jax.random.normal(kw, (Cout, Cin, K, K, K), dtype=jnp.float32) * 0.1
    b = jax.random.normal(kb, (Cout,), dtype=jnp.float32) * 0.1
    gamma = jnp.ones((Cout,), dtype=jnp.float32)     # BN weight init
    beta = jnp.zeros((Cout,), dtype=jnp.float32)     # BN bias init

    out = unit_forward_jit(x, w, b, gamma, beta, K, P)
    out = jax.block_until_ready(out)

    ref = unit_reference(x, w, b, gamma, beta, P)
    assert out.shape == ref.shape == (N, Cout, 4, 4, 4), out.shape
    # Tolerance accounts for bf16 matmul operands + bf16 conv intermediate
    # (f32 accumulation / f32 stats) vs the f32 HIGHEST reference; a semantic
    # bug would give O(1) errors post-BN.
    assert jnp.allclose(out, ref, rtol=3e-2, atol=6e-2), (
        float(jnp.max(jnp.abs(out - ref))))

    print("KERNEL_OK")
</pallas_src>

<mosaic_0001>
module attributes {stable_mosaic.version = 11 : i64} {
  func.func @kernel(%arg0: i32, %arg1: i32, %arg2: memref<1x10x10x10x8xbf16, #tpu.memory_space<vmem>>, %arg3: memref<216x128xbf16, #tpu.memory_space<vmem>>, %arg4: memref<1x128xf32, #tpu.memory_space<vmem>>, %arg5: memref<1x256x128xbf16, #tpu.memory_space<vmem>>, %arg6: memref<1x1x1x128xf32, #tpu.memory_space<vmem>>, %arg7: memref<1x1x1x128xf32, #tpu.memory_space<vmem>>, %arg8: memref<256x216xbf16, #tpu.memory_space<vmem>>) attributes {dimension_semantics = [#tpu.dimension_semantics<parallel>, #tpu.dimension_semantics<parallel>], iteration_bounds = array<i64: 2, 2>, scalar_prefetch = 0 : i64, scratch_operands = 1 : i64, tpu.core_type = #tpu.core_type<tc>, window_params = [{transform_indices = @transform_0, window_bounds = array<i64: 1, 10, 10, 10, 8>}, {pipeline_mode = #tpu.pipeline_mode<synchronous>, transform_indices = @transform_1, window_bounds = array<i64: 216, 128>}, {pipeline_mode = #tpu.pipeline_mode<synchronous>, transform_indices = @transform_2, window_bounds = array<i64: 1, 128>}, {transform_indices = @transform_3, window_bounds = array<i64: 1, 256, 128>}, {transform_indices = @transform_4, window_bounds = array<i64: 1, 1, 1, 128>}, {transform_indices = @transform_5, window_bounds = array<i64: 1, 1, 1, 128>}]} {
    %c4_i32 = arith.constant 4 : i32
    %0 = arith.muli %arg1, %c4_i32 : i32
    %1 = tpu.assume_multiple %0, 4 : i32
    %c0_i32 = arith.constant 0 : i32
    %2 = arith.addi %1, %c0_i32 : i32
    %c0 = arith.constant 0 : index
    %3 = arith.index_cast %2 : i32 to index
    %c0_0 = arith.constant 0 : index
    %c0_1 = arith.constant 0 : index
    %c0_2 = arith.constant 0 : index
    %4 = vector.load %arg2[%c0, %3, %c0_0, %c0_1, %c0_2] : memref<1x10x10x10x8xbf16, #tpu.memory_space<vmem>>, vector<1x4x8x8x8xbf16>
    %5 = vector.shape_cast %4 : vector<1x4x8x8x8xbf16> to vector<4x8x8x8xbf16>
    %6 = vector.shape_cast %5 : vector<4x8x8x8xbf16> to vector<256x8xbf16>
    %c0_3 = arith.constant 0 : index
    %c0_4 = arith.constant 0 : index
    %7 = vector.load %arg8[%c0_3, %c0_4] : memref<256x216xbf16, #tpu.memory_space<vmem>>, vector<256x8xbf16>
    tpu.vector_store %arg8[%c0_3, %c0_4], %6 {strides = array<i32>} : memref<256x216xbf16, #tpu.memory_space<vmem>>, vector<256x8xbf16>,
    %c0_i32_5 = arith.constant 0 : i32
    %8 = arith.addi %1, %c0_i32_5 : i32
    %c0_6 = arith.constant 0 : index
    %9 = arith.index_cast %8 : i32 to index
    %c0_7 = arith.constant 0 : index
    %c1 = arith.constant 1 : index
    %c0_8 = arith.constant 0 : index
    %10 = vector.load %arg2[%c0_6, %9, %c0_7, %c1, %c0_8] : memref<1x10x10x10x8xbf16, #tpu.memory_space<vmem>>, vector<1x4x8x8x8xbf16>
    %11 = vector.shape_cast %10 : vector<1x4x8x8x8xbf16> to vector<4x8x8x8xbf16>
    %12 = vector.shape_cast %11 : vector<4x8x8x8xbf16> to vector<256x8xbf16>
    %c0_9 = arith.constant 0 : index
    %c8 = arith.constant 8 : index
    %13 = vector.load %arg8[%c0_9, %c8] : memref<256x216xbf16, #tpu.memory_space<vmem>>, vector<256x8xbf16>
    tpu.vector_store %arg8[%c0_9, %c8], %12 {strides = array<i32>} : memref<256x216xbf16, #tpu.memory_space<vmem>>, vector<256x8xbf16>,
    %c0_i32_10 = arith.constant 0 : i32
    %14 = arith.addi %1, %c0_i32_10 : i32
    %c0_11 = arith.constant 0 : index
    %15 = arith.index_cast %14 : i32 to index
    %c0_12 = arith.constant 0 : index
    %c2 = arith.constant 2 : index
    %c0_13 = arith.constant 0 : index
    %16 = vector.load %arg2[%c0_11, %15, %c0_12, %c2, %c0_13] : memref<1x10x10x10x8xbf16, #tpu.memory_space<vmem>>, vector<1x4x8x8x8xbf16>
    %17 = vector.shape_cast %16 : vector<1x4x8x8x8xbf16> to vector<4x8x8x8xbf16>
    %18 = vector.shape_cast %17 : vector<4x8x8x8xbf16> to vector<256x8xbf16>
    %c0_14 = arith.constant 0 : index
    %c16 = arith.constant 16 : index
    %19 = vector.load %arg8[%c0_14, %c16] : memref<256x216xbf16, #tpu.memory_space<vmem>>, vector<256x8xbf16>
    tpu.vector_store %arg8[%c0_14, %c16], %18 {strides = array<i32>} : memref<256x216xbf16, #tpu.memory_space<vmem>>, vector<256x8xbf16>,
    %c0_i32_15 = arith.constant 0 : i32
    %20 = arith.addi %1, %c0_i32_15 : i32
    %c0_16 = arith.constant 0 : index
    %21 = arith.index_cast %20 : i32 to index
    %c1_17 = arith.constant 1 : index
    %c0_18 = arith.constant 0 : index
    %c0_19 = arith.constant 0 : index
    %22 = vector.load %arg2[%c0_16, %21, %c1_17, %c0_18, %c0_19] : memref<1x10x10x10x8xbf16, #tpu.memory_space<vmem>>, vector<1x4x8x8x8xbf16>
    %23 = vector.shape_cast %22 : vector<1x4x8x8x8xbf16> to vector<4x8x8x8xbf16>
    %24 = vector.shape_cast %23 : vector<4x8x8x8xbf16> to vector<256x8xbf16>
    %c0_20 = arith.constant 0 : index
    %c24 = arith.constant 24 : index
    %25 = vector.load %arg8[%c0_20, %c24] : memref<256x216xbf16, #tpu.memory_space<vmem>>, vector<256x8xbf16>
    tpu.vector_store %arg8[%c0_20, %c24], %24 {strides = array<i32>} : memref<256x216xbf16, #tpu.memory_space<vmem>>, vector<256x8xbf16>,
    %c0_i32_21 = arith.constant 0 : i32
    %26 = arith.addi %1, %c0_i32_21 : i32
    %c0_22 = arith.constant 0 : index
    %27 = arith.index_cast %26 : i32 to index
    %c1_23 = arith.constant 1 : index
    %c1_24 = arith.constant 1 : index
    %c0_25 = arith.constant 0 : index
    %28 = vector.load %arg2[%c0_22, %27, %c1_23, %c1_24, %c0_25] : memref<1x10x10x10x8xbf16, #tpu.memory_space<vmem>>, vector<1x4x8x8x8xbf16>
    %29 = vector.shape_cast %28 : vector<1x4x8x8x8xbf16> to vector<4x8x8x8xbf16>
    %30 = vector.shape_cast %29 : vector<4x8x8x8xbf16> to vector<256x8xbf16>
    %c0_26 = arith.constant 0 : index
    %c32 = arith.constant 32 : index
    %31 = vector.load %arg8[%c0_26, %c32] : memref<256x216xbf16, #tpu.memory_space<vmem>>, vector<256x8xbf16>
    tpu.vector_store %arg8[%c0_26, %c32], %30 {strides = array<i32>} : memref<256x216xbf16, #tpu.memory_space<vmem>>, vector<256x8xbf16>,
    %c0_i32_27 = arith.constant 0 : i32
    %32 = arith.addi %1, %c0_i32_27 : i32
    %c0_28 = arith.constant 0 : index
    %33 = arith.index_cast %32 : i32 to index
    %c1_29 = arith.constant 1 : index
    %c2_30 = arith.constant 2 : index
    %c0_31 = arith.constant 0 : index
    %34 = vector.load %arg2[%c0_28, %33, %c1_29, %c2_30, %c0_31] : memref<1x10x10x10x8xbf16, #tpu.memory_space<vmem>>, vector<1x4x8x8x8xbf16>
    %35 = vector.shape_cast %34 : vector<1x4x8x8x8xbf16> to vector<4x8x8x8xbf16>
    %36 = vector.shape_cast %35 : vector<4x8x8x8xbf16> to vector<256x8xbf16>
    %c0_32 = arith.constant 0 : index
    %c40 = arith.constant 40 : index
    %37 = vector.load %arg8[%c0_32, %c40] : memref<256x216xbf16, #tpu.memory_space<vmem>>, vector<256x8xbf16>
    tpu.vector_store %arg8[%c0_32, %c40], %36 {strides = array<i32>} : memref<256x216xbf16, #tpu.memory_space<vmem>>, vector<256x8xbf16>,
    %c0_i32_33 = arith.constant 0 : i32
    %38 = arith.addi %1, %c0_i32_33 : i32
    %c0_34 = arith.constant 0 : index
    %39 = arith.index_cast %38 : i32 to index
    %c2_35 = arith.constant 2 : index
    %c0_36 = arith.constant 0 : index
    %c0_37 = arith.constant 0 : index
    %40 = vector.load %arg2[%c0_34, %39, %c2_35, %c0_36, %c0_37] : memref<1x10x10x10x8xbf16, #tpu.memory_space<vmem>>, vector<1x4x8x8x8xbf16>
    %41 = vector.shape_cast %40 : vector<1x4x8x8x8xbf16> to vector<4x8x8x8xbf16>
    %42 = vector.shape_cast %41 : vector<4x8x8x8xbf16> to vector<256x8xbf16>
    %c0_38 = arith.constant 0 : index
    %c48 = arith.constant 48 : index
    %43 = vector.load %arg8[%c0_38, %c48] : memref<256x216xbf16, #tpu.memory_space<vmem>>, vector<256x8xbf16>
    tpu.vector_store %arg8[%c0_38, %c48], %42 {strides = array<i32>} : memref<256x216xbf16, #tpu.memory_space<vmem>>, vector<256x8xbf16>,
    %c0_i32_39 = arith.constant 0 : i32
    %44 = arith.addi %1, %c0_i32_39 : i32
    %c0_40 = arith.constant 0 : index
    %45 = arith.index_cast %44 : i32 to index
    %c2_41 = arith.constant 2 : index
    %c1_42 = arith.constant 1 : index
    %c0_43 = arith.constant 0 : index
    %46 = vector.load %arg2[%c0_40, %45, %c2_41, %c1_42, %c0_43] : memref<1x10x10x10x8xbf16, #tpu.memory_space<vmem>>, vector<1x4x8x8x8xbf16>
    %47 = vector.shape_cast %46 : vector<1x4x8x8x8xbf16> to vector<4x8x8x8xbf16>
    %48 = vector.shape_cast %47 : vector<4x8x8x8xbf16> to vector<256x8xbf16>
    %c0_44 = arith.constant 0 : index
    %c56 = arith.constant 56 : index
    %49 = vector.load %arg8[%c0_44, %c56] : memref<256x216xbf16, #tpu.memory_space<vmem>>, vector<256x8xbf16>
    tpu.vector_store %arg8[%c0_44, %c56], %48 {strides = array<i32>} : memref<256x216xbf16, #tpu.memory_space<vmem>>, vector<256x8xbf16>,
    %c0_i32_45 = arith.constant 0 : i32
    %50 = arith.addi %1, %c0_i32_45 : i32
    %c0_46 = arith.constant 0 : index
    %51 = arith.index_cast %50 : i32 to index
    %c2_47 = arith.constant 2 : index
    %c2_48 = arith.constant 2 : index
    %c0_49 = arith.constant 0 : index
    %52 = vector.load %arg2[%c0_46, %51, %c2_47, %c2_48, %c0_49] : memref<1x10x10x10x8xbf16, #tpu.memory_space<vmem>>, vector<1x4x8x8x8xbf16>
    %53 = vector.shape_cast %52 : vector<1x4x8x8x8xbf16> to vector<4x8x8x8xbf16>
    %54 = vector.shape_cast %53 : vector<4x8x8x8xbf16> to vector<256x8xbf16>
    %c0_50 = arith.constant 0 : index
    %c64 = arith.constant 64 : index
    %55 = vector.load %arg8[%c0_50, %c64] : memref<256x216xbf16, #tpu.memory_space<vmem>>, vector<256x8xbf16>
    tpu.vector_store %arg8[%c0_50, %c64], %54 {strides = array<i32>} : memref<256x216xbf16, #tpu.memory_space<vmem>>, vector<256x8xbf16>,
    %c1_i32 = arith.constant 1 : i32
    %56 = arith.addi %1, %c1_i32 : i32
    %c0_51 = arith.constant 0 : index
    %57 = arith.index_cast %56 : i32 to index
    %c0_52 = arith.constant 0 : index
    %c0_53 = arith.constant 0 : index
    %c0_54 = arith.constant 0 : index
    %58 = vector.load %arg2[%c0_51, %57, %c0_52, %c0_53, %c0_54] : memref<1x10x10x10x8xbf16, #tpu.memory_space<vmem>>, vector<1x4x8x8x8xbf16>
    %59 = vector.shape_cast %58 : vector<1x4x8x8x8xbf16> to vector<4x8x8x8xbf16>
    %60 = vector.shape_cast %59 : vector<4x8x8x8xbf16> to vector<256x8xbf16>
    %c0_55 = arith.constant 0 : index
    %c72 = arith.constant 72 : index
    %61 = vector.load %arg8[%c0_55, %c72] : memref<256x216xbf16, #tpu.memory_space<vmem>>, vector<256x8xbf16>
    tpu.vector_store %arg8[%c0_55, %c72], %60 {strides = array<i32>} : memref<256x216xbf16, #tpu.memory_space<vmem>>, vector<256x8xbf16>,
    %c1_i32_56 = arith.constant 1 : i32
    %62 = arith.addi %1, %c1_i32_56 : i32
    %c0_57 = arith.constant 0 : index
    %63 = arith.index_cast %62 : i32 to index
    %c0_58 = arith.constant 0 : index
    %c1_59 = arith.constant 1 : index
    %c0_60 = arith.constant 0 : index
    %64 = vector.load %arg2[%c0_57, %63, %c0_58, %c1_59, %c0_60] : memref<1x10x10x10x8xbf16, #tpu.memory_space<vmem>>, vector<1x4x8x8x8xbf16>
    %65 = vector.shape_cast %64 : vector<1x4x8x8x8xbf16> to vector<4x8x8x8xbf16>
    %66 = vector.shape_cast %65 : vector<4x8x8x8xbf16> to vector<256x8xbf16>
    %c0_61 = arith.constant 0 : index
    %c80 = arith.constant 80 : index
    %67 = vector.load %arg8[%c0_61, %c80] : memref<256x216xbf16, #tpu.memory_space<vmem>>, vector<256x8xbf16>
    tpu.vector_store %arg8[%c0_61, %c80], %66 {strides = array<i32>} : memref<256x216xbf16, #tpu.memory_space<vmem>>, vector<256x8xbf16>,
    %c1_i32_62 = arith.constant 1 : i32
    %68 = arith.addi %1, %c1_i32_62 : i32
    %c0_63 = arith.constant 0 : index
    %69 = arith.index_cast %68 : i32 to index
    %c0_64 = arith.constant 0 : index
    %c2_65 = arith.constant 2 : index
    %c0_66 = arith.constant 0 : index
    %70 = vector.load %arg2[%c0_63, %69, %c0_64, %c2_65, %c0_66] : memref<1x10x10x10x8xbf16, #tpu.memory_space<vmem>>, vector<1x4x8x8x8xbf16>
    %71 = vector.shape_cast %70 : vector<1x4x8x8x8xbf16> to vector<4x8x8x8xbf16>
    %72 = vector.shape_cast %71 : vector<4x8x8x8xbf16> to vector<256x8xbf16>
    %c0_67 = arith.constant 0 : index
    %c88 = arith.constant 88 : index
    %73 = vector.load %arg8[%c0_67, %c88] : memref<256x216xbf16, #tpu.memory_space<vmem>>, vector<256x8xbf16>
    tpu.vector_store %arg8[%c0_67, %c88], %72 {strides = array<i32>} : memref<256x216xbf16, #tpu.memory_space<vmem>>, vector<256x8xbf16>,
    %c1_i32_68 = arith.constant 1 : i32
    %74 = arith.addi %1, %c1_i32_68 : i32
    %c0_69 = arith.constant 0 : index
    %75 = arith.index_cast %74 : i32 to index
    %c1_70 = arith.constant 1 : index
    %c0_71 = arith.constant 0 : index
    %c0_72 = arith.constant 0 : index
    %76 = vector.load %arg2[%c0_69, %75, %c1_70, %c0_71, %c0_72] : memref<1x10x10x10x8xbf16, #tpu.memory_space<vmem>>, vector<1x4x8x8x8xbf16>
    %77 = vector.shape_cast %76 : vector<1x4x8x8x8xbf16> to vector<4x8x8x8xbf16>
    %78 = vector.shape_cast %77 : vector<4x8x8x8xbf16> to vector<256x8xbf16>
    %c0_73 = arith.constant 0 : index
    %c96 = arith.constant 96 : index
    %79 = vector.load %arg8[%c0_73, %c96] : memref<256x216xbf16, #tpu.memory_space<vmem>>, vector<256x8xbf16>
    tpu.vector_store %arg8[%c0_73, %c96], %78 {strides = array<i32>} : memref<256x216xbf16, #tpu.memory_space<vmem>>, vector<256x8xbf16>,
    %c1_i32_74 = arith.constant 1 : i32
    %80 = arith.addi %1, %c1_i32_74 : i32
    %c0_75 = arith.constant 0 : index
    %81 = arith.index_cast %80 : i32 to index
    %c1_76 = arith.constant 1 : index
    %c1_77 = arith.constant 1 : index
    %c0_78 = arith.constant 0 : index
    %82 = vector.load %arg2[%c0_75, %81, %c1_76, %c1_77, %c0_78] : memref<1x10x10x10x8xbf16, #tpu.memory_space<vmem>>, vector<1x4x8x8x8xbf16>
    %83 = vector.shape_cast %82 : vector<1x4x8x8x8xbf16> to vector<4x8x8x8xbf16>
    %84 = vector.shape_cast %83 : vector<4x8x8x8xbf16> to vector<256x8xbf16>
    %c0_79 = arith.constant 0 : index
    %c104 = arith.constant 104 : index
    %85 = vector.load %arg8[%c0_79, %c104] : memref<256x216xbf16, #tpu.memory_space<vmem>>, vector<256x8xbf16>
    tpu.vector_store %arg8[%c0_79, %c104], %84 {strides = array<i32>} : memref<256x216xbf16, #tpu.memory_space<vmem>>, vector<256x8xbf16>,
    %c1_i32_80 = arith.constant 1 : i32
    %86 = arith.addi %1, %c1_i32_80 : i32
    %c0_81 = arith.constant 0 : index
    %87 = arith.index_cast %86 : i32 to index
    %c1_82 = arith.constant 1 : index
    %c2_83 = arith.constant 2 : index
    %c0_84 = arith.constant 0 : index
    %88 = vector.load %arg2[%c0_81, %87, %c1_82, %c2_83, %c0_84] : memref<1x10x10x10x8xbf16, #tpu.memory_space<vmem>>, vector<1x4x8x8x8xbf16>
    %89 = vector.shape_cast %88 : vector<1x4x8x8x8xbf16> to vector<4x8x8x8xbf16>
    %90 = vector.shape_cast %89 : vector<4x8x8x8xbf16> to vector<256x8xbf16>
    %c0_85 = arith.constant 0 : index
    %c112 = arith.constant 112 : index
    %91 = vector.load %arg8[%c0_85, %c112] : memref<256x216xbf16, #tpu.memory_space<vmem>>, vector<256x8xbf16>
    tpu.vector_store %arg8[%c0_85, %c112], %90 {strides = array<i32>} : memref<256x216xbf16, #tpu.memory_space<vmem>>, vector<256x8xbf16>,
    %c1_i32_86 = arith.constant 1 : i32
    %92 = arith.addi %1, %c1_i32_86 : i32
    %c0_87 = arith.constant 0 : index
    %93 = arith.index_cast %92 : i32 to index
    %c2_88 = arith.constant 2 : index
    %c0_89 = arith.constant 0 : index
    %c0_90 = arith.constant 0 : index
    %94 = vector.load %arg2[%c0_87, %93, %c2_88, %c0_89, %c0_90] : memref<1x10x10x10x8xbf16, #tpu.memory_space<vmem>>, vector<1x4x8x8x8xbf16>
    %95 = vector.shape_cast %94 : vector<1x4x8x8x8xbf16> to vector<4x8x8x8xbf16>
    %96 = vector.shape_cast %95 : vector<4x8x8x8xbf16> to vector<256x8xbf16>
    %c0_91 = arith.constant 0 : index
    %c120 = arith.constant 120 : index
    %97 = vector.load %arg8[%c0_91, %c120] : memref<256x216xbf16, #tpu.memory_space<vmem>>, vector<256x8xbf16>
    tpu.vector_store %arg8[%c0_91, %c120], %96 {strides = array<i32>} : memref<256x216xbf16, #tpu.memory_space<vmem>>, vector<256x8xbf16>,
    %c1_i32_92 = arith.constant 1 : i32
    %98 = arith.addi %1, %c1_i32_92 : i32
    %c0_93 = arith.constant 0 : index
    %99 = arith.index_cast %98 : i32 to index
    %c2_94 = arith.constant 2 : index
    %c1_95 = arith.constant 1 : index
    %c0_96 = arith.constant 0 : index
    %100 = vector.load %arg2[%c0_93, %99, %c2_94, %c1_95, %c0_96] : memref<1x10x10x10x8xbf16, #tpu.memory_space<vmem>>, vector<1x4x8x8x8xbf16>
    %101 = vector.shape_cast %100 : vector<1x4x8x8x8xbf16> to vector<4x8x8x8xbf16>
    %102 = vector.shape_cast %101 : vector<4x8x8x8xbf16> to vector<256x8xbf16>
    %c0_97 = arith.constant 0 : index
    %c128 = arith.constant 128 : index
    %103 = vector.load %arg8[%c0_97, %c128] : memref<256x216xbf16, #tpu.memory_space<vmem>>, vector<256x8xbf16>
    tpu.vector_store %arg8[%c0_97, %c128], %102 {strides = array<i32>} : memref<256x216xbf16, #tpu.memory_space<vmem>>, vector<256x8xbf16>,
    %c1_i32_98 = arith.constant 1 : i32
    %104 = arith.addi %1, %c1_i32_98 : i32
    %c0_99 = arith.constant 0 : index
    %105 = arith.index_cast %104 : i32 to index
    %c2_100 = arith.constant 2 : index
    %c2_101 = arith.constant 2 : index
    %c0_102 = arith.constant 0 : index
    %106 = vector.load %arg2[%c0_99, %105, %c2_100, %c2_101, %c0_102] : memref<1x10x10x10x8xbf16, #tpu.memory_space<vmem>>, vector<1x4x8x8x8xbf16>
    %107 = vector.shape_cast %106 : vector<1x4x8x8x8xbf16> to vector<4x8x8x8xbf16>
    %108 = vector.shape_cast %107 : vector<4x8x8x8xbf16> to vector<256x8xbf16>
    %c0_103 = arith.constant 0 : index
    %c136 = arith.constant 136 : index
    %109 = vector.load %arg8[%c0_103, %c136] : memref<256x216xbf16, #tpu.memory_space<vmem>>, vector<256x8xbf16>
    tpu.vector_store %arg8[%c0_103, %c136], %108 {strides = array<i32>} : memref<256x216xbf16, #tpu.memory_space<vmem>>, vector<256x8xbf16>,
    %c2_i32 = arith.constant 2 : i32
    %110 = arith.addi %1, %c2_i32 : i32
    %c0_104 = arith.constant 0 : index
    %111 = arith.index_cast %110 : i32 to index
    %c0_105 = arith.constant 0 : index
    %c0_106 = arith.constant 0 : index
    %c0_107 = arith.constant 0 : index
    %112 = vector.load %arg2[%c0_104, %111, %c0_105, %c0_106, %c0_107] : memref<1x10x10x10x8xbf16, #tpu.memory_space<vmem>>, vector<1x4x8x8x8xbf16>
    %113 = vector.shape_cast %112 : vector<1x4x8x8x8xbf16> to vector<4x8x8x8xbf16>
    %114 = vector.shape_cast %113 : vector<4x8x8x8xbf16> to vector<256x8xbf16>
    %c0_108 = arith.constant 0 : index
    %c144 = arith.constant 144 : index
    %115 = vector.load %arg8[%c0_108, %c144] : memref<256x216xbf16, #tpu.memory_space<vmem>>, vector<256x8xbf16>
    tpu.vector_store %arg8[%c0_108, %c144], %114 {strides = array<i32>} : memref<256x216xbf16, #tpu.memory_space<vmem>>, vector<256x8xbf16>,
    %c2_i32_109 = arith.constant 2 : i32
    %116 = arith.addi %1, %c2_i32_109 : i32
    %c0_110 = arith.constant 0 : index
    %117 = arith.index_cast %116 : i32 to index
    %c0_111 = arith.constant 0 : index
    %c1_112 = arith.constant 1 : index
    %c0_113 = arith.constant 0 : index
    %118 = vector.load %arg2[%c0_110, %117, %c0_111, %c1_112, %c0_113] : memref<1x10x10x10x8xbf16, #tpu.memory_space<vmem>>, vector<1x4x8x8x8xbf16>
    %119 = vector.shape_cast %118 : vector<1x4x8x8x8xbf16> to vector<4x8x8x8xbf16>
    %120 = vector.shape_cast %119 : vector<4x8x8x8xbf16> to vector<256x8xbf16>
    %c0_114 = arith.constant 0 : index
    %c152 = arith.constant 152 : index
    %121 = vector.load %arg8[%c0_114, %c152] : memref<256x216xbf16, #tpu.memory_space<vmem>>, vector<256x8xbf16>
    tpu.vector_store %arg8[%c0_114, %c152], %120 {strides = array<i32>} : memref<256x216xbf16, #tpu.memory_space<vmem>>, vector<256x8xbf16>,
    %c2_i32_115 = arith.constant 2 : i32
    %122 = arith.addi %1, %c2_i32_115 : i32
    %c0_116 = arith.constant 0 : index
    %123 = arith.index_cast %122 : i32 to index
    %c0_117 = arith.constant 0 : index
    %c2_118 = arith.constant 2 : index
    %c0_119 = arith.constant 0 : index
    %124 = vector.load %arg2[%c0_116, %123, %c0_117, %c2_118, %c0_119] : memref<1x10x10x10x8xbf16, #tpu.memory_space<vmem>>, vector<1x4x8x8x8xbf16>
    %125 = vector.shape_cast %124 : vector<1x4x8x8x8xbf16> to vector<4x8x8x8xbf16>
    %126 = vector.shape_cast %125 : vector<4x8x8x8xbf16> to vector<256x8xbf16>
    %c0_120 = arith.constant 0 : index
    %c160 = arith.constant 160 : index
    %127 = vector.load %arg8[%c0_120, %c160] : memref<256x216xbf16, #tpu.memory_space<vmem>>, vector<256x8xbf16>
    tpu.vector_store %arg8[%c0_120, %c160], %126 {strides = array<i32>} : memref<256x216xbf16, #tpu.memory_space<vmem>>, vector<256x8xbf16>,
    %c2_i32_121 = arith.constant 2 : i32
    %128 = arith.addi %1, %c2_i32_121 : i32
    %c0_122 = arith.constant 0 : index
    %129 = arith.index_cast %128 : i32 to index
    %c1_123 = arith.constant 1 : index
    %c0_124 = arith.constant 0 : index
    %c0_125 = arith.constant 0 : index
    %130 = vector.load %arg2[%c0_122, %129, %c1_123, %c0_124, %c0_125] : memref<1x10x10x10x8xbf16, #tpu.memory_space<vmem>>, vector<1x4x8x8x8xbf16>
    %131 = vector.shape_cast %130 : vector<1x4x8x8x8xbf16> to vector<4x8x8x8xbf16>
    %132 = vector.shape_cast %131 : vector<4x8x8x8xbf16> to vector<256x8xbf16>
    %c0_126 = arith.constant 0 : index
    %c168 = arith.constant 168 : index
    %133 = vector.load %arg8[%c0_126, %c168] : memref<256x216xbf16, #tpu.memory_space<vmem>>, vector<256x8xbf16>
    tpu.vector_store %arg8[%c0_126, %c168], %132 {strides = array<i32>} : memref<256x216xbf16, #tpu.memory_space<vmem>>, vector<256x8xbf16>,
    %c2_i32_127 = arith.constant 2 : i32
    %134 = arith.addi %1, %c2_i32_127 : i32
    %c0_128 = arith.constant 0 : index
    %135 = arith.index_cast %134 : i32 to index
    %c1_129 = arith.constant 1 : index
    %c1_130 = arith.constant 1 : index
    %c0_131 = arith.constant 0 : index
    %136 = vector.load %arg2[%c0_128, %135, %c1_129, %c1_130, %c0_131] : memref<1x10x10x10x8xbf16, #tpu.memory_space<vmem>>, vector<1x4x8x8x8xbf16>
    %137 = vector.shape_cast %136 : vector<1x4x8x8x8xbf16> to vector<4x8x8x8xbf16>
    %138 = vector.shape_cast %137 : vector<4x8x8x8xbf16> to vector<256x8xbf16>
    %c0_132 = arith.constant 0 : index
    %c176 = arith.constant 176 : index
    %139 = vector.load %arg8[%c0_132, %c176] : memref<256x216xbf16, #tpu.memory_space<vmem>>, vector<256x8xbf16>
    tpu.vector_store %arg8[%c0_132, %c176], %138 {strides = array<i32>} : memref<256x216xbf16, #tpu.memory_space<vmem>>, vector<256x8xbf16>,
    %c2_i32_133 = arith.constant 2 : i32
    %140 = arith.addi %1, %c2_i32_133 : i32
    %c0_134 = arith.constant 0 : index
    %141 = arith.index_cast %140 : i32 to index
    %c1_135 = arith.constant 1 : index
    %c2_136 = arith.constant 2 : index
    %c0_137 = arith.constant 0 : index
    %142 = vector.load %arg2[%c0_134, %141, %c1_135, %c2_136, %c0_137] : memref<1x10x10x10x8xbf16, #tpu.memory_space<vmem>>, vector<1x4x8x8x8xbf16>
    %143 = vector.shape_cast %142 : vector<1x4x8x8x8xbf16> to vector<4x8x8x8xbf16>
    %144 = vector.shape_cast %143 : vector<4x8x8x8xbf16> to vector<256x8xbf16>
    %c0_138 = arith.constant 0 : index
    %c184 = arith.constant 184 : index
    %145 = vector.load %arg8[%c0_138, %c184] : memref<256x216xbf16, #tpu.memory_space<vmem>>, vector<256x8xbf16>
    tpu.vector_store %arg8[%c0_138, %c184], %144 {strides = array<i32>} : memref<256x216xbf16, #tpu.memory_space<vmem>>, vector<256x8xbf16>,
    %c2_i32_139 = arith.constant 2 : i32
    %146 = arith.addi %1, %c2_i32_139 : i32
    %c0_140 = arith.constant 0 : index
    %147 = arith.index_cast %146 : i32 to index
    %c2_141 = arith.constant 2 : index
    %c0_142 = arith.constant 0 : index
    %c0_143 = arith.constant 0 : index
    %148 = vector.load %arg2[%c0_140, %147, %c2_141, %c0_142, %c0_143] : memref<1x10x10x10x8xbf16, #tpu.memory_space<vmem>>, vector<1x4x8x8x8xbf16>
    %149 = vector.shape_cast %148 : vector<1x4x8x8x8xbf16> to vector<4x8x8x8xbf16>
    %150 = vector.shape_cast %149 : vector<4x8x8x8xbf16> to vector<256x8xbf16>
    %c0_144 = arith.constant 0 : index
    %c192 = arith.constant 192 : index
    %151 = vector.load %arg8[%c0_144, %c192] : memref<256x216xbf16, #tpu.memory_space<vmem>>, vector<256x8xbf16>
    tpu.vector_store %arg8[%c0_144, %c192], %150 {strides = array<i32>} : memref<256x216xbf16, #tpu.memory_space<vmem>>, vector<256x8xbf16>,
    %c2_i32_145 = arith.constant 2 : i32
    %152 = arith.addi %1, %c2_i32_145 : i32
    %c0_146 = arith.constant 0 : index
    %153 = arith.index_cast %152 : i32 to index
    %c2_147 = arith.constant 2 : index
    %c1_148 = arith.constant 1 : index
    %c0_149 = arith.constant 0 : index
    %154 = vector.load %arg2[%c0_146, %153, %c2_147, %c1_148, %c0_149] : memref<1x10x10x10x8xbf16, #tpu.memory_space<vmem>>, vector<1x4x8x8x8xbf16>
    %155 = vector.shape_cast %154 : vector<1x4x8x8x8xbf16> to vector<4x8x8x8xbf16>
    %156 = vector.shape_cast %155 : vector<4x8x8x8xbf16> to vector<256x8xbf16>
    %c0_150 = arith.constant 0 : index
    %c200 = arith.constant 200 : index
    %157 = vector.load %arg8[%c0_150, %c200] : memref<256x216xbf16, #tpu.memory_space<vmem>>, vector<256x8xbf16>
    tpu.vector_store %arg8[%c0_150, %c200], %156 {strides = array<i32>} : memref<256x216xbf16, #tpu.memory_space<vmem>>, vector<256x8xbf16>,
    %c2_i32_151 = arith.constant 2 : i32
    %158 = arith.addi %1, %c2_i32_151 : i32
    %c0_152 = arith.constant 0 : index
    %159 = arith.index_cast %158 : i32 to index
    %c2_153 = arith.constant 2 : index
    %c2_154 = arith.constant 2 : index
    %c0_155 = arith.constant 0 : index
    %160 = vector.load %arg2[%c0_152, %159, %c2_153, %c2_154, %c0_155] : memref<1x10x10x10x8xbf16, #tpu.memory_space<vmem>>, vector<1x4x8x8x8xbf16>
    %161 = vector.shape_cast %160 : vector<1x4x8x8x8xbf16> to vector<4x8x8x8xbf16>
    %162 = vector.shape_cast %161 : vector<4x8x8x8xbf16> to vector<256x8xbf16>
    %c0_156 = arith.constant 0 : index
    %c208 = arith.constant 208 : index
    %163 = vector.load %arg8[%c0_156, %c208] : memref<256x216xbf16, #tpu.memory_space<vmem>>, vector<256x8xbf16>
    tpu.vector_store %arg8[%c0_156, %c208], %162 {strides = array<i32>} : memref<256x216xbf16, #tpu.memory_space<vmem>>, vector<256x8xbf16>,
    %c0_157 = arith.constant 0 : index
    %c0_158 = arith.constant 0 : index
    %164 = vector.load %arg8[%c0_157, %c0_158] : memref<256x216xbf16, #tpu.memory_space<vmem>>, vector<256x216xbf16>
    %c0_159 = arith.constant 0 : index
    %c0_160 = arith.constant 0 : index
    %165 = vector.load %arg3[%c0_159, %c0_160] : memref<216x128xbf16, #tpu.memory_space<vmem>>, vector<216x128xbf16>
    %cst = arith.constant dense<0.000000e+00> : vector<256x128xf32>
    %166 = tpu.matmul %164, %165, %cst {dimension_numbers = #tpu.dot_dimension_numbers<[1], [0], [0], [1], [0, 0, 1, 1], [], []>} : vector<256x216xbf16>, vector<216x128xbf16>, vector<256x128xf32> -> vector<256x128xf32>
    %cst_161 = arith.constant dense<0.000000e+00> : vector<128xf32>
    %167 = vector.multi_reduction <add>, %166, %cst_161 [0] : vector<256x128xf32> to vector<128xf32>
    %168 = vector.shape_cast %167 : vector<128xf32> to vector<1x128xf32>
    %c0_162 = arith.constant 0 : index
    %c0_163 = arith.constant 0 : index
    %c0_164 = arith.constant 0 : index
    %c0_165 = arith.constant 0 : index
    %169 = vector.load %arg6[%c0_162, %c0_163, %c0_164, %c0_165] : memref<1x1x1x128xf32, #tpu.memory_space<vmem>>, vector<1x1x1x128xf32>
    %170 = vector.shape_cast %169 : vector<1x1x1x128xf32> to vector<1x128xf32>
    %171 = vector.shape_cast %168 : vector<1x128xf32> to vector<1x1x1x128xf32>
    tpu.vector_store %arg6[%c0_162, %c0_163, %c0_164, %c0_165], %171 {strides = array<i32>} : memref<1x1x1x128xf32, #tpu.memory_space<vmem>>, vector<1x1x1x128xf32>,
    %172 = arith.mulf %166, %166 : vector<256x128xf32>
    %cst_166 = arith.constant dense<0.000000e+00> : vector<128xf32>
    %173 = vector.multi_reduction <add>, %172, %cst_166 [0] : vector<256x128xf32> to vector<128xf32>
    %174 = vector.shape_cast %173 : vector<128xf32> to vector<1x128xf32>
    %c0_167 = arith.constant 0 : index
    %c0_168 = arith.constant 0 : index
    %c0_169 = arith.constant 0 : index
    %c0_170 = arith.constant 0 : index
    %175 = vector.load %arg7[%c0_167, %c0_168, %c0_169, %c0_170] : memref<1x1x1x128xf32, #tpu.memory_space<vmem>>, vector<1x1x1x128xf32>
    %176 = vector.shape_cast %175 : vector<1x1x1x128xf32> to vector<1x128xf32>
    %177 = vector.shape_cast %174 : vector<1x128xf32> to vector<1x1x1x128xf32>
    tpu.vector_store %arg7[%c0_167, %c0_168, %c0_169, %c0_170], %177 {strides = array<i32>} : memref<1x1x1x128xf32, #tpu.memory_space<vmem>>, vector<1x1x1x128xf32>,
    %c0_171 = arith.constant 0 : index
    %c0_172 = arith.constant 0 : index
    %178 = vector.load %arg4[%c0_171, %c0_172] : memref<1x128xf32, #tpu.memory_space<vmem>>, vector<1x128xf32>
    %179 = vector.broadcast %178 : vector<1x128xf32> to vector<256x128xf32>
    %180 = arith.addf %166, %179 : vector<256x128xf32>
    %181 = arith.truncf %180 : vector<256x128xf32> to vector<256x128xbf16>
    %c0_173 = arith.constant 0 : index
    %c0_174 = arith.constant 0 : index
    %c0_175 = arith.constant 0 : index
    %182 = vector.load %arg5[%c0_173, %c0_174, %c0_175] : memref<1x256x128xbf16, #tpu.memory_space<vmem>>, vector<1x256x128xbf16>
    %183 = vector.shape_cast %182 : vector<1x256x128xbf16> to vector<256x128xbf16>
    %184 = vector.shape_cast %181 : vector<256x128xbf16> to vector<1x256x128xbf16>
    tpu.vector_store %arg5[%c0_173, %c0_174, %c0_175], %184 {strides = array<i32>} : memref<1x256x128xbf16, #tpu.memory_space<vmem>>, vector<1x256x128xbf16>,
    return
  }
  func.func @transform_0(%arg0: i32, %arg1: i32) -> (i32, i32, i32, i32, i32) {
    %c0_i32 = arith.constant 0 : i32
    %c0_i32_0 = arith.constant 0 : i32
    %c0_i32_1 = arith.constant 0 : i32
    %c0_i32_2 = arith.constant 0 : i32
    %c0_i32_3 = arith.constant 0 : i32
    return %arg0, %c0_i32, %c0_i32_0, %c0_i32_1, %c0_i32_2 : i32, i32, i32, i32, i32
  }
  func.func @transform_1(%arg0: i32, %arg1: i32) -> (i32, i32) {
    %c0_i32 = arith.constant 0 : i32
    %c0_i32_0 = arith.constant 0 : i32
    %c0_i32_1 = arith.constant 0 : i32
    return %c0_i32, %c0_i32_0 : i32, i32
  }
  func.func @transform_2(%arg0: i32, %arg1: i32) -> (i32, i32) {
    %c0_i32 = arith.constant 0 : i32
    %c0_i32_0 = arith.constant 0 : i32
    %c0_i32_1 = arith.constant 0 : i32
    return %c0_i32, %c0_i32_0 : i32, i32
  }
  func.func @transform_3(%arg0: i32, %arg1: i32) -> (i32, i32, i32) {
    %c0_i32 = arith.constant 0 : i32
    %c0_i32_0 = arith.constant 0 : i32
    return %arg0, %arg1, %c0_i32 : i32, i32, i32
  }
  func.func @transform_4(%arg0: i32, %arg1: i32) -> (i32, i32, i32, i32) {
    %c0_i32 = arith.constant 0 : i32
    %c0_i32_0 = arith.constant 0 : i32
    %c0_i32_1 = arith.constant 0 : i32
    return %arg0, %arg1, %c0_i32, %c0_i32_0 : i32, i32, i32, i32
  }
  func.func @transform_5(%arg0: i32, %arg1: i32) -> (i32, i32, i32, i32) {
    %c0_i32 = arith.constant 0 : i32
    %c0_i32_0 = arith.constant 0 : i32
    %c0_i32_1 = arith.constant 0 : i32
    return %arg0, %arg1, %c0_i32, %c0_i32_0 : i32, i32, i32, i32
  }
}

module attributes {stable_mosaic.version = 11 : i64} {
  func.func @kernel(%arg0: i32, %arg1: i32, %arg2: memref<1x128xf32, #tpu.memory_space<vmem>>, %arg3: memref<1x128xf32, #tpu.memory_space<vmem>>, %arg4: memref<1x2x8x8x128xbf16, #tpu.memory_space<vmem>>, %arg5: memref<1x1x4x4x128xf32, #tpu.memory_space<vmem>>) attributes {dimension_semantics = [#tpu.dimension_semantics<parallel>, #tpu.dimension_semantics<parallel>], iteration_bounds = array<i64: 2, 4>, scalar_prefetch = 0 : i64, scratch_operands = 0 : i64, tpu.core_type = #tpu.core_type<tc>, window_params = [{pipeline_mode = #tpu.pipeline_mode<synchronous>, transform_indices = @transform_0, window_bounds = array<i64: 1, 128>}, {pipeline_mode = #tpu.pipeline_mode<synchronous>, transform_indices = @transform_1, window_bounds = array<i64: 1, 128>}, {transform_indices = @transform_2, window_bounds = array<i64: 1, 2, 8, 8, 128>}, {transform_indices = @transform_3, window_bounds = array<i64: 1, 1, 4, 4, 128>}]} {
    %c0 = arith.constant 0 : index
    %c0_0 = arith.constant 0 : index
    %c0_1 = arith.constant 0 : index
    %c0_2 = arith.constant 0 : index
    %c0_3 = arith.constant 0 : index
    %0 = vector.load %arg4[%c0, %c0_0, %c0_1, %c0_2, %c0_3] : memref<1x2x8x8x128xbf16, #tpu.memory_space<vmem>>, vector<1x2x8x8x128xbf16>
    %1 = vector.shape_cast %0 : vector<1x2x8x8x128xbf16> to vector<2x8x8x128xbf16>
    %2 = arith.extf %1 : vector<2x8x8x128xbf16> to vector<2x8x8x128xf32>
    %c0_4 = arith.constant 0 : index
    %c0_5 = arith.constant 0 : index
    %3 = vector.load %arg2[%c0_4, %c0_5] : memref<1x128xf32, #tpu.memory_space<vmem>>, vector<1x128xf32>
    %4 = vector.shape_cast %3 : vector<1x128xf32> to vector<1x1x1x128xf32>
    %5 = vector.broadcast %4 : vector<1x1x1x128xf32> to vector<2x8x8x128xf32>
    %6 = arith.mulf %2, %5 : vector<2x8x8x128xf32>
    %c0_6 = arith.constant 0 : index
    %c0_7 = arith.constant 0 : index
    %7 = vector.load %arg3[%c0_6, %c0_7] : memref<1x128xf32, #tpu.memory_space<vmem>>, vector<1x128xf32>
    %8 = vector.shape_cast %7 : vector<1x128xf32> to vector<1x1x1x128xf32>
    %9 = vector.broadcast %8 : vector<1x1x1x128xf32> to vector<2x8x8x128xf32>
    %10 = arith.addf %6, %9 : vector<2x8x8x128xf32>
    %cst = arith.constant 0.000000e+00 : f32
    %11 = vector.broadcast %cst : f32 to vector<2x8x8x128xf32>
    %12 = arith.maximumf %10, %11 : vector<2x8x8x128xf32>
    %cst_8 = arith.constant dense<0xFF800000> : vector<8x8x128xf32>
    %13 = vector.multi_reduction <maximumf>, %12, %cst_8 [0] : vector<2x8x8x128xf32> to vector<8x8x128xf32>
    %14 = vector.shape_cast %13 : vector<8x8x128xf32> to vector<4x2x8x128xf32>
    %cst_9 = arith.constant dense<0xFF800000> : vector<4x8x128xf32>
    %15 = vector.multi_reduction <maximumf>, %14, %cst_9 [1] : vector<4x2x8x128xf32> to vector<4x8x128xf32>
    %16 = vector.shape_cast %15 : vector<4x8x128xf32> to vector<4x4x2x128xf32>
    %cst_10 = arith.constant dense<0xFF800000> : vector<4x4x128xf32>
    %17 = vector.multi_reduction <maximumf>, %16, %cst_10 [2] : vector<4x4x2x128xf32> to vector<4x4x128xf32>
    %c0_11 = arith.constant 0 : index
    %c0_12 = arith.constant 0 : index
    %c0_13 = arith.constant 0 : index
    %c0_14 = arith.constant 0 : index
    %c0_15 = arith.constant 0 : index
    %18 = vector.load %arg5[%c0_11, %c0_12, %c0_13, %c0_14, %c0_15] : memref<1x1x4x4x128xf32, #tpu.memory_space<vmem>>, vector<1x1x4x4x128xf32>
    %19 = vector.shape_cast %18 : vector<1x1x4x4x128xf32> to vector<4x4x128xf32>
    %20 = vector.shape_cast %17 : vector<4x4x128xf32> to vector<1x1x4x4x128xf32>
    tpu.vector_store %arg5[%c0_11, %c0_12, %c0_13, %c0_14, %c0_15], %20 {strides = array<i32>} : memref<1x1x4x4x128xf32, #tpu.memory_space<vmem>>, vector<1x1x4x4x128xf32>,
    return
  }
  func.func @transform_0(%arg0: i32, %arg1: i32) -> (i32, i32) {
    %c0_i32 = arith.constant 0 : i32
    %c0_i32_0 = arith.constant 0 : i32
    %c0_i32_1 = arith.constant 0 : i32
    return %c0_i32, %c0_i32_0 : i32, i32
  }
  func.func @transform_1(%arg0: i32, %arg1: i32) -> (i32, i32) {
    %c0_i32 = arith.constant 0 : i32
    %c0_i32_0 = arith.constant 0 : i32
    %c0_i32_1 = arith.constant 0 : i32
    return %c0_i32, %c0_i32_0 : i32, i32
  }
  func.func @transform_2(%arg0: i32, %arg1: i32) -> (i32, i32, i32, i32, i32) {
    %c0_i32 = arith.constant 0 : i32
    %c0_i32_0 = arith.constant 0 : i32
    %c0_i32_1 = arith.constant 0 : i32
    %c0_i32_2 = arith.constant 0 : i32
    return %arg0, %arg1, %c0_i32, %c0_i32_0, %c0_i32_1 : i32, i32, i32, i32, i32
  }
  func.func @transform_3(%arg0: i32, %arg1: i32) -> (i32, i32, i32, i32, i32) {
    %c0_i32 = arith.constant 0 : i32
    %c0_i32_0 = arith.constant 0 : i32
    %c0_i32_1 = arith.constant 0 : i32
    %c0_i32_2 = arith.constant 0 : i32
    return %arg0, %arg1, %c0_i32, %c0_i32_0, %c0_i32_1 : i32, i32, i32, i32, i32
  }
}

</mosaic_0001>

<llo_original>
// kernel: unit_forward.3
$region0: #{unit_forward.3}
  #allocation0 [shape = 'u32[]', space=smem, size = 0x4, offset = 0x4, fixed_abs, tag = 'smem constant byte address 0x4 - core index']
  #allocation1 [shape = 'u32[144,128]{1,0:T(1,128)}', space=vmem, size = 0x12000, scoped, tag = 'internal scratch']
  %s0 = inlined_call_operand.vmem [shape: f32[1,128], index: 0, kind: input, shape index: {}]
  %s1 = inlined_call_operand.vmem [shape: f32[1,128], index: 1, kind: input, shape index: {}]
  %s2 = inlined_call_operand.vmem [shape: bf16[2,8,8,8,128], index: 2, kind: input, shape index: {}]
  %s3 = inlined_call_operand.vmem [shape: f32[2,4,4,4,128], index: 3, kind: output, shape index: {}]
  %s4 = sld [smem:[#allocation0]]
  $region45: #{unit_forward.3} parent=0
    _
  %s6 = ssub.s32 1, %s4
  %s7 = scalar_select 0, %s6, %s4
  loop: start=0, step=1, limit=10
  $region2: #{unit_forward.3} parent=0 // loop_pre_header
    _
  $region3: #{unit_forward.3} parent=0 // loop_header
    %s9 = sphi 0, %s13
    %p10 = scmp.ge.s32.totalorder %s9, 10
    %s16 = sphi 0, %s28
    %s17 = sphi 0, %s24
    %s18 = sphi 0, %s16
    %s19 = sphi 0, %s17
    %s20 = sphi 0, %s18
    %s21 = sphi 0, %s19
    %s29 = sphi 0, %s29
    %s31 = sphi 0, %s29
    %s32 = sphi 0, %s31
    %s46 = sphi 0, %s32
    %s50 = sphi 0, %s50
    %s52 = sphi 0, %s50
    %s53 = sphi 0, %s52
    %s67 = sphi 0, %s53
    %s75 = sphi 0, %s77
    %s78 = sphi 0, %s75
    %s79 = sphi 0, %s78
    %s95 = sphi 0, %s79
    %s103 = sphi 0, %s105
    %s106 = sphi 0, %s103
    %s107 = sphi 0, %s106
    %s123 = sphi 0, %s107
  $region4: #{unit_forward.3} parent=0 // loop_header_branch
    %12 = sbr.rel (%p10) target = $region8
  $region5: #{unit_forward.3} parent=0 // loop_body
    %s14 = ssub.s32 %s9, 1
    %s15 = ssub.s32 %s9, 2
    %s22 = sadd.s32 1, %s17
    %p23 = scmp.ge.s32.totalorder %s22, 4
    %s24 = scalar_select %p23, 0, %s22
    %s25 = sadd.s32 1, %s16
    %s26 = scalar_select %p23, %s25, %s16
    %p27 = scmp.ge.s32.totalorder %s26, 2
    %s28 = scalar_select %p27, 0, %s26
    %s30 = sadd.s32 %s29, 1
    %p33 = scmp.eq.s32.totalorder %s9, 7
    %p34 = scmp.ne.s32.totalorder %s29, %s31
    %p35 = scmp.eq.s32.totalorder %s9, 0
    %p36 = por %p34, %p35
    %p37 = scmp.ne.s32.totalorder %s29, %s31
    %p38 = scmp.eq.s32.totalorder %s14, 7
    %p39 = por %p37, %p38
    %p40 = scmp.ne.s32.totalorder %s31, %s32
    %p41 = scmp.eq.s32.totalorder %s14, 0
    %p42 = por %p40, %p41
    %p43 = scmp.ne.s32.totalorder %s31, %s32
    %p44 = scmp.eq.s32.totalorder %s15, 7
    %p45 = por %p43, %p44
    %p47 = scmp.ne.s32.totalorder %s32, %s46
    %p48 = scmp.eq.s32.totalorder %s15, 0
    %p49 = por %p47, %p48
    %s51 = sadd.s32 %s50, 1
    %p54 = scmp.eq.s32.totalorder %s9, 7
    %p55 = scmp.ne.s32.totalorder %s50, %s52
    %p56 = scmp.eq.s32.totalorder %s9, 0
    %p57 = por %p55, %p56
    %p58 = scmp.ne.s32.totalorder %s50, %s52
    %p59 = scmp.eq.s32.totalorder %s14, 7
    %p60 = por %p58, %p59
    %p61 = scmp.ne.s32.totalorder %s52, %s53
    %p62 = scmp.eq.s32.totalorder %s14, 0
    %p63 = por %p61, %p62
    %p64 = scmp.ne.s32.totalorder %s52, %s53
    %p65 = scmp.eq.s32.totalorder %s15, 7
    %p66 = por %p64, %p65
    %p68 = scmp.ne.s32.totalorder %s53, %s67
    %p69 = scmp.eq.s32.totalorder %s15, 0
    %p70 = por %p68, %p69
    %s71 = ssub.s32 %s16, %s28
    %s72 = ssub.s32 %s17, %s24
    %s73 = sor.u32 %s71, %s72
    %p74 = scmp.eq.s32.totalorder %s73, 0
    %s76 = sadd.s32 %s75, 1
    %s77 = scalar_select %p74, %s75, %s76
    %p80 = pneg %p74
    %p81 = scmp.eq.s32.totalorder %s9, 7
    %p82 = por %p80, %p81
    %p83 = scmp.ne.s32.totalorder %s75, %s78
    %p84 = scmp.eq.s32.totalorder %s9, 0
    %p85 = por %p83, %p84
    %p86 = scmp.ne.s32.totalorder %s75, %s78
    %p87 = scmp.eq.s32.totalorder %s14, 7
    %p88 = por %p86, %p87
    %p89 = scmp.ne.s32.totalorder %s78, %s79
    %p90 = scmp.eq.s32.totalorder %s14, 0
    %p91 = por %p89, %p90
    %p92 = scmp.ne.s32.totalorder %s78, %s79
    %p93 = scmp.eq.s32.totalorder %s15, 7
    %p94 = por %p92, %p93
    %p96 = scmp.ne.s32.totalorder %s79, %s95
    %p97 = scmp.eq.s32.totalorder %s15, 0
    %p98 = por %p96, %p97
    %s99 = ssub.s32 %s16, %s28
    %s100 = ssub.s32 %s17, %s24
    %s101 = sor.u32 %s99, %s100
    %p102 = scmp.eq.s32.totalorder %s101, 0
    %s104 = sadd.s32 %s103, 1
    %s105 = scalar_select %p102, %s103, %s104
    %p108 = pneg %p102
    %p109 = scmp.eq.s32.totalorder %s9, 7
    %p110 = por %p108, %p109
    %p111 = scmp.ne.s32.totalorder %s103, %s106
    %p112 = scmp.eq.s32.totalorder %s9, 0
    %p113 = por %p111, %p112
    %p114 = scmp.ne.s32.totalorder %s103, %s106
    %p115 = scmp.eq.s32.totalorder %s14, 7
    %p116 = por %p114, %p115
    %p117 = scmp.ne.s32.totalorder %s106, %s107
    %p118 = scmp.eq.s32.totalorder %s14, 0
    %p119 = por %p117, %p118
    %p120 = scmp.ne.s32.totalorder %s106, %s107
    %p121 = scmp.eq.s32.totalorder %s15, 7
    %p122 = por %p120, %p121
    %p124 = scmp.ne.s32.totalorder %s107, %s123
    %p125 = scmp.eq.s32.totalorder %s15, 0
    %p126 = por %p124, %p125
    %p127 = scmp.le.s32.totalorder 1, %s9
    %p128 = scmp.lt.s32.totalorder %s9, 9
    %p129 = pnand %p127, %p128
    %p130 = pneg %p129
    // Predicated region
    $region9: #{unit_forward.3} parent=5 // pred_check
      _
    $region10: #{unit_forward.3} parent=5 // pred_check_branch
      %132 = sbr.rel (%p129) target = $region12
    $region11: #{unit_forward.3} parent=5 // pred_region
      %s133 = ssub.s32 %s9, 1
      // Predicated region
      $region13: #{unit_forward.3} parent=11 // pred_check
        %p134 = pneg %p42
      $region14: #{unit_forward.3} parent=11 // pred_check_branch
        %136 = sbr.rel (%p134) target = $region16
      $region15: #{unit_forward.3} parent=11 // pred_region
        _
      $region16: #{unit_forward.3} parent=11 // pred_fallthru
        _
      // Predicated region
      $region17: #{unit_forward.3} parent=11 // pred_check
        %p137 = pneg %p63
      $region18: #{unit_forward.3} parent=11 // pred_check_branch
        %139 = sbr.rel (%p137) target = $region20
      $region19: #{unit_forward.3} parent=11 // pred_region
        _
      $region20: #{unit_forward.3} parent=11 // pred_fallthru
        _
    $region12: #{unit_forward.3} parent=5 // pred_fallthru
      _
    %p140 = scmp.lt.s32.totalorder %s9, 8
    // Predicated region
    $region21: #{unit_forward.3} parent=5 // pred_check
      %p141 = pneg %p140
    $region22: #{unit_forward.3} parent=5 // pred_check_branch
      %143 = sbr.rel (%p141) target = $region24
    $region23: #{unit_forward.3} parent=5 // pred_region
      // Predicated region
      $region25: #{unit_forward.3} parent=23 // pred_check
        %p144 = pneg %p85
      $region26: #{unit_forward.3} parent=23 // pred_check_branch
        %146 = sbr.rel (%p144) target = $region28
      $region27: #{unit_forward.3} parent=23 // pred_region
        %s147 = smul.u32 2, %s17
        %p148 = scmp.lt.s32.totalorder %s16, 1
        %s149 = scalar_select %p148, %s16, 1
        %p150 = scmp.lt.s32.totalorder %s147, 7
        %s151 = scalar_select %p150, %s147, 7
        %s152 = smul.addr %s151, 8
        %s153 = smul.addr %s149, 64
        %s154 = sadd.s32 %s152, %s153
        %s155 = smul.addr %s154, 4
        %s156 = scalar_lea.vmem %s2, %s155
        %s157 = smul.u32 2, %s17
      $region28: #{unit_forward.3} parent=23 // pred_fallthru
        _
    $region24: #{unit_forward.3} parent=5 // pred_fallthru
      _
    %p158 = scmp.le.s32.totalorder 1, %s9
    %p159 = scmp.lt.s32.totalorder %s9, 9
    %p160 = pnand %p158, %p159
    %p161 = pneg %p160
    // Predicated region
    $region29: #{unit_forward.3} parent=5 // pred_check
      _
    $region30: #{unit_forward.3} parent=5 // pred_check_branch
      %163 = sbr.rel (%p160) target = $region32
    $region31: #{unit_forward.3} parent=5 // pred_region
      %s164 = ssub.s32 %s9, 1
      %p165 = pneg %p42
      %p166 = pneg %p39
      %p167 = pneg %p63
      %p168 = pneg %p60
      %s169 = smul.u32 2, %s19
      %p170 = scmp.lt.s32.totalorder %s18, 1
      %s171 = scalar_select %p170, %s18, 1
      %p172 = scmp.lt.s32.totalorder %s169, 7
      %s173 = scalar_select %p172, %s169, 7
      %s174 = smul.addr %s173, 8
      %s175 = smul.addr %s171, 64
      %s176 = sadd.s32 %s174, %s175
      %s177 = smul.addr %s176, 4
      %s178 = scalar_lea.vmem %s2, %s177
      %p179 = pneg %p91
      %p180 = pneg %p88
      %p181 = pneg %p119
      %p182 = pneg %p116
      %p183 = scmp.lt.s32.totalorder %s18, 1
      %s184 = scalar_select %p183, %s18, 1
      %p185 = scmp.lt.s32.totalorder %s19, 3
      %s186 = scalar_select %p185, %s19, 3
      %s187 = smul.addr %s186, 4
      %s188 = smul.addr %s184, 16
      %s189 = sadd.s32 %s187, %s188
      %s190 = smul.addr %s189, 4
      %s191 = scalar_lea.vmem %s3, %s190
      %s192 = smul.u32 2, %s19
      %p193 = scmp.lt.s32.totalorder %s18, 1
      %s194 = scalar_select %p193, %s18, 1
      %p195 = scmp.lt.s32.totalorder %s192, 7
      %s196 = scalar_select %p195, %s192, 7
      %s197 = smul.addr %s196, 8
      %s198 = smul.addr %s194, 64
      %s199 = sadd.s32 %s197, %s198
      %s200 = smul.addr %s199, 4
      %s201 = scalar_lea.vmem %s2, %s200
      %s202 = smul.u32 2, %s19
      %p203 = scmp.lt.s32.totalorder %s18, 1
      %s204 = scalar_select %p203, %s18, 1
      %p205 = scmp.lt.s32.totalorder %s19, 3
      %s206 = scalar_select %p205, %s19, 3
      %s207 = smul.addr %s206, 4
      %s208 = smul.addr %s204, 16
      %s209 = sadd.s32 %s207, %s208
      %s210 = smul.addr %s209, 4
      %s211 = scalar_lea.vmem %s3, %s210
      %v212 = vld [vmem:[%s201] sm:$0xf]
      %v213 = vld [vmem:[%s201 + $0x4] sm:$0xf]
      %v214 = vld [vmem:[%s201 + $0x8] sm:$0xf]
      %v215 = vld [vmem:[%s201 + $0xc] sm:$0xf]
      %v216 = vld [vmem:[%s201 + $0x10] sm:$0xf]
      %v217 = vld [vmem:[%s201 + $0x14] sm:$0xf]
      %v218 = vld [vmem:[%s201 + $0x18] sm:$0xf]
      %v219 = vld [vmem:[%s201 + $0x1c] sm:$0xf]
      %v220 = vld [vmem:[%s201 + $0x20] sm:$0xf]
      %v221 = vld [vmem:[%s201 + $0x24] sm:$0xf]
      %v222 = vld [vmem:[%s201 + $0x28] sm:$0xf]
      %v223 = vld [vmem:[%s201 + $0x2c] sm:$0xf]
      %v224 = vld [vmem:[%s201 + $0x30] sm:$0xf]
      %v225 = vld [vmem:[%s201 + $0x34] sm:$0xf]
      %v226 = vld [vmem:[%s201 + $0x38] sm:$0xf]
      %v227 = vld [vmem:[%s201 + $0x3c] sm:$0xf]
      %v228 = vunpack.c.l.bf16 %v212
      %v229 = vunpack.c.l.bf16 %v213
      %v230 = vunpack.c.l.bf16 %v214
      %v231 = vunpack.c.l.bf16 %v215
      %v232 = vunpack.c.l.bf16 %v216
      %v233 = vunpack.c.l.bf16 %v217
      %v234 = vunpack.c.l.bf16 %v218
      %v235 = vunpack.c.l.bf16 %v219
      %v236 = vunpack.c.l.bf16 %v220
      %v237 = vunpack.c.l.bf16 %v221
      %v238 = vunpack.c.l.bf16 %v222
      %v239 = vunpack.c.l.bf16 %v223
      %v240 = vunpack.c.l.bf16 %v224
      %v241 = vunpack.c.l.bf16 %v225
      %v242 = vunpack.c.l.bf16 %v226
      %v243 = vunpack.c.l.bf16 %v227
      %v244 = vld [vmem:[%s0] sm:$0x1]
      %v246 = vlaneseq
      %v247 = vshrl.u32 %v246, 7
      %v248 = vsub.s32 0, %v247
      %v249 = vrot.slane %v244, %v248
      %v251 = vmul.f32 %v228, %v249
      %v252 = vmul.f32 %v229, %v249
      %v253 = vmul.f32 %v230, %v249
      %v254 = vmul.f32 %v231, %v249
      %v255 = vmul.f32 %v232, %v249
      %v256 = vmul.f32 %v233, %v249
      %v257 = vmul.f32 %v234, %v249
      %v258 = vmul.f32 %v235, %v249
      %v259 = vmul.f32 %v236, %v249
      %v260 = vmul.f32 %v237, %v249
      %v261 = vmul.f32 %v238, %v249
      %v262 = vmul.f32 %v239, %v249
      %v263 = vmul.f32 %v240, %v249
      %v264 = vmul.f32 %v241, %v249
      %v265 = vmul.f32 %v242, %v249
      %v266 = vmul.f32 %v243, %v249
      %v267 = vld [vmem:[%s1] sm:$0x1]
      %v269 = vlaneseq
      %v270 = vshrl.u32 %v269, 7
      %v271 = vsub.s32 0, %v270
      %v272 = vrot.slane %v267, %v271
      %v274 = vadd.f32 %v251, %v272
      %v275 = vadd.f32 %v252, %v272
      %v276 = vadd.f32 %v253, %v272
      %v277 = vadd.f32 %v254, %v272
      %v278 = vadd.f32 %v255, %v272
      %v279 = vadd.f32 %v256, %v272
      %v280 = vadd.f32 %v257, %v272
      %v281 = vadd.f32 %v258, %v272
      %v282 = vadd.f32 %v259, %v272
      %v283 = vadd.f32 %v260, %v272
      %v284 = vadd.f32 %v261, %v272
      %v285 = vadd.f32 %v262, %v272
      %v286 = vadd.f32 %v263, %v272
      %v287 = vadd.f32 %v264, %v272
      %v288 = vadd.f32 %v265, %v272
      %v289 = vadd.f32 %v266, %v272
      %v290 = vmax.f32 %v274, 0.0
      %v291 = vmax.f32 %v275, 0.0
      %v292 = vmax.f32 %v276, 0.0
      %v293 = vmax.f32 %v277, 0.0
      %v294 = vmax.f32 %v278, 0.0
      %v295 = vmax.f32 %v279, 0.0
      %v296 = vmax.f32 %v280, 0.0
      %v297 = vmax.f32 %v281, 0.0
      %v298 = vmax.f32 %v282, 0.0
      %v299 = vmax.f32 %v283, 0.0
      %v300 = vmax.f32 %v284, 0.0
      %v301 = vmax.f32 %v285, 0.0
      %v302 = vmax.f32 %v286, 0.0
      %v303 = vmax.f32 %v287, 0.0
      %v304 = vmax.f32 %v288, 0.0
      %v305 = vmax.f32 %v289, 0.0
      %v306 = vmax.f32 %v290, %v298
      %v307 = vmax.f32 %v291, %v299
      %v308 = vmax.f32 %v292, %v300
      %v309 = vmax.f32 %v293, %v301
      %v310 = vmax.f32 %v294, %v302
      %v311 = vmax.f32 %v295, %v303
      %v312 = vmax.f32 %v296, %v304
      %v313 = vmax.f32 %v297, %v305
      %v314 = vmax.f32 %v306, %v307
      %v315 = vmax.f32 %v308, %v309
      %v316 = vmax.f32 %v310, %v311
      %v317 = vmax.f32 %v312, %v313
      %v322 = vcombine.high %v314, %v314
      %v324 = vunpack.c.l.s4 1983009808
      %v325 = vunpack.c.0.s8 %v324
      %v326 = vlaneseq
      %v327 = vshrl.u32 %v326, 7
      %v328 = vsub.s32 %v325, %v327
      %v329 = vrot.slane %v314, %v328
      %v331 = vunpack.c.l.s4 1983009808
      %v332 = vunpack.c.0.s8 %v331
      %v333 = vlaneseq
      %v334 = vshrl.u32 %v333, 7
      %v335 = vsub.s32 %v332, %v334
      %v336 = vrot.slane %v322, %v335
      %v337 = vcombine.high %v329, %v329
      %v338 = vcombine.high %v336, %v336
      %v339 = vcombine.high %v315, %v315
      %v341 = vunpack.c.l.s4 1983009808
      %v342 = vunpack.c.0.s8 %v341
      %v343 = vlaneseq
      %v344 = vshrl.u32 %v343, 7
      %v345 = vsub.s32 %v342, %v344
      %v346 = vrot.slane %v315, %v345
      %v348 = vunpack.c.l.s4 1983009808
      %v349 = vunpack.c.0.s8 %v348
      %v350 = vlaneseq
      %v351 = vshrl.u32 %v350, 7
      %v352 = vsub.s32 %v349, %v351
      %v353 = vrot.slane %v339, %v352
      %v354 = vcombine.high %v346, %v346
      %v355 = vcombine.high %v353, %v353
      %v356 = vcombine.high %v316, %v316
      %v358 = vunpack.c.l.s4 1983009808
      %v359 = vunpack.c.0.s8 %v358
      %v360 = vlaneseq
      %v361 = vshrl.u32 %v360, 7
      %v362 = vsub.s32 %v359, %v361
      %v363 = vrot.slane %v316, %v362
      %v365 = vunpack.c.l.s4 1983009808
      %v366 = vunpack.c.0.s8 %v365
      %v367 = vlaneseq
      %v368 = vshrl.u32 %v367, 7
      %v369 = vsub.s32 %v366, %v368
      %v370 = vrot.slane %v356, %v369
      %v371 = vcombine.high %v363, %v363
      %v372 = vcombine.high %v370, %v370
      %v373 = vcombine.high %v317, %v317
      %v375 = vunpack.c.l.s4 1983009808
      %v376 = vunpack.c.0.s8 %v375
      %v377 = vlaneseq
      %v378 = vshrl.u32 %v377, 7
      %v379 = vsub.s32 %v376, %v378
      %v380 = vrot.slane %v317, %v379
      %v382 = vunpack.c.l.s4 1983009808
      %v383 = vunpack.c.0.s8 %v382
      %v384 = vlaneseq
      %v385 = vshrl.u32 %v384, 7
      %v386 = vsub.s32 %v383, %v385
      %v387 = vrot.slane %v373, %v386
      %v388 = vcombine.high %v380, %v380
      %v389 = vcombine.high %v387, %v387
      %vm406 = vcmask 1041408
      %v407 = vsel %vm406, %v329, -inf
      %v408 = vrot.slane %v407, 4
      %v409 = vmax.f32 %v407, %v408
      %v410 = vrot.slane %v409, 2
      %v411 = vmax.f32 %v409, %v410
      %v412 = vrot.slane %v411, 1
      %v413 = vmax.f32 %v411, %v412
      %v414 = vsel %vm406, %v337, -inf
      %v415 = vrot.slane %v414, 4
      %v416 = vmax.f32 %v414, %v415
      %v417 = vrot.slane %v416, 2
      %v418 = vmax.f32 %v416, %v417
      %v419 = vrot.slane %v418, 1
      %v420 = vmax.f32 %v418, %v419
      %v421 = vsel %vm406, %v336, -inf
      %v422 = vrot.slane %v421, 4
      %v423 = vmax.f32 %v421, %v422
      %v424 = vrot.slane %v423, 2
      %v425 = vmax.f32 %v423, %v424
      %v426 = vrot.slane %v425, 1
      %v427 = vmax.f32 %v425, %v426
      %v428 = vsel %vm406, %v338, -inf
      %v429 = vrot.slane %v428, 4
      %v430 = vmax.f32 %v428, %v429
      %v431 = vrot.slane %v430, 2
      %v432 = vmax.f32 %v430, %v431
      %v433 = vrot.slane %v432, 1
      %v434 = vmax.f32 %v432, %v433
      %v435 = vsel %vm406, %v346, -inf
      %v436 = vrot.slane %v435, 4
      %v437 = vmax.f32 %v435, %v436
      %v438 = vrot.slane %v437, 2
      %v439 = vmax.f32 %v437, %v438
      %v440 = vrot.slane %v439, 1
      %v441 = vmax.f32 %v439, %v440
      %v442 = vsel %vm406, %v354, -inf
      %v443 = vrot.slane %v442, 4
      %v444 = vmax.f32 %v442, %v443
      %v445 = vrot.slane %v444, 2
      %v446 = vmax.f32 %v444, %v445
      %v447 = vrot.slane %v446, 1
      %v448 = vmax.f32 %v446, %v447
      %v449 = vsel %vm406, %v353, -inf
      %v450 = vrot.slane %v449, 4
      %v451 = vmax.f32 %v449, %v450
      %v452 = vrot.slane %v451, 2
      %v453 = vmax.f32 %v451, %v452
      %v454 = vrot.slane %v453, 1
      %v455 = vmax.f32 %v453, %v454
      %v456 = vsel %vm406, %v355, -inf
      %v457 = vrot.slane %v456, 4
      %v458 = vmax.f32 %v456, %v457
      %v459 = vrot.slane %v458, 2
      %v460 = vmax.f32 %v458, %v459
      %v461 = vrot.slane %v460, 1
      %v462 = vmax.f32 %v460, %v461
      %v463 = vsel %vm406, %v363, -inf
      %v464 = vrot.slane %v463, 4
      %v465 = vmax.f32 %v463, %v464
      %v466 = vrot.slane %v465, 2
      %v467 = vmax.f32 %v465, %v466
      %v468 = vrot.slane %v467, 1
      %v469 = vmax.f32 %v467, %v468
      %v470 = vsel %vm406, %v371, -inf
      %v471 = vrot.slane %v470, 4
      %v472 = vmax.f32 %v470, %v471
      %v473 = vrot.slane %v472, 2
      %v474 = vmax.f32 %v472, %v473
      %v475 = vrot.slane %v474, 1
      %v476 = vmax.f32 %v474, %v475
      %v477 = vsel %vm406, %v370, -inf
      %v478 = vrot.slane %v477, 4
      %v479 = vmax.f32 %v477, %v478
      %v480 = vrot.slane %v479, 2
      %v481 = vmax.f32 %v479, %v480
      %v482 = vrot.slane %v481, 1
      %v483 = vmax.f32 %v481, %v482
      %v484 = vsel %vm406, %v372, -inf
      %v485 = vrot.slane %v484, 4
      %v486 = vmax.f32 %v484, %v485
      %v487 = vrot.slane %v486, 2
      %v488 = vmax.f32 %v486, %v487
      %v489 = vrot.slane %v488, 1
      %v490 = vmax.f32 %v488, %v489
      %v491 = vsel %vm406, %v380, -inf
      %v492 = vrot.slane %v491, 4
      %v493 = vmax.f32 %v491, %v492
      %v494 = vrot.slane %v493, 2
      %v495 = vmax.f32 %v493, %v494
      %v496 = vrot.slane %v495, 1
      %v497 = vmax.f32 %v495, %v496
      %v498 = vsel %vm406, %v388, -inf
      %v499 = vrot.slane %v498, 4
      %v500 = vmax.f32 %v498, %v499
      %v501 = vrot.slane %v500, 2
      %v502 = vmax.f32 %v500, %v501
      %v503 = vrot.slane %v502, 1
      %v504 = vmax.f32 %v502, %v503
      %v505 = vsel %vm406, %v387, -inf
      %v506 = vrot.slane %v505, 4
      %v507 = vmax.f32 %v505, %v506
      %v508 = vrot.slane %v507, 2
      %v509 = vmax.f32 %v507, %v508
      %v510 = vrot.slane %v509, 1
      %v511 = vmax.f32 %v509, %v510
      %v512 = vsel %vm406, %v389, -inf
      %v513 = vrot.slane %v512, 4
      %v514 = vmax.f32 %v512, %v513
      %v515 = vrot.slane %v514, 2
      %v516 = vmax.f32 %v514, %v515
      %v517 = vrot.slane %v516, 1
      %v518 = vmax.f32 %v516, %v517
      %vm535 = vcmask 1041409
      %v536 = vsel %vm535, %v420, %v413
      %vm537 = vcmask 1042434
      %v538 = vsel %vm537, %v427, %v536
      %vm539 = vcmask 1043459
      %v540 = vsel %vm539, %v434, %v538
      %v541 = vsel %vm535, %v448, %v441
      %v542 = vsel %vm537, %v455, %v541
      %v543 = vsel %vm539, %v462, %v542
      %v544 = vsel %vm535, %v476, %v469
      %v545 = vsel %vm537, %v483, %v544
      %v546 = vsel %vm539, %v490, %v545
      %v547 = vsel %vm535, %v504, %v497
      %v548 = vsel %vm537, %v511, %v547
      %v549 = vsel %vm539, %v518, %v548
      %554 = vst [vmem:[%s211] sm:$0xf] %v540
      %555 = vst [vmem:[%s211 + $0x4] sm:$0xf] %v543
      %556 = vst [vmem:[%s211 + $0x8] sm:$0xf] %v546
      %557 = vst [vmem:[%s211 + $0xc] sm:$0xf] %v549
      %p558 = scmp.lt.s32.totalorder %s18, 1
      %s559 = scalar_select %p558, %s18, 1
      %p560 = scmp.lt.s32.totalorder %s19, 3
      %s561 = scalar_select %p560, %s19, 3
      %s562 = smul.addr %s561, 4
      %s563 = smul.addr %s559, 16
      %s564 = sadd.s32 %s562, %s563
      %s565 = smul.addr %s564, 4
      %s566 = scalar_lea.vmem %s3, %s565
      // Predicated region
      $region33: #{unit_forward.3} parent=31 // pred_check
        %p567 = pneg %p116
      $region34: #{unit_forward.3} parent=31 // pred_check_branch
        %569 = sbr.rel (%p567) target = $region36
      $region35: #{unit_forward.3} parent=31 // pred_region
        _
      $region36: #{unit_forward.3} parent=31 // pred_fallthru
        _
    $region32: #{unit_forward.3} parent=5 // pred_fallthru
      _
    %p570 = scmp.le.s32.totalorder 2, %s9
    // Predicated region
    $region37: #{unit_forward.3} parent=5 // pred_check
      %p571 = pneg %p570
    $region38: #{unit_forward.3} parent=5 // pred_check_branch
      %573 = sbr.rel (%p571) target = $region40
    $region39: #{unit_forward.3} parent=5 // pred_region
      %s574 = ssub.s32 %s9, 2
      // Predicated region
      $region41: #{unit_forward.3} parent=39 // pred_check
        %p575 = pneg %p122
      $region42: #{unit_forward.3} parent=39 // pred_check_branch
        %577 = sbr.rel (%p575) target = $region44
      $region43: #{unit_forward.3} parent=39 // pred_region
        %p578 = scmp.lt.s32.totalorder %s20, 1
        %s579 = scalar_select %p578, %s20, 1
        %p580 = scmp.lt.s32.totalorder %s21, 3
        %s581 = scalar_select %p580, %s21, 3
        %s582 = smul.addr %s581, 4
        %s583 = smul.addr %s579, 16
        %s584 = sadd.s32 %s582, %s583
        %s585 = smul.addr %s584, 4
        %s586 = scalar_lea.vmem %s3, %s585
      $region44: #{unit_forward.3} parent=39 // pred_fallthru
        _
    $region40: #{unit_forward.3} parent=5 // pred_fallthru
      _
  $region6: #{unit_forward.3} parent=0 // loop_footer
    %s13 = sadd.s32 1, %s9
  $region7: #{unit_forward.3} parent=0 // loop_footer_branch
    %8 = sbr.rel target = $region3
  $region8: #{unit_forward.3} parent=0 // loop_exit
    _

// kernel: unit_forward.2
$region0: #{unit_forward.2}
  #allocation0 [shape = 'u32[]', space=smem, size = 0x4, offset = 0x4, fixed_abs, tag = 'smem constant byte address 0x4 - core index']
  #allocation1 [shape = 'u32[144,128]{1,0:T(1,128)}', space=vmem, size = 0x12000, scoped, tag = 'internal scratch']
  #allocation2 [shape = 'bf16[256,216]{1,0:T(16,128)(2,1)}', space=vmem, size = 0x20000, scoped, tag = 'scratch operand']
  %s0 = inlined_call_operand.vmem [shape: bf16[2,10,10,10,8], index: 0, kind: input, shape index: {}]
  %s1 = inlined_call_operand.vmem [shape: bf16[216,128], index: 1, kind: input, shape index: {}]
  %s2 = inlined_call_operand.vmem [shape: f32[1,128], index: 2, kind: input, shape index: {}]
  %s3 = inlined_call_operand.vmem [shape: bf16[2,512,128], index: 3, kind: output, shape index: {0}]
  %s4 = inlined_call_operand.vmem [shape: f32[2,2,1,128], index: 4, kind: output, shape index: {1}]
  %s5 = inlined_call_operand.vmem [shape: f32[2,2,1,128], index: 5, kind: output, shape index: {2}]
  %6 = xla_tuple %s3, %s4, %s5
  %s7 = sld [smem:[#allocation0]]
  $region61: #{unit_forward.2} parent=0
    _
  %s9 = ssub.s32 1, %s7
  %s10 = scalar_select 0, %s9, %s7
  loop: start=0, step=1, limit=6
  $region2: #{unit_forward.2} parent=0 // loop_pre_header
    _
  $region3: #{unit_forward.2} parent=0 // loop_header
    %s12 = sphi 0, %s16
    %p13 = scmp.ge.s32.totalorder %s12, 6
    %s19 = sphi 0, %s31
    %s20 = sphi 0, %s27
    %s21 = sphi 0, %s19
    %s22 = sphi 0, %s20
    %s23 = sphi 0, %s21
    %s24 = sphi 0, %s22
    %s34 = sphi 0, %s36
    %s37 = sphi 0, %s34
    %s38 = sphi 0, %s37
    %s54 = sphi 0, %s38
    %s58 = sphi 0, %s58
    %s60 = sphi 0, %s58
    %s61 = sphi 0, %s60
    %s75 = sphi 0, %s61
    %s79 = sphi 0, %s79
    %s81 = sphi 0, %s79
    %s82 = sphi 0, %s81
    %s96 = sphi 0, %s82
    %s104 = sphi 0, %s106
    %s107 = sphi 0, %s104
    %s108 = sphi 0, %s107
    %s124 = sphi 0, %s108
    %s132 = sphi 0, %s134
    %s135 = sphi 0, %s132
    %s136 = sphi 0, %s135
    %s152 = sphi 0, %s136
    %s160 = sphi 0, %s162
    %s163 = sphi 0, %s160
    %s164 = sphi 0, %s163
    %s180 = sphi 0, %s164
  $region4: #{unit_forward.2} parent=0 // loop_header_branch
    %15 = sbr.rel (%p13) target = $region8
  $region5: #{unit_forward.2} parent=0 // loop_body
    %s17 = ssub.s32 %s12, 1
    %s18 = ssub.s32 %s12, 2
    %s25 = sadd.s32 1, %s20
    %p26 = scmp.ge.s32.totalorder %s25, 2
    %s27 = scalar_select %p26, 0, %s25
    %s28 = sadd.s32 1, %s19
    %s29 = scalar_select %p26, %s28, %s19
    %p30 = scmp.ge.s32.totalorder %s29, 2
    %s31 = scalar_select %p30, 0, %s29
    %s32 = ssub.s32 %s19, %s31
    %p33 = scmp.eq.s32.totalorder %s32, 0
    %s35 = sadd.s32 %s34, 1
    %s36 = scalar_select %p33, %s34, %s35
    %p39 = pneg %p33
    %p40 = scmp.eq.s32.totalorder %s12, 3
    %p41 = por %p39, %p40
    %p42 = scmp.ne.s32.totalorder %s34, %s37
    %p43 = scmp.eq.s32.totalorder %s12, 0
    %p44 = por %p42, %p43
    %p45 = scmp.ne.s32.totalorder %s34, %s37
    %p46 = scmp.eq.s32.totalorder %s17, 3
    %p47 = por %p45, %p46
    %p48 = scmp.ne.s32.totalorder %s37, %s38
    %p49 = scmp.eq.s32.totalorder %s17, 0
    %p50 = por %p48, %p49
    %p51 = scmp.ne.s32.totalorder %s37, %s38
    %p52 = scmp.eq.s32.totalorder %s18, 3
    %p53 = por %p51, %p52
    %p55 = scmp.ne.s32.totalorder %s38, %s54
    %p56 = scmp.eq.s32.totalorder %s18, 0
    %p57 = por %p55, %p56
    %s59 = sadd.s32 %s58, 1
    %p62 = scmp.eq.s32.totalorder %s12, 3
    %p63 = scmp.ne.s32.totalorder %s58, %s60
    %p64 = scmp.eq.s32.totalorder %s12, 0
    %p65 = por %p63, %p64
    %p66 = scmp.ne.s32.totalorder %s58, %s60
    %p67 = scmp.eq.s32.totalorder %s17, 3
    %p68 = por %p66, %p67
    %p69 = scmp.ne.s32.totalorder %s60, %s61
    %p70 = scmp.eq.s32.totalorder %s17, 0
    %p71 = por %p69, %p70
    %p72 = scmp.ne.s32.totalorder %s60, %s61
    %p73 = scmp.eq.s32.totalorder %s18, 3
    %p74 = por %p72, %p73
    %p76 = scmp.ne.s32.totalorder %s61, %s75
    %p77 = scmp.eq.s32.totalorder %s18, 0
    %p78 = por %p76, %p77
    %s80 = sadd.s32 %s79, 1
    %p83 = scmp.eq.s32.totalorder %s12, 3
    %p84 = scmp.ne.s32.totalorder %s79, %s81
    %p85 = scmp.eq.s32.totalorder %s12, 0
    %p86 = por %p84, %p85
    %p87 = scmp.ne.s32.totalorder %s79, %s81
    %p88 = scmp.eq.s32.totalorder %s17, 3
    %p89 = por %p87, %p88
    %p90 = scmp.ne.s32.totalorder %s81, %s82
    %p91 = scmp.eq.s32.totalorder %s17, 0
    %p92 = por %p90, %p91
    %p93 = scmp.ne.s32.totalorder %s81, %s82
    %p94 = scmp.eq.s32.totalorder %s18, 3
    %p95 = por %p93, %p94
    %p97 = scmp.ne.s32.totalorder %s82, %s96
    %p98 = scmp.eq.s32.totalorder %s18, 0
    %p99 = por %p97, %p98
    %s100 = ssub.s32 %s19, %s31
    %s101 = ssub.s32 %s20, %s27
    %s102 = sor.u32 %s100, %s101
    %p103 = scmp.eq.s32.totalorder %s102, 0
    %s105 = sadd.s32 %s104, 1
    %s106 = scalar_select %p103, %s104, %s105
    %p109 = pneg %p103
    %p110 = scmp.eq.s32.totalorder %s12, 3
    %p111 = por %p109, %p110
    %p112 = scmp.ne.s32.totalorder %s104, %s107
    %p113 = scmp.eq.s32.totalorder %s12, 0
    %p114 = por %p112, %p113
    %p115 = scmp.ne.s32.totalorder %s104, %s107
    %p116 = scmp.eq.s32.totalorder %s17, 3
    %p117 = por %p115, %p116
    %p118 = scmp.ne.s32.totalorder %s107, %s108
    %p119 = scmp.eq.s32.totalorder %s17, 0
    %p120 = por %p118, %p119
    %p121 = scmp.ne.s32.totalorder %s107, %s108
    %p122 = scmp.eq.s32.totalorder %s18, 3
    %p123 = por %p121, %p122
    %p125 = scmp.ne.s32.totalorder %s108, %s124
    %p126 = scmp.eq.s32.totalorder %s18, 0
    %p127 = por %p125, %p126
    %s128 = ssub.s32 %s19, %s31
    %s129 = ssub.s32 %s20, %s27
    %s130 = sor.u32 %s128, %s129
    %p131 = scmp.eq.s32.totalorder %s130, 0
    %s133 = sadd.s32 %s132, 1
    %s134 = scalar_select %p131, %s132, %s133
    %p137 = pneg %p131
    %p138 = scmp.eq.s32.totalorder %s12, 3
    %p139 = por %p137, %p138
    %p140 = scmp.ne.s32.totalorder %s132, %s135
    %p141 = scmp.eq.s32.totalorder %s12, 0
    %p142 = por %p140, %p141
    %p143 = scmp.ne.s32.totalorder %s132, %s135
    %p144 = scmp.eq.s32.totalorder %s17, 3
    %p145 = por %p143, %p144
    %p146 = scmp.ne.s32.totalorder %s135, %s136
    %p147 = scmp.eq.s32.totalorder %s17, 0
    %p148 = por %p146, %p147
    %p149 = scmp.ne.s32.totalorder %s135, %s136
    %p150 = scmp.eq.s32.totalorder %s18, 3
    %p151 = por %p149, %p150
    %p153 = scmp.ne.s32.totalorder %s136, %s152
    %p154 = scmp.eq.s32.totalorder %s18, 0
    %p155 = por %p153, %p154
    %s156 = ssub.s32 %s19, %s31
    %s157 = ssub.s32 %s20, %s27
    %s158 = sor.u32 %s156, %s157
    %p159 = scmp.eq.s32.totalorder %s158, 0
    %s161 = sadd.s32 %s160, 1
    %s162 = scalar_select %p159, %s160, %s161
    %p165 = pneg %p159
    %p166 = scmp.eq.s32.totalorder %s12, 3
    %p167 = por %p165, %p166
    %p168 = scmp.ne.s32.totalorder %s160, %s163
    %p169 = scmp.eq.s32.totalorder %s12, 0
    %p170 = por %p168, %p169
    %p171 = scmp.ne.s32.totalorder %s160, %s163
    %p172 = scmp.eq.s32.totalorder %s17, 3
    %p173 = por %p171, %p172
    %p174 = scmp.ne.s32.totalorder %s163, %s164
    %p175 = scmp.eq.s32.totalorder %s17, 0
    %p176 = por %p174, %p175
    %p177 = scmp.ne.s32.totalorder %s163, %s164
    %p178 = scmp.eq.s32.totalorder %s18, 3
    %p179 = por %p177, %p178
    %p181 = scmp.ne.s32.totalorder %s164, %s180
    %p182 = scmp.eq.s32.totalorder %s18, 0
    %p183 = por %p181, %p182
    %p184 = scmp.le.s32.totalorder 1, %s12
    %p185 = scmp.lt.s32.totalorder %s12, 5
    %p186 = pnand %p184, %p185
    %p187 = pneg %p186
    // Predicated region
    $region9: #{unit_forward.2} parent=5 // pred_check
      _
    $region10: #{unit_forward.2} parent=5 // pred_check_branch
      %189 = sbr.rel (%p186) target = $region12
    $region11: #{unit_forward.2} parent=5 // pred_region
      %s190 = ssub.s32 %s12, 1
      // Predicated region
      $region13: #{unit_forward.2} parent=11 // pred_check
        %p191 = pneg %p71
      $region14: #{unit_forward.2} parent=11 // pred_check_branch
        %193 = sbr.rel (%p191) target = $region16
      $region15: #{unit_forward.2} parent=11 // pred_region
        _
      $region16: #{unit_forward.2} parent=11 // pred_fallthru
        _
      // Predicated region
      $region17: #{unit_forward.2} parent=11 // pred_check
        %p194 = pneg %p92
      $region18: #{unit_forward.2} parent=11 // pred_check_branch
        %196 = sbr.rel (%p194) target = $region20
      $region19: #{unit_forward.2} parent=11 // pred_region
        _
      $region20: #{unit_forward.2} parent=11 // pred_fallthru
        _
    $region12: #{unit_forward.2} parent=5 // pred_fallthru
      _
    %p197 = scmp.lt.s32.totalorder %s12, 4
    // Predicated region
    $region21: #{unit_forward.2} parent=5 // pred_check
      %p198 = pneg %p197
    $region22: #{unit_forward.2} parent=5 // pred_check_branch
      %200 = sbr.rel (%p198) target = $region24
    $region23: #{unit_forward.2} parent=5 // pred_region
      // Predicated region
      $region25: #{unit_forward.2} parent=23 // pred_check
        %p201 = pneg %p44
      $region26: #{unit_forward.2} parent=23 // pred_check_branch
        %203 = sbr.rel (%p201) target = $region28
      $region27: #{unit_forward.2} parent=23 // pred_region
        %p204 = scmp.lt.s32.totalorder %s19, 1
        %s205 = scalar_select %p204, %s19, 1
        %s206 = smul.addr %s205, 200
        %s207 = smul.addr %s206, 4
        %s208 = scalar_lea.vmem %s0, %s207
      $region28: #{unit_forward.2} parent=23 // pred_fallthru
        _
    $region24: #{unit_forward.2} parent=5 // pred_fallthru
      _
    %p209 = scmp.le.s32.totalorder 1, %s12
    %p210 = scmp.lt.s32.totalorder %s12, 5
    %p211 = pnand %p209, %p210
    %p212 = pneg %p211
    // Predicated region
    $region29: #{unit_forward.2} parent=5 // pred_check
      _
    $region30: #{unit_forward.2} parent=5 // pred_check_branch
      %214 = sbr.rel (%p211) target = $region32
    $region31: #{unit_forward.2} parent=5 // pred_region
      %s215 = ssub.s32 %s12, 1
      %p216 = scmp.lt.s32.totalorder %s21, 1
      %s217 = scalar_select %p216, %s21, 1
      %s218 = smul.addr %s217, 200
      %s219 = smul.addr %s218, 4
      %s220 = scalar_lea.vmem %s0, %s219
      %p221 = pneg %p50
      %p222 = pneg %p47
      %p223 = pneg %p71
      %p224 = pneg %p68
      %p225 = pneg %p92
      %p226 = pneg %p89
      %p227 = pneg %p120
      %p228 = pneg %p117
      %s229 = smul.u32 32, %s22
      %p230 = scmp.lt.s32.totalorder %s21, 1
      %s231 = scalar_select %p230, %s21, 1
      %p232 = scmp.lt.s32.totalorder %s229, 63
      %s233 = scalar_select %p232, %s229, 63
      %s234 = smul.addr %s231, 64
      %s235 = sadd.s32 %s233, %s234
      %s236 = smul.addr %s235, 4
      %s237 = scalar_lea.vmem %s3, %s236
      %p238 = pneg %p148
      %p239 = pneg %p145
      %p240 = scmp.lt.s32.totalorder %s21, 1
      %s241 = scalar_select %p240, %s21, 1
      %p242 = scmp.lt.s32.totalorder %s22, 1
      %s243 = scalar_select %p242, %s22, 1
      %s244 = smul.addr %s241, 2
      %s245 = sadd.s32 %s243, %s244
      %s246 = scalar_lea.vmem %s4, %s245
      %p247 = pneg %p176
      %p248 = pneg %p173
      %p249 = scmp.lt.s32.totalorder %s21, 1
      %s250 = scalar_select %p249, %s21, 1
      %p251 = scmp.lt.s32.totalorder %s22, 1
      %s252 = scalar_select %p251, %s22, 1
      %s253 = smul.addr %s250, 2
      %s254 = sadd.s32 %s252, %s253
      %s255 = scalar_lea.vmem %s5, %s254
      %p256 = scmp.lt.s32.totalorder %s21, 1
      %s257 = scalar_select %p256, %s21, 1
      %s258 = smul.addr %s257, 200
      %s259 = smul.addr %s258, 4
      %s260 = scalar_lea.vmem %s0, %s259
      %s261 = smul.u32 32, %s22
      %p262 = scmp.lt.s32.totalorder %s21, 1
      %s263 = scalar_select %p262, %s21, 1
      %p264 = scmp.lt.s32.totalorder %s261, 63
      %s265 = scalar_select %p264, %s261, 63
      %s266 = smul.addr %s263, 64
      %s267 = sadd.s32 %s265, %s266
      %s268 = smul.addr %s267, 4
      %s269 = scalar_lea.vmem %s3, %s268
      %s270 = smul.u32 32, %s22
      %p271 = scmp.lt.s32.totalorder %s21, 1
      %s272 = scalar_select %p271, %s21, 1
      %p273 = scmp.lt.s32.totalorder %s22, 1
      %s274 = scalar_select %p273, %s22, 1
      %s275 = smul.addr %s272, 2
      %s276 = sadd.s32 %s274, %s275
      %s277 = scalar_lea.vmem %s4, %s276
      %p278 = scmp.lt.s32.totalorder %s21, 1
      %s279 = scalar_select %p278, %s21, 1
      %p280 = scmp.lt.s32.totalorder %s22, 1
      %s281 = scalar_select %p280, %s22, 1
      %s282 = smul.addr %s279, 2
      %s283 = sadd.s32 %s281, %s282
      %s284 = scalar_lea.vmem %s5, %s283
      %s286 = smul.u32 %s22, 4
      %s287 = smul.u32 %s286, 20
      %s288 = smul.addr %s287, 4
      %s289 = scalar_lea.vmem %s260, %s288
      %v290 = vld [vmem:[%s289] sm:$0xf]
      %v291 = vld [vmem:[%s289 + $0x8] sm:$0xf]
      %v292 = vld [vmem:[%s289 + $0x10] sm:$0xf]
      %v293 = vld [vmem:[%s289 + $0x18] sm:$0xf]
      %v294 = vld [vmem:[%s289 + $0x20] sm:$0xf]
      %v295 = vld [vmem:[%s289 + $0x28] sm:$0xf]
      %v296 = vld [vmem:[%s289 + $0x30] sm:$0xf]
      %v297 = vld [vmem:[%s289 + $0x38] sm:$0xf]
      %v298 = vld [vmem:[%s289 + $0x50] sm:$0xf]
      %v299 = vld [vmem:[%s289 + $0x58] sm:$0xf]
      %v300 = vld [vmem:[%s289 + $0x60] sm:$0xf]
      %v301 = vld [vmem:[%s289 + $0x68] sm:$0xf]
      %v302 = vld [vmem:[%s289 + $0x70] sm:$0xf]
      %v303 = vld [vmem:[%s289 + $0x78] sm:$0xf]
      %v304 = vld [vmem:[%s289 + $0x80] sm:$0xf]
      %v305 = vld [vmem:[%s289 + $0x88] sm:$0xf]
      %v306 = vld [vmem:[%s289 + $0xa0] sm:$0xf]
      %v307 = vld [vmem:[%s289 + $0xa8] sm:$0xf]
      %v308 = vld [vmem:[%s289 + $0xb0] sm:$0xf]
      %v309 = vld [vmem:[%s289 + $0xb8] sm:$0xf]
      %v310 = vld [vmem:[%s289 + $0xc0] sm:$0xf]
      %v311 = vld [vmem:[%s289 + $0xc8] sm:$0xf]
      %v312 = vld [vmem:[%s289 + $0xd0] sm:$0xf]
      %v313 = vld [vmem:[%s289 + $0xd8] sm:$0xf]
      %v314 = vld [vmem:[%s289 + $0xf0] sm:$0xf]
      %v315 = vld [vmem:[%s289 + $0xf8] sm:$0xf]
      %v316 = vld [vmem:[%s289 + $0x100] sm:$0xf]
      %v317 = vld [vmem:[%s289 + $0x108] sm:$0xf]
      %v318 = vld [vmem:[%s289 + $0x110] sm:$0xf]
      %v319 = vld [vmem:[%s289 + $0x118] sm:$0xf]
      %v320 = vld [vmem:[%s289 + $0x120] sm:$0xf]
      %v321 = vld [vmem:[%s289 + $0x128] sm:$0xf]
      %v354 = vunpack.c.l.b16 %v290
      %v355 = vunpack.c.l.b16 %v291
      %v356 = vunpack.c.l.b16 %v292
      %v357 = vunpack.c.l.b16 %v293
      %v358 = vunpack.c.l.b16 %v294
      %v359 = vunpack.c.l.b16 %v295
      %v360 = vunpack.c.l.b16 %v296
      %v361 = vunpack.c.l.b16 %v297
      %v362 = vunpack.c.l.b16 %v298
      %v363 = vunpack.c.l.b16 %v299
      %v364 = vunpack.c.l.b16 %v300
      %v365 = vunpack.c.l.b16 %v301
      %v366 = vunpack.c.l.b16 %v302
      %v367 = vunpack.c.l.b16 %v303
      %v368 = vunpack.c.l.b16 %v304
      %v369 = vunpack.c.l.b16 %v305
      %v370 = vunpack.c.l.b16 %v306
      %v371 = vunpack.c.l.b16 %v307
      %v372 = vunpack.c.l.b16 %v308
      %v373 = vunpack.c.l.b16 %v309
      %v374 = vunpack.c.l.b16 %v310
      %v375 = vunpack.c.l.b16 %v311
      %v376 = vunpack.c.l.b16 %v312
      %v377 = vunpack.c.l.b16 %v313
      %v378 = vunpack.c.l.b16 %v314
      %v379 = vunpack.c.l.b16 %v315
      %v380 = vunpack.c.l.b16 %v316
      %v381 = vunpack.c.l.b16 %v317
      %v382 = vunpack.c.l.b16 %v318
      %v383 = vunpack.c.l.b16 %v319
      %v384 = vunpack.c.l.b16 %v320
      %v385 = vunpack.c.l.b16 %v321
      %v386 = vpack.c.b16 %v355, %v354
      %v387 = vpack.c.b16 %v357, %v356
      %v388 = vpack.c.b16 %v359, %v358
      %v389 = vpack.c.b16 %v361, %v360
      %v390 = vpack.c.b16 %v363, %v362
      %v391 = vpack.c.b16 %v365, %v364
      %v392 = vpack.c.b16 %v367, %v366
      %v393 = vpack.c.b16 %v369, %v368
      %v394 = vpack.c.b16 %v371, %v370
      %v395 = vpack.c.b16 %v373, %v372
      %v396 = vpack.c.b16 %v375, %v374
      %v397 = vpack.c.b16 %v377, %v376
      %v398 = vpack.c.b16 %v379, %v378
      %v399 = vpack.c.b16 %v381, %v380
      %v400 = vpack.c.b16 %v383, %v382
      %v401 = vpack.c.b16 %v385, %v384
      %vm418 = vcmask 64512
      %419 = vst.msk [vmem:[#allocation2] sm:$0xff] %vm418, %v386
      %420 = vst.msk [vmem:[#allocation2 + $0x10] sm:$0xff] %vm418, %v387
      %421 = vst.msk [vmem:[#allocation2 + $0x20] sm:$0xff] %vm418, %v388
      %422 = vst.msk [vmem:[#allocation2 + $0x30] sm:$0xff] %vm418, %v389
      %423 = vst.msk [vmem:[#allocation2 + $0x40] sm:$0xff] %vm418, %v390
      %424 = vst.msk [vmem:[#allocation2 + $0x50] sm:$0xff] %vm418, %v391
      %425 = vst.msk [vmem:[#allocation2 + $0x60] sm:$0xff] %vm418, %v392
      %426 = vst.msk [vmem:[#allocation2 + $0x70] sm:$0xff] %vm418, %v393
      %427 = vst.msk [vmem:[#allocation2 + $0x80] sm:$0xff] %vm418, %v394
      %428 = vst.msk [vmem:[#allocation2 + $0x90] sm:$0xff] %vm418, %v395
      %429 = vst.msk [vmem:[#allocation2 + $0xa0] sm:$0xff] %vm418, %v396
      %430 = vst.msk [vmem:[#allocation2 + $0xb0] sm:$0xff] %vm418, %v397
      %431 = vst.msk [vmem:[#allocation2 + $0xc0] sm:$0xff] %vm418, %v398
      %432 = vst.msk [vmem:[#allocation2 + $0xd0] sm:$0xff] %vm418, %v399
      %433 = vst.msk [vmem:[#allocation2 + $0xe0] sm:$0xff] %vm418, %v400
      %434 = vst.msk [vmem:[#allocation2 + $0xf0] sm:$0xff] %vm418, %v401
      %v435 = vld [vmem:[%s289] sm:$0xf]
      %v436 = vld [vmem:[%s289 + $0x4] sm:$0x1]
      %v437 = vld [vmem:[%s289 + $0x8] sm:$0xf]
      %v438 = vld [vmem:[%s289 + $0xc] sm:$0x1]
      %v439 = vld [vmem:[%s289 + $0x10] sm:$0xf]
      %v440 = vld [vmem:[%s289 + $0x14] sm:$0x1]
      %v441 = vld [vmem:[%s289 + $0x18] sm:$0xf]
      %v442 = vld [vmem:[%s289 + $0x1c] sm:$0x1]
      %v443 = vld [vmem:[%s289 + $0x20] sm:$0xf]
      %v444 = vld [vmem:[%s289 + $0x24] sm:$0x1]
      %v445 = vld [vmem:[%s289 + $0x28] sm:$0xf]
      %v446 = vld [vmem:[%s289 + $0x2c] sm:$0x1]
      %v447 = vld [vmem:[%s289 + $0x30] sm:$0xf]
      %v448 = vld [vmem:[%s289 + $0x34] sm:$0x1]
      %v449 = vld [vmem:[%s289 + $0x38] sm:$0xf]
      %v450 = vld [vmem:[%s289 + $0x3c] sm:$0x1]
      %v451 = vld [vmem:[%s289 + $0x50] sm:$0xf]
      %v452 = vld [vmem:[%s289 + $0x54] sm:$0x1]
      %v453 = vld [vmem:[%s289 + $0x58] sm:$0xf]
      %v454 = vld [vmem:[%s289 + $0x5c] sm:$0x1]
      %v455 = vld [vmem:[%s289 + $0x60] sm:$0xf]
      %v456 = vld [vmem:[%s289 + $0x64] sm:$0x1]
      %v457 = vld [vmem:[%s289 + $0x68] sm:$0xf]
      %v458 = vld [vmem:[%s289 + $0x6c] sm:$0x1]
      %v459 = vld [vmem:[%s289 + $0x70] sm:$0xf]
      %v460 = vld [vmem:[%s289 + $0x74] sm:$0x1]
      %v461 = vld [vmem:[%s289 + $0x78] sm:$0xf]
      %v462 = vld [vmem:[%s289 + $0x7c] sm:$0x1]
      %v463 = vld [vmem:[%s289 + $0x80] sm:$0xf]
      %v464 = vld [vmem:[%s289 + $0x84] sm:$0x1]
      %v465 = vld [vmem:[%s289 + $0x88] sm:$0xf]
      %v466 = vld [vmem:[%s289 + $0x8c] sm:$0x1]
      %v467 = vld [vmem:[%s289 + $0xa0] sm:$0xf]
      %v468 = vld [vmem:[%s289 + $0xa4] sm:$0x1]
      %v469 = vld [vmem:[%s289 + $0xa8] sm:$0xf]
      %v470 = vld [vmem:[%s289 + $0xac] sm:$0x1]
      %v471 = vld [vmem:[%s289 + $0xb0] sm:$0xf]
      %v472 = vld [vmem:[%s289 + $0xb4] sm:$0x1]
      %v473 = vld [vmem:[%s289 + $0xb8] sm:$0xf]
      %v474 = vld [vmem:[%s289 + $0xbc] sm:$0x1]
      %v475 = vld [vmem:[%s289 + $0xc0] sm:$0xf]
      %v476 = vld [vmem:[%s289 + $0xc4] sm:$0x1]
      %v477 = vld [vmem:[%s289 + $0xc8] sm:$0xf]
      %v478 = vld [vmem:[%s289 + $0xcc] sm:$0x1]
      %v479 = vld [vmem:[%s289 + $0xd0] sm:$0xf]
      %v480 = vld [vmem:[%s289 + $0xd4] sm:$0x1]
      %v481 = vld [vmem:[%s289 + $0xd8] sm:$0xf]
      %v482 = vld [vmem:[%s289 + $0xdc] sm:$0x1]
      %v483 = vld [vmem:[%s289 + $0xf0] sm:$0xf]
      %v484 = vld [vmem:[%s289 + $0xf4] sm:$0x1]
      %v485 = vld [vmem:[%s289 + $0xf8] sm:$0xf]
      %v486 = vld [vmem:[%s289 + $0xfc] sm:$0x1]
      %v487 = vld [vmem:[%s289 + $0x100] sm:$0xf]
      %v488 = vld [vmem:[%s289 + $0x104] sm:$0x1]
      %v489 = vld [vmem:[%s289 + $0x108] sm:$0xf]
      %v490 = vld [vmem:[%s289 + $0x10c] sm:$0x1]
      %v491 = vld [vmem:[%s289 + $0x110] sm:$0xf]
      %v492 = vld [vmem:[%s289 + $0x114] sm:$0x1]
      %v493 = vld [vmem:[%s289 + $0x118] sm:$0xf]
      %v494 = vld [vmem:[%s289 + $0x11c] sm:$0x1]
      %v495 = vld [vmem:[%s289 + $0x120] sm:$0xf]
      %v496 = vld [vmem:[%s289 + $0x124] sm:$0x1]
      %v497 = vld [vmem:[%s289 + $0x128] sm:$0xf]
      %v498 = vld [vmem:[%s289 + $0x12c] sm:$0x1]
      %vm499 = vsmask.f32 3328
      %vm500 = vsmask.f32 7440
      %vm501 = vmor %vm499, %vm500
      %v503 = vshrl.u32 %v435, 16
      %v505 = vrot.slane %v503, 4
      %v506 = vshll.u32 %v435, 16
      %v508 = vrot.slane %v506, 5
      %v509 = vor.u32 %v505, %v508
      %v510 = vrot.slane %v509, 4
      %v512 = vshll.u32 %v436, 16
      %v514 = vrot.slane %v512, 5
      %v515 = vsel %vm501, %v510, %v514
      %v517 = vshrl.u32 %v437, 16
      %v519 = vrot.slane %v517, 4
      %v520 = vshll.u32 %v437, 16
      %v522 = vrot.slane %v520, 5
      %v523 = vor.u32 %v519, %v522
      %v524 = vrot.slane %v523, 4
      %v526 = vshll.u32 %v438, 16
      %v528 = vrot.slane %v526, 5
      %v529 = vsel %vm501, %v524, %v528
      %v531 = vshrl.u32 %v439, 16
      %v533 = vrot.slane %v531, 4
      %v534 = vshll.u32 %v439, 16
      %v536 = vrot.slane %v534, 5
      %v537 = vor.u32 %v533, %v536
      %v538 = vrot.slane %v537, 4
      %v540 = vshll.u32 %v440, 16
      %v542 = vrot.slane %v540, 5
      %v543 = vsel %vm501, %v538, %v542
      %v545 = vshrl.u32 %v441, 16
      %v547 = vrot.slane %v545, 4
      %v548 = vshll.u32 %v441, 16
      %v550 = vrot.slane %v548, 5
      %v551 = vor.u32 %v547, %v550
      %v552 = vrot.slane %v551, 4
      %v554 = vshll.u32 %v442, 16
      %v556 = vrot.slane %v554, 5
      %v557 = vsel %vm501, %v552, %v556
      %v559 = vshrl.u32 %v443, 16
      %v561 = vrot.slane %v559, 4
      %v562 = vshll.u32 %v443, 16
      %v564 = vrot.slane %v562, 5
      %v565 = vor.u32 %v561, %v564
      %v566 = vrot.slane %v565, 4
      %v568 = vshll.u32 %v444, 16
      %v570 = vrot.slane %v568, 5
      %v571 = vsel %vm501, %v566, %v570
      %v573 = vshrl.u32 %v445, 16
      %v575 = vrot.slane %v573, 4
      %v576 = vshll.u32 %v445, 16
      %v578 = vrot.slane %v576, 5
      %v579 = vor.u32 %v575, %v578
      %v580 = vrot.slane %v579, 4
      %v582 = vshll.u32 %v446, 16
      %v584 = vrot.slane %v582, 5
      %v585 = vsel %vm501, %v580, %v584
      %v587 = vshrl.u32 %v447, 16
      %v589 = vrot.slane %v587, 4
      %v590 = vshll.u32 %v447, 16
      %v592 = vrot.slane %v590, 5
      %v593 = vor.u32 %v589, %v592
      %v594 = vrot.slane %v593, 4
      %v596 = vshll.u32 %v448, 16
      %v598 = vrot.slane %v596, 5
      %v599 = vsel %vm501, %v594, %v598
      %v601 = vshrl.u32 %v449, 16
      %v603 = vrot.slane %v601, 4
      %v604 = vshll.u32 %v449, 16
      %v606 = vrot.slane %v604, 5
      %v607 = vor.u32 %v603, %v606
      %v608 = vrot.slane %v607, 4
      %v610 = vshll.u32 %v450, 16
      %v612 = vrot.slane %v610, 5
      %v613 = vsel %vm501, %v608, %v612
      %v615 = vshrl.u32 %v451, 16
      %v617 = vrot.slane %v615, 4
      %v618 = vshll.u32 %v451, 16
      %v620 = vrot.slane %v618, 5
      %v621 = vor.u32 %v617, %v620
      %v622 = vrot.slane %v621, 4
      %v624 = vshll.u32 %v452, 16
      %v626 = vrot.slane %v624, 5
      %v627 = vsel %vm501, %v622, %v626
      %v629 = vshrl.u32 %v453, 16
      %v631 = vrot.slane %v629, 4
      %v632 = vshll.u32 %v453, 16
      %v634 = vrot.slane %v632, 5
      %v635 = vor.u32 %v631, %v634
      %v636 = vrot.slane %v635, 4
      %v638 = vshll.u32 %v454, 16
      %v640 = vrot.slane %v638, 5
      %v641 = vsel %vm501, %v636, %v640
      %v643 = vshrl.u32 %v455, 16
      %v645 = vrot.slane %v643, 4
      %v646 = vshll.u32 %v455, 16
      %v648 = vrot.slane %v646, 5
      %v649 = vor.u32 %v645, %v648
      %v650 = vrot.slane %v649, 4
      %v652 = vshll.u32 %v456, 16
      %v654 = vrot.slane %v652, 5
      %v655 = vsel %vm501, %v650, %v654
      %v657 = vshrl.u32 %v457, 16
      %v659 = vrot.slane %v657, 4
      %v660 = vshll.u32 %v457, 16
      %v662 = vrot.slane %v660, 5
      %v663 = vor.u32 %v659, %v662
      %v664 = vrot.slane %v663, 4
      %v666 = vshll.u32 %v458, 16
      %v668 = vrot.slane %v666, 5
      %v669 = vsel %vm501, %v664, %v668
      %v671 = vshrl.u32 %v459, 16
      %v673 = vrot.slane %v671, 4
      %v674 = vshll.u32 %v459, 16
      %v676 = vrot.slane %v674, 5
      %v677 = vor.u32 %v673, %v676
      %v678 = vrot.slane %v677, 4
      %v680 = vshll.u32 %v460, 16
      %v682 = vrot.slane %v680, 5
      %v683 = vsel %vm501, %v678, %v682
      %v685 = vshrl.u32 %v461, 16
      %v687 = vrot.slane %v685, 4
      %v688 = vshll.u32 %v461, 16
      %v690 = vrot.slane %v688, 5
      %v691 = vor.u32 %v687, %v690
      %v692 = vrot.slane %v691, 4
      %v694 = vshll.u32 %v462, 16
      %v696 = vrot.slane %v694, 5
      %v697 = vsel %vm501, %v692, %v696
      %v699 = vshrl.u32 %v463, 16
      %v701 = vrot.slane %v699, 4
      %v702 = vshll.u32 %v463, 16
      %v704 = vrot.slane %v702, 5
      %v705 = vor.u32 %v701, %v704
      %v706 = vrot.slane %v705, 4
      %v708 = vshll.u32 %v464, 16
      %v710 = vrot.slane %v708, 5
      %v711 = vsel %vm501, %v706, %v710
      %v713 = vshrl.u32 %v465, 16
      %v715 = vrot.slane %v713, 4
      %v716 = vshll.u32 %v465, 16
      %v718 = vrot.slane %v716, 5
      %v719 = vor.u32 %v715, %v718
      %v720 = vrot.slane %v719, 4
      %v722 = vshll.u32 %v466, 16
      %v724 = vrot.slane %v722, 5
      %v725 = vsel %vm501, %v720, %v724
      %v727 = vshrl.u32 %v467, 16
      %v729 = vrot.slane %v727, 4
      %v730 = vshll.u32 %v467, 16
      %v732 = vrot.slane %v730, 5
      %v733 = vor.u32 %v729, %v732
      %v734 = vrot.slane %v733, 4
      %v736 = vshll.u32 %v468, 16
      %v738 = vrot.slane %v736, 5
      %v739 = vsel %vm501, %v734, %v738
      %v741 = vshrl.u32 %v469, 16
      %v743 = vrot.slane %v741, 4
      %v744 = vshll.u32 %v469, 16
      %v746 = vrot.slane %v744, 5
      %v747 = vor.u32 %v743, %v746
      %v748 = vrot.slane %v747, 4
      %v750 = vshll.u32 %v470, 16
      %v752 = vrot.slane %v750, 5
      %v753 = vsel %vm501, %v748, %v752
      %v755 = vshrl.u32 %v471, 16
      %v757 = vrot.slane %v755, 4
      %v758 = vshll.u32 %v471, 16
      %v760 = vrot.slane %v758, 5
      %v761 = vor.u32 %v757, %v760
      %v762 = vrot.slane %v761, 4
      %v764 = vshll.u32 %v472, 16
      %v766 = vrot.slane %v764, 5
      %v767 = vsel %vm501, %v762, %v766
      %v769 = vshrl.u32 %v473, 16
      %v771 = vrot.slane %v769, 4
      %v772 = vshll.u32 %v473, 16
      %v774 = vrot.slane %v772, 5
      %v775 = vor.u32 %v771, %v774
      %v776 = vrot.slane %v775, 4
      %v778 = vshll.u32 %v474, 16
      %v780 = vrot.slane %v778, 5
      %v781 = vsel %vm501, %v776, %v780
      %v783 = vshrl.u32 %v475, 16
      %v785 = vrot.slane %v783, 4
      %v786 = vshll.u32 %v475, 16
      %v788 = vrot.slane %v786, 5
      %v789 = vor.u32 %v785, %v788
      %v790 = vrot.slane %v789, 4
      %v792 = vshll.u32 %v476, 16
      %v794 = vrot.slane %v792, 5
      %v795 = vsel %vm501, %v790, %v794
      %v797 = vshrl.u32 %v477, 16
      %v799 = vrot.slane %v797, 4
      %v800 = vshll.u32 %v477, 16
      %v802 = vrot.slane %v800, 5
      %v803 = vor.u32 %v799, %v802
      %v804 = vrot.slane %v803, 4
      %v806 = vshll.u32 %v478, 16
      %v808 = vrot.slane %v806, 5
      %v809 = vsel %vm501, %v804, %v808
      %v811 = vshrl.u32 %v479, 16
      %v813 = vrot.slane %v811, 4
      %v814 = vshll.u32 %v479, 16
      %v816 = vrot.slane %v814, 5
      %v817 = vor.u32 %v813, %v816
      %v818 = vrot.slane %v817, 4
      %v820 = vshll.u32 %v480, 16
      %v822 = vrot.slane %v820, 5
      %v823 = vsel %vm501, %v818, %v822
      %v825 = vshrl.u32 %v481, 16
      %v827 = vrot.slane %v825, 4
      %v828 = vshll.u32 %v481, 16
      %v830 = vrot.slane %v828, 5
      %v831 = vor.u32 %v827, %v830
      %v832 = vrot.slane %v831, 4
      %v834 = vshll.u32 %v482, 16
      %v836 = vrot.slane %v834, 5
      %v837 = vsel %vm501, %v832, %v836
      %v839 = vshrl.u32 %v483, 16
      %v841 = vrot.slane %v839, 4
      %v842 = vshll.u32 %v483, 16
      %v844 = vrot.slane %v842, 5
      %v845 = vor.u32 %v841, %v844
      %v846 = vrot.slane %v845, 4
      %v848 = vshll.u32 %v484, 16
      %v850 = vrot.slane %v848, 5
      %v851 = vsel %vm501, %v846, %v850
      %v853 = vshrl.u32 %v485, 16
      %v855 = vrot.slane %v853, 4
      %v856 = vshll.u32 %v485, 16
      %v858 = vrot.slane %v856, 5
      %v859 = vor.u32 %v855, %v858
      %v860 = vrot.slane %v859, 4
      %v862 = vshll.u32 %v486, 16
      %v864 = vrot.slane %v862, 5
      %v865 = vsel %vm501, %v860, %v864
      %v867 = vshrl.u32 %v487, 16
      %v869 = vrot.slane %v867, 4
      %v870 = vshll.u32 %v487, 16
      %v872 = vrot.slane %v870, 5
      %v873 = vor.u32 %v869, %v872
      %v874 = vrot.slane %v873, 4
      %v876 = vshll.u32 %v488, 16
      %v878 = vrot.slane %v876, 5
      %v879 = vsel %vm501, %v874, %v878
      %v881 = vshrl.u32 %v489, 16
      %v883 = vrot.slane %v881, 4
      %v884 = vshll.u32 %v489, 16
      %v886 = vrot.slane %v884, 5
      %v887 = vor.u32 %v883, %v886
      %v888 = vrot.slane %v887, 4
      %v890 = vshll.u32 %v490, 16
      %v892 = vrot.slane %v890, 5
      %v893 = vsel %vm501, %v888, %v892
      %v895 = vshrl.u32 %v491, 16
      %v897 = vrot.slane %v895, 4
      %v898 = vshll.u32 %v491, 16
      %v900 = vrot.slane %v898, 5
      %v901 = vor.u32 %v897, %v900
      %v902 = vrot.slane %v901, 4
      %v904 = vshll.u32 %v492, 16
      %v906 = vrot.slane %v904, 5
      %v907 = vsel %vm501, %v902, %v906
      %v909 = vshrl.u32 %v493, 16
      %v911 = vrot.slane %v909, 4
      %v912 = vshll.u32 %v493, 16
      %v914 = vrot.slane %v912, 5
      %v915 = vor.u32 %v911, %v914
      %v916 = vrot.slane %v915, 4
      %v918 = vshll.u32 %v494, 16
      %v920 = vrot.slane %v918, 5
      %v921 = vsel %vm501, %v916, %v920
      %v923 = vshrl.u32 %v495, 16
      %v925 = vrot.slane %v923, 4
      %v926 = vshll.u32 %v495, 16
      %v928 = vrot.slane %v926, 5
      %v929 = vor.u32 %v925, %v928
      %v930 = vrot.slane %v929, 4
      %v932 = vshll.u32 %v496, 16
      %v934 = vrot.slane %v932, 5
      %v935 = vsel %vm501, %v930, %v934
      %v937 = vshrl.u32 %v497, 16
      %v939 = vrot.slane %v937, 4
      %v940 = vshll.u32 %v497, 16
      %v942 = vrot.slane %v940, 5
      %v943 = vor.u32 %v939, %v942
      %v944 = vrot.slane %v943, 4
      %v946 = vshll.u32 %v498, 16
      %v948 = vrot.slane %v946, 5
      %v949 = vsel %vm501, %v944, %v948
      %v950 = vunpack.c.l.b16 %v515
      %v951 = vunpack.c.l.b16 %v529
      %v952 = vunpack.c.l.b16 %v543
      %v953 = vunpack.c.l.b16 %v557
      %v954 = vunpack.c.l.b16 %v571
      %v955 = vunpack.c.l.b16 %v585
      %v956 = vunpack.c.l.b16 %v599
      %v957 = vunpack.c.l.b16 %v613
      %v958 = vunpack.c.l.b16 %v627
      %v959 = vunpack.c.l.b16 %v641
      %v960 = vunpack.c.l.b16 %v655
      %v961 = vunpack.c.l.b16 %v669
      %v962 = vunpack.c.l.b16 %v683
      %v963 = vunpack.c.l.b16 %v697
      %v964 = vunpack.c.l.b16 %v711
      %v965 = vunpack.c.l.b16 %v725
      %v966 = vunpack.c.l.b16 %v739
      %v967 = vunpack.c.l.b16 %v753
      %v968 = vunpack.c.l.b16 %v767
      %v969 = vunpack.c.l.b16 %v781
      %v970 = vunpack.c.l.b16 %v795
      %v971 = vunpack.c.l.b16 %v809
      %v972 = vunpack.c.l.b16 %v823
      %v973 = vunpack.c.l.b16 %v837
      %v974 = vunpack.c.l.b16 %v851
      %v975 = vunpack.c.l.b16 %v865
      %v976 = vunpack.c.l.b16 %v879
      %v977 = vunpack.c.l.b16 %v893
      %v978 = vunpack.c.l.b16 %v907
      %v979 = vunpack.c.l.b16 %v921
      %v980 = vunpack.c.l.b16 %v935
      %v981 = vunpack.c.l.b16 %v949
      %v982 = vpack.c.b16 %v951, %v950
      %v983 = vpack.c.b16 %v953, %v952
      %v984 = vpack.c.b16 %v955, %v954
      %v985 = vpack.c.b16 %v957, %v956
      %v986 = vpack.c.b16 %v959, %v958
      %v987 = vpack.c.b16 %v961, %v960
      %v988 = vpack.c.b16 %v963, %v962
      %v989 = vpack.c.b16 %v965, %v964
      %v990 = vpack.c.b16 %v967, %v966
      %v991 = vpack.c.b16 %v969, %v968
      %v992 = vpack.c.b16 %v971, %v970
      %v993 = vpack.c.b16 %v973, %v972
      %v994 = vpack.c.b16 %v975, %v974
      %v995 = vpack.c.b16 %v977, %v976
      %v996 = vpack.c.b16 %v979, %v978
      %v997 = vpack.c.b16 %v981, %v980
      %998 = vrot.lane.b32.xlu0 %v982, 8
      %v999 = vpop.permute.xlu0 %998
      %1000 = vrot.lane.b32.xlu0 %v983, 8
      %v1001 = vpop.permute.xlu0 %1000
      %1002 = vrot.lane.b32.xlu0 %v984, 8
      %v1003 = vpop.permute.xlu0 %1002
      %1004 = vrot.lane.b32.xlu0 %v985, 8
      %v1005 = vpop.permute.xlu0 %1004
      %1006 = vrot.lane.b32.xlu0 %v986, 8
      %v1007 = vpop.permute.xlu0 %1006
      %1008 = vrot.lane.b32.xlu0 %v987, 8
      %v1009 = vpop.permute.xlu0 %1008
      %1010 = vrot.lane.b32.xlu0 %v988, 8
      %v1011 = vpop.permute.xlu0 %1010
      %1012 = vrot.lane.b32.xlu0 %v989, 8
      %v1013 = vpop.permute.xlu0 %1012
      %1014 = vrot.lane.b32.xlu0 %v990, 8
      %v1015 = vpop.permute.xlu0 %1014
      %1016 = vrot.lane.b32.xlu0 %v991, 8
      %v1017 = vpop.permute.xlu0 %1016
      %1018 = vrot.lane.b32.xlu0 %v992, 8
      %v1019 = vpop.permute.xlu0 %1018
      %1020 = vrot.lane.b32.xlu0 %v993, 8
      %v1021 = vpop.permute.xlu0 %1020
      %1022 = vrot.lane.b32.xlu0 %v994, 8
      %v1023 = vpop.permute.xlu0 %1022
      %1024 = vrot.lane.b32.xlu0 %v995, 8
      %v1025 = vpop.permute.xlu0 %1024
      %1026 = vrot.lane.b32.xlu0 %v996, 8
      %v1027 = vpop.permute.xlu0 %1026
      %1028 = vrot.lane.b32.xlu0 %v997, 8
      %v1029 = vpop.permute.xlu0 %1028
      %vm1046 = vcmask 130112
      %1047 = vst.msk [vmem:[#allocation2] sm:$0xff] %vm1046, %v999
      %1048 = vst.msk [vmem:[#allocation2 + $0x10] sm:$0xff] %vm1046, %v1001
      %1049 = vst.msk [vmem:[#allocation2 + $0x20] sm:$0xff] %vm1046, %v1003
      %1050 = vst.msk [vmem:[#allocation2 + $0x30] sm:$0xff] %vm1046, %v1005
      %1051 = vst.msk [vmem:[#allocation2 + $0x40] sm:$0xff] %vm1046, %v1007
      %1052 = vst.msk [vmem:[#allocation2 + $0x50] sm:$0xff] %vm1046, %v1009
      %1053 = vst.msk [vmem:[#allocation2 + $0x60] sm:$0xff] %vm1046, %v1011
      %1054 = vst.msk [vmem:[#allocation2 + $0x70] sm:$0xff] %vm1046, %v1013
      %1055 = vst.msk [vmem:[#allocation2 + $0x80] sm:$0xff] %vm1046, %v1015
      %1056 = vst.msk [vmem:[#allocation2 + $0x90] sm:$0xff] %vm1046, %v1017
      %1057 = vst.msk [vmem:[#allocation2 + $0xa0] sm:$0xff] %vm1046, %v1019
      %1058 = vst.msk [vmem:[#allocation2 + $0xb0] sm:$0xff] %vm1046, %v1021
      %1059 = vst.msk [vmem:[#allocation2 + $0xc0] sm:$0xff] %vm1046, %v1023
      %1060 = vst.msk [vmem:[#allocation2 + $0xd0] sm:$0xff] %vm1046, %v1025
      %1061 = vst.msk [vmem:[#allocation2 + $0xe0] sm:$0xff] %vm1046, %v1027
      %1062 = vst.msk [vmem:[#allocation2 + $0xf0] sm:$0xff] %vm1046, %v1029
      %v1063 = vld [vmem:[%s289] sm:$0xe]
      %v1064 = vld [vmem:[%s289 + $0x4] sm:$0x1]
      %v1065 = vld [vmem:[%s289 + $0x8] sm:$0xe]
      %v1066 = vld [vmem:[%s289 + $0xc] sm:$0x1]
      %v1067 = vld [vmem:[%s289 + $0x10] sm:$0xe]
      %v1068 = vld [vmem:[%s289 + $0x14] sm:$0x1]
      %v1069 = vld [vmem:[%s289 + $0x18] sm:$0xe]
      %v1070 = vld [vmem:[%s289 + $0x1c] sm:$0x1]
      %v1071 = vld [vmem:[%s289 + $0x20] sm:$0xe]
      %v1072 = vld [vmem:[%s289 + $0x24] sm:$0x1]
      %v1073 = vld [vmem:[%s289 + $0x28] sm:$0xe]
      %v1074 = vld [vmem:[%s289 + $0x2c] sm:$0x1]
      %v1075 = vld [vmem:[%s289 + $0x30] sm:$0xe]
      %v1076 = vld [vmem:[%s289 + $0x34] sm:$0x1]
      %v1077 = vld [vmem:[%s289 + $0x38] sm:$0xe]
      %v1078 = vld [vmem:[%s289 + $0x3c] sm:$0x1]
      %v1079 = vld [vmem:[%s289 + $0x50] sm:$0xe]
      %v1080 = vld [vmem:[%s289 + $0x54] sm:$0x1]
      %v1081 = vld [vmem:[%s289 + $0x58] sm:$0xe]
      %v1082 = vld [vmem:[%s289 + $0x5c] sm:$0x1]
      %v1083 = vld [vmem:[%s289 + $0x60] sm:$0xe]
      %v1084 = vld [vmem:[%s289 + $0x64] sm:$0x1]
      %v1085 = vld [vmem:[%s289 + $0x68] sm:$0xe]
      %v1086 = vld [vmem:[%s289 + $0x6c] sm:$0x1]
      %v1087 = vld [vmem:[%s289 + $0x70] sm:$0xe]
      %v1088 = vld [vmem:[%s289 + $0x74] sm:$0x1]
      %v1089 = vld [vmem:[%s289 + $0x78] sm:$0xe]
      %v1090 = vld [vmem:[%s289 + $0x7c] sm:$0x1]
      %v1091 = vld [vmem:[%s289 + $0x80] sm:$0xe]
      %v1092 = vld [vmem:[%s289 + $0x84] sm:$0x1]
      %v1093 = vld [vmem:[%s289 + $0x88] sm:$0xe]
      %v1094 = vld [vmem:[%s289 + $0x8c] sm:$0x1]
      %v1095 = vld [vmem:[%s289 + $0xa0] sm:$0xe]
      %v1096 = vld [vmem:[%s289 + $0xa4] sm:$0x1]
      %v1097 = vld [vmem:[%s289 + $0xa8] sm:$0xe]
      %v1098 = vld [vmem:[%s289 + $0xac] sm:$0x1]
      %v1099 = vld [vmem:[%s289 + $0xb0] sm:$0xe]
      %v1100 = vld [vmem:[%s289 + $0xb4] sm:$0x1]
      %v1101 = vld [vmem:[%s289 + $0xb8] sm:$0xe]
      %v1102 = vld [vmem:[%s289 + $0xbc] sm:$0x1]
      %v1103 = vld [vmem:[%s289 + $0xc0] sm:$0xe]
      %v1104 = vld [vmem:[%s289 + $0xc4] sm:$0x1]
      %v1105 = vld [vmem:[%s289 + $0xc8] sm:$0xe]
      %v1106 = vld [vmem:[%s289 + $0xcc] sm:$0x1]
      %v1107 = vld [vmem:[%s289 + $0xd0] sm:$0xe]
      %v1108 = vld [vmem:[%s289 + $0xd4] sm:$0x1]
      %v1109 = vld [vmem:[%s289 + $0xd8] sm:$0xe]
      %v1110 = vld [vmem:[%s289 + $0xdc] sm:$0x1]
      %v1111 = vld [vmem:[%s289 + $0xf0] sm:$0xe]
      %v1112 = vld [vmem:[%s289 + $0xf4] sm:$0x1]
      %v1113 = vld [vmem:[%s289 + $0xf8] sm:$0xe]
      %v1114 = vld [vmem:[%s289 + $0xfc] sm:$0x1]
      %v1115 = vld [vmem:[%s289 + $0x100] sm:$0xe]
      %v1116 = vld [vmem:[%s289 + $0x104] sm:$0x1]
      %v1117 = vld [vmem:[%s289 + $0x108] sm:$0xe]
      %v1118 = vld [vmem:[%s289 + $0x10c] sm:$0x1]
      %v1119 = vld [vmem:[%s289 + $0x110] sm:$0xe]
      %v1120 = vld [vmem:[%s289 + $0x114] sm:$0x1]
      %v1121 = vld [vmem:[%s289 + $0x118] sm:$0xe]
      %v1122 = vld [vmem:[%s289 + $0x11c] sm:$0x1]
      %v1123 = vld [vmem:[%s289 + $0x120] sm:$0xe]
      %v1124 = vld [vmem:[%s289 + $0x124] sm:$0x1]
      %v1125 = vld [vmem:[%s289 + $0x128] sm:$0xe]
      %v1126 = vld [vmem:[%s289 + $0x12c] sm:$0x1]
      %vm1191 = vcmask 1042432
      %vm1192 = vcmask 1046532
      %vm1193 = vmor %vm1191, %vm1192
      %v1194 = vrot.slane %v1063, 5
      %v1195 = vrot.slane %v1194, 4
      %v1196 = vrot.slane %v1064, 5
      %v1197 = vsel %vm1193, %v1195, %v1196
      %v1198 = vrot.slane %v1065, 5
      %v1199 = vrot.slane %v1198, 4
      %v1200 = vrot.slane %v1066, 5
      %v1201 = vsel %vm1193, %v1199, %v1200
      %v1202 = vrot.slane %v1067, 5
      %v1203 = vrot.slane %v1202, 4
      %v1204 = vrot.slane %v1068, 5
      %v1205 = vsel %vm1193, %v1203, %v1204
      %v1206 = vrot.slane %v1069, 5
      %v1207 = vrot.slane %v1206, 4
      %v1208 = vrot.slane %v1070, 5
      %v1209 = vsel %vm1193, %v1207, %v1208
      %v1210 = vrot.slane %v1071, 5
      %v1211 = vrot.slane %v1210, 4
      %v1212 = vrot.slane %v1072, 5
      %v1213 = vsel %vm1193, %v1211, %v1212
      %v1214 = vrot.slane %v1073, 5
      %v1215 = vrot.slane %v1214, 4
      %v1216 = vrot.slane %v1074, 5
      %v1217 = vsel %vm1193, %v1215, %v1216
      %v1218 = vrot.slane %v1075, 5
      %v1219 = vrot.slane %v1218, 4
      %v1220 = vrot.slane %v1076, 5
      %v1221 = vsel %vm1193, %v1219, %v1220
      %v1222 = vrot.slane %v1077, 5
      %v1223 = vrot.slane %v1222, 4
      %v1224 = vrot.slane %v1078, 5
      %v1225 = vsel %vm1193, %v1223, %v1224
      %v1226 = vrot.slane %v1079, 5
      %v1227 = vrot.slane %v1226, 4
      %v1228 = vrot.slane %v1080, 5
      %v1229 = vsel %vm1193, %v1227, %v1228
      %v1230 = vrot.slane %v1081, 5
      %v1231 = vrot.slane %v1230, 4
      %v1232 = vrot.slane %v1082, 5
      %v1233 = vsel %vm1193, %v1231, %v1232
      %v1234 = vrot.slane %v1083, 5
      %v1235 = vrot.slane %v1234, 4
      %v1236 = vrot.slane %v1084, 5
      %v1237 = vsel %vm1193, %v1235, %v1236
      %v1238 = vrot.slane %v1085, 5
      %v1239 = vrot.slane %v1238, 4
      %v1240 = vrot.slane %v1086, 5
      %v1241 = vsel %vm1193, %v1239, %v1240
      %v1242 = vrot.slane %v1087, 5
      %v1243 = vrot.slane %v1242, 4
      %v1244 = vrot.slane %v1088, 5
      %v1245 = vsel %vm1193, %v1243, %v1244
      %v1246 = vrot.slane %v1089, 5
      %v1247 = vrot.slane %v1246, 4
      %v1248 = vrot.slane %v1090, 5
      %v1249 = vsel %vm1193, %v1247, %v1248
      %v1250 = vrot.slane %v1091, 5
      %v1251 = vrot.slane %v1250, 4
      %v1252 = vrot.slane %v1092, 5
      %v1253 = vsel %vm1193, %v1251, %v1252
      %v1254 = vrot.slane %v1093, 5
      %v1255 = vrot.slane %v1254, 4
      %v1256 = vrot.slane %v1094, 5
      %v1257 = vsel %vm1193, %v1255, %v1256
      %v1258 = vrot.slane %v1095, 5
      %v1259 = vrot.slane %v1258, 4
      %v1260 = vrot.slane %v1096, 5
      %v1261 = vsel %vm1193, %v1259, %v1260
      %v1262 = vrot.slane %v1097, 5
      %v1263 = vrot.slane %v1262, 4
      %v1264 = vrot.slane %v1098, 5
      %v1265 = vsel %vm1193, %v1263, %v1264
      %v1266 = vrot.slane %v1099, 5
      %v1267 = vrot.slane %v1266, 4
      %v1268 = vrot.slane %v1100, 5
      %v1269 = vsel %vm1193, %v1267, %v1268
      %v1270 = vrot.slane %v1101, 5
      %v1271 = vrot.slane %v1270, 4
      %v1272 = vrot.slane %v1102, 5
      %v1273 = vsel %vm1193, %v1271, %v1272
      %v1274 = vrot.slane %v1103, 5
      %v1275 = vrot.slane %v1274, 4
      %v1276 = vrot.slane %v1104, 5
      %v1277 = vsel %vm1193, %v1275, %v1276
      %v1278 = vrot.slane %v1105, 5
      %v1279 = vrot.slane %v1278, 4
      %v1280 = vrot.slane %v1106, 5
      %v1281 = vsel %vm1193, %v1279, %v1280
      %v1282 = vrot.slane %v1107, 5
      %v1283 = vrot.slane %v1282, 4
      %v1284 = vrot.slane %v1108, 5
      %v1285 = vsel %vm1193, %v1283, %v1284
      %v1286 = vrot.slane %v1109, 5
      %v1287 = vrot.slane %v1286, 4
      %v1288 = vrot.slane %v1110, 5
      %v1289 = vsel %vm1193, %v1287, %v1288
      %v1290 = vrot.slane %v1111, 5
      %v1291 = vrot.slane %v1290, 4
      %v1292 = vrot.slane %v1112, 5
      %v1293 = vsel %vm1193, %v1291, %v1292
      %v1294 = vrot.slane %v1113, 5
      %v1295 = vrot.slane %v1294, 4
      %v1296 = vrot.slane %v1114, 5
      %v1297 = vsel %vm1193, %v1295, %v1296
      %v1298 = vrot.slane %v1115, 5
      %v1299 = vrot.slane %v1298, 4
      %v1300 = vrot.slane %v1116, 5
      %v1301 = vsel %vm1193, %v1299, %v1300
      %v1302 = vrot.slane %v1117, 5
      %v1303 = vrot.slane %v1302, 4
      %v1304 = vrot.slane %v1118, 5
      %v1305 = vsel %vm1193, %v1303, %v1304
      %v1306 = vrot.slane %v1119, 5
      %v1307 = vrot.slane %v1306, 4
      %v1308 = vrot.slane %v1120, 5
      %v1309 = vsel %vm1193, %v1307, %v1308
      %v1310 = vrot.slane %v1121, 5
      %v1311 = vrot.slane %v1310, 4
      %v1312 = vrot.slane %v1122, 5
      %v1313 = vsel %vm1193, %v1311, %v1312
      %v1314 = vrot.slane %v1123, 5
      %v1315 = vrot.slane %v1314, 4
      %v1316 = vrot.slane %v1124, 5
      %v1317 = vsel %vm1193, %v1315, %v1316
      %v1318 = vrot.slane %v1125, 5
      %v1319 = vrot.slane %v1318, 4
      %v1320 = vrot.slane %v1126, 5
      %v1321 = vsel %vm1193, %v1319, %v1320
      %v1322 = vunpack.c.l.b16 %v1197
      %v1323 = vunpack.c.l.b16 %v1201
      %v1324 = vunpack.c.l.b16 %v1205
      %v1325 = vunpack.c.l.b16 %v1209
      %v1326 = vunpack.c.l.b16 %v1213
      %v1327 = vunpack.c.l.b16 %v1217
      %v1328 = vunpack.c.l.b16 %v1221
      %v1329 = vunpack.c.l.b16 %v1225
      %v1330 = vunpack.c.l.b16 %v1229
      %v1331 = vunpack.c.l.b16 %v1233
      %v1332 = vunpack.c.l.b16 %v1237
      %v1333 = vunpack.c.l.b16 %v1241
      %v1334 = vunpack.c.l.b16 %v1245
      %v1335 = vunpack.c.l.b16 %v1249
      %v1336 = vunpack.c.l.b16 %v1253
      %v1337 = vunpack.c.l.b16 %v1257
      %v1338 = vunpack.c.l.b16 %v1261
      %v1339 = vunpack.c.l.b16 %v1265
      %v1340 = vunpack.c.l.b16 %v1269
      %v1341 = vunpack.c.l.b16 %v1273
      %v1342 = vunpack.c.l.b16 %v1277
      %v1343 = vunpack.c.l.b16 %v1281
      %v1344 = vunpack.c.l.b16 %v1285
      %v1345 = vunpack.c.l.b16 %v1289
      %v1346 = vunpack.c.l.b16 %v1293
      %v1347 = vunpack.c.l.b16 %v1297
      %v1348 = vunpack.c.l.b16 %v1301
      %v1349 = vunpack.c.l.b16 %v1305
      %v1350 = vunpack.c.l.b16 %v1309
      %v1351 = vunpack.c.l.b16 %v1313
      %v1352 = vunpack.c.l.b16 %v1317
      %v1353 = vunpack.c.l.b16 %v1321
      %v1354 = vpack.c.b16 %v1323, %v1322
      %v1355 = vpack.c.b16 %v1325, %v1324
      %v1356 = vpack.c.b16 %v1327, %v1326
      %v1357 = vpack.c.b16 %v1329, %v1328
      %v1358 = vpack.c.b16 %v1331, %v1330
      %v1359 = vpack.c.b16 %v1333, %v1332
      %v1360 = vpack.c.b16 %v1335, %v1334
      %v1361 = vpack.c.b16 %v1337, %v1336
      %v1362 = vpack.c.b16 %v1339, %v1338
      %v1363 = vpack.c.b16 %v1341, %v1340
      %v1364 = vpack.c.b16 %v1343, %v1342
      %v1365 = vpack.c.b16 %v1345, %v1344
      %v1366 = vpack.c.b16 %v1347, %v1346
      %v1367 = vpack.c.b16 %v1349, %v1348
      %v1368 = vpack.c.b16 %v1351, %v1350
      %v1369 = vpack.c.b16 %v1353, %v1352
      %1370 = vrot.lane.b32.xlu0 %v1354, 16
      %v1371 = vpop.permute.xlu0 %1370
      %1372 = vrot.lane.b32.xlu0 %v1355, 16
      %v1373 = vpop.permute.xlu0 %1372
      %1374 = vrot.lane.b32.xlu0 %v1356, 16
      %v1375 = vpop.permute.xlu0 %1374
      %1376 = vrot.lane.b32.xlu0 %v1357, 16
      %v1377 = vpop.permute.xlu0 %1376
      %1378 = vrot.lane.b32.xlu0 %v1358, 16
      %v1379 = vpop.permute.xlu0 %1378
      %1380 = vrot.lane.b32.xlu0 %v1359, 16
      %v1381 = vpop.permute.xlu0 %1380
      %1382 = vrot.lane.b32.xlu0 %v1360, 16
      %v1383 = vpop.permute.xlu0 %1382
      %1384 = vrot.lane.b32.xlu0 %v1361, 16
      %v1385 = vpop.permute.xlu0 %1384
      %1386 = vrot.lane.b32.xlu0 %v1362, 16
      %v1387 = vpop.permute.xlu0 %1386
      %1388 = vrot.lane.b32.xlu0 %v1363, 16
      %v1389 = vpop.permute.xlu0 %1388
      %1390 = vrot.lane.b32.xlu0 %v1364, 16
      %v1391 = vpop.permute.xlu0 %1390
      %1392 = vrot.lane.b32.xlu0 %v1365, 16
      %v1393 = vpop.permute.xlu0 %1392
      %1394 = vrot.lane.b32.xlu0 %v1366, 16
      %v1395 = vpop.permute.xlu0 %1394
      %1396 = vrot.lane.b32.xlu0 %v1367, 16
      %v1397 = vpop.permute.xlu0 %1396
      %1398 = vrot.lane.b32.xlu0 %v1368, 16
      %v1399 = vpop.permute.xlu0 %1398
      %1400 = vrot.lane.b32.xlu0 %v1369, 16
      %v1401 = vpop.permute.xlu0 %1400
      %vm1418 = vcmask 195712
      %1419 = vst.msk [vmem:[#allocation2] sm:$0xff] %vm1418, %v1371
      %1420 = vst.msk [vmem:[#allocation2 + $0x10] sm:$0xff] %vm1418, %v1373
      %1421 = vst.msk [vmem:[#allocation2 + $0x20] sm:$0xff] %vm1418, %v1375
      %1422 = vst.msk [vmem:[#allocation2 + $0x30] sm:$0xff] %vm1418, %v1377
      %1423 = vst.msk [vmem:[#allocation2 + $0x40] sm:$0xff] %vm1418, %v1379
      %1424 = vst.msk [vmem:[#allocation2 + $0x50] sm:$0xff] %vm1418, %v1381
      %1425 = vst.msk [vmem:[#allocation2 + $0x60] sm:$0xff] %vm1418, %v1383
      %1426 = vst.msk [vmem:[#allocation2 + $0x70] sm:$0xff] %vm1418, %v1385
      %1427 = vst.msk [vmem:[#allocation2 + $0x80] sm:$0xff] %vm1418, %v1387
      %1428 = vst.msk [vmem:[#allocation2 + $0x90] sm:$0xff] %vm1418, %v1389
      %1429 = vst.msk [vmem:[#allocation2 + $0xa0] sm:$0xff] %vm1418, %v1391
      %1430 = vst.msk [vmem:[#allocation2 + $0xb0] sm:$0xff] %vm1418, %v1393
      %1431 = vst.msk [vmem:[#allocation2 + $0xc0] sm:$0xff] %vm1418, %v1395
      %1432 = vst.msk [vmem:[#allocation2 + $0xd0] sm:$0xff] %vm1418, %v1397
      %1433 = vst.msk [vmem:[#allocation2 + $0xe0] sm:$0xff] %vm1418, %v1399
      %1434 = vst.msk [vmem:[#allocation2 + $0xf0] sm:$0xff] %vm1418, %v1401
      %s1435 = sadd.s32 2, %s287
      %s1436 = smul.addr %s1435, 4
      %s1437 = scalar_lea.vmem %s260, %s1436
      %v1438 = vld [vmem:[%s1437] sm:$0xf]
      %v1439 = vld [vmem:[%s1437 + $0x8] sm:$0xf]
      %v1440 = vld [vmem:[%s1437 + $0x10] sm:$0xf]
      %v1441 = vld [vmem:[%s1437 + $0x18] sm:$0xf]
      %v1442 = vld [vmem:[%s1437 + $0x20] sm:$0xf]
      %v1443 = vld [vmem:[%s1437 + $0x28] sm:$0xf]
      %v1444 = vld [vmem:[%s1437 + $0x30] sm:$0xf]
      %v1445 = vld [vmem:[%s1437 + $0x38] sm:$0xf]
      %v1446 = vld [vmem:[%s1437 + $0x50] sm:$0xf]
      %v1447 = vld [vmem:[%s1437 + $0x58] sm:$0xf]
      %v1448 = vld [vmem:[%s1437 + $0x60] sm:$0xf]
      %v1449 = vld [vmem:[%s1437 + $0x68] sm:$0xf]
      %v1450 = vld [vmem:[%s1437 + $0x70] sm:$0xf]
      %v1451 = vld [vmem:[%s1437 + $0x78] sm:$0xf]
      %v1452 = vld [vmem:[%s1437 + $0x80] sm:$0xf]
      %v1453 = vld [vmem:[%s1437 + $0x88] sm:$0xf]
      %v1454 = vld [vmem:[%s1437 + $0xa0] sm:$0xf]
      %v1455 = vld [vmem:[%s1437 + $0xa8] sm:$0xf]
      %v1456 = vld [vmem:[%s1437 + $0xb0] sm:$0xf]
      %v1457 = vld [vmem:[%s1437 + $0xb8] sm:$0xf]
      %v1458 = vld [vmem:[%s1437 + $0xc0] sm:$0xf]
      %v1459 = vld [vmem:[%s1437 + $0xc8] sm:$0xf]
      %v1460 = vld [vmem:[%s1437 + $0xd0] sm:$0xf]
      %v1461 = vld [vmem:[%s1437 + $0xd8] sm:$0xf]
      %v1462 = vld [vmem:[%s1437 + $0xf0] sm:$0xf]
      %v1463 = vld [vmem:[%s1437 + $0xf8] sm:$0xf]
      %v1464 = vld [vmem:[%s1437 + $0x100] sm:$0xf]
      %v1465 = vld [vmem:[%s1437 + $0x108] sm:$0xf]
      %v1466 = vld [vmem:[%s1437 + $0x110] sm:$0xf]
      %v1467 = vld [vmem:[%s1437 + $0x118] sm:$0xf]
      %v1468 = vld [vmem:[%s1437 + $0x120] sm:$0xf]
      %v1469 = vld [vmem:[%s1437 + $0x128] sm:$0xf]
      %v1502 = vunpack.c.l.b16 %v1438
      %v1503 = vunpack.c.l.b16 %v1439
      %v1504 = vunpack.c.l.b16 %v1440
      %v1505 = vunpack.c.l.b16 %v1441
      %v1506 = vunpack.c.l.b16 %v1442
      %v1507 = vunpack.c.l.b16 %v1443
      %v1508 = vunpack.c.l.b16 %v1444
      %v1509 = vunpack.c.l.b16 %v1445
      %v1510 = vunpack.c.l.b16 %v1446
      %v1511 = vunpack.c.l.b16 %v1447
      %v1512 = vunpack.c.l.b16 %v1448
      %v1513 = vunpack.c.l.b16 %v1449
      %v1514 = vunpack.c.l.b16 %v1450
      %v1515 = vunpack.c.l.b16 %v1451
      %v1516 = vunpack.c.l.b16 %v1452
      %v1517 = vunpack.c.l.b16 %v1453
      %v1518 = vunpack.c.l.b16 %v1454
      %v1519 = vunpack.c.l.b16 %v1455
      %v1520 = vunpack.c.l.b16 %v1456
      %v1521 = vunpack.c.l.b16 %v1457
      %v1522 = vunpack.c.l.b16 %v1458
      %v1523 = vunpack.c.l.b16 %v1459
      %v1524 = vunpack.c.l.b16 %v1460
      %v1525 = vunpack.c.l.b16 %v1461
      %v1526 = vunpack.c.l.b16 %v1462
      %v1527 = vunpack.c.l.b16 %v1463
      %v1528 = vunpack.c.l.b16 %v1464
      %v1529 = vunpack.c.l.b16 %v1465
      %v1530 = vunpack.c.l.b16 %v1466
      %v1531 = vunpack.c.l.b16 %v1467
      %v1532 = vunpack.c.l.b16 %v1468
      %v1533 = vunpack.c.l.b16 %v1469
      %v1534 = vpack.c.b16 %v1503, %v1502
      %v1535 = vpack.c.b16 %v1505, %v1504
      %v1536 = vpack.c.b16 %v1507, %v1506
      %v1537 = vpack.c.b16 %v1509, %v1508
      %v1538 = vpack.c.b16 %v1511, %v1510
      %v1539 = vpack.c.b16 %v1513, %v1512
      %v1540 = vpack.c.b16 %v1515, %v1514
      %v1541 = vpack.c.b16 %v1517, %v1516
      %v1542 = vpack.c.b16 %v1519, %v1518
      %v1543 = vpack.c.b16 %v1521, %v1520
      %v1544 = vpack.c.b16 %v1523, %v1522
      %v1545 = vpack.c.b16 %v1525, %v1524
      %v1546 = vpack.c.b16 %v1527, %v1526
      %v1547 = vpack.c.b16 %v1529, %v1528
      %v1548 = vpack.c.b16 %v1531, %v1530
      %v1549 = vpack.c.b16 %v1533, %v1532
      %1550 = vrot.lane.b32.xlu0 %v1534, 24
      %v1551 = vpop.permute.xlu0 %1550
      %1552 = vrot.lane.b32.xlu0 %v1535, 24
      %v1553 = vpop.permute.xlu0 %1552
      %1554 = vrot.lane.b32.xlu0 %v1536, 24
      %v1555 = vpop.permute.xlu0 %1554
      %1556 = vrot.lane.b32.xlu0 %v1537, 24
      %v1557 = vpop.permute.xlu0 %1556
      %1558 = vrot.lane.b32.xlu0 %v1538, 24
      %v1559 = vpop.permute.xlu0 %1558
      %1560 = vrot.lane.b32.xlu0 %v1539, 24
      %v1561 = vpop.permute.xlu0 %1560
      %1562 = vrot.lane.b32.xlu0 %v1540, 24
      %v1563 = vpop.permute.xlu0 %1562
      %1564 = vrot.lane.b32.xlu0 %v1541, 24
      %v1565 = vpop.permute.xlu0 %1564
      %1566 = vrot.lane.b32.xlu0 %v1542, 24
      %v1567 = vpop.permute.xlu0 %1566
      %1568 = vrot.lane.b32.xlu0 %v1543, 24
      %v1569 = vpop.permute.xlu0 %1568
      %1570 = vrot.lane.b32.xlu0 %v1544, 24
      %v1571 = vpop.permute.xlu0 %1570
      %1572 = vrot.lane.b32.xlu0 %v1545, 24
      %v1573 = vpop.permute.xlu0 %1572
      %1574 = vrot.lane.b32.xlu0 %v1546, 24
      %v1575 = vpop.permute.xlu0 %1574
      %1576 = vrot.lane.b32.xlu0 %v1547, 24
      %v1577 = vpop.permute.xlu0 %1576
      %1578 = vrot.lane.b32.xlu0 %v1548, 24
      %v1579 = vpop.permute.xlu0 %1578
      %1580 = vrot.lane.b32.xlu0 %v1549, 24
      %v1581 = vpop.permute.xlu0 %1580
      %vm1598 = vcmask 261312
      %1599 = vst.msk [vmem:[#allocation2] sm:$0xff] %vm1598, %v1551
      %1600 = vst.msk [vmem:[#allocation2 + $0x10] sm:$0xff] %vm1598, %v1553
      %1601 = vst.msk [vmem:[#allocation2 + $0x20] sm:$0xff] %vm1598, %v1555
      %1602 = vst.msk [vmem:[#allocation2 + $0x30] sm:$0xff] %vm1598, %v1557
      %1603 = vst.msk [vmem:[#allocation2 + $0x40] sm:$0xff] %vm1598, %v1559
      %1604 = vst.msk [vmem:[#allocation2 + $0x50] sm:$0xff] %vm1598, %v1561
      %1605 = vst.msk [vmem:[#allocation2 + $0x60] sm:$0xff] %vm1598, %v1563
      %1606 = vst.msk [vmem:[#allocation2 + $0x70] sm:$0xff] %vm1598, %v1565
      %1607 = vst.msk [vmem:[#allocation2 + $0x80] sm:$0xff] %vm1598, %v1567
      %1608 = vst.msk [vmem:[#allocation2 + $0x90] sm:$0xff] %vm1598, %v1569
      %1609 = vst.msk [vmem:[#allocation2 + $0xa0] sm:$0xff] %vm1598, %v1571
      %1610 = vst.msk [vmem:[#allocation2 + $0xb0] sm:$0xff] %vm1598, %v1573
      %1611 = vst.msk [vmem:[#allocation2 + $0xc0] sm:$0xff] %vm1598, %v1575
      %1612 = vst.msk [vmem:[#allocation2 + $0xd0] sm:$0xff] %vm1598, %v1577
      %1613 = vst.msk [vmem:[#allocation2 + $0xe0] sm:$0xff] %vm1598, %v1579
      %1614 = vst.msk [vmem:[#allocation2 + $0xf0] sm:$0xff] %vm1598, %v1581
      %v1615 = vld [vmem:[%s1437] sm:$0xf]
      %v1616 = vld [vmem:[%s1437 + $0x4] sm:$0x1]
      %v1617 = vld [vmem:[%s1437 + $0x8] sm:$0xf]
      %v1618 = vld [vmem:[%s1437 + $0xc] sm:$0x1]
      %v1619 = vld [vmem:[%s1437 + $0x10] sm:$0xf]
      %v1620 = vld [vmem:[%s1437 + $0x14] sm:$0x1]
      %v1621 = vld [vmem:[%s1437 + $0x18] sm:$0xf]
      %v1622 = vld [vmem:[%s1437 + $0x1c] sm:$0x1]
      %v1623 = vld [vmem:[%s1437 + $0x20] sm:$0xf]
      %v1624 = vld [vmem:[%s1437 + $0x24] sm:$0x1]
      %v1625 = vld [vmem:[%s1437 + $0x28] sm:$0xf]
      %v1626 = vld [vmem:[%s1437 + $0x2c] sm:$0x1]
      %v1627 = vld [vmem:[%s1437 + $0x30] sm:$0xf]
      %v1628 = vld [vmem:[%s1437 + $0x34] sm:$0x1]
      %v1629 = vld [vmem:[%s1437 + $0x38] sm:$0xf]
      %v1630 = vld [vmem:[%s1437 + $0x3c] sm:$0x1]
      %v1631 = vld [vmem:[%s1437 + $0x50] sm:$0xf]
      %v1632 = vld [vmem:[%s1437 + $0x54] sm:$0x1]
      %v1633 = vld [vmem:[%s1437 + $0x58] sm:$0xf]
      %v1634 = vld [vmem:[%s1437 + $0x5c] sm:$0x1]
      %v1635 = vld [vmem:[%s1437 + $0x60] sm:$0xf]
      %v1636 = vld [vmem:[%s1437 + $0x64] sm:$0x1]
      %v1637 = vld [vmem:[%s1437 + $0x68] sm:$0xf]
      %v1638 = vld [vmem:[%s1437 + $0x6c] sm:$0x1]
      %v1639 = vld [vmem:[%s1437 + $0x70] sm:$0xf]
      %v1640 = vld [vmem:[%s1437 + $0x74] sm:$0x1]
      %v1641 = vld [vmem:[%s1437 + $0x78] sm:$0xf]
      %v1642 = vld [vmem:[%s1437 + $0x7c] sm:$0x1]
      %v1643 = vld [vmem:[%s1437 + $0x80] sm:$0xf]
      %v1644 = vld [vmem:[%s1437 + $0x84] sm:$0x1]
      %v1645 = vld [vmem:[%s1437 + $0x88] sm:$0xf]
      %v1646 = vld [vmem:[%s1437 + $0x8c] sm:$0x1]
      %v1647 = vld [vmem:[%s1437 + $0xa0] sm:$0xf]
      %v1648 = vld [vmem:[%s1437 + $0xa4] sm:$0x1]
      %v1649 = vld [vmem:[%s1437 + $0xa8] sm:$0xf]
      %v1650 = vld [vmem:[%s1437 + $0xac] sm:$0x1]
      %v1651 = vld [vmem:[%s1437 + $0xb0] sm:$0xf]
      %v1652 = vld [vmem:[%s1437 + $0xb4] sm:$0x1]
      %v1653 = vld [vmem:[%s1437 + $0xb8] sm:$0xf]
      %v1654 = vld [vmem:[%s1437 + $0xbc] sm:$0x1]
      %v1655 = vld [vmem:[%s1437 + $0xc0] sm:$0xf]
      %v1656 = vld [vmem:[%s1437 + $0xc4] sm:$0x1]
      %v1657 = vld [vmem:[%s1437 + $0xc8] sm:$0xf]
      %v1658 = vld [vmem:[%s1437 + $0xcc] sm:$0x1]
      %v1659 = vld [vmem:[%s1437 + $0xd0] sm:$0xf]
      %v1660 = vld [vmem:[%s1437 + $0xd4] sm:$0x1]
      %v1661 = vld [vmem:[%s1437 + $0xd8] sm:$0xf]
      %v1662 = vld [vmem:[%s1437 + $0xdc] sm:$0x1]
      %v1663 = vld [vmem:[%s1437 + $0xf0] sm:$0xf]
      %v1664 = vld [vmem:[%s1437 + $0xf4] sm:$0x1]
      %v1665 = vld [vmem:[%s1437 + $0xf8] sm:$0xf]
      %v1666 = vld [vmem:[%s1437 + $0xfc] sm:$0x1]
      %v1667 = vld [vmem:[%s1437 + $0x100] sm:$0xf]
      %v1668 = vld [vmem:[%s1437 + $0x104] sm:$0x1]
      %v1669 = vld [vmem:[%s1437 + $0x108] sm:$0xf]
      %v1670 = vld [vmem:[%s1437 + $0x10c] sm:$0x1]
      %v1671 = vld [vmem:[%s1437 + $0x110] sm:$0xf]
      %v1672 = vld [vmem:[%s1437 + $0x114] sm:$0x1]
      %v1673 = vld [vmem:[%s1437 + $0x118] sm:$0xf]
      %v1674 = vld [vmem:[%s1437 + $0x11c] sm:$0x1]
      %v1675 = vld [vmem:[%s1437 + $0x120] sm:$0xf]
      %v1676 = vld [vmem:[%s1437 + $0x124] sm:$0x1]
      %v1677 = vld [vmem:[%s1437 + $0x128] sm:$0xf]
      %v1678 = vld [vmem:[%s1437 + $0x12c] sm:$0x1]
      %v1680 = vshrl.u32 %v1615, 16
      %v1682 = vrot.slane %v1680, 4
      %v1683 = vshll.u32 %v1615, 16
      %v1685 = vrot.slane %v1683, 5
      %v1686 = vor.u32 %v1682, %v1685
      %v1687 = vrot.slane %v1686, 4
      %v1689 = vshll.u32 %v1616, 16
      %v1691 = vrot.slane %v1689, 5
      %v1692 = vsel %vm501, %v1687, %v1691
      %v1694 = vshrl.u32 %v1617, 16
      %v1696 = vrot.slane %v1694, 4
      %v1697 = vshll.u32 %v1617, 16
      %v1699 = vrot.slane %v1697, 5
      %v1700 = vor.u32 %v1696, %v1699
      %v1701 = vrot.slane %v1700, 4
      %v1703 = vshll.u32 %v1618, 16
      %v1705 = vrot.slane %v1703, 5
      %v1706 = vsel %vm501, %v1701, %v1705
      %v1708 = vshrl.u32 %v1619, 16
      %v1710 = vrot.slane %v1708, 4
      %v1711 = vshll.u32 %v1619, 16
      %v1713 = vrot.slane %v1711, 5
      %v1714 = vor.u32 %v1710, %v1713
      %v1715 = vrot.slane %v1714, 4
      %v1717 = vshll.u32 %v1620, 16
      %v1719 = vrot.slane %v1717, 5
      %v1720 = vsel %vm501, %v1715, %v1719
      %v1722 = vshrl.u32 %v1621, 16
      %v1724 = vrot.slane %v1722, 4
      %v1725 = vshll.u32 %v1621, 16
      %v1727 = vrot.slane %v1725, 5
      %v1728 = vor.u32 %v1724, %v1727
      %v1729 = vrot.slane %v1728, 4
      %v1731 = vshll.u32 %v1622, 16
      %v1733 = vrot.slane %v1731, 5
      %v1734 = vsel %vm501, %v1729, %v1733
      %v1736 = vshrl.u32 %v1623, 16
      %v1738 = vrot.slane %v1736, 4
      %v1739 = vshll.u32 %v1623, 16
      %v1741 = vrot.slane %v1739, 5
      %v1742 = vor.u32 %v1738, %v1741
      %v1743 = vrot.slane %v1742, 4
      %v1745 = vshll.u32 %v1624, 16
      %v1747 = vrot.slane %v1745, 5
      %v1748 = vsel %vm501, %v1743, %v1747
      %v1750 = vshrl.u32 %v1625, 16
      %v1752 = vrot.slane %v1750, 4
      %v1753 = vshll.u32 %v1625, 16
      %v1755 = vrot.slane %v1753, 5
      %v1756 = vor.u32 %v1752, %v1755
      %v1757 = vrot.slane %v1756, 4
      %v1759 = vshll.u32 %v1626, 16
      %v1761 = vrot.slane %v1759, 5
      %v1762 = vsel %vm501, %v1757, %v1761
      %v1764 = vshrl.u32 %v1627, 16
      %v1766 = vrot.slane %v1764, 4
      %v1767 = vshll.u32 %v1627, 16
      %v1769 = vrot.slane %v1767, 5
      %v1770 = vor.u32 %v1766, %v1769
      %v1771 = vrot.slane %v1770, 4
      %v1773 = vshll.u32 %v1628, 16
      %v1775 = vrot.slane %v1773, 5
      %v1776 = vsel %vm501, %v1771, %v1775
      %v1778 = vshrl.u32 %v1629, 16
      %v1780 = vrot.slane %v1778, 4
      %v1781 = vshll.u32 %v1629, 16
      %v1783 = vrot.slane %v1781, 5
      %v1784 = vor.u32 %v1780, %v1783
      %v1785 = vrot.slane %v1784, 4
      %v1787 = vshll.u32 %v1630, 16
      %v1789 = vrot.slane %v1787, 5
      %v1790 = vsel %vm501, %v1785, %v1789
      %v1792 = vshrl.u32 %v1631, 16
      %v1794 = vrot.slane %v1792, 4
      %v1795 = vshll.u32 %v1631, 16
      %v1797 = vrot.slane %v1795, 5
      %v1798 = vor.u32 %v1794, %v1797
      %v1799 = vrot.slane %v1798, 4
      %v1801 = vshll.u32 %v1632, 16
      %v1803 = vrot.slane %v1801, 5
      %v1804 = vsel %vm501, %v1799, %v1803
      %v1806 = vshrl.u32 %v1633, 16
      %v1808 = vrot.slane %v1806, 4
      %v1809 = vshll.u32 %v1633, 16
      %v1811 = vrot.slane %v1809, 5
      %v1812 = vor.u32 %v1808, %v1811
      %v1813 = vrot.slane %v1812, 4
      %v1815 = vshll.u32 %v1634, 16
      %v1817 = vrot.slane %v1815, 5
      %v1818 = vsel %vm501, %v1813, %v1817
      %v1820 = vshrl.u32 %v1635, 16
      %v1822 = vrot.slane %v1820, 4
      %v1823 = vshll.u32 %v1635, 16
      %v1825 = vrot.slane %v1823, 5
      %v1826 = vor.u32 %v1822, %v1825
      %v1827 = vrot.slane %v1826, 4
      %v1829 = vshll.u32 %v1636, 16
      %v1831 = vrot.slane %v1829, 5
      %v1832 = vsel %vm501, %v1827, %v1831
      %v1834 = vshrl.u32 %v1637, 16
      %v1836 = vrot.slane %v1834, 4
      %v1837 = vshll.u32 %v1637, 16
      %v1839 = vrot.slane %v1837, 5
      %v1840 = vor.u32 %v1836, %v1839
      %v1841 = vrot.slane %v1840, 4
      %v1843 = vshll.u32 %v1638, 16
      %v1845 = vrot.slane %v1843, 5
      %v1846 = vsel %vm501, %v1841, %v1845
      %v1848 = vshrl.u32 %v1639, 16
      %v1850 = vrot.slane %v1848, 4
      %v1851 = vshll.u32 %v1639, 16
      %v1853 = vrot.slane %v1851, 5
      %v1854 = vor.u32 %v1850, %v1853
      %v1855 = vrot.slane %v1854, 4
      %v1857 = vshll.u32 %v1640, 16
      %v1859 = vrot.slane %v1857, 5
      %v1860 = vsel %vm501, %v1855, %v1859
      %v1862 = vshrl.u32 %v1641, 16
      %v1864 = vrot.slane %v1862, 4
      %v1865 = vshll.u32 %v1641, 16
      %v1867 = vrot.slane %v1865, 5
      %v1868 = vor.u32 %v1864, %v1867
      %v1869 = vrot.slane %v1868, 4
      %v1871 = vshll.u32 %v1642, 16
      %v1873 = vrot.slane %v1871, 5
      %v1874 = vsel %vm501, %v1869, %v1873
      %v1876 = vshrl.u32 %v1643, 16
      %v1878 = vrot.slane %v1876, 4
      %v1879 = vshll.u32 %v1643, 16
      %v1881 = vrot.slane %v1879, 5
      %v1882 = vor.u32 %v1878, %v1881
      %v1883 = vrot.slane %v1882, 4
      %v1885 = vshll.u32 %v1644, 16
      %v1887 = vrot.slane %v1885, 5
      %v1888 = vsel %vm501, %v1883, %v1887
      %v1890 = vshrl.u32 %v1645, 16
      %v1892 = vrot.slane %v1890, 4
      %v1893 = vshll.u32 %v1645, 16
      %v1895 = vrot.slane %v1893, 5
      %v1896 = vor.u32 %v1892, %v1895
      %v1897 = vrot.slane %v1896, 4
      %v1899 = vshll.u32 %v1646, 16
      %v1901 = vrot.slane %v1899, 5
      %v1902 = vsel %vm501, %v1897, %v1901
      %v1904 = vshrl.u32 %v1647, 16
      %v1906 = vrot.slane %v1904, 4
      %v1907 = vshll.u32 %v1647, 16
      %v1909 = vrot.slane %v1907, 5
      %v1910 = vor.u32 %v1906, %v1909
      %v1911 = vrot.slane %v1910, 4
      %v1913 = vshll.u32 %v1648, 16
      %v1915 = vrot.slane %v1913, 5
      %v1916 = vsel %vm501, %v1911, %v1915
      %v1918 = vshrl.u32 %v1649, 16
      %v1920 = vrot.slane %v1918, 4
      %v1921 = vshll.u32 %v1649, 16
      %v1923 = vrot.slane %v1921, 5
      %v1924 = vor.u32 %v1920, %v1923
      %v1925 = vrot.slane %v1924, 4
      %v1927 = vshll.u32 %v1650, 16
      %v1929 = vrot.slane %v1927, 5
      %v1930 = vsel %vm501, %v1925, %v1929
      %v1932 = vshrl.u32 %v1651, 16
      %v1934 = vrot.slane %v1932, 4
      %v1935 = vshll.u32 %v1651, 16
      %v1937 = vrot.slane %v1935, 5
      %v1938 = vor.u32 %v1934, %v1937
      %v1939 = vrot.slane %v1938, 4
      %v1941 = vshll.u32 %v1652, 16
      %v1943 = vrot.slane %v1941, 5
      %v1944 = vsel %vm501, %v1939, %v1943
      %v1946 = vshrl.u32 %v1653, 16
      %v1948 = vrot.slane %v1946, 4
      %v1949 = vshll.u32 %v1653, 16
      %v1951 = vrot.slane %v1949, 5
      %v1952 = vor.u32 %v1948, %v1951
      %v1953 = vrot.slane %v1952, 4
      %v1955 = vshll.u32 %v1654, 16
      %v1957 = vrot.slane %v1955, 5
      %v1958 = vsel %vm501, %v1953, %v1957
      %v1960 = vshrl.u32 %v1655, 16
      %v1962 = vrot.slane %v1960, 4
      %v1963 = vshll.u32 %v1655, 16
      %v1965 = vrot.slane %v1963, 5
      %v1966 = vor.u32 %v1962, %v1965
      %v1967 = vrot.slane %v1966, 4
      %v1969 = vshll.u32 %v1656, 16
      %v1971 = vrot.slane %v1969, 5
      %v1972 = vsel %vm501, %v1967, %v1971
      %v1974 = vshrl.u32 %v1657, 16
      %v1976 = vrot.slane %v1974, 4
      %v1977 = vshll.u32 %v1657, 16
      %v1979 = vrot.slane %v1977, 5
      %v1980 = vor.u32 %v1976, %v1979
      %v1981 = vrot.slane %v1980, 4
      %v1983 = vshll.u32 %v1658, 16
      %v1985 = vrot.slane %v1983, 5
      %v1986 = vsel %vm501, %v1981, %v1985
      %v1988 = vshrl.u32 %v1659, 16
      %v1990 = vrot.slane %v1988, 4
      %v1991 = vshll.u32 %v1659, 16
      %v1993 = vrot.slane %v1991, 5
      %v1994 = vor.u32 %v1990, %v1993
      %v1995 = vrot.slane %v1994, 4
      %v1997 = vshll.u32 %v1660, 16
      %v1999 = vrot.slane %v1997, 5
      %v2000 = vsel %vm501, %v1995, %v1999
      %v2002 = vshrl.u32 %v1661, 16
      %v2004 = vrot.slane %v2002, 4
      %v2005 = vshll.u32 %v1661, 16
      %v2007 = vrot.slane %v2005, 5
      %v2008 = vor.u32 %v2004, %v2007
      %v2009 = vrot.slane %v2008, 4
      %v2011 = vshll.u32 %v1662, 16
      %v2013 = vrot.slane %v2011, 5
      %v2014 = vsel %vm501, %v2009, %v2013
      %v2016 = vshrl.u32 %v1663, 16
      %v2018 = vrot.slane %v2016, 4
      %v2019 = vshll.u32 %v1663, 16
      %v2021 = vrot.slane %v2019, 5
      %v2022 = vor.u32 %v2018, %v2021
      %v2023 = vrot.slane %v2022, 4
      %v2025 = vshll.u32 %v1664, 16
      %v2027 = vrot.slane %v2025, 5
      %v2028 = vsel %vm501, %v2023, %v2027
      %v2030 = vshrl.u32 %v1665, 16
      %v2032 = vrot.slane %v2030, 4
      %v2033 = vshll.u32 %v1665, 16
      %v2035 = vrot.slane %v2033, 5
      %v2036 = vor.u32 %v2032, %v2035
      %v2037 = vrot.slane %v2036, 4
      %v2039 = vshll.u32 %v1666, 16
      %v2041 = vrot.slane %v2039, 5
      %v2042 = vsel %vm501, %v2037, %v2041
      %v2044 = vshrl.u32 %v1667, 16
      %v2046 = vrot.slane %v2044, 4
      %v2047 = vshll.u32 %v1667, 16
      %v2049 = vrot.slane %v2047, 5
      %v2050 = vor.u32 %v2046, %v2049
      %v2051 = vrot.slane %v2050, 4
      %v2053 = vshll.u32 %v1668, 16
      %v2055 = vrot.slane %v2053, 5
      %v2056 = vsel %vm501, %v2051, %v2055
      %v2058 = vshrl.u32 %v1669, 16
      %v2060 = vrot.slane %v2058, 4
      %v2061 = vshll.u32 %v1669, 16
      %v2063 = vrot.slane %v2061, 5
      %v2064 = vor.u32 %v2060, %v2063
      %v2065 = vrot.slane %v2064, 4
      %v2067 = vshll.u32 %v1670, 16
      %v2069 = vrot.slane %v2067, 5
      %v2070 = vsel %vm501, %v2065, %v2069
      %v2072 = vshrl.u32 %v1671, 16
      %v2074 = vrot.slane %v2072, 4
      %v2075 = vshll.u32 %v1671, 16
      %v2077 = vrot.slane %v2075, 5
      %v2078 = vor.u32 %v2074, %v2077
      %v2079 = vrot.slane %v2078, 4
      %v2081 = vshll.u32 %v1672, 16
      %v2083 = vrot.slane %v2081, 5
      %v2084 = vsel %vm501, %v2079, %v2083
      %v2086 = vshrl.u32 %v1673, 16
      %v2088 = vrot.slane %v2086, 4
      %v2089 = vshll.u32 %v1673, 16
      %v2091 = vrot.slane %v2089, 5
      %v2092 = vor.u32 %v2088, %v2091
      %v2093 = vrot.slane %v2092, 4
      %v2095 = vshll.u32 %v1674, 16
      %v2097 = vrot.slane %v2095, 5
      %v2098 = vsel %vm501, %v2093, %v2097
      %v2100 = vshrl.u32 %v1675, 16
      %v2102 = vrot.slane %v2100, 4
      %v2103 = vshll.u32 %v1675, 16
      %v2105 = vrot.slane %v2103, 5
      %v2106 = vor.u32 %v2102, %v2105
      %v2107 = vrot.slane %v2106, 4
      %v2109 = vshll.u32 %v1676, 16
      %v2111 = vrot.slane %v2109, 5
      %v2112 = vsel %vm501, %v2107, %v2111
      %v2114 = vshrl.u32 %v1677, 16
      %v2116 = vrot.slane %v2114, 4
      %v2117 = vshll.u32 %v1677, 16
      %v2119 = vrot.slane %v2117, 5
      %v2120 = vor.u32 %v2116, %v2119
      %v2121 = vrot.slane %v2120, 4
      %v2123 = vshll.u32 %v1678, 16
      %v2125 = vrot.slane %v2123, 5
      %v2126 = vsel %vm501, %v2121, %v2125
      %v2127 = vunpack.c.l.b16 %v1692
      %v2128 = vunpack.c.l.b16 %v1706
      %v2129 = vunpack.c.l.b16 %v1720
      %v2130 = vunpack.c.l.b16 %v1734
      %v2131 = vunpack.c.l.b16 %v1748
      %v2132 = vunpack.c.l.b16 %v1762
      %v2133 = vunpack.c.l.b16 %v1776
      %v2134 = vunpack.c.l.b16 %v1790
      %v2135 = vunpack.c.l.b16 %v1804
      %v2136 = vunpack.c.l.b16 %v1818
      %v2137 = vunpack.c.l.b16 %v1832
      %v2138 = vunpack.c.l.b16 %v1846
      %v2139 = vunpack.c.l.b16 %v1860
      %v2140 = vunpack.c.l.b16 %v1874
      %v2141 = vunpack.c.l.b16 %v1888
      %v2142 = vunpack.c.l.b16 %v1902
      %v2143 = vunpack.c.l.b16 %v1916
      %v2144 = vunpack.c.l.b16 %v1930
      %v2145 = vunpack.c.l.b16 %v1944
      %v2146 = vunpack.c.l.b16 %v1958
      %v2147 = vunpack.c.l.b16 %v1972
      %v2148 = vunpack.c.l.b16 %v1986
      %v2149 = vunpack.c.l.b16 %v2000
      %v2150 = vunpack.c.l.b16 %v2014
      %v2151 = vunpack.c.l.b16 %v2028
      %v2152 = vunpack.c.l.b16 %v2042
      %v2153 = vunpack.c.l.b16 %v2056
      %v2154 = vunpack.c.l.b16 %v2070
      %v2155 = vunpack.c.l.b16 %v2084
      %v2156 = vunpack.c.l.b16 %v2098
      %v2157 = vunpack.c.l.b16 %v2112
      %v2158 = vunpack.c.l.b16 %v2126
      %v2159 = vpack.c.b16 %v2128, %v2127
      %v2160 = vpack.c.b16 %v2130, %v2129
      %v2161 = vpack.c.b16 %v2132, %v2131
      %v2162 = vpack.c.b16 %v2134, %v2133
      %v2163 = vpack.c.b16 %v2136, %v2135
      %v2164 = vpack.c.b16 %v2138, %v2137
      %v2165 = vpack.c.b16 %v2140, %v2139
      %v2166 = vpack.c.b16 %v2142, %v2141
      %v2167 = vpack.c.b16 %v2144, %v2143
      %v2168 = vpack.c.b16 %v2146, %v2145
      %v2169 = vpack.c.b16 %v2148, %v2147
      %v2170 = vpack.c.b16 %v2150, %v2149
      %v2171 = vpack.c.b16 %v2152, %v2151
      %v2172 = vpack.c.b16 %v2154, %v2153
      %v2173 = vpack.c.b16 %v2156, %v2155
      %v2174 = vpack.c.b16 %v2158, %v2157
      %2175 = vrot.lane.b32.xlu0 %v2159, 32
      %v2176 = vpop.permute.xlu0 %2175
      %2177 = vrot.lane.b32.xlu0 %v2160, 32
      %v2178 = vpop.permute.xlu0 %2177
      %2179 = vrot.lane.b32.xlu0 %v2161, 32
      %v2180 = vpop.permute.xlu0 %2179
      %2181 = vrot.lane.b32.xlu0 %v2162, 32
      %v2182 = vpop.permute.xlu0 %2181
      %2183 = vrot.lane.b32.xlu0 %v2163, 32
      %v2184 = vpop.permute.xlu0 %2183
      %2185 = vrot.lane.b32.xlu0 %v2164, 32
      %v2186 = vpop.permute.xlu0 %2185
      %2187 = vrot.lane.b32.xlu0 %v2165, 32
      %v2188 = vpop.permute.xlu0 %2187
      %2189 = vrot.lane.b32.xlu0 %v2166, 32
      %v2190 = vpop.permute.xlu0 %2189
      %2191 = vrot.lane.b32.xlu0 %v2167, 32
      %v2192 = vpop.permute.xlu0 %2191
      %2193 = vrot.lane.b32.xlu0 %v2168, 32
      %v2194 = vpop.permute.xlu0 %2193
      %2195 = vrot.lane.b32.xlu0 %v2169, 32
      %v2196 = vpop.permute.xlu0 %2195
      %2197 = vrot.lane.b32.xlu0 %v2170, 32
      %v2198 = vpop.permute.xlu0 %2197
      %2199 = vrot.lane.b32.xlu0 %v2171, 32
      %v2200 = vpop.permute.xlu0 %2199
      %2201 = vrot.lane.b32.xlu0 %v2172, 32
      %v2202 = vpop.permute.xlu0 %2201
      %2203 = vrot.lane.b32.xlu0 %v2173, 32
      %v2204 = vpop.permute.xlu0 %2203
      %2205 = vrot.lane.b32.xlu0 %v2174, 32
      %v2206 = vpop.permute.xlu0 %2205
      %vm2223 = vcmask 326912
      %2224 = vst.msk [vmem:[#allocation2] sm:$0xff] %vm2223, %v2176
      %2225 = vst.msk [vmem:[#allocation2 + $0x10] sm:$0xff] %vm2223, %v2178
      %2226 = vst.msk [vmem:[#allocation2 + $0x20] sm:$0xff] %vm2223, %v2180
      %2227 = vst.msk [vmem:[#allocation2 + $0x30] sm:$0xff] %vm2223, %v2182
      %2228 = vst.msk [vmem:[#allocation2 + $0x40] sm:$0xff] %vm2223, %v2184
      %2229 = vst.msk [vmem:[#allocation2 + $0x50] sm:$0xff] %vm2223, %v2186
      %2230 = vst.msk [vmem:[#allocation2 + $0x60] sm:$0xff] %vm2223, %v2188
      %2231 = vst.msk [vmem:[#allocation2 + $0x70] sm:$0xff] %vm2223, %v2190
      %2232 = vst.msk [vmem:[#allocation2 + $0x80] sm:$0xff] %vm2223, %v2192
      %2233 = vst.msk [vmem:[#allocation2 + $0x90] sm:$0xff] %vm2223, %v2194
      %2234 = vst.msk [vmem:[#allocation2 + $0xa0] sm:$0xff] %vm2223, %v2196
      %2235 = vst.msk [vmem:[#allocation2 + $0xb0] sm:$0xff] %vm2223, %v2198
      %2236 = vst.msk [vmem:[#allocation2 + $0xc0] sm:$0xff] %vm2223, %v2200
      %2237 = vst.msk [vmem:[#allocation2 + $0xd0] sm:$0xff] %vm2223, %v2202
      %2238 = vst.msk [vmem:[#allocation2 + $0xe0] sm:$0xff] %vm2223, %v2204
      %2239 = vst.msk [vmem:[#allocation2 + $0xf0] sm:$0xff] %vm2223, %v2206
      %v2240 = vld [vmem:[%s1437] sm:$0xe]
      %v2241 = vld [vmem:[%s1437 + $0x4] sm:$0x1]
      %v2242 = vld [vmem:[%s1437 + $0x8] sm:$0xe]
      %v2243 = vld [vmem:[%s1437 + $0xc] sm:$0x1]
      %v2244 = vld [vmem:[%s1437 + $0x10] sm:$0xe]
      %v2245 = vld [vmem:[%s1437 + $0x14] sm:$0x1]
      %v2246 = vld [vmem:[%s1437 + $0x18] sm:$0xe]
      %v2247 = vld [vmem:[%s1437 + $0x1c] sm:$0x1]
      %v2248 = vld [vmem:[%s1437 + $0x20] sm:$0xe]
      %v2249 = vld [vmem:[%s1437 + $0x24] sm:$0x1]
      %v2250 = vld [vmem:[%s1437 + $0x28] sm:$0xe]
      %v2251 = vld [vmem:[%s1437 + $0x2c] sm:$0x1]
      %v2252 = vld [vmem:[%s1437 + $0x30] sm:$0xe]
      %v2253 = vld [vmem:[%s1437 + $0x34] sm:$0x1]
      %v2254 = vld [vmem:[%s1437 + $0x38] sm:$0xe]
      %v2255 = vld [vmem:[%s1437 + $0x3c] sm:$0x1]
      %v2256 = vld [vmem:[%s1437 + $0x50] sm:$0xe]
      %v2257 = vld [vmem:[%s1437 + $0x54] sm:$0x1]
      %v2258 = vld [vmem:[%s1437 + $0x58] sm:$0xe]
      %v2259 = vld [vmem:[%s1437 + $0x5c] sm:$0x1]
      %v2260 = vld [vmem:[%s1437 + $0x60] sm:$0xe]
      %v2261 = vld [vmem:[%s1437 + $0x64] sm:$0x1]
      %v2262 = vld [vmem:[%s1437 + $0x68] sm:$0xe]
      %v2263 = vld [vmem:[%s1437 + $0x6c] sm:$0x1]
      %v2264 = vld [vmem:[%s1437 + $0x70] sm:$0xe]
      %v2265 = vld [vmem:[%s1437 + $0x74] sm:$0x1]
      %v2266 = vld [vmem:[%s1437 + $0x78] sm:$0xe]
      %v2267 = vld [vmem:[%s1437 + $0x7c] sm:$0x1]
      %v2268 = vld [vmem:[%s1437 + $0x80] sm:$0xe]
      %v2269 = vld [vmem:[%s1437 + $0x84] sm:$0x1]
      %v2270 = vld [vmem:[%s1437 + $0x88] sm:$0xe]
      %v2271 = vld [vmem:[%s1437 + $0x8c] sm:$0x1]
      %v2272 = vld [vmem:[%s1437 + $0xa0] sm:$0xe]
      %v2273 = vld [vmem:[%s1437 + $0xa4] sm:$0x1]
      %v2274 = vld [vmem:[%s1437 + $0xa8] sm:$0xe]
      %v2275 = vld [vmem:[%s1437 + $0xac] sm:$0x1]
      %v2276 = vld [vmem:[%s1437 + $0xb0] sm:$0xe]
      %v2277 = vld [vmem:[%s1437 + $0xb4] sm:$0x1]
      %v2278 = vld [vmem:[%s1437 + $0xb8] sm:$0xe]
      %v2279 = vld [vmem:[%s1437 + $0xbc] sm:$0x1]
      %v2280 = vld [vmem:[%s1437 + $0xc0] sm:$0xe]
      %v2281 = vld [vmem:[%s1437 + $0xc4] sm:$0x1]
      %v2282 = vld [vmem:[%s1437 + $0xc8] sm:$0xe]
      %v2283 = vld [vmem:[%s1437 + $0xcc] sm:$0x1]
      %v2284 = vld [vmem:[%s1437 + $0xd0] sm:$0xe]
      %v2285 = vld [vmem:[%s1437 + $0xd4] sm:$0x1]
      %v2286 = vld [vmem:[%s1437 + $0xd8] sm:$0xe]
      %v2287 = vld [vmem:[%s1437 + $0xdc] sm:$0x1]
      %v2288 = vld [vmem:[%s1437 + $0xf0] sm:$0xe]
      %v2289 = vld [vmem:[%s1437 + $0xf4] sm:$0x1]
      %v2290 = vld [vmem:[%s1437 + $0xf8] sm:$0xe]
      %v2291 = vld [vmem:[%s1437 + $0xfc] sm:$0x1]
      %v2292 = vld [vmem:[%s1437 + $0x100] sm:$0xe]
      %v2293 = vld [vmem:[%s1437 + $0x104] sm:$0x1]
      %v2294 = vld [vmem:[%s1437 + $0x108] sm:$0xe]
      %v2295 = vld [vmem:[%s1437 + $0x10c] sm:$0x1]
      %v2296 = vld [vmem:[%s1437 + $0x110] sm:$0xe]
      %v2297 = vld [vmem:[%s1437 + $0x114] sm:$0x1]
      %v2298 = vld [vmem:[%s1437 + $0x118] sm:$0xe]
      %v2299 = vld [vmem:[%s1437 + $0x11c] sm:$0x1]
      %v2300 = vld [vmem:[%s1437 + $0x120] sm:$0xe]
      %v2301 = vld [vmem:[%s1437 + $0x124] sm:$0x1]
      %v2302 = vld [vmem:[%s1437 + $0x128] sm:$0xe]
      %v2303 = vld [vmem:[%s1437 + $0x12c] sm:$0x1]
      %v2368 = vrot.slane %v2240, 5
      %v2369 = vrot.slane %v2368, 4
      %v2370 = vrot.slane %v2241, 5
      %v2371 = vsel %vm1193, %v2369, %v2370
      %v2372 = vrot.slane %v2242, 5
      %v2373 = vrot.slane %v2372, 4
      %v2374 = vrot.slane %v2243, 5
      %v2375 = vsel %vm1193, %v2373, %v2374
      %v2376 = vrot.slane %v2244, 5
      %v2377 = vrot.slane %v2376, 4
      %v2378 = vrot.slane %v2245, 5
      %v2379 = vsel %vm1193, %v2377, %v2378
      %v2380 = vrot.slane %v2246, 5
      %v2381 = vrot.slane %v2380, 4
      %v2382 = vrot.slane %v2247, 5
      %v2383 = vsel %vm1193, %v2381, %v2382
      %v2384 = vrot.slane %v2248, 5
      %v2385 = vrot.slane %v2384, 4
      %v2386 = vrot.slane %v2249, 5
      %v2387 = vsel %vm1193, %v2385, %v2386
      %v2388 = vrot.slane %v2250, 5
      %v2389 = vrot.slane %v2388, 4
      %v2390 = vrot.slane %v2251, 5
      %v2391 = vsel %vm1193, %v2389, %v2390
      %v2392 = vrot.slane %v2252, 5
      %v2393 = vrot.slane %v2392, 4
      %v2394 = vrot.slane %v2253, 5
      %v2395 = vsel %vm1193, %v2393, %v2394
      %v2396 = vrot.slane %v2254, 5
      %v2397 = vrot.slane %v2396, 4
      %v2398 = vrot.slane %v2255, 5
      %v2399 = vsel %vm1193, %v2397, %v2398
      %v2400 = vrot.slane %v2256, 5
      %v2401 = vrot.slane %v2400, 4
      %v2402 = vrot.slane %v2257, 5
      %v2403 = vsel %vm1193, %v2401, %v2402
      %v2404 = vrot.slane %v2258, 5
      %v2405 = vrot.slane %v2404, 4
      %v2406 = vrot.slane %v2259, 5
      %v2407 = vsel %vm1193, %v2405, %v2406
      %v2408 = vrot.slane %v2260, 5
      %v2409 = vrot.slane %v2408, 4
      %v2410 = vrot.slane %v2261, 5
      %v2411 = vsel %vm1193, %v2409, %v2410
      %v2412 = vrot.slane %v2262, 5
      %v2413 = vrot.slane %v2412, 4
      %v2414 = vrot.slane %v2263, 5
      %v2415 = vsel %vm1193, %v2413, %v2414
      %v2416 = vrot.slane %v2264, 5
      %v2417 = vrot.slane %v2416, 4
      %v2418 = vrot.slane %v2265, 5
      %v2419 = vsel %vm1193, %v2417, %v2418
      %v2420 = vrot.slane %v2266, 5
      %v2421 = vrot.slane %v2420, 4
      %v2422 = vrot.slane %v2267, 5
      %v2423 = vsel %vm1193, %v2421, %v2422
      %v2424 = vrot.slane %v2268, 5
      %v2425 = vrot.slane %v2424, 4
      %v2426 = vrot.slane %v2269, 5
      %v2427 = vsel %vm1193, %v2425, %v2426
      %v2428 = vrot.slane %v2270, 5
      %v2429 = vrot.slane %v2428, 4
      %v2430 = vrot.slane %v2271, 5
      %v2431 = vsel %vm1193, %v2429, %v2430
      %v2432 = vrot.slane %v2272, 5
      %v2433 = vrot.slane %v2432, 4
      %v2434 = vrot.slane %v2273, 5
      %v2435 = vsel %vm1193, %v2433, %v2434
      %v2436 = vrot.slane %v2274, 5
      %v2437 = vrot.slane %v2436, 4
      %v2438 = vrot.slane %v2275, 5
      %v2439 = vsel %vm1193, %v2437, %v2438
      %v2440 = vrot.slane %v2276, 5
      %v2441 = vrot.slane %v2440, 4
      %v2442 = vrot.slane %v2277, 5
      %v2443 = vsel %vm1193, %v2441, %v2442
      %v2444 = vrot.slane %v2278, 5
      %v2445 = vrot.slane %v2444, 4
      %v2446 = vrot.slane %v2279, 5
      %v2447 = vsel %vm1193, %v2445, %v2446
      %v2448 = vrot.slane %v2280, 5
      %v2449 = vrot.slane %v2448, 4
      %v2450 = vrot.slane %v2281, 5
      %v2451 = vsel %vm1193, %v2449, %v2450
      %v2452 = vrot.slane %v2282, 5
      %v2453 = vrot.slane %v2452, 4
      %v2454 = vrot.slane %v2283, 5
      %v2455 = vsel %vm1193, %v2453, %v2454
      %v2456 = vrot.slane %v2284, 5
      %v2457 = vrot.slane %v2456, 4
      %v2458 = vrot.slane %v2285, 5
      %v2459 = vsel %vm1193, %v2457, %v2458
      %v2460 = vrot.slane %v2286, 5
      %v2461 = vrot.slane %v2460, 4
      %v2462 = vrot.slane %v2287, 5
      %v2463 = vsel %vm1193, %v2461, %v2462
      %v2464 = vrot.slane %v2288, 5
      %v2465 = vrot.slane %v2464, 4
      %v2466 = vrot.slane %v2289, 5
      %v2467 = vsel %vm1193, %v2465, %v2466
      %v2468 = vrot.slane %v2290, 5
      %v2469 = vrot.slane %v2468, 4
      %v2470 = vrot.slane %v2291, 5
      %v2471 = vsel %vm1193, %v2469, %v2470
      %v2472 = vrot.slane %v2292, 5
      %v2473 = vrot.slane %v2472, 4
      %v2474 = vrot.slane %v2293, 5
      %v2475 = vsel %vm1193, %v2473, %v2474
      %v2476 = vrot.slane %v2294, 5
      %v2477 = vrot.slane %v2476, 4
      %v2478 = vrot.slane %v2295, 5
      %v2479 = vsel %vm1193, %v2477, %v2478
      %v2480 = vrot.slane %v2296, 5
      %v2481 = vrot.slane %v2480, 4
      %v2482 = vrot.slane %v2297, 5
      %v2483 = vsel %vm1193, %v2481, %v2482
      %v2484 = vrot.slane %v2298, 5
      %v2485 = vrot.slane %v2484, 4
      %v2486 = vrot.slane %v2299, 5
      %v2487 = vsel %vm1193, %v2485, %v2486
      %v2488 = vrot.slane %v2300, 5
      %v2489 = vrot.slane %v2488, 4
      %v2490 = vrot.slane %v2301, 5
      %v2491 = vsel %vm1193, %v2489, %v2490
      %v2492 = vrot.slane %v2302, 5
      %v2493 = vrot.slane %v2492, 4
      %v2494 = vrot.slane %v2303, 5
      %v2495 = vsel %vm1193, %v2493, %v2494
      %v2496 = vunpack.c.l.b16 %v2371
      %v2497 = vunpack.c.l.b16 %v2375
      %v2498 = vunpack.c.l.b16 %v2379
      %v2499 = vunpack.c.l.b16 %v2383
      %v2500 = vunpack.c.l.b16 %v2387
      %v2501 = vunpack.c.l.b16 %v2391
      %v2502 = vunpack.c.l.b16 %v2395
      %v2503 = vunpack.c.l.b16 %v2399
      %v2504 = vunpack.c.l.b16 %v2403
      %v2505 = vunpack.c.l.b16 %v2407
      %v2506 = vunpack.c.l.b16 %v2411
      %v2507 = vunpack.c.l.b16 %v2415
      %v2508 = vunpack.c.l.b16 %v2419
      %v2509 = vunpack.c.l.b16 %v2423
      %v2510 = vunpack.c.l.b16 %v2427
      %v2511 = vunpack.c.l.b16 %v2431
      %v2512 = vunpack.c.l.b16 %v2435
      %v2513 = vunpack.c.l.b16 %v2439
      %v2514 = vunpack.c.l.b16 %v2443
      %v2515 = vunpack.c.l.b16 %v2447
      %v2516 = vunpack.c.l.b16 %v2451
      %v2517 = vunpack.c.l.b16 %v2455
      %v2518 = vunpack.c.l.b16 %v2459
      %v2519 = vunpack.c.l.b16 %v2463
      %v2520 = vunpack.c.l.b16 %v2467
      %v2521 = vunpack.c.l.b16 %v2471
      %v2522 = vunpack.c.l.b16 %v2475
      %v2523 = vunpack.c.l.b16 %v2479
      %v2524 = vunpack.c.l.b16 %v2483
      %v2525 = vunpack.c.l.b16 %v2487
      %v2526 = vunpack.c.l.b16 %v2491
      %v2527 = vunpack.c.l.b16 %v2495
      %v2528 = vpack.c.b16 %v2497, %v2496
      %v2529 = vpack.c.b16 %v2499, %v2498
      %v2530 = vpack.c.b16 %v2501, %v2500
      %v2531 = vpack.c.b16 %v2503, %v2502
      %v2532 = vpack.c.b16 %v2505, %v2504
      %v2533 = vpack.c.b16 %v2507, %v2506
      %v2534 = vpack.c.b16 %v2509, %v2508
      %v2535 = vpack.c.b16 %v2511, %v2510
      %v2536 = vpack.c.b16 %v2513, %v2512
      %v2537 = vpack.c.b16 %v2515, %v2514
      %v2538 = vpack.c.b16 %v2517, %v2516
      %v2539 = vpack.c.b16 %v2519, %v2518
      %v2540 = vpack.c.b16 %v2521, %v2520
      %v2541 = vpack.c.b16 %v2523, %v2522
      %v2542 = vpack.c.b16 %v2525, %v2524
      %v2543 = vpack.c.b16 %v2527, %v2526
      %2544 = vrot.lane.b32.xlu0 %v2528, 40
      %v2545 = vpop.permute.xlu0 %2544
      %2546 = vrot.lane.b32.xlu0 %v2529, 40
      %v2547 = vpop.permute.xlu0 %2546
      %2548 = vrot.lane.b32.xlu0 %v2530, 40
      %v2549 = vpop.permute.xlu0 %2548
      %2550 = vrot.lane.b32.xlu0 %v2531, 40
      %v2551 = vpop.permute.xlu0 %2550
      %2552 = vrot.lane.b32.xlu0 %v2532, 40
      %v2553 = vpop.permute.xlu0 %2552
      %2554 = vrot.lane.b32.xlu0 %v2533, 40
      %v2555 = vpop.permute.xlu0 %2554
      %2556 = vrot.lane.b32.xlu0 %v2534, 40
      %v2557 = vpop.permute.xlu0 %2556
      %2558 = vrot.lane.b32.xlu0 %v2535, 40
      %v2559 = vpop.permute.xlu0 %2558
      %2560 = vrot.lane.b32.xlu0 %v2536, 40
      %v2561 = vpop.permute.xlu0 %2560
      %2562 = vrot.lane.b32.xlu0 %v2537, 40
      %v2563 = vpop.permute.xlu0 %2562
      %2564 = vrot.lane.b32.xlu0 %v2538, 40
      %v2565 = vpop.permute.xlu0 %2564
      %2566 = vrot.lane.b32.xlu0 %v2539, 40
      %v2567 = vpop.permute.xlu0 %2566
      %2568 = vrot.lane.b32.xlu0 %v2540, 40
      %v2569 = vpop.permute.xlu0 %2568
      %2570 = vrot.lane.b32.xlu0 %v2541, 40
      %v2571 = vpop.permute.xlu0 %2570
      %2572 = vrot.lane.b32.xlu0 %v2542, 40
      %v2573 = vpop.permute.xlu0 %2572
      %2574 = vrot.lane.b32.xlu0 %v2543, 40
      %v2575 = vpop.permute.xlu0 %2574
      %vm2592 = vcmask 392512
      %2593 = vst.msk [vmem:[#allocation2] sm:$0xff] %vm2592, %v2545
      %2594 = vst.msk [vmem:[#allocation2 + $0x10] sm:$0xff] %vm2592, %v2547
      %2595 = vst.msk [vmem:[#allocation2 + $0x20] sm:$0xff] %vm2592, %v2549
      %2596 = vst.msk [vmem:[#allocation2 + $0x30] sm:$0xff] %vm2592, %v2551
      %2597 = vst.msk [vmem:[#allocation2 + $0x40] sm:$0xff] %vm2592, %v2553
      %2598 = vst.msk [vmem:[#allocation2 + $0x50] sm:$0xff] %vm2592, %v2555
      %2599 = vst.msk [vmem:[#allocation2 + $0x60] sm:$0xff] %vm2592, %v2557
      %2600 = vst.msk [vmem:[#allocation2 + $0x70] sm:$0xff] %vm2592, %v2559
      %2601 = vst.msk [vmem:[#allocation2 + $0x80] sm:$0xff] %vm2592, %v2561
      %2602 = vst.msk [vmem:[#allocation2 + $0x90] sm:$0xff] %vm2592, %v2563
      %2603 = vst.msk [vmem:[#allocation2 + $0xa0] sm:$0xff] %vm2592, %v2565
      %2604 = vst.msk [vmem:[#allocation2 + $0xb0] sm:$0xff] %vm2592, %v2567
      %2605 = vst.msk [vmem:[#allocation2 + $0xc0] sm:$0xff] %vm2592, %v2569
      %2606 = vst.msk [vmem:[#allocation2 + $0xd0] sm:$0xff] %vm2592, %v2571
      %2607 = vst.msk [vmem:[#allocation2 + $0xe0] sm:$0xff] %vm2592, %v2573
      %2608 = vst.msk [vmem:[#allocation2 + $0xf0] sm:$0xff] %vm2592, %v2575
      %s2609 = sadd.s32 4, %s287
      %s2610 = smul.addr %s2609, 4
      %s2611 = scalar_lea.vmem %s260, %s2610
      %v2612 = vld [vmem:[%s2611] sm:$0xf]
      %v2613 = vld [vmem:[%s2611 + $0x8] sm:$0xf]
      %v2614 = vld [vmem:[%s2611 + $0x10] sm:$0xf]
      %v2615 = vld [vmem:[%s2611 + $0x18] sm:$0xf]
      %v2616 = vld [vmem:[%s2611 + $0x20] sm:$0xf]
      %v2617 = vld [vmem:[%s2611 + $0x28] sm:$0xf]
      %v2618 = vld [vmem:[%s2611 + $0x30] sm:$0xf]
      %v2619 = vld [vmem:[%s2611 + $0x38] sm:$0xf]
      %v2620 = vld [vmem:[%s2611 + $0x50] sm:$0xf]
      %v2621 = vld [vmem:[%s2611 + $0x58] sm:$0xf]
      %v2622 = vld [vmem:[%s2611 + $0x60] sm:$0xf]
      %v2623 = vld [vmem:[%s2611 + $0x68] sm:$0xf]
      %v2624 = vld [vmem:[%s2611 + $0x70] sm:$0xf]
      %v2625 = vld [vmem:[%s2611 + $0x78] sm:$0xf]
      %v2626 = vld [vmem:[%s2611 + $0x80] sm:$0xf]
      %v2627 = vld [vmem:[%s2611 + $0x88] sm:$0xf]
      %v2628 = vld [vmem:[%s2611 + $0xa0] sm:$0xf]
      %v2629 = vld [vmem:[%s2611 + $0xa8] sm:$0xf]
      %v2630 = vld [vmem:[%s2611 + $0xb0] sm:$0xf]
      %v2631 = vld [vmem:[%s2611 + $0xb8] sm:$0xf]
      %v2632 = vld [vmem:[%s2611 + $0xc0] sm:$0xf]
      %v2633 = vld [vmem:[%s2611 + $0xc8] sm:$0xf]
      %v2634 = vld [vmem:[%s2611 + $0xd0] sm:$0xf]
      %v2635 = vld [vmem:[%s2611 + $0xd8] sm:$0xf]
      %v2636 = vld [vmem:[%s2611 + $0xf0] sm:$0xf]
      %v2637 = vld [vmem:[%s2611 + $0xf8] sm:$0xf]
      %v2638 = vld [vmem:[%s2611 + $0x100] sm:$0xf]
      %v2639 = vld [vmem:[%s2611 + $0x108] sm:$0xf]
      %v2640 = vld [vmem:[%s2611 + $0x110] sm:$0xf]
      %v2641 = vld [vmem:[%s2611 + $0x118] sm:$0xf]
      %v2642 = vld [vmem:[%s2611 + $0x120] sm:$0xf]
      %v2643 = vld [vmem:[%s2611 + $0x128] sm:$0xf]
      %v2676 = vunpack.c.l.b16 %v2612
      %v2677 = vunpack.c.l.b16 %v2613
      %v2678 = vunpack.c.l.b16 %v2614
      %v2679 = vunpack.c.l.b16 %v2615
      %v2680 = vunpack.c.l.b16 %v2616
      %v2681 = vunpack.c.l.b16 %v2617
      %v2682 = vunpack.c.l.b16 %v2618
      %v2683 = vunpack.c.l.b16 %v2619
      %v2684 = vunpack.c.l.b16 %v2620
      %v2685 = vunpack.c.l.b16 %v2621
      %v2686 = vunpack.c.l.b16 %v2622
      %v2687 = vunpack.c.l.b16 %v2623
      %v2688 = vunpack.c.l.b16 %v2624
      %v2689 = vunpack.c.l.b16 %v2625
      %v2690 = vunpack.c.l.b16 %v2626
      %v2691 = vunpack.c.l.b16 %v2627
      %v2692 = vunpack.c.l.b16 %v2628
      %v2693 = vunpack.c.l.b16 %v2629
      %v2694 = vunpack.c.l.b16 %v2630
      %v2695 = vunpack.c.l.b16 %v2631
      %v2696 = vunpack.c.l.b16 %v2632
      %v2697 = vunpack.c.l.b16 %v2633
      %v2698 = vunpack.c.l.b16 %v2634
      %v2699 = vunpack.c.l.b16 %v2635
      %v2700 = vunpack.c.l.b16 %v2636
      %v2701 = vunpack.c.l.b16 %v2637
      %v2702 = vunpack.c.l.b16 %v2638
      %v2703 = vunpack.c.l.b16 %v2639
      %v2704 = vunpack.c.l.b16 %v2640
      %v2705 = vunpack.c.l.b16 %v2641
      %v2706 = vunpack.c.l.b16 %v2642
      %v2707 = vunpack.c.l.b16 %v2643
      %v2708 = vpack.c.b16 %v2677, %v2676
      %v2709 = vpack.c.b16 %v2679, %v2678
      %v2710 = vpack.c.b16 %v2681, %v2680
      %v2711 = vpack.c.b16 %v2683, %v2682
      %v2712 = vpack.c.b16 %v2685, %v2684
      %v2713 = vpack.c.b16 %v2687, %v2686
      %v2714 = vpack.c.b16 %v2689, %v2688
      %v2715 = vpack.c.b16 %v2691, %v2690
      %v2716 = vpack.c.b16 %v2693, %v2692
      %v2717 = vpack.c.b16 %v2695, %v2694
      %v2718 = vpack.c.b16 %v2697, %v2696
      %v2719 = vpack.c.b16 %v2699, %v2698
      %v2720 = vpack.c.b16 %v2701, %v2700
      %v2721 = vpack.c.b16 %v2703, %v2702
      %v2722 = vpack.c.b16 %v2705, %v2704
      %v2723 = vpack.c.b16 %v2707, %v2706
      %2724 = vrot.lane.b32.xlu0 %v2708, 48
      %v2725 = vpop.permute.xlu0 %2724
      %2726 = vrot.lane.b32.xlu0 %v2709, 48
      %v2727 = vpop.permute.xlu0 %2726
      %2728 = vrot.lane.b32.xlu0 %v2710, 48
      %v2729 = vpop.permute.xlu0 %2728
      %2730 = vrot.lane.b32.xlu0 %v2711, 48
      %v2731 = vpop.permute.xlu0 %2730
      %2732 = vrot.lane.b32.xlu0 %v2712, 48
      %v2733 = vpop.permute.xlu0 %2732
      %2734 = vrot.lane.b32.xlu0 %v2713, 48
      %v2735 = vpop.permute.xlu0 %2734
      %2736 = vrot.lane.b32.xlu0 %v2714, 48
      %v2737 = vpop.permute.xlu0 %2736
      %2738 = vrot.lane.b32.xlu0 %v2715, 48
      %v2739 = vpop.permute.xlu0 %2738
      %2740 = vrot.lane.b32.xlu0 %v2716, 48
      %v2741 = vpop.permute.xlu0 %2740
      %2742 = vrot.lane.b32.xlu0 %v2717, 48
      %v2743 = vpop.permute.xlu0 %2742
      %2744 = vrot.lane.b32.xlu0 %v2718, 48
      %v2745 = vpop.permute.xlu0 %2744
      %2746 = vrot.lane.b32.xlu0 %v2719, 48
      %v2747 = vpop.permute.xlu0 %2746
      %2748 = vrot.lane.b32.xlu0 %v2720, 48
      %v2749 = vpop.permute.xlu0 %2748
      %2750 = vrot.lane.b32.xlu0 %v2721, 48
      %v2751 = vpop.permute.xlu0 %2750
      %2752 = vrot.lane.b32.xlu0 %v2722, 48
      %v2753 = vpop.permute.xlu0 %2752
      %2754 = vrot.lane.b32.xlu0 %v2723, 48
      %v2755 = vpop.permute.xlu0 %2754
      %vm2772 = vcmask 458112
      %2773 = vst.msk [vmem:[#allocation2] sm:$0xff] %vm2772, %v2725
      %2774 = vst.msk [vmem:[#allocation2 + $0x10] sm:$0xff] %vm2772, %v2727
      %2775 = vst.msk [vmem:[#allocation2 + $0x20] sm:$0xff] %vm2772, %v2729
      %2776 = vst.msk [vmem:[#allocation2 + $0x30] sm:$0xff] %vm2772, %v2731
      %2777 = vst.msk [vmem:[#allocation2 + $0x40] sm:$0xff] %vm2772, %v2733
      %2778 = vst.msk [vmem:[#allocation2 + $0x50] sm:$0xff] %vm2772, %v2735
      %2779 = vst.msk [vmem:[#allocation2 + $0x60] sm:$0xff] %vm2772, %v2737
      %2780 = vst.msk [vmem:[#allocation2 + $0x70] sm:$0xff] %vm2772, %v2739
      %2781 = vst.msk [vmem:[#allocation2 + $0x80] sm:$0xff] %vm2772, %v2741
      %2782 = vst.msk [vmem:[#allocation2 + $0x90] sm:$0xff] %vm2772, %v2743
      %2783 = vst.msk [vmem:[#allocation2 + $0xa0] sm:$0xff] %vm2772, %v2745
      %2784 = vst.msk [vmem:[#allocation2 + $0xb0] sm:$0xff] %vm2772, %v2747
      %2785 = vst.msk [vmem:[#allocation2 + $0xc0] sm:$0xff] %vm2772, %v2749
      %2786 = vst.msk [vmem:[#allocation2 + $0xd0] sm:$0xff] %vm2772, %v2751
      %2787 = vst.msk [vmem:[#allocation2 + $0xe0] sm:$0xff] %vm2772, %v2753
      %2788 = vst.msk [vmem:[#allocation2 + $0xf0] sm:$0xff] %vm2772, %v2755
      %v2789 = vld [vmem:[%s2611] sm:$0xf]
      %v2790 = vld [vmem:[%s2611 + $0x4] sm:$0x1]
      %v2791 = vld [vmem:[%s2611 + $0x8] sm:$0xf]
      %v2792 = vld [vmem:[%s2611 + $0xc] sm:$0x1]
      %v2793 = vld [vmem:[%s2611 + $0x10] sm:$0xf]
      %v2794 = vld [vmem:[%s2611 + $0x14] sm:$0x1]
      %v2795 = vld [vmem:[%s2611 + $0x18] sm:$0xf]
      %v2796 = vld [vmem:[%s2611 + $0x1c] sm:$0x1]
      %v2797 = vld [vmem:[%s2611 + $0x20] sm:$0xf]
      %v2798 = vld [vmem:[%s2611 + $0x24] sm:$0x1]
      %v2799 = vld [vmem:[%s2611 + $0x28] sm:$0xf]
      %v2800 = vld [vmem:[%s2611 + $0x2c] sm:$0x1]
      %v2801 = vld [vmem:[%s2611 + $0x30] sm:$0xf]
      %v2802 = vld [vmem:[%s2611 + $0x34] sm:$0x1]
      %v2803 = vld [vmem:[%s2611 + $0x38] sm:$0xf]
      %v2804 = vld [vmem:[%s2611 + $0x3c] sm:$0x1]
      %v2805 = vld [vmem:[%s2611 + $0x50] sm:$0xf]
      %v2806 = vld [vmem:[%s2611 + $0x54] sm:$0x1]
      %v2807 = vld [vmem:[%s2611 + $0x58] sm:$0xf]
      %v2808 = vld [vmem:[%s2611 + $0x5c] sm:$0x1]
      %v2809 = vld [vmem:[%s2611 + $0x60] sm:$0xf]
      %v2810 = vld [vmem:[%s2611 + $0x64] sm:$0x1]
      %v2811 = vld [vmem:[%s2611 + $0x68] sm:$0xf]
      %v2812 = vld [vmem:[%s2611 + $0x6c] sm:$0x1]
      %v2813 = vld [vmem:[%s2611 + $0x70] sm:$0xf]
      %v2814 = vld [vmem:[%s2611 + $0x74] sm:$0x1]
      %v2815 = vld [vmem:[%s2611 + $0x78] sm:$0xf]
      %v2816 = vld [vmem:[%s2611 + $0x7c] sm:$0x1]
      %v2817 = vld [vmem:[%s2611 + $0x80] sm:$0xf]
      %v2818 = vld [vmem:[%s2611 + $0x84] sm:$0x1]
      %v2819 = vld [vmem:[%s2611 + $0x88] sm:$0xf]
      %v2820 = vld [vmem:[%s2611 + $0x8c] sm:$0x1]
      %v2821 = vld [vmem:[%s2611 + $0xa0] sm:$0xf]
      %v2822 = vld [vmem:[%s2611 + $0xa4] sm:$0x1]
      %v2823 = vld [vmem:[%s2611 + $0xa8] sm:$0xf]
      %v2824 = vld [vmem:[%s2611 + $0xac] sm:$0x1]
      %v2825 = vld [vmem:[%s2611 + $0xb0] sm:$0xf]
      %v2826 = vld [vmem:[%s2611 + $0xb4] sm:$0x1]
      %v2827 = vld [vmem:[%s2611 + $0xb8] sm:$0xf]
      %v2828 = vld [vmem:[%s2611 + $0xbc] sm:$0x1]
      %v2829 = vld [vmem:[%s2611 + $0xc0] sm:$0xf]
      %v2830 = vld [vmem:[%s2611 + $0xc4] sm:$0x1]
      %v2831 = vld [vmem:[%s2611 + $0xc8] sm:$0xf]
      %v2832 = vld [vmem:[%s2611 + $0xcc] sm:$0x1]
      %v2833 = vld [vmem:[%s2611 + $0xd0] sm:$0xf]
      %v2834 = vld [vmem:[%s2611 + $0xd4] sm:$0x1]
      %v2835 = vld [vmem:[%s2611 + $0xd8] sm:$0xf]
      %v2836 = vld [vmem:[%s2611 + $0xdc] sm:$0x1]
      %v2837 = vld [vmem:[%s2611 + $0xf0] sm:$0xf]
      %v2838 = vld [vmem:[%s2611 + $0xf4] sm:$0x1]
      %v2839 = vld [vmem:[%s2611 + $0xf8] sm:$0xf]
      %v2840 = vld [vmem:[%s2611 + $0xfc] sm:$0x1]
      %v2841 = vld [vmem:[%s2611 + $0x100] sm:$0xf]
      %v2842 = vld [vmem:[%s2611 + $0x104] sm:$0x1]
      %v2843 = vld [vmem:[%s2611 + $0x108] sm:$0xf]
      %v2844 = vld [vmem:[%s2611 + $0x10c] sm:$0x1]
      %v2845 = vld [vmem:[%s2611 + $0x110] sm:$0xf]
      %v2846 = vld [vmem:[%s2611 + $0x114] sm:$0x1]
      %v2847 = vld [vmem:[%s2611 + $0x118] sm:$0xf]
      %v2848 = vld [vmem:[%s2611 + $0x11c] sm:$0x1]
      %v2849 = vld [vmem:[%s2611 + $0x120] sm:$0xf]
      %v2850 = vld [vmem:[%s2611 + $0x124] sm:$0x1]
      %v2851 = vld [vmem:[%s2611 + $0x128] sm:$0xf]
      %v2852 = vld [vmem:[%s2611 + $0x12c] sm:$0x1]
      %v2854 = vshrl.u32 %v2789, 16
      %v2856 = vrot.slane %v2854, 4
      %v2857 = vshll.u32 %v2789, 16
      %v2859 = vrot.slane %v2857, 5
      %v2860 = vor.u32 %v2856, %v2859
      %v2861 = vrot.slane %v2860, 4
      %v2863 = vshll.u32 %v2790, 16
      %v2865 = vrot.slane %v2863, 5
      %v2866 = vsel %vm501, %v2861, %v2865
      %v2868 = vshrl.u32 %v2791, 16
      %v2870 = vrot.slane %v2868, 4
      %v2871 = vshll.u32 %v2791, 16
      %v2873 = vrot.slane %v2871, 5
      %v2874 = vor.u32 %v2870, %v2873
      %v2875 = vrot.slane %v2874, 4
      %v2877 = vshll.u32 %v2792, 16
      %v2879 = vrot.slane %v2877, 5
      %v2880 = vsel %vm501, %v2875, %v2879
      %v2882 = vshrl.u32 %v2793, 16
      %v2884 = vrot.slane %v2882, 4
      %v2885 = vshll.u32 %v2793, 16
      %v2887 = vrot.slane %v2885, 5
      %v2888 = vor.u32 %v2884, %v2887
      %v2889 = vrot.slane %v2888, 4
      %v2891 = vshll.u32 %v2794, 16
      %v2893 = vrot.slane %v2891, 5
      %v2894 = vsel %vm501, %v2889, %v2893
      %v2896 = vshrl.u32 %v2795, 16
      %v2898 = vrot.slane %v2896, 4
      %v2899 = vshll.u32 %v2795, 16
      %v2901 = vrot.slane %v2899, 5
      %v2902 = vor.u32 %v2898, %v2901
      %v2903 = vrot.slane %v2902, 4
      %v2905 = vshll.u32 %v2796, 16
      %v2907 = vrot.slane %v2905, 5
      %v2908 = vsel %vm501, %v2903, %v2907
      %v2910 = vshrl.u32 %v2797, 16
      %v2912 = vrot.slane %v2910, 4
      %v2913 = vshll.u32 %v2797, 16
      %v2915 = vrot.slane %v2913, 5
      %v2916 = vor.u32 %v2912, %v2915
      %v2917 = vrot.slane %v2916, 4
      %v2919 = vshll.u32 %v2798, 16
      %v2921 = vrot.slane %v2919, 5
      %v2922 = vsel %vm501, %v2917, %v2921
      %v2924 = vshrl.u32 %v2799, 16
      %v2926 = vrot.slane %v2924, 4
      %v2927 = vshll.u32 %v2799, 16
      %v2929 = vrot.slane %v2927, 5
      %v2930 = vor.u32 %v2926, %v2929
      %v2931 = vrot.slane %v2930, 4
      %v2933 = vshll.u32 %v2800, 16
      %v2935 = vrot.slane %v2933, 5
      %v2936 = vsel %vm501, %v2931, %v2935
      %v2938 = vshrl.u32 %v2801, 16
      %v2940 = vrot.slane %v2938, 4
      %v2941 = vshll.u32 %v2801, 16
      %v2943 = vrot.slane %v2941, 5
      %v2944 = vor.u32 %v2940, %v2943
      %v2945 = vrot.slane %v2944, 4
      %v2947 = vshll.u32 %v2802, 16
      %v2949 = vrot.slane %v2947, 5
      %v2950 = vsel %vm501, %v2945, %v2949
      %v2952 = vshrl.u32 %v2803, 16
      %v2954 = vrot.slane %v2952, 4
      %v2955 = vshll.u32 %v2803, 16
      %v2957 = vrot.slane %v2955, 5
      %v2958 = vor.u32 %v2954, %v2957
      %v2959 = vrot.slane %v2958, 4
      %v2961 = vshll.u32 %v2804, 16
      %v2963 = vrot.slane %v2961, 5
      %v2964 = vsel %vm501, %v2959, %v2963
      %v2966 = vshrl.u32 %v2805, 16
      %v2968 = vrot.slane %v2966, 4
      %v2969 = vshll.u32 %v2805, 16
      %v2971 = vrot.slane %v2969, 5
      %v2972 = vor.u32 %v2968, %v2971
      %v2973 = vrot.slane %v2972, 4
      %v2975 = vshll.u32 %v2806, 16
      %v2977 = vrot.slane %v2975, 5
      %v2978 = vsel %vm501, %v2973, %v2977
      %v2980 = vshrl.u32 %v2807, 16
      %v2982 = vrot.slane %v2980, 4
      %v2983 = vshll.u32 %v2807, 16
      %v2985 = vrot.slane %v2983, 5
      %v2986 = vor.u32 %v2982, %v2985
      %v2987 = vrot.slane %v2986, 4
      %v2989 = vshll.u32 %v2808, 16
      %v2991 = vrot.slane %v2989, 5
      %v2992 = vsel %vm501, %v2987, %v2991
      %v2994 = vshrl.u32 %v2809, 16
      %v2996 = vrot.slane %v2994, 4
      %v2997 = vshll.u32 %v2809, 16
      %v2999 = vrot.slane %v2997, 5
      %v3000 = vor.u32 %v2996, %v2999
      %v3001 = vrot.slane %v3000, 4
      %v3003 = vshll.u32 %v2810, 16
      %v3005 = vrot.slane %v3003, 5
      %v3006 = vsel %vm501, %v3001, %v3005
      %v3008 = vshrl.u32 %v2811, 16
      %v3010 = vrot.slane %v3008, 4
      %v3011 = vshll.u32 %v2811, 16
      %v3013 = vrot.slane %v3011, 5
      %v3014 = vor.u32 %v3010, %v3013
      %v3015 = vrot.slane %v3014, 4
      %v3017 = vshll.u32 %v2812, 16
      %v3019 = vrot.slane %v3017, 5
      %v3020 = vsel %vm501, %v3015, %v3019
      %v3022 = vshrl.u32 %v2813, 16
      %v3024 = vrot.slane %v3022, 4
      %v3025 = vshll.u32 %v2813, 16
      %v3027 = vrot.slane %v3025, 5
      %v3028 = vor.u32 %v3024, %v3027
      %v3029 = vrot.slane %v3028, 4
      %v3031 = vshll.u32 %v2814, 16
      %v3033 = vrot.slane %v3031, 5
      %v3034 = vsel %vm501, %v3029, %v3033
      %v3036 = vshrl.u32 %v2815, 16
      %v3038 = vrot.slane %v3036, 4
      %v3039 = vshll.u32 %v2815, 16
      %v3041 = vrot.slane %v3039, 5
      %v3042 = vor.u32 %v3038, %v3041
      %v3043 = vrot.slane %v3042, 4
      %v3045 = vshll.u32 %v2816, 16
      %v3047 = vrot.slane %v3045, 5
      %v3048 = vsel %vm501, %v3043, %v3047
      %v3050 = vshrl.u32 %v2817, 16
      %v3052 = vrot.slane %v3050, 4
      %v3053 = vshll.u32 %v2817, 16
      %v3055 = vrot.slane %v3053, 5
      %v3056 = vor.u32 %v3052, %v3055
      %v3057 = vrot.slane %v3056, 4
      %v3059 = vshll.u32 %v2818, 16
      %v3061 = vrot.slane %v3059, 5
      %v3062 = vsel %vm501, %v3057, %v3061
      %v3064 = vshrl.u32 %v2819, 16
      %v3066 = vrot.slane %v3064, 4
      %v3067 = vshll.u32 %v2819, 16
      %v3069 = vrot.slane %v3067, 5
      %v3070 = vor.u32 %v3066, %v3069
      %v3071 = vrot.slane %v3070, 4
      %v3073 = vshll.u32 %v2820, 16
      %v3075 = vrot.slane %v3073, 5
      %v3076 = vsel %vm501, %v3071, %v3075
      %v3078 = vshrl.u32 %v2821, 16
      %v3080 = vrot.slane %v3078, 4
      %v3081 = vshll.u32 %v2821, 16
      %v3083 = vrot.slane %v3081, 5
      %v3084 = vor.u32 %v3080, %v3083
      %v3085 = vrot.slane %v3084, 4
      %v3087 = vshll.u32 %v2822, 16
      %v3089 = vrot.slane %v3087, 5
      %v3090 = vsel %vm501, %v3085, %v3089
      %v3092 = vshrl.u32 %v2823, 16
      %v3094 = vrot.slane %v3092, 4
      %v3095 = vshll.u32 %v2823, 16
      %v3097 = vrot.slane %v3095, 5
      %v3098 = vor.u32 %v3094, %v3097
      %v3099 = vrot.slane %v3098, 4
      %v3101 = vshll.u32 %v2824, 16
      %v3103 = vrot.slane %v3101, 5
      %v3104 = vsel %vm501, %v3099, %v3103
      %v3106 = vshrl.u32 %v2825, 16
      %v3108 = vrot.slane %v3106, 4
      %v3109 = vshll.u32 %v2825, 16
      %v3111 = vrot.slane %v3109, 5
      %v3112 = vor.u32 %v3108, %v3111
      %v3113 = vrot.slane %v3112, 4
      %v3115 = vshll.u32 %v2826, 16
      %v3117 = vrot.slane %v3115, 5
      %v3118 = vsel %vm501, %v3113, %v3117
      %v3120 = vshrl.u32 %v2827, 16
      %v3122 = vrot.slane %v3120, 4
      %v3123 = vshll.u32 %v2827, 16
      %v3125 = vrot.slane %v3123, 5
      %v3126 = vor.u32 %v3122, %v3125
      %v3127 = vrot.slane %v3126, 4
      %v3129 = vshll.u32 %v2828, 16
      %v3131 = vrot.slane %v3129, 5
      %v3132 = vsel %vm501, %v3127, %v3131
      %v3134 = vshrl.u32 %v2829, 16
      %v3136 = vrot.slane %v3134, 4
      %v3137 = vshll.u32 %v2829, 16
      %v3139 = vrot.slane %v3137, 5
      %v3140 = vor.u32 %v3136, %v3139
      %v3141 = vrot.slane %v3140, 4
      %v3143 = vshll.u32 %v2830, 16
      %v3145 = vrot.slane %v3143, 5
      %v3146 = vsel %vm501, %v3141, %v3145
      %v3148 = vshrl.u32 %v2831, 16
      %v3150 = vrot.slane %v3148, 4
      %v3151 = vshll.u32 %v2831, 16
      %v3153 = vrot.slane %v3151, 5
      %v3154 = vor.u32 %v3150, %v3153
      %v3155 = vrot.slane %v3154, 4
      %v3157 = vshll.u32 %v2832, 16
      %v3159 = vrot.slane %v3157, 5
      %v3160 = vsel %vm501, %v3155, %v3159
      %v3162 = vshrl.u32 %v2833, 16
      %v3164 = vrot.slane %v3162, 4
      %v3165 = vshll.u32 %v2833, 16
      %v3167 = vrot.slane %v3165, 5
      %v3168 = vor.u32 %v3164, %v3167
      %v3169 = vrot.slane %v3168, 4
      %v3171 = vshll.u32 %v2834, 16
      %v3173 = vrot.slane %v3171, 5
      %v3174 = vsel %vm501, %v3169, %v3173
      %v3176 = vshrl.u32 %v2835, 16
      %v3178 = vrot.slane %v3176, 4
      %v3179 = vshll.u32 %v2835, 16
      %v3181 = vrot.slane %v3179, 5
      %v3182 = vor.u32 %v3178, %v3181
      %v3183 = vrot.slane %v3182, 4
      %v3185 = vshll.u32 %v2836, 16
      %v3187 = vrot.slane %v3185, 5
      %v3188 = vsel %vm501, %v3183, %v3187
      %v3190 = vshrl.u32 %v2837, 16
      %v3192 = vrot.slane %v3190, 4
      %v3193 = vshll.u32 %v2837, 16
      %v3195 = vrot.slane %v3193, 5
      %v3196 = vor.u32 %v3192, %v3195
      %v3197 = vrot.slane %v3196, 4
      %v3199 = vshll.u32 %v2838, 16
      %v3201 = vrot.slane %v3199, 5
      %v3202 = vsel %vm501, %v3197, %v3201
      %v3204 = vshrl.u32 %v2839, 16
      %v3206 = vrot.slane %v3204, 4
      %v3207 = vshll.u32 %v2839, 16
      %v3209 = vrot.slane %v3207, 5
      %v3210 = vor.u32 %v3206, %v3209
      %v3211 = vrot.slane %v3210, 4
      %v3213 = vshll.u32 %v2840, 16
      %v3215 = vrot.slane %v3213, 5
      %v3216 = vsel %vm501, %v3211, %v3215
      %v3218 = vshrl.u32 %v2841, 16
      %v3220 = vrot.slane %v3218, 4
      %v3221 = vshll.u32 %v2841, 16
      %v3223 = vrot.slane %v3221, 5
      %v3224 = vor.u32 %v3220, %v3223
      %v3225 = vrot.slane %v3224, 4
      %v3227 = vshll.u32 %v2842, 16
      %v3229 = vrot.slane %v3227, 5
      %v3230 = vsel %vm501, %v3225, %v3229
      %v3232 = vshrl.u32 %v2843, 16
      %v3234 = vrot.slane %v3232, 4
      %v3235 = vshll.u32 %v2843, 16
      %v3237 = vrot.slane %v3235, 5
      %v3238 = vor.u32 %v3234, %v3237
      %v3239 = vrot.slane %v3238, 4
      %v3241 = vshll.u32 %v2844, 16
      %v3243 = vrot.slane %v3241, 5
      %v3244 = vsel %vm501, %v3239, %v3243
      %v3246 = vshrl.u32 %v2845, 16
      %v3248 = vrot.slane %v3246, 4
      %v3249 = vshll.u32 %v2845, 16
      %v3251 = vrot.slane %v3249, 5
      %v3252 = vor.u32 %v3248, %v3251
      %v3253 = vrot.slane %v3252, 4
      %v3255 = vshll.u32 %v2846, 16
      %v3257 = vrot.slane %v3255, 5
      %v3258 = vsel %vm501, %v3253, %v3257
      %v3260 = vshrl.u32 %v2847, 16
      %v3262 = vrot.slane %v3260, 4
      %v3263 = vshll.u32 %v2847, 16
      %v3265 = vrot.slane %v3263, 5
      %v3266 = vor.u32 %v3262, %v3265
      %v3267 = vrot.slane %v3266, 4
      %v3269 = vshll.u32 %v2848, 16
      %v3271 = vrot.slane %v3269, 5
      %v3272 = vsel %vm501, %v3267, %v3271
      %v3274 = vshrl.u32 %v2849, 16
      %v3276 = vrot.slane %v3274, 4
      %v3277 = vshll.u32 %v2849, 16
      %v3279 = vrot.slane %v3277, 5
      %v3280 = vor.u32 %v3276, %v3279
      %v3281 = vrot.slane %v3280, 4
      %v3283 = vshll.u32 %v2850, 16
      %v3285 = vrot.slane %v3283, 5
      %v3286 = vsel %vm501, %v3281, %v3285
      %v3288 = vshrl.u32 %v2851, 16
      %v3290 = vrot.slane %v3288, 4
      %v3291 = vshll.u32 %v2851, 16
      %v3293 = vrot.slane %v3291, 5
      %v3294 = vor.u32 %v3290, %v3293
      %v3295 = vrot.slane %v3294, 4
      %v3297 = vshll.u32 %v2852, 16
      %v3299 = vrot.slane %v3297, 5
      %v3300 = vsel %vm501, %v3295, %v3299
      %v3301 = vunpack.c.l.b16 %v2866
      %v3302 = vunpack.c.l.b16 %v2880
      %v3303 = vunpack.c.l.b16 %v2894
      %v3304 = vunpack.c.l.b16 %v2908
      %v3305 = vunpack.c.l.b16 %v2922
      %v3306 = vunpack.c.l.b16 %v2936
      %v3307 = vunpack.c.l.b16 %v2950
      %v3308 = vunpack.c.l.b16 %v2964
      %v3309 = vunpack.c.l.b16 %v2978
      %v3310 = vunpack.c.l.b16 %v2992
      %v3311 = vunpack.c.l.b16 %v3006
      %v3312 = vunpack.c.l.b16 %v3020
      %v3313 = vunpack.c.l.b16 %v3034
      %v3314 = vunpack.c.l.b16 %v3048
      %v3315 = vunpack.c.l.b16 %v3062
      %v3316 = vunpack.c.l.b16 %v3076
      %v3317 = vunpack.c.l.b16 %v3090
      %v3318 = vunpack.c.l.b16 %v3104
      %v3319 = vunpack.c.l.b16 %v3118
      %v3320 = vunpack.c.l.b16 %v3132
      %v3321 = vunpack.c.l.b16 %v3146
      %v3322 = vunpack.c.l.b16 %v3160
      %v3323 = vunpack.c.l.b16 %v3174
      %v3324 = vunpack.c.l.b16 %v3188
      %v3325 = vunpack.c.l.b16 %v3202
      %v3326 = vunpack.c.l.b16 %v3216
      %v3327 = vunpack.c.l.b16 %v3230
      %v3328 = vunpack.c.l.b16 %v3244
      %v3329 = vunpack.c.l.b16 %v3258
      %v3330 = vunpack.c.l.b16 %v3272
      %v3331 = vunpack.c.l.b16 %v3286
      %v3332 = vunpack.c.l.b16 %v3300
      %v3333 = vpack.c.b16 %v3302, %v3301
      %v3334 = vpack.c.b16 %v3304, %v3303
      %v3335 = vpack.c.b16 %v3306, %v3305
      %v3336 = vpack.c.b16 %v3308, %v3307
      %v3337 = vpack.c.b16 %v3310, %v3309
      %v3338 = vpack.c.b16 %v3312, %v3311
      %v3339 = vpack.c.b16 %v3314, %v3313
      %v3340 = vpack.c.b16 %v3316, %v3315
      %v3341 = vpack.c.b16 %v3318, %v3317
      %v3342 = vpack.c.b16 %v3320, %v3319
      %v3343 = vpack.c.b16 %v3322, %v3321
      %v3344 = vpack.c.b16 %v3324, %v3323
      %v3345 = vpack.c.b16 %v3326, %v3325
      %v3346 = vpack.c.b16 %v3328, %v3327
      %v3347 = vpack.c.b16 %v3330, %v3329
      %v3348 = vpack.c.b16 %v3332, %v3331
      %3349 = vrot.lane.b32.xlu0 %v3333, 56
      %v3350 = vpop.permute.xlu0 %3349
      %3351 = vrot.lane.b32.xlu0 %v3334, 56
      %v3352 = vpop.permute.xlu0 %3351
      %3353 = vrot.lane.b32.xlu0 %v3335, 56
      %v3354 = vpop.permute.xlu0 %3353
      %3355 = vrot.lane.b32.xlu0 %v3336, 56
      %v3356 = vpop.permute.xlu0 %3355
      %3357 = vrot.lane.b32.xlu0 %v3337, 56
      %v3358 = vpop.permute.xlu0 %3357
      %3359 = vrot.lane.b32.xlu0 %v3338, 56
      %v3360 = vpop.permute.xlu0 %3359
      %3361 = vrot.lane.b32.xlu0 %v3339, 56
      %v3362 = vpop.permute.xlu0 %3361
      %3363 = vrot.lane.b32.xlu0 %v3340, 56
      %v3364 = vpop.permute.xlu0 %3363
      %3365 = vrot.lane.b32.xlu0 %v3341, 56
      %v3366 = vpop.permute.xlu0 %3365
      %3367 = vrot.lane.b32.xlu0 %v3342, 56
      %v3368 = vpop.permute.xlu0 %3367
      %3369 = vrot.lane.b32.xlu0 %v3343, 56
      %v3370 = vpop.permute.xlu0 %3369
      %3371 = vrot.lane.b32.xlu0 %v3344, 56
      %v3372 = vpop.permute.xlu0 %3371
      %3373 = vrot.lane.b32.xlu0 %v3345, 56
      %v3374 = vpop.permute.xlu0 %3373
      %3375 = vrot.lane.b32.xlu0 %v3346, 56
      %v3376 = vpop.permute.xlu0 %3375
      %3377 = vrot.lane.b32.xlu0 %v3347, 56
      %v3378 = vpop.permute.xlu0 %3377
      %3379 = vrot.lane.b32.xlu0 %v3348, 56
      %v3380 = vpop.permute.xlu0 %3379
      %vm3397 = vcmask 523712
      %3398 = vst.msk [vmem:[#allocation2] sm:$0xff] %vm3397, %v3350
      %3399 = vst.msk [vmem:[#allocation2 + $0x10] sm:$0xff] %vm3397, %v3352
      %3400 = vst.msk [vmem:[#allocation2 + $0x20] sm:$0xff] %vm3397, %v3354
      %3401 = vst.msk [vmem:[#allocation2 + $0x30] sm:$0xff] %vm3397, %v3356
      %3402 = vst.msk [vmem:[#allocation2 + $0x40] sm:$0xff] %vm3397, %v3358
      %3403 = vst.msk [vmem:[#allocation2 + $0x50] sm:$0xff] %vm3397, %v3360
      %3404 = vst.msk [vmem:[#allocation2 + $0x60] sm:$0xff] %vm3397, %v3362
      %3405 = vst.msk [vmem:[#allocation2 + $0x70] sm:$0xff] %vm3397, %v3364
      %3406 = vst.msk [vmem:[#allocation2 + $0x80] sm:$0xff] %vm3397, %v3366
      %3407 = vst.msk [vmem:[#allocation2 + $0x90] sm:$0xff] %vm3397, %v3368
      %3408 = vst.msk [vmem:[#allocation2 + $0xa0] sm:$0xff] %vm3397, %v3370
      %3409 = vst.msk [vmem:[#allocation2 + $0xb0] sm:$0xff] %vm3397, %v3372
      %3410 = vst.msk [vmem:[#allocation2 + $0xc0] sm:$0xff] %vm3397, %v3374
      %3411 = vst.msk [vmem:[#allocation2 + $0xd0] sm:$0xff] %vm3397, %v3376
      %3412 = vst.msk [vmem:[#allocation2 + $0xe0] sm:$0xff] %vm3397, %v3378
      %3413 = vst.msk [vmem:[#allocation2 + $0xf0] sm:$0xff] %vm3397, %v3380
      %v3414 = vld [vmem:[%s2611] sm:$0xe]
      %v3415 = vld [vmem:[%s2611 + $0x4] sm:$0x1]
      %v3416 = vld [vmem:[%s2611 + $0x8] sm:$0xe]
      %v3417 = vld [vmem:[%s2611 + $0xc] sm:$0x1]
      %v3418 = vld [vmem:[%s2611 + $0x10] sm:$0xe]
      %v3419 = vld [vmem:[%s2611 + $0x14] sm:$0x1]
      %v3420 = vld [vmem:[%s2611 + $0x18] sm:$0xe]
      %v3421 = vld [vmem:[%s2611 + $0x1c] sm:$0x1]
      %v3422 = vld [vmem:[%s2611 + $0x20] sm:$0xe]
      %v3423 = vld [vmem:[%s2611 + $0x24] sm:$0x1]
      %v3424 = vld [vmem:[%s2611 + $0x28] sm:$0xe]
      %v3425 = vld [vmem:[%s2611 + $0x2c] sm:$0x1]
      %v3426 = vld [vmem:[%s2611 + $0x30] sm:$0xe]
      %v3427 = vld [vmem:[%s2611 + $0x34] sm:$0x1]
      %v3428 = vld [vmem:[%s2611 + $0x38] sm:$0xe]
      %v3429 = vld [vmem:[%s2611 + $0x3c] sm:$0x1]
      %v3430 = vld [vmem:[%s2611 + $0x50] sm:$0xe]
      %v3431 = vld [vmem:[%s2611 + $0x54] sm:$0x1]
      %v3432 = vld [vmem:[%s2611 + $0x58] sm:$0xe]
      %v3433 = vld [vmem:[%s2611 + $0x5c] sm:$0x1]
      %v3434 = vld [vmem:[%s2611 + $0x60] sm:$0xe]
      %v3435 = vld [vmem:[%s2611 + $0x64] sm:$0x1]
      %v3436 = vld [vmem:[%s2611 + $0x68] sm:$0xe]
      %v3437 = vld [vmem:[%s2611 + $0x6c] sm:$0x1]
      %v3438 = vld [vmem:[%s2611 + $0x70] sm:$0xe]
      %v3439 = vld [vmem:[%s2611 + $0x74] sm:$0x1]
      %v3440 = vld [vmem:[%s2611 + $0x78] sm:$0xe]
      %v3441 = vld [vmem:[%s2611 + $0x7c] sm:$0x1]
      %v3442 = vld [vmem:[%s2611 + $0x80] sm:$0xe]
      %v3443 = vld [vmem:[%s2611 + $0x84] sm:$0x1]
      %v3444 = vld [vmem:[%s2611 + $0x88] sm:$0xe]
      %v3445 = vld [vmem:[%s2611 + $0x8c] sm:$0x1]
      %v3446 = vld [vmem:[%s2611 + $0xa0] sm:$0xe]
      %v3447 = vld [vmem:[%s2611 + $0xa4] sm:$0x1]
      %v3448 = vld [vmem:[%s2611 + $0xa8] sm:$0xe]
      %v3449 = vld [vmem:[%s2611 + $0xac] sm:$0x1]
      %v3450 = vld [vmem:[%s2611 + $0xb0] sm:$0xe]
      %v3451 = vld [vmem:[%s2611 + $0xb4] sm:$0x1]
      %v3452 = vld [vmem:[%s2611 + $0xb8] sm:$0xe]
      %v3453 = vld [vmem:[%s2611 + $0xbc] sm:$0x1]
      %v3454 = vld [vmem:[%s2611 + $0xc0] sm:$0xe]
      %v3455 = vld [vmem:[%s2611 + $0xc4] sm:$0x1]
      %v3456 = vld [vmem:[%s2611 + $0xc8] sm:$0xe]
      %v3457 = vld [vmem:[%s2611 + $0xcc] sm:$0x1]
      %v3458 = vld [vmem:[%s2611 + $0xd0] sm:$0xe]
      %v3459 = vld [vmem:[%s2611 + $0xd4] sm:$0x1]
      %v3460 = vld [vmem:[%s2611 + $0xd8] sm:$0xe]
      %v3461 = vld [vmem:[%s2611 + $0xdc] sm:$0x1]
      %v3462 = vld [vmem:[%s2611 + $0xf0] sm:$0xe]
      %v3463 = vld [vmem:[%s2611 + $0xf4] sm:$0x1]
      %v3464 = vld [vmem:[%s2611 + $0xf8] sm:$0xe]
      %v3465 = vld [vmem:[%s2611 + $0xfc] sm:$0x1]
      %v3466 = vld [vmem:[%s2611 + $0x100] sm:$0xe]
      %v3467 = vld [vmem:[%s2611 + $0x104] sm:$0x1]
      %v3468 = vld [vmem:[%s2611 + $0x108] sm:$0xe]
      %v3469 = vld [vmem:[%s2611 + $0x10c] sm:$0x1]
      %v3470 = vld [vmem:[%s2611 + $0x110] sm:$0xe]
      %v3471 = vld [vmem:[%s2611 + $0x114] sm:$0x1]
      %v3472 = vld [vmem:[%s2611 + $0x118] sm:$0xe]
      %v3473 = vld [vmem:[%s2611 + $0x11c] sm:$0x1]
      %v3474 = vld [vmem:[%s2611 + $0x120] sm:$0xe]
      %v3475 = vld [vmem:[%s2611 + $0x124] sm:$0x1]
      %v3476 = vld [vmem:[%s2611 + $0x128] sm:$0xe]
      %v3477 = vld [vmem:[%s2611 + $0x12c] sm:$0x1]
      %v3542 = vrot.slane %v3414, 5
      %v3543 = vrot.slane %v3542, 4
      %v3544 = vrot.slane %v3415, 5
      %v3545 = vsel %vm1193, %v3543, %v3544
      %v3546 = vrot.slane %v3416, 5
      %v3547 = vrot.slane %v3546, 4
      %v3548 = vrot.slane %v3417, 5
      %v3549 = vsel %vm1193, %v3547, %v3548
      %v3550 = vrot.slane %v3418, 5
      %v3551 = vrot.slane %v3550, 4
      %v3552 = vrot.slane %v3419, 5
      %v3553 = vsel %vm1193, %v3551, %v3552
      %v3554 = vrot.slane %v3420, 5
      %v3555 = vrot.slane %v3554, 4
      %v3556 = vrot.slane %v3421, 5
      %v3557 = vsel %vm1193, %v3555, %v3556
      %v3558 = vrot.slane %v3422, 5
      %v3559 = vrot.slane %v3558, 4
      %v3560 = vrot.slane %v3423, 5
      %v3561 = vsel %vm1193, %v3559, %v3560
      %v3562 = vrot.slane %v3424, 5
      %v3563 = vrot.slane %v3562, 4
      %v3564 = vrot.slane %v3425, 5
      %v3565 = vsel %vm1193, %v3563, %v3564
      %v3566 = vrot.slane %v3426, 5
      %v3567 = vrot.slane %v3566, 4
      %v3568 = vrot.slane %v3427, 5
      %v3569 = vsel %vm1193, %v3567, %v3568
      %v3570 = vrot.slane %v3428, 5
      %v3571 = vrot.slane %v3570, 4
      %v3572 = vrot.slane %v3429, 5
      %v3573 = vsel %vm1193, %v3571, %v3572
      %v3574 = vrot.slane %v3430, 5
      %v3575 = vrot.slane %v3574, 4
      %v3576 = vrot.slane %v3431, 5
      %v3577 = vsel %vm1193, %v3575, %v3576
      %v3578 = vrot.slane %v3432, 5
      %v3579 = vrot.slane %v3578, 4
      %v3580 = vrot.slane %v3433, 5
      %v3581 = vsel %vm1193, %v3579, %v3580
      %v3582 = vrot.slane %v3434, 5
      %v3583 = vrot.slane %v3582, 4
      %v3584 = vrot.slane %v3435, 5
      %v3585 = vsel %vm1193, %v3583, %v3584
      %v3586 = vrot.slane %v3436, 5
      %v3587 = vrot.slane %v3586, 4
      %v3588 = vrot.slane %v3437, 5
      %v3589 = vsel %vm1193, %v3587, %v3588
      %v3590 = vrot.slane %v3438, 5
      %v3591 = vrot.slane %v3590, 4
      %v3592 = vrot.slane %v3439, 5
      %v3593 = vsel %vm1193, %v3591, %v3592
      %v3594 = vrot.slane %v3440, 5
      %v3595 = vrot.slane %v3594, 4
      %v3596 = vrot.slane %v3441, 5
      %v3597 = vsel %vm1193, %v3595, %v3596
      %v3598 = vrot.slane %v3442, 5
      %v3599 = vrot.slane %v3598, 4
      %v3600 = vrot.slane %v3443, 5
      %v3601 = vsel %vm1193, %v3599, %v3600
      %v3602 = vrot.slane %v3444, 5
      %v3603 = vrot.slane %v3602, 4
      %v3604 = vrot.slane %v3445, 5
      %v3605 = vsel %vm1193, %v3603, %v3604
      %v3606 = vrot.slane %v3446, 5
      %v3607 = vrot.slane %v3606, 4
      %v3608 = vrot.slane %v3447, 5
      %v3609 = vsel %vm1193, %v3607, %v3608
      %v3610 = vrot.slane %v3448, 5
      %v3611 = vrot.slane %v3610, 4
      %v3612 = vrot.slane %v3449, 5
      %v3613 = vsel %vm1193, %v3611, %v3612
      %v3614 = vrot.slane %v3450, 5
      %v3615 = vrot.slane %v3614, 4
      %v3616 = vrot.slane %v3451, 5
      %v3617 = vsel %vm1193, %v3615, %v3616
      %v3618 = vrot.slane %v3452, 5
      %v3619 = vrot.slane %v3618, 4
      %v3620 = vrot.slane %v3453, 5
      %v3621 = vsel %vm1193, %v3619, %v3620
      %v3622 = vrot.slane %v3454, 5
      %v3623 = vrot.slane %v3622, 4
      %v3624 = vrot.slane %v3455, 5
      %v3625 = vsel %vm1193, %v3623, %v3624
      %v3626 = vrot.slane %v3456, 5
      %v3627 = vrot.slane %v3626, 4
      %v3628 = vrot.slane %v3457, 5
      %v3629 = vsel %vm1193, %v3627, %v3628
      %v3630 = vrot.slane %v3458, 5
      %v3631 = vrot.slane %v3630, 4
      %v3632 = vrot.slane %v3459, 5
      %v3633 = vsel %vm1193, %v3631, %v3632
      %v3634 = vrot.slane %v3460, 5
      %v3635 = vrot.slane %v3634, 4
      %v3636 = vrot.slane %v3461, 5
      %v3637 = vsel %vm1193, %v3635, %v3636
      %v3638 = vrot.slane %v3462, 5
      %v3639 = vrot.slane %v3638, 4
      %v3640 = vrot.slane %v3463, 5
      %v3641 = vsel %vm1193, %v3639, %v3640
      %v3642 = vrot.slane %v3464, 5
      %v3643 = vrot.slane %v3642, 4
      %v3644 = vrot.slane %v3465, 5
      %v3645 = vsel %vm1193, %v3643, %v3644
      %v3646 = vrot.slane %v3466, 5
      %v3647 = vrot.slane %v3646, 4
      %v3648 = vrot.slane %v3467, 5
      %v3649 = vsel %vm1193, %v3647, %v3648
      %v3650 = vrot.slane %v3468, 5
      %v3651 = vrot.slane %v3650, 4
      %v3652 = vrot.slane %v3469, 5
      %v3653 = vsel %vm1193, %v3651, %v3652
      %v3654 = vrot.slane %v3470, 5
      %v3655 = vrot.slane %v3654, 4
      %v3656 = vrot.slane %v3471, 5
      %v3657 = vsel %vm1193, %v3655, %v3656
      %v3658 = vrot.slane %v3472, 5
      %v3659 = vrot.slane %v3658, 4
      %v3660 = vrot.slane %v3473, 5
      %v3661 = vsel %vm1193, %v3659, %v3660
      %v3662 = vrot.slane %v3474, 5
      %v3663 = vrot.slane %v3662, 4
      %v3664 = vrot.slane %v3475, 5
      %v3665 = vsel %vm1193, %v3663, %v3664
      %v3666 = vrot.slane %v3476, 5
      %v3667 = vrot.slane %v3666, 4
      %v3668 = vrot.slane %v3477, 5
      %v3669 = vsel %vm1193, %v3667, %v3668
      %v3670 = vunpack.c.l.b16 %v3545
      %v3671 = vunpack.c.l.b16 %v3549
      %v3672 = vunpack.c.l.b16 %v3553
      %v3673 = vunpack.c.l.b16 %v3557
      %v3674 = vunpack.c.l.b16 %v3561
      %v3675 = vunpack.c.l.b16 %v3565
      %v3676 = vunpack.c.l.b16 %v3569
      %v3677 = vunpack.c.l.b16 %v3573
      %v3678 = vunpack.c.l.b16 %v3577
      %v3679 = vunpack.c.l.b16 %v3581
      %v3680 = vunpack.c.l.b16 %v3585
      %v3681 = vunpack.c.l.b16 %v3589
      %v3682 = vunpack.c.l.b16 %v3593
      %v3683 = vunpack.c.l.b16 %v3597
      %v3684 = vunpack.c.l.b16 %v3601
      %v3685 = vunpack.c.l.b16 %v3605
      %v3686 = vunpack.c.l.b16 %v3609
      %v3687 = vunpack.c.l.b16 %v3613
      %v3688 = vunpack.c.l.b16 %v3617
      %v3689 = vunpack.c.l.b16 %v3621
      %v3690 = vunpack.c.l.b16 %v3625
      %v3691 = vunpack.c.l.b16 %v3629
      %v3692 = vunpack.c.l.b16 %v3633
      %v3693 = vunpack.c.l.b16 %v3637
      %v3694 = vunpack.c.l.b16 %v3641
      %v3695 = vunpack.c.l.b16 %v3645
      %v3696 = vunpack.c.l.b16 %v3649
      %v3697 = vunpack.c.l.b16 %v3653
      %v3698 = vunpack.c.l.b16 %v3657
      %v3699 = vunpack.c.l.b16 %v3661
      %v3700 = vunpack.c.l.b16 %v3665
      %v3701 = vunpack.c.l.b16 %v3669
      %v3702 = vpack.c.b16 %v3671, %v3670
      %v3703 = vpack.c.b16 %v3673, %v3672
      %v3704 = vpack.c.b16 %v3675, %v3674
      %v3705 = vpack.c.b16 %v3677, %v3676
      %v3706 = vpack.c.b16 %v3679, %v3678
      %v3707 = vpack.c.b16 %v3681, %v3680
      %v3708 = vpack.c.b16 %v3683, %v3682
      %v3709 = vpack.c.b16 %v3685, %v3684
      %v3710 = vpack.c.b16 %v3687, %v3686
      %v3711 = vpack.c.b16 %v3689, %v3688
      %v3712 = vpack.c.b16 %v3691, %v3690
      %v3713 = vpack.c.b16 %v3693, %v3692
      %v3714 = vpack.c.b16 %v3695, %v3694
      %v3715 = vpack.c.b16 %v3697, %v3696
      %v3716 = vpack.c.b16 %v3699, %v3698
      %v3717 = vpack.c.b16 %v3701, %v3700
      %3718 = vrot.lane.b32.xlu0 %v3702, 64
      %v3719 = vpop.permute.xlu0 %3718
      %3720 = vrot.lane.b32.xlu0 %v3703, 64
      %v3721 = vpop.permute.xlu0 %3720
      %3722 = vrot.lane.b32.xlu0 %v3704, 64
      %v3723 = vpop.permute.xlu0 %3722
      %3724 = vrot.lane.b32.xlu0 %v3705, 64
      %v3725 = vpop.permute.xlu0 %3724
      %3726 = vrot.lane.b32.xlu0 %v3706, 64
      %v3727 = vpop.permute.xlu0 %3726
      %3728 = vrot.lane.b32.xlu0 %v3707, 64
      %v3729 = vpop.permute.xlu0 %3728
      %3730 = vrot.lane.b32.xlu0 %v3708, 64
      %v3731 = vpop.permute.xlu0 %3730
      %3732 = vrot.lane.b32.xlu0 %v3709, 64
      %v3733 = vpop.permute.xlu0 %3732
      %3734 = vrot.lane.b32.xlu0 %v3710, 64
      %v3735 = vpop.permute.xlu0 %3734
      %3736 = vrot.lane.b32.xlu0 %v3711, 64
      %v3737 = vpop.permute.xlu0 %3736
      %3738 = vrot.lane.b32.xlu0 %v3712, 64
      %v3739 = vpop.permute.xlu0 %3738
      %3740 = vrot.lane.b32.xlu0 %v3713, 64
      %v3741 = vpop.permute.xlu0 %3740
      %3742 = vrot.lane.b32.xlu0 %v3714, 64
      %v3743 = vpop.permute.xlu0 %3742
      %3744 = vrot.lane.b32.xlu0 %v3715, 64
      %v3745 = vpop.permute.xlu0 %3744
      %3746 = vrot.lane.b32.xlu0 %v3716, 64
      %v3747 = vpop.permute.xlu0 %3746
      %3748 = vrot.lane.b32.xlu0 %v3717, 64
      %v3749 = vpop.permute.xlu0 %3748
      %vm3766 = vcmask 589312
      %3767 = vst.msk [vmem:[#allocation2] sm:$0xff] %vm3766, %v3719
      %3768 = vst.msk [vmem:[#allocation2 + $0x10] sm:$0xff] %vm3766, %v3721
      %3769 = vst.msk [vmem:[#allocation2 + $0x20] sm:$0xff] %vm3766, %v3723
      %3770 = vst.msk [vmem:[#allocation2 + $0x30] sm:$0xff] %vm3766, %v3725
      %3771 = vst.msk [vmem:[#allocation2 + $0x40] sm:$0xff] %vm3766, %v3727
      %3772 = vst.msk [vmem:[#allocation2 + $0x50] sm:$0xff] %vm3766, %v3729
      %3773 = vst.msk [vmem:[#allocation2 + $0x60] sm:$0xff] %vm3766, %v3731
      %3774 = vst.msk [vmem:[#allocation2 + $0x70] sm:$0xff] %vm3766, %v3733
      %3775 = vst.msk [vmem:[#allocation2 + $0x80] sm:$0xff] %vm3766, %v3735
      %3776 = vst.msk [vmem:[#allocation2 + $0x90] sm:$0xff] %vm3766, %v3737
      %3777 = vst.msk [vmem:[#allocation2 + $0xa0] sm:$0xff] %vm3766, %v3739
      %3778 = vst.msk [vmem:[#allocation2 + $0xb0] sm:$0xff] %vm3766, %v3741
      %3779 = vst.msk [vmem:[#allocation2 + $0xc0] sm:$0xff] %vm3766, %v3743
      %3780 = vst.msk [vmem:[#allocation2 + $0xd0] sm:$0xff] %vm3766, %v3745
      %3781 = vst.msk [vmem:[#allocation2 + $0xe0] sm:$0xff] %vm3766, %v3747
      %3782 = vst.msk [vmem:[#allocation2 + $0xf0] sm:$0xff] %vm3766, %v3749
      %s3783 = sadd.s32 %s286, 1
      %s3784 = smul.u32 %s3783, 20
      %s3785 = smul.addr %s3784, 4
      %s3786 = scalar_lea.vmem %s260, %s3785
      %v3787 = vld [vmem:[%s3786] sm:$0xf]
      %v3788 = vld [vmem:[%s3786 + $0x8] sm:$0xf]
      %v3789 = vld [vmem:[%s3786 + $0x10] sm:$0xf]
      %v3790 = vld [vmem:[%s3786 + $0x18] sm:$0xf]
      %v3791 = vld [vmem:[%s3786 + $0x20] sm:$0xf]
      %v3792 = vld [vmem:[%s3786 + $0x28] sm:$0xf]
      %v3793 = vld [vmem:[%s3786 + $0x30] sm:$0xf]
      %v3794 = vld [vmem:[%s3786 + $0x38] sm:$0xf]
      %v3795 = vld [vmem:[%s3786 + $0x50] sm:$0xf]
      %v3796 = vld [vmem:[%s3786 + $0x58] sm:$0xf]
      %v3797 = vld [vmem:[%s3786 + $0x60] sm:$0xf]
      %v3798 = vld [vmem:[%s3786 + $0x68] sm:$0xf]
      %v3799 = vld [vmem:[%s3786 + $0x70] sm:$0xf]
      %v3800 = vld [vmem:[%s3786 + $0x78] sm:$0xf]
      %v3801 = vld [vmem:[%s3786 + $0x80] sm:$0xf]
      %v3802 = vld [vmem:[%s3786 + $0x88] sm:$0xf]
      %v3803 = vld [vmem:[%s3786 + $0xa0] sm:$0xf]
      %v3804 = vld [vmem:[%s3786 + $0xa8] sm:$0xf]
      %v3805 = vld [vmem:[%s3786 + $0xb0] sm:$0xf]
      %v3806 = vld [vmem:[%s3786 + $0xb8] sm:$0xf]
      %v3807 = vld [vmem:[%s3786 + $0xc0] sm:$0xf]
      %v3808 = vld [vmem:[%s3786 + $0xc8] sm:$0xf]
      %v3809 = vld [vmem:[%s3786 + $0xd0] sm:$0xf]
      %v3810 = vld [vmem:[%s3786 + $0xd8] sm:$0xf]
      %v3811 = vld [vmem:[%s3786 + $0xf0] sm:$0xf]
      %v3812 = vld [vmem:[%s3786 + $0xf8] sm:$0xf]
      %v3813 = vld [vmem:[%s3786 + $0x100] sm:$0xf]
      %v3814 = vld [vmem:[%s3786 + $0x108] sm:$0xf]
      %v3815 = vld [vmem:[%s3786 + $0x110] sm:$0xf]
      %v3816 = vld [vmem:[%s3786 + $0x118] sm:$0xf]
      %v3817 = vld [vmem:[%s3786 + $0x120] sm:$0xf]
      %v3818 = vld [vmem:[%s3786 + $0x128] sm:$0xf]
      %v3851 = vunpack.c.l.b16 %v3787
      %v3852 = vunpack.c.l.b16 %v3788
      %v3853 = vunpack.c.l.b16 %v3789
      %v3854 = vunpack.c.l.b16 %v3790
      %v3855 = vunpack.c.l.b16 %v3791
      %v3856 = vunpack.c.l.b16 %v3792
      %v3857 = vunpack.c.l.b16 %v3793
      %v3858 = vunpack.c.l.b16 %v3794
      %v3859 = vunpack.c.l.b16 %v3795
      %v3860 = vunpack.c.l.b16 %v3796
      %v3861 = vunpack.c.l.b16 %v3797
      %v3862 = vunpack.c.l.b16 %v3798
      %v3863 = vunpack.c.l.b16 %v3799
      %v3864 = vunpack.c.l.b16 %v3800
      %v3865 = vunpack.c.l.b16 %v3801
      %v3866 = vunpack.c.l.b16 %v3802
      %v3867 = vunpack.c.l.b16 %v3803
      %v3868 = vunpack.c.l.b16 %v3804
      %v3869 = vunpack.c.l.b16 %v3805
      %v3870 = vunpack.c.l.b16 %v3806
      %v3871 = vunpack.c.l.b16 %v3807
      %v3872 = vunpack.c.l.b16 %v3808
      %v3873 = vunpack.c.l.b16 %v3809
      %v3874 = vunpack.c.l.b16 %v3810
      %v3875 = vunpack.c.l.b16 %v3811
      %v3876 = vunpack.c.l.b16 %v3812
      %v3877 = vunpack.c.l.b16 %v3813
      %v3878 = vunpack.c.l.b16 %v3814
      %v3879 = vunpack.c.l.b16 %v3815
      %v3880 = vunpack.c.l.b16 %v3816
      %v3881 = vunpack.c.l.b16 %v3817
      %v3882 = vunpack.c.l.b16 %v3818
      %v3883 = vpack.c.b16 %v3852, %v3851
      %v3884 = vpack.c.b16 %v3854, %v3853
      %v3885 = vpack.c.b16 %v3856, %v3855
      %v3886 = vpack.c.b16 %v3858, %v3857
      %v3887 = vpack.c.b16 %v3860, %v3859
      %v3888 = vpack.c.b16 %v3862, %v3861
      %v3889 = vpack.c.b16 %v3864, %v3863
      %v3890 = vpack.c.b16 %v3866, %v3865
      %v3891 = vpack.c.b16 %v3868, %v3867
      %v3892 = vpack.c.b16 %v3870, %v3869
      %v3893 = vpack.c.b16 %v3872, %v3871
      %v3894 = vpack.c.b16 %v3874, %v3873
      %v3895 = vpack.c.b16 %v3876, %v3875
      %v3896 = vpack.c.b16 %v3878, %v3877
      %v3897 = vpack.c.b16 %v3880, %v3879
      %v3898 = vpack.c.b16 %v3882, %v3881
      %3899 = vrot.lane.b32.xlu0 %v3883, 72
      %v3900 = vpop.permute.xlu0 %3899
      %3901 = vrot.lane.b32.xlu0 %v3884, 72
      %v3902 = vpop.permute.xlu0 %3901
      %3903 = vrot.lane.b32.xlu0 %v3885, 72
      %v3904 = vpop.permute.xlu0 %3903
      %3905 = vrot.lane.b32.xlu0 %v3886, 72
      %v3906 = vpop.permute.xlu0 %3905
      %3907 = vrot.lane.b32.xlu0 %v3887, 72
      %v3908 = vpop.permute.xlu0 %3907
      %3909 = vrot.lane.b32.xlu0 %v3888, 72
      %v3910 = vpop.permute.xlu0 %3909
      %3911 = vrot.lane.b32.xlu0 %v3889, 72
      %v3912 = vpop.permute.xlu0 %3911
      %3913 = vrot.lane.b32.xlu0 %v3890, 72
      %v3914 = vpop.permute.xlu0 %3913
      %3915 = vrot.lane.b32.xlu0 %v3891, 72
      %v3916 = vpop.permute.xlu0 %3915
      %3917 = vrot.lane.b32.xlu0 %v3892, 72
      %v3918 = vpop.permute.xlu0 %3917
      %3919 = vrot.lane.b32.xlu0 %v3893, 72
      %v3920 = vpop.permute.xlu0 %3919
      %3921 = vrot.lane.b32.xlu0 %v3894, 72
      %v3922 = vpop.permute.xlu0 %3921
      %3923 = vrot.lane.b32.xlu0 %v3895, 72
      %v3924 = vpop.permute.xlu0 %3923
      %3925 = vrot.lane.b32.xlu0 %v3896, 72
      %v3926 = vpop.permute.xlu0 %3925
      %3927 = vrot.lane.b32.xlu0 %v3897, 72
      %v3928 = vpop.permute.xlu0 %3927
      %3929 = vrot.lane.b32.xlu0 %v3898, 72
      %v3930 = vpop.permute.xlu0 %3929
      %vm3947 = vcmask 654912
      %3948 = vst.msk [vmem:[#allocation2] sm:$0xff] %vm3947, %v3900
      %3949 = vst.msk [vmem:[#allocation2 + $0x10] sm:$0xff] %vm3947, %v3902
      %3950 = vst.msk [vmem:[#allocation2 + $0x20] sm:$0xff] %vm3947, %v3904
      %3951 = vst.msk [vmem:[#allocation2 + $0x30] sm:$0xff] %vm3947, %v3906
      %3952 = vst.msk [vmem:[#allocation2 + $0x40] sm:$0xff] %vm3947, %v3908
      %3953 = vst.msk [vmem:[#allocation2 + $0x50] sm:$0xff] %vm3947, %v3910
      %3954 = vst.msk [vmem:[#allocation2 + $0x60] sm:$0xff] %vm3947, %v3912
      %3955 = vst.msk [vmem:[#allocation2 + $0x70] sm:$0xff] %vm3947, %v3914
      %3956 = vst.msk [vmem:[#allocation2 + $0x80] sm:$0xff] %vm3947, %v3916
      %3957 = vst.msk [vmem:[#allocation2 + $0x90] sm:$0xff] %vm3947, %v3918
      %3958 = vst.msk [vmem:[#allocation2 + $0xa0] sm:$0xff] %vm3947, %v3920
      %3959 = vst.msk [vmem:[#allocation2 + $0xb0] sm:$0xff] %vm3947, %v3922
      %3960 = vst.msk [vmem:[#allocation2 + $0xc0] sm:$0xff] %vm3947, %v3924
      %3961 = vst.msk [vmem:[#allocation2 + $0xd0] sm:$0xff] %vm3947, %v3926
      %3962 = vst.msk [vmem:[#allocation2 + $0xe0] sm:$0xff] %vm3947, %v3928
      %3963 = vst.msk [vmem:[#allocation2 + $0xf0] sm:$0xff] %vm3947, %v3930
      %v3964 = vld [vmem:[%s3786] sm:$0xf]
      %v3965 = vld [vmem:[%s3786 + $0x4] sm:$0x1]
      %v3966 = vld [vmem:[%s3786 + $0x8] sm:$0xf]
      %v3967 = vld [vmem:[%s3786 + $0xc] sm:$0x1]
      %v3968 = vld [vmem:[%s3786 + $0x10] sm:$0xf]
      %v3969 = vld [vmem:[%s3786 + $0x14] sm:$0x1]
      %v3970 = vld [vmem:[%s3786 + $0x18] sm:$0xf]
      %v3971 = vld [vmem:[%s3786 + $0x1c] sm:$0x1]
      %v3972 = vld [vmem:[%s3786 + $0x20] sm:$0xf]
      %v3973 = vld [vmem:[%s3786 + $0x24] sm:$0x1]
      %v3974 = vld [vmem:[%s3786 + $0x28] sm:$0xf]
      %v3975 = vld [vmem:[%s3786 + $0x2c] sm:$0x1]
      %v3976 = vld [vmem:[%s3786 + $0x30] sm:$0xf]
      %v3977 = vld [vmem:[%s3786 + $0x34] sm:$0x1]
      %v3978 = vld [vmem:[%s3786 + $0x38] sm:$0xf]
      %v3979 = vld [vmem:[%s3786 + $0x3c] sm:$0x1]
      %v3980 = vld [vmem:[%s3786 + $0x50] sm:$0xf]
      %v3981 = vld [vmem:[%s3786 + $0x54] sm:$0x1]
      %v3982 = vld [vmem:[%s3786 + $0x58] sm:$0xf]
      %v3983 = vld [vmem:[%s3786 + $0x5c] sm:$0x1]
      %v3984 = vld [vmem:[%s3786 + $0x60] sm:$0xf]
      %v3985 = vld [vmem:[%s3786 + $0x64] sm:$0x1]
      %v3986 = vld [vmem:[%s3786 + $0x68] sm:$0xf]
      %v3987 = vld [vmem:[%s3786 + $0x6c] sm:$0x1]
      %v3988 = vld [vmem:[%s3786 + $0x70] sm:$0xf]
      %v3989 = vld [vmem:[%s3786 + $0x74] sm:$0x1]
      %v3990 = vld [vmem:[%s3786 + $0x78] sm:$0xf]
      %v3991 = vld [vmem:[%s3786 + $0x7c] sm:$0x1]
      %v3992 = vld [vmem:[%s3786 + $0x80] sm:$0xf]
      %v3993 = vld [vmem:[%s3786 + $0x84] sm:$0x1]
      %v3994 = vld [vmem:[%s3786 + $0x88] sm:$0xf]
      %v3995 = vld [vmem:[%s3786 + $0x8c] sm:$0x1]
      %v3996 = vld [vmem:[%s3786 + $0xa0] sm:$0xf]
      %v3997 = vld [vmem:[%s3786 + $0xa4] sm:$0x1]
      %v3998 = vld [vmem:[%s3786 + $0xa8] sm:$0xf]
      %v3999 = vld [vmem:[%s3786 + $0xac] sm:$0x1]
      %v4000 = vld [vmem:[%s3786 + $0xb0] sm:$0xf]
      %v4001 = vld [vmem:[%s3786 + $0xb4] sm:$0x1]
      %v4002 = vld [vmem:[%s3786 + $0xb8] sm:$0xf]
      %v4003 = vld [vmem:[%s3786 + $0xbc] sm:$0x1]
      %v4004 = vld [vmem:[%s3786 + $0xc0] sm:$0xf]
      %v4005 = vld [vmem:[%s3786 + $0xc4] sm:$0x1]
      %v4006 = vld [vmem:[%s3786 + $0xc8] sm:$0xf]
      %v4007 = vld [vmem:[%s3786 + $0xcc] sm:$0x1]
      %v4008 = vld [vmem:[%s3786 + $0xd0] sm:$0xf]
      %v4009 = vld [vmem:[%s3786 + $0xd4] sm:$0x1]
      %v4010 = vld [vmem:[%s3786 + $0xd8] sm:$0xf]
      %v4011 = vld [vmem:[%s3786 + $0xdc] sm:$0x1]
      %v4012 = vld [vmem:[%s3786 + $0xf0] sm:$0xf]
      %v4013 = vld [vmem:[%s3786 + $0xf4] sm:$0x1]
      %v4014 = vld [vmem:[%s3786 + $0xf8] sm:$0xf]
      %v4015 = vld [vmem:[%s3786 + $0xfc] sm:$0x1]
      %v4016 = vld [vmem:[%s3786 + $0x100] sm:$0xf]
      %v4017 = vld [vmem:[%s3786 + $0x104] sm:$0x1]
      %v4018 = vld [vmem:[%s3786 + $0x108] sm:$0xf]
      %v4019 = vld [vmem:[%s3786 + $0x10c] sm:$0x1]
      %v4020 = vld [vmem:[%s3786 + $0x110] sm:$0xf]
      %v4021 = vld [vmem:[%s3786 + $0x114] sm:$0x1]
      %v4022 = vld [vmem:[%s3786 + $0x118] sm:$0xf]
      %v4023 = vld [vmem:[%s3786 + $0x11c] sm:$0x1]
      %v4024 = vld [vmem:[%s3786 + $0x120] sm:$0xf]
      %v4025 = vld [vmem:[%s3786 + $0x124] sm:$0x1]
      %v4026 = vld [vmem:[%s3786 + $0x128] sm:$0xf]
      %v4027 = vld [vmem:[%s3786 + $0x12c] sm:$0x1]
      %v4029 = vshrl.u32 %v3964, 16
      %v4031 = vrot.slane %v4029, 4
      %v4032 = vshll.u32 %v3964, 16
      %v4034 = vrot.slane %v4032, 5
      %v4035 = vor.u32 %v4031, %v4034
      %v4036 = vrot.slane %v4035, 4
      %v4038 = vshll.u32 %v3965, 16
      %v4040 = vrot.slane %v4038, 5
      %v4041 = vsel %vm501, %v4036, %v4040
      %v4043 = vshrl.u32 %v3966, 16
      %v4045 = vrot.slane %v4043, 4
      %v4046 = vshll.u32 %v3966, 16
      %v4048 = vrot.slane %v4046, 5
      %v4049 = vor.u32 %v4045, %v4048
      %v4050 = vrot.slane %v4049, 4
      %v4052 = vshll.u32 %v3967, 16
      %v4054 = vrot.slane %v4052, 5
      %v4055 = vsel %vm501, %v4050, %v4054
      %v4057 = vshrl.u32 %v3968, 16
      %v4059 = vrot.slane %v4057, 4
      %v4060 = vshll.u32 %v3968, 16
      %v4062 = vrot.slane %v4060, 5
      %v4063 = vor.u32 %v4059, %v4062
      %v4064 = vrot.slane %v4063, 4
      %v4066 = vshll.u32 %v3969, 16
      %v4068 = vrot.slane %v4066, 5
      %v4069 = vsel %vm501, %v4064, %v4068
      %v4071 = vshrl.u32 %v3970, 16
      %v4073 = vrot.slane %v4071, 4
      %v4074 = vshll.u32 %v3970, 16
      %v4076 = vrot.slane %v4074, 5
      %v4077 = vor.u32 %v4073, %v4076
      %v4078 = vrot.slane %v4077, 4
      %v4080 = vshll.u32 %v3971, 16
      %v4082 = vrot.slane %v4080, 5
      %v4083 = vsel %vm501, %v4078, %v4082
      %v4085 = vshrl.u32 %v3972, 16
      %v4087 = vrot.slane %v4085, 4
      %v4088 = vshll.u32 %v3972, 16
      %v4090 = vrot.slane %v4088, 5
      %v4091 = vor.u32 %v4087, %v4090
      %v4092 = vrot.slane %v4091, 4
      %v4094 = vshll.u32 %v3973, 16
      %v4096 = vrot.slane %v4094, 5
      %v4097 = vsel %vm501, %v4092, %v4096
      %v4099 = vshrl.u32 %v3974, 16
      %v4101 = vrot.slane %v4099, 4
      %v4102 = vshll.u32 %v3974, 16
      %v4104 = vrot.slane %v4102, 5
      %v4105 = vor.u32 %v4101, %v4104
      %v4106 = vrot.slane %v4105, 4
      %v4108 = vshll.u32 %v3975, 16
      %v4110 = vrot.slane %v4108, 5
      %v4111 = vsel %vm501, %v4106, %v4110
      %v4113 = vshrl.u32 %v3976, 16
      %v4115 = vrot.slane %v4113, 4
      %v4116 = vshll.u32 %v3976, 16
      %v4118 = vrot.slane %v4116, 5
      %v4119 = vor.u32 %v4115, %v4118
      %v4120 = vrot.slane %v4119, 4
      %v4122 = vshll.u32 %v3977, 16
      %v4124 = vrot.slane %v4122, 5
      %v4125 = vsel %vm501, %v4120, %v4124
      %v4127 = vshrl.u32 %v3978, 16
      %v4129 = vrot.slane %v4127, 4
      %v4130 = vshll.u32 %v3978, 16
      %v4132 = vrot.slane %v4130, 5
      %v4133 = vor.u32 %v4129, %v4132
      %v4134 = vrot.slane %v4133, 4
      %v4136 = vshll.u32 %v3979, 16
      %v4138 = vrot.slane %v4136, 5
      %v4139 = vsel %vm501, %v4134, %v4138
      %v4141 = vshrl.u32 %v3980, 16
      %v4143 = vrot.slane %v4141, 4
      %v4144 = vshll.u32 %v3980, 16
      %v4146 = vrot.slane %v4144, 5
      %v4147 = vor.u32 %v4143, %v4146
      %v4148 = vrot.slane %v4147, 4
      %v4150 = vshll.u32 %v3981, 16
      %v4152 = vrot.slane %v4150, 5
      %v4153 = vsel %vm501, %v4148, %v4152
      %v4155 = vshrl.u32 %v3982, 16
      %v4157 = vrot.slane %v4155, 4
      %v4158 = vshll.u32 %v3982, 16
      %v4160 = vrot.slane %v4158, 5
      %v4161 = vor.u32 %v4157, %v4160
      %v4162 = vrot.slane %v4161, 4
      %v4164 = vshll.u32 %v3983, 16
      %v4166 = vrot.slane %v4164, 5
      %v4167 = vsel %vm501, %v4162, %v4166
      %v4169 = vshrl.u32 %v3984, 16
      %v4171 = vrot.slane %v4169, 4
      %v4172 = vshll.u32 %v3984, 16
      %v4174 = vrot.slane %v4172, 5
      %v4175 = vor.u32 %v4171, %v4174
      %v4176 = vrot.slane %v4175, 4
      %v4178 = vshll.u32 %v3985, 16
      %v4180 = vrot.slane %v4178, 5
      %v4181 = vsel %vm501, %v4176, %v4180
      %v4183 = vshrl.u32 %v3986, 16
      %v4185 = vrot.slane %v4183, 4
      %v4186 = vshll.u32 %v3986, 16
      %v4188 = vrot.slane %v4186, 5
      %v4189 = vor.u32 %v4185, %v4188
      %v4190 = vrot.slane %v4189, 4
      %v4192 = vshll.u32 %v3987, 16
      %v4194 = vrot.slane %v4192, 5
      %v4195 = vsel %vm501, %v4190, %v4194
      %v4197 = vshrl.u32 %v3988, 16
      %v4199 = vrot.slane %v4197, 4
      %v4200 = vshll.u32 %v3988, 16
      %v4202 = vrot.slane %v4200, 5
      %v4203 = vor.u32 %v4199, %v4202
      %v4204 = vrot.slane %v4203, 4
      %v4206 = vshll.u32 %v3989, 16
      %v4208 = vrot.slane %v4206, 5
      %v4209 = vsel %vm501, %v4204, %v4208
      %v4211 = vshrl.u32 %v3990, 16
      %v4213 = vrot.slane %v4211, 4
      %v4214 = vshll.u32 %v3990, 16
      %v4216 = vrot.slane %v4214, 5
      %v4217 = vor.u32 %v4213, %v4216
      %v4218 = vrot.slane %v4217, 4
      %v4220 = vshll.u32 %v3991, 16
      %v4222 = vrot.slane %v4220, 5
      %v4223 = vsel %vm501, %v4218, %v4222
      %v4225 = vshrl.u32 %v3992, 16
      %v4227 = vrot.slane %v4225, 4
      %v4228 = vshll.u32 %v3992, 16
      %v4230 = vrot.slane %v4228, 5
      %v4231 = vor.u32 %v4227, %v4230
      %v4232 = vrot.slane %v4231, 4
      %v4234 = vshll.u32 %v3993, 16
      %v4236 = vrot.slane %v4234, 5
      %v4237 = vsel %vm501, %v4232, %v4236
      %v4239 = vshrl.u32 %v3994, 16
      %v4241 = vrot.slane %v4239, 4
      %v4242 = vshll.u32 %v3994, 16
      %v4244 = vrot.slane %v4242, 5
      %v4245 = vor.u32 %v4241, %v4244
      %v4246 = vrot.slane %v4245, 4
      %v4248 = vshll.u32 %v3995, 16
      %v4250 = vrot.slane %v4248, 5
      %v4251 = vsel %vm501, %v4246, %v4250
      %v4253 = vshrl.u32 %v3996, 16
      %v4255 = vrot.slane %v4253, 4
      %v4256 = vshll.u32 %v3996, 16
      %v4258 = vrot.slane %v4256, 5
      %v4259 = vor.u32 %v4255, %v4258
      %v4260 = vrot.slane %v4259, 4
      %v4262 = vshll.u32 %v3997, 16
      %v4264 = vrot.slane %v4262, 5
      %v4265 = vsel %vm501, %v4260, %v4264
      %v4267 = vshrl.u32 %v3998, 16
      %v4269 = vrot.slane %v4267, 4
      %v4270 = vshll.u32 %v3998, 16
      %v4272 = vrot.slane %v4270, 5
      %v4273 = vor.u32 %v4269, %v4272
      %v4274 = vrot.slane %v4273, 4
      %v4276 = vshll.u32 %v3999, 16
      %v4278 = vrot.slane %v4276, 5
      %v4279 = vsel %vm501, %v4274, %v4278
      %v4281 = vshrl.u32 %v4000, 16
      %v4283 = vrot.slane %v4281, 4
      %v4284 = vshll.u32 %v4000, 16
      %v4286 = vrot.slane %v4284, 5
      %v4287 = vor.u32 %v4283, %v4286
      %v4288 = vrot.slane %v4287, 4
      %v4290 = vshll.u32 %v4001, 16
      %v4292 = vrot.slane %v4290, 5
      %v4293 = vsel %vm501, %v4288, %v4292
      %v4295 = vshrl.u32 %v4002, 16
      %v4297 = vrot.slane %v4295, 4
      %v4298 = vshll.u32 %v4002, 16
      %v4300 = vrot.slane %v4298, 5
      %v4301 = vor.u32 %v4297, %v4300
      %v4302 = vrot.slane %v4301, 4
      %v4304 = vshll.u32 %v4003, 16
      %v4306 = vrot.slane %v4304, 5
      %v4307 = vsel %vm501, %v4302, %v4306
      %v4309 = vshrl.u32 %v4004, 16
      %v4311 = vrot.slane %v4309, 4
      %v4312 = vshll.u32 %v4004, 16
      %v4314 = vrot.slane %v4312, 5
      %v4315 = vor.u32 %v4311, %v4314
      %v4316 = vrot.slane %v4315, 4
      %v4318 = vshll.u32 %v4005, 16
      %v4320 = vrot.slane %v4318, 5
      %v4321 = vsel %vm501, %v4316, %v4320
      %v4323 = vshrl.u32 %v4006, 16
      %v4325 = vrot.slane %v4323, 4
      %v4326 = vshll.u32 %v4006, 16
      %v4328 = vrot.slane %v4326, 5
      %v4329 = vor.u32 %v4325, %v4328
      %v4330 = vrot.slane %v4329, 4
      %v4332 = vshll.u32 %v4007, 16
      %v4334 = vrot.slane %v4332, 5
      %v4335 = vsel %vm501, %v4330, %v4334
      %v4337 = vshrl.u32 %v4008, 16
      %v4339 = vrot.slane %v4337, 4
      %v4340 = vshll.u32 %v4008, 16
      %v4342 = vrot.slane %v4340, 5
      %v4343 = vor.u32 %v4339, %v4342
      %v4344 = vrot.slane %v4343, 4
      %v4346 = vshll.u32 %v4009, 16
      %v4348 = vrot.slane %v4346, 5
      %v4349 = vsel %vm501, %v4344, %v4348
      %v4351 = vshrl.u32 %v4010, 16
      %v4353 = vrot.slane %v4351, 4
      %v4354 = vshll.u32 %v4010, 16
      %v4356 = vrot.slane %v4354, 5
      %v4357 = vor.u32 %v4353, %v4356
      %v4358 = vrot.slane %v4357, 4
      %v4360 = vshll.u32 %v4011, 16
      %v4362 = vrot.slane %v4360, 5
      %v4363 = vsel %vm501, %v4358, %v4362
      %v4365 = vshrl.u32 %v4012, 16
      %v4367 = vrot.slane %v4365, 4
      %v4368 = vshll.u32 %v4012, 16
      %v4370 = vrot.slane %v4368, 5
      %v4371 = vor.u32 %v4367, %v4370
      %v4372 = vrot.slane %v4371, 4
      %v4374 = vshll.u32 %v4013, 16
      %v4376 = vrot.slane %v4374, 5
      %v4377 = vsel %vm501, %v4372, %v4376
      %v4379 = vshrl.u32 %v4014, 16
      %v4381 = vrot.slane %v4379, 4
      %v4382 = vshll.u32 %v4014, 16
      %v4384 = vrot.slane %v4382, 5
      %v4385 = vor.u32 %v4381, %v4384
      %v4386 = vrot.slane %v4385, 4
      %v4388 = vshll.u32 %v4015, 16
      %v4390 = vrot.slane %v4388, 5
      %v4391 = vsel %vm501, %v4386, %v4390
      %v4393 = vshrl.u32 %v4016, 16
      %v4395 = vrot.slane %v4393, 4
      %v4396 = vshll.u32 %v4016, 16
      %v4398 = vrot.slane %v4396, 5
      %v4399 = vor.u32 %v4395, %v4398
      %v4400 = vrot.slane %v4399, 4
      %v4402 = vshll.u32 %v4017, 16
      %v4404 = vrot.slane %v4402, 5
      %v4405 = vsel %vm501, %v4400, %v4404
      %v4407 = vshrl.u32 %v4018, 16
      %v4409 = vrot.slane %v4407, 4
      %v4410 = vshll.u32 %v4018, 16
      %v4412 = vrot.slane %v4410, 5
      %v4413 = vor.u32 %v4409, %v4412
      %v4414 = vrot.slane %v4413, 4
      %v4416 = vshll.u32 %v4019, 16
      %v4418 = vrot.slane %v4416, 5
      %v4419 = vsel %vm501, %v4414, %v4418
      %v4421 = vshrl.u32 %v4020, 16
      %v4423 = vrot.slane %v4421, 4
      %v4424 = vshll.u32 %v4020, 16
      %v4426 = vrot.slane %v4424, 5
      %v4427 = vor.u32 %v4423, %v4426
      %v4428 = vrot.slane %v4427, 4
      %v4430 = vshll.u32 %v4021, 16
      %v4432 = vrot.slane %v4430, 5
      %v4433 = vsel %vm501, %v4428, %v4432
      %v4435 = vshrl.u32 %v4022, 16
      %v4437 = vrot.slane %v4435, 4
      %v4438 = vshll.u32 %v4022, 16
      %v4440 = vrot.slane %v4438, 5
      %v4441 = vor.u32 %v4437, %v4440
      %v4442 = vrot.slane %v4441, 4
      %v4444 = vshll.u32 %v4023, 16
      %v4446 = vrot.slane %v4444, 5
      %v4447 = vsel %vm501, %v4442, %v4446
      %v4449 = vshrl.u32 %v4024, 16
      %v4451 = vrot.slane %v4449, 4
      %v4452 = vshll.u32 %v4024, 16
      %v4454 = vrot.slane %v4452, 5
      %v4455 = vor.u32 %v4451, %v4454
      %v4456 = vrot.slane %v4455, 4
      %v4458 = vshll.u32 %v4025, 16
      %v4460 = vrot.slane %v4458, 5
      %v4461 = vsel %vm501, %v4456, %v4460
      %v4463 = vshrl.u32 %v4026, 16
      %v4465 = vrot.slane %v4463, 4
      %v4466 = vshll.u32 %v4026, 16
      %v4468 = vrot.slane %v4466, 5
      %v4469 = vor.u32 %v4465, %v4468
      %v4470 = vrot.slane %v4469, 4
      %v4472 = vshll.u32 %v4027, 16
      %v4474 = vrot.slane %v4472, 5
      %v4475 = vsel %vm501, %v4470, %v4474
      %v4476 = vunpack.c.l.b16 %v4041
      %v4477 = vunpack.c.l.b16 %v4055
      %v4478 = vunpack.c.l.b16 %v4069
      %v4479 = vunpack.c.l.b16 %v4083
      %v4480 = vunpack.c.l.b16 %v4097
      %v4481 = vunpack.c.l.b16 %v4111
      %v4482 = vunpack.c.l.b16 %v4125
      %v4483 = vunpack.c.l.b16 %v4139
      %v4484 = vunpack.c.l.b16 %v4153
      %v4485 = vunpack.c.l.b16 %v4167
      %v4486 = vunpack.c.l.b16 %v4181
      %v4487 = vunpack.c.l.b16 %v4195
      %v4488 = vunpack.c.l.b16 %v4209
      %v4489 = vunpack.c.l.b16 %v4223
      %v4490 = vunpack.c.l.b16 %v4237
      %v4491 = vunpack.c.l.b16 %v4251
      %v4492 = vunpack.c.l.b16 %v4265
      %v4493 = vunpack.c.l.b16 %v4279
      %v4494 = vunpack.c.l.b16 %v4293
      %v4495 = vunpack.c.l.b16 %v4307
      %v4496 = vunpack.c.l.b16 %v4321
      %v4497 = vunpack.c.l.b16 %v4335
      %v4498 = vunpack.c.l.b16 %v4349
      %v4499 = vunpack.c.l.b16 %v4363
      %v4500 = vunpack.c.l.b16 %v4377
      %v4501 = vunpack.c.l.b16 %v4391
      %v4502 = vunpack.c.l.b16 %v4405
      %v4503 = vunpack.c.l.b16 %v4419
      %v4504 = vunpack.c.l.b16 %v4433
      %v4505 = vunpack.c.l.b16 %v4447
      %v4506 = vunpack.c.l.b16 %v4461
      %v4507 = vunpack.c.l.b16 %v4475
      %v4508 = vpack.c.b16 %v4477, %v4476
      %v4509 = vpack.c.b16 %v4479, %v4478
      %v4510 = vpack.c.b16 %v4481, %v4480
      %v4511 = vpack.c.b16 %v4483, %v4482
      %v4512 = vpack.c.b16 %v4485, %v4484
      %v4513 = vpack.c.b16 %v4487, %v4486
      %v4514 = vpack.c.b16 %v4489, %v4488
      %v4515 = vpack.c.b16 %v4491, %v4490
      %v4516 = vpack.c.b16 %v4493, %v4492
      %v4517 = vpack.c.b16 %v4495, %v4494
      %v4518 = vpack.c.b16 %v4497, %v4496
      %v4519 = vpack.c.b16 %v4499, %v4498
      %v4520 = vpack.c.b16 %v4501, %v4500
      %v4521 = vpack.c.b16 %v4503, %v4502
      %v4522 = vpack.c.b16 %v4505, %v4504
      %v4523 = vpack.c.b16 %v4507, %v4506
      %4524 = vrot.lane.b32.xlu0 %v4508, 80
      %v4525 = vpop.permute.xlu0 %4524
      %4526 = vrot.lane.b32.xlu0 %v4509, 80
      %v4527 = vpop.permute.xlu0 %4526
      %4528 = vrot.lane.b32.xlu0 %v4510, 80
      %v4529 = vpop.permute.xlu0 %4528
      %4530 = vrot.lane.b32.xlu0 %v4511, 80
      %v4531 = vpop.permute.xlu0 %4530
      %4532 = vrot.lane.b32.xlu0 %v4512, 80
      %v4533 = vpop.permute.xlu0 %4532
      %4534 = vrot.lane.b32.xlu0 %v4513, 80
      %v4535 = vpop.permute.xlu0 %4534
      %4536 = vrot.lane.b32.xlu0 %v4514, 80
      %v4537 = vpop.permute.xlu0 %4536
      %4538 = vrot.lane.b32.xlu0 %v4515, 80
      %v4539 = vpop.permute.xlu0 %4538
      %4540 = vrot.lane.b32.xlu0 %v4516, 80
      %v4541 = vpop.permute.xlu0 %4540
      %4542 = vrot.lane.b32.xlu0 %v4517, 80
      %v4543 = vpop.permute.xlu0 %4542
      %4544 = vrot.lane.b32.xlu0 %v4518, 80
      %v4545 = vpop.permute.xlu0 %4544
      %4546 = vrot.lane.b32.xlu0 %v4519, 80
      %v4547 = vpop.permute.xlu0 %4546
      %4548 = vrot.lane.b32.xlu0 %v4520, 80
      %v4549 = vpop.permute.xlu0 %4548
      %4550 = vrot.lane.b32.xlu0 %v4521, 80
      %v4551 = vpop.permute.xlu0 %4550
      %4552 = vrot.lane.b32.xlu0 %v4522, 80
      %v4553 = vpop.permute.xlu0 %4552
      %4554 = vrot.lane.b32.xlu0 %v4523, 80
      %v4555 = vpop.permute.xlu0 %4554
      %vm4572 = vcmask 720512
      %4573 = vst.msk [vmem:[#allocation2] sm:$0xff] %vm4572, %v4525
      %4574 = vst.msk [vmem:[#allocation2 + $0x10] sm:$0xff] %vm4572, %v4527
      %4575 = vst.msk [vmem:[#allocation2 + $0x20] sm:$0xff] %vm4572, %v4529
      %4576 = vst.msk [vmem:[#allocation2 + $0x30] sm:$0xff] %vm4572, %v4531
      %4577 = vst.msk [vmem:[#allocation2 + $0x40] sm:$0xff] %vm4572, %v4533
      %4578 = vst.msk [vmem:[#allocation2 + $0x50] sm:$0xff] %vm4572, %v4535
      %4579 = vst.msk [vmem:[#allocation2 + $0x60] sm:$0xff] %vm4572, %v4537
      %4580 = vst.msk [vmem:[#allocation2 + $0x70] sm:$0xff] %vm4572, %v4539
      %4581 = vst.msk [vmem:[#allocation2 + $0x80] sm:$0xff] %vm4572, %v4541
      %4582 = vst.msk [vmem:[#allocation2 + $0x90] sm:$0xff] %vm4572, %v4543
      %4583 = vst.msk [vmem:[#allocation2 + $0xa0] sm:$0xff] %vm4572, %v4545
      %4584 = vst.msk [vmem:[#allocation2 + $0xb0] sm:$0xff] %vm4572, %v4547
      %4585 = vst.msk [vmem:[#allocation2 + $0xc0] sm:$0xff] %vm4572, %v4549
      %4586 = vst.msk [vmem:[#allocation2 + $0xd0] sm:$0xff] %vm4572, %v4551
      %4587 = vst.msk [vmem:[#allocation2 + $0xe0] sm:$0xff] %vm4572, %v4553
      %4588 = vst.msk [vmem:[#allocation2 + $0xf0] sm:$0xff] %vm4572, %v4555
      %v4589 = vld [vmem:[%s3786] sm:$0xe]
      %v4590 = vld [vmem:[%s3786 + $0x4] sm:$0x1]
      %v4591 = vld [vmem:[%s3786 + $0x8] sm:$0xe]
      %v4592 = vld [vmem:[%s3786 + $0xc] sm:$0x1]
      %v4593 = vld [vmem:[%s3786 + $0x10] sm:$0xe]
      %v4594 = vld [vmem:[%s3786 + $0x14] sm:$0x1]
      %v4595 = vld [vmem:[%s3786 + $0x18] sm:$0xe]
      %v4596 = vld [vmem:[%s3786 + $0x1c] sm:$0x1]
      %v4597 = vld [vmem:[%s3786 + $0x20] sm:$0xe]
      %v4598 = vld [vmem:[%s3786 + $0x24] sm:$0x1]
      %v4599 = vld [vmem:[%s3786 + $0x28] sm:$0xe]
      %v4600 = vld [vmem:[%s3786 + $0x2c] sm:$0x1]
      %v4601 = vld [vmem:[%s3786 + $0x30] sm:$0xe]
      %v4602 = vld [vmem:[%s3786 + $0x34] sm:$0x1]
      %v4603 = vld [vmem:[%s3786 + $0x38] sm:$0xe]
      %v4604 = vld [vmem:[%s3786 + $0x3c] sm:$0x1]
      %v4605 = vld [vmem:[%s3786 + $0x50] sm:$0xe]
      %v4606 = vld [vmem:[%s3786 + $0x54] sm:$0x1]
      %v4607 = vld [vmem:[%s3786 + $0x58] sm:$0xe]
      %v4608 = vld [vmem:[%s3786 + $0x5c] sm:$0x1]
      %v4609 = vld [vmem:[%s3786 + $0x60] sm:$0xe]
      %v4610 = vld [vmem:[%s3786 + $0x64] sm:$0x1]
      %v4611 = vld [vmem:[%s3786 + $0x68] sm:$0xe]
      %v4612 = vld [vmem:[%s3786 + $0x6c] sm:$0x1]
      %v4613 = vld [vmem:[%s3786 + $0x70] sm:$0xe]
      %v4614 = vld [vmem:[%s3786 + $0x74] sm:$0x1]
      %v4615 = vld [vmem:[%s3786 + $0x78] sm:$0xe]
      %v4616 = vld [vmem:[%s3786 + $0x7c] sm:$0x1]
      %v4617 = vld [vmem:[%s3786 + $0x80] sm:$0xe]
      %v4618 = vld [vmem:[%s3786 + $0x84] sm:$0x1]
      %v4619 = vld [vmem:[%s3786 + $0x88] sm:$0xe]
      %v4620 = vld [vmem:[%s3786 + $0x8c] sm:$0x1]
      %v4621 = vld [vmem:[%s3786 + $0xa0] sm:$0xe]
      %v4622 = vld [vmem:[%s3786 + $0xa4] sm:$0x1]
      %v4623 = vld [vmem:[%s3786 + $0xa8] sm:$0xe]
      %v4624 = vld [vmem:[%s3786 + $0xac] sm:$0x1]
      %v4625 = vld [vmem:[%s3786 + $0xb0] sm:$0xe]
      %v4626 = vld [vmem:[%s3786 + $0xb4] sm:$0x1]
      %v4627 = vld [vmem:[%s3786 + $0xb8] sm:$0xe]
      %v4628 = vld [vmem:[%s3786 + $0xbc] sm:$0x1]
      %v4629 = vld [vmem:[%s3786 + $0xc0] sm:$0xe]
      %v4630 = vld [vmem:[%s3786 + $0xc4] sm:$0x1]
      %v4631 = vld [vmem:[%s3786 + $0xc8] sm:$0xe]
      %v4632 = vld [vmem:[%s3786 + $0xcc] sm:$0x1]
      %v4633 = vld [vmem:[%s3786 + $0xd0] sm:$0xe]
      %v4634 = vld [vmem:[%s3786 + $0xd4] sm:$0x1]
      %v4635 = vld [vmem:[%s3786 + $0xd8] sm:$0xe]
      %v4636 = vld [vmem:[%s3786 + $0xdc] sm:$0x1]
      %v4637 = vld [vmem:[%s3786 + $0xf0] sm:$0xe]
      %v4638 = vld [vmem:[%s3786 + $0xf4] sm:$0x1]
      %v4639 = vld [vmem:[%s3786 + $0xf8] sm:$0xe]
      %v4640 = vld [vmem:[%s3786 + $0xfc] sm:$0x1]
      %v4641 = vld [vmem:[%s3786 + $0x100] sm:$0xe]
      %v4642 = vld [vmem:[%s3786 + $0x104] sm:$0x1]
      %v4643 = vld [vmem:[%s3786 + $0x108] sm:$0xe]
      %v4644 = vld [vmem:[%s3786 + $0x10c] sm:$0x1]
      %v4645 = vld [vmem:[%s3786 + $0x110] sm:$0xe]
      %v4646 = vld [vmem:[%s3786 + $0x114] sm:$0x1]
      %v4647 = vld [vmem:[%s3786 + $0x118] sm:$0xe]
      %v4648 = vld [vmem:[%s3786 + $0x11c] sm:$0x1]
      %v4649 = vld [vmem:[%s3786 + $0x120] sm:$0xe]
      %v4650 = vld [vmem:[%s3786 + $0x124] sm:$0x1]
      %v4651 = vld [vmem:[%s3786 + $0x128] sm:$0xe]
      %v4652 = vld [vmem:[%s3786 + $0x12c] sm:$0x1]
      %v4717 = vrot.slane %v4589, 5
      %v4718 = vrot.slane %v4717, 4
      %v4719 = vrot.slane %v4590, 5
      %v4720 = vsel %vm1193, %v4718, %v4719
      %v4721 = vrot.slane %v4591, 5
      %v4722 = vrot.slane %v4721, 4
      %v4723 = vrot.slane %v4592, 5
      %v4724 = vsel %vm1193, %v4722, %v4723
      %v4725 = vrot.slane %v4593, 5
      %v4726 = vrot.slane %v4725, 4
      %v4727 = vrot.slane %v4594, 5
      %v4728 = vsel %vm1193, %v4726, %v4727
      %v4729 = vrot.slane %v4595, 5
      %v4730 = vrot.slane %v4729, 4
      %v4731 = vrot.slane %v4596, 5
      %v4732 = vsel %vm1193, %v4730, %v4731
      %v4733 = vrot.slane %v4597, 5
      %v4734 = vrot.slane %v4733, 4
      %v4735 = vrot.slane %v4598, 5
      %v4736 = vsel %vm1193, %v4734, %v4735
      %v4737 = vrot.slane %v4599, 5
      %v4738 = vrot.slane %v4737, 4
      %v4739 = vrot.slane %v4600, 5
      %v4740 = vsel %vm1193, %v4738, %v4739
      %v4741 = vrot.slane %v4601, 5
      %v4742 = vrot.slane %v4741, 4
      %v4743 = vrot.slane %v4602, 5
      %v4744 = vsel %vm1193, %v4742, %v4743
      %v4745 = vrot.slane %v4603, 5
      %v4746 = vrot.slane %v4745, 4
      %v4747 = vrot.slane %v4604, 5
      %v4748 = vsel %vm1193, %v4746, %v4747
      %v4749 = vrot.slane %v4605, 5
      %v4750 = vrot.slane %v4749, 4
      %v4751 = vrot.slane %v4606, 5
      %v4752 = vsel %vm1193, %v4750, %v4751
      %v4753 = vrot.slane %v4607, 5
      %v4754 = vrot.slane %v4753, 4
      %v4755 = vrot.slane %v4608, 5
      %v4756 = vsel %vm1193, %v4754, %v4755
      %v4757 = vrot.slane %v4609, 5
      %v4758 = vrot.slane %v4757, 4
      %v4759 = vrot.slane %v4610, 5
      %v4760 = vsel %vm1193, %v4758, %v4759
      %v4761 = vrot.slane %v4611, 5
      %v4762 = vrot.slane %v4761, 4
      %v4763 = vrot.slane %v4612, 5
      %v4764 = vsel %vm1193, %v4762, %v4763
      %v4765 = vrot.slane %v4613, 5
      %v4766 = vrot.slane %v4765, 4
      %v4767 = vrot.slane %v4614, 5
      %v4768 = vsel %vm1193, %v4766, %v4767
      %v4769 = vrot.slane %v4615, 5
      %v4770 = vrot.slane %v4769, 4
      %v4771 = vrot.slane %v4616, 5
      %v4772 = vsel %vm1193, %v4770, %v4771
      %v4773 = vrot.slane %v4617, 5
      %v4774 = vrot.slane %v4773, 4
      %v4775 = vrot.slane %v4618, 5
      %v4776 = vsel %vm1193, %v4774, %v4775
      %v4777 = vrot.slane %v4619, 5
      %v4778 = vrot.slane %v4777, 4
      %v4779 = vrot.slane %v4620, 5
      %v4780 = vsel %vm1193, %v4778, %v4779
      %v4781 = vrot.slane %v4621, 5
      %v4782 = vrot.slane %v4781, 4
      %v4783 = vrot.slane %v4622, 5
      %v4784 = vsel %vm1193, %v4782, %v4783
      %v4785 = vrot.slane %v4623, 5
      %v4786 = vrot.slane %v4785, 4
      %v4787 = vrot.slane %v4624, 5
      %v4788 = vsel %vm1193, %v4786, %v4787
      %v4789 = vrot.slane %v4625, 5
      %v4790 = vrot.slane %v4789, 4
      %v4791 = vrot.slane %v4626, 5
      %v4792 = vsel %vm1193, %v4790, %v4791
      %v4793 = vrot.slane %v4627, 5
      %v4794 = vrot.slane %v4793, 4
      %v4795 = vrot.slane %v4628, 5
      %v4796 = vsel %vm1193, %v4794, %v4795
      %v4797 = vrot.slane %v4629, 5
      %v4798 = vrot.slane %v4797, 4
      %v4799 = vrot.slane %v4630, 5
      %v4800 = vsel %vm1193, %v4798, %v4799
      %v4801 = vrot.slane %v4631, 5
      %v4802 = vrot.slane %v4801, 4
      %v4803 = vrot.slane %v4632, 5
      %v4804 = vsel %vm1193, %v4802, %v4803
      %v4805 = vrot.slane %v4633, 5
      %v4806 = vrot.slane %v4805, 4
      %v4807 = vrot.slane %v4634, 5
      %v4808 = vsel %vm1193, %v4806, %v4807
      %v4809 = vrot.slane %v4635, 5
      %v4810 = vrot.slane %v4809, 4
      %v4811 = vrot.slane %v4636, 5
      %v4812 = vsel %vm1193, %v4810, %v4811
      %v4813 = vrot.slane %v4637, 5
      %v4814 = vrot.slane %v4813, 4
      %v4815 = vrot.slane %v4638, 5
      %v4816 = vsel %vm1193, %v4814, %v4815
      %v4817 = vrot.slane %v4639, 5
      %v4818 = vrot.slane %v4817, 4
      %v4819 = vrot.slane %v4640, 5
      %v4820 = vsel %vm1193, %v4818, %v4819
      %v4821 = vrot.slane %v4641, 5
      %v4822 = vrot.slane %v4821, 4
      %v4823 = vrot.slane %v4642, 5
      %v4824 = vsel %vm1193, %v4822, %v4823
      %v4825 = vrot.slane %v4643, 5
      %v4826 = vrot.slane %v4825, 4
      %v4827 = vrot.slane %v4644, 5
      %v4828 = vsel %vm1193, %v4826, %v4827
      %v4829 = vrot.slane %v4645, 5
      %v4830 = vrot.slane %v4829, 4
      %v4831 = vrot.slane %v4646, 5
      %v4832 = vsel %vm1193, %v4830, %v4831
      %v4833 = vrot.slane %v4647, 5
      %v4834 = vrot.slane %v4833, 4
      %v4835 = vrot.slane %v4648, 5
      %v4836 = vsel %vm1193, %v4834, %v4835
      %v4837 = vrot.slane %v4649, 5
      %v4838 = vrot.slane %v4837, 4
      %v4839 = vrot.slane %v4650, 5
      %v4840 = vsel %vm1193, %v4838, %v4839
      %v4841 = vrot.slane %v4651, 5
      %v4842 = vrot.slane %v4841, 4
      %v4843 = vrot.slane %v4652, 5
      %v4844 = vsel %vm1193, %v4842, %v4843
      %v4845 = vunpack.c.l.b16 %v4720
      %v4846 = vunpack.c.l.b16 %v4724
      %v4847 = vunpack.c.l.b16 %v4728
      %v4848 = vunpack.c.l.b16 %v4732
      %v4849 = vunpack.c.l.b16 %v4736
      %v4850 = vunpack.c.l.b16 %v4740
      %v4851 = vunpack.c.l.b16 %v4744
      %v4852 = vunpack.c.l.b16 %v4748
      %v4853 = vunpack.c.l.b16 %v4752
      %v4854 = vunpack.c.l.b16 %v4756
      %v4855 = vunpack.c.l.b16 %v4760
      %v4856 = vunpack.c.l.b16 %v4764
      %v4857 = vunpack.c.l.b16 %v4768
      %v4858 = vunpack.c.l.b16 %v4772
      %v4859 = vunpack.c.l.b16 %v4776
      %v4860 = vunpack.c.l.b16 %v4780
      %v4861 = vunpack.c.l.b16 %v4784
      %v4862 = vunpack.c.l.b16 %v4788
      %v4863 = vunpack.c.l.b16 %v4792
      %v4864 = vunpack.c.l.b16 %v4796
      %v4865 = vunpack.c.l.b16 %v4800
      %v4866 = vunpack.c.l.b16 %v4804
      %v4867 = vunpack.c.l.b16 %v4808
      %v4868 = vunpack.c.l.b16 %v4812
      %v4869 = vunpack.c.l.b16 %v4816
      %v4870 = vunpack.c.l.b16 %v4820
      %v4871 = vunpack.c.l.b16 %v4824
      %v4872 = vunpack.c.l.b16 %v4828
      %v4873 = vunpack.c.l.b16 %v4832
      %v4874 = vunpack.c.l.b16 %v4836
      %v4875 = vunpack.c.l.b16 %v4840
      %v4876 = vunpack.c.l.b16 %v4844
      %v4877 = vpack.c.b16 %v4846, %v4845
      %v4878 = vpack.c.b16 %v4848, %v4847
      %v4879 = vpack.c.b16 %v4850, %v4849
      %v4880 = vpack.c.b16 %v4852, %v4851
      %v4881 = vpack.c.b16 %v4854, %v4853
      %v4882 = vpack.c.b16 %v4856, %v4855
      %v4883 = vpack.c.b16 %v4858, %v4857
      %v4884 = vpack.c.b16 %v4860, %v4859
      %v4885 = vpack.c.b16 %v4862, %v4861
      %v4886 = vpack.c.b16 %v4864, %v4863
      %v4887 = vpack.c.b16 %v4866, %v4865
      %v4888 = vpack.c.b16 %v4868, %v4867
      %v4889 = vpack.c.b16 %v4870, %v4869
      %v4890 = vpack.c.b16 %v4872, %v4871
      %v4891 = vpack.c.b16 %v4874, %v4873
      %v4892 = vpack.c.b16 %v4876, %v4875
      %4893 = vrot.lane.b32.xlu0 %v4877, 88
      %v4894 = vpop.permute.xlu0 %4893
      %4895 = vrot.lane.b32.xlu0 %v4878, 88
      %v4896 = vpop.permute.xlu0 %4895
      %4897 = vrot.lane.b32.xlu0 %v4879, 88
      %v4898 = vpop.permute.xlu0 %4897
      %4899 = vrot.lane.b32.xlu0 %v4880, 88
      %v4900 = vpop.permute.xlu0 %4899
      %4901 = vrot.lane.b32.xlu0 %v4881, 88
      %v4902 = vpop.permute.xlu0 %4901
      %4903 = vrot.lane.b32.xlu0 %v4882, 88
      %v4904 = vpop.permute.xlu0 %4903
      %4905 = vrot.lane.b32.xlu0 %v4883, 88
      %v4906 = vpop.permute.xlu0 %4905
      %4907 = vrot.lane.b32.xlu0 %v4884, 88
      %v4908 = vpop.permute.xlu0 %4907
      %4909 = vrot.lane.b32.xlu0 %v4885, 88
      %v4910 = vpop.permute.xlu0 %4909
      %4911 = vrot.lane.b32.xlu0 %v4886, 88
      %v4912 = vpop.permute.xlu0 %4911
      %4913 = vrot.lane.b32.xlu0 %v4887, 88
      %v4914 = vpop.permute.xlu0 %4913
      %4915 = vrot.lane.b32.xlu0 %v4888, 88
      %v4916 = vpop.permute.xlu0 %4915
      %4917 = vrot.lane.b32.xlu0 %v4889, 88
      %v4918 = vpop.permute.xlu0 %4917
      %4919 = vrot.lane.b32.xlu0 %v4890, 88
      %v4920 = vpop.permute.xlu0 %4919
      %4921 = vrot.lane.b32.xlu0 %v4891, 88
      %v4922 = vpop.permute.xlu0 %4921
      %4923 = vrot.lane.b32.xlu0 %v4892, 88
      %v4924 = vpop.permute.xlu0 %4923
      %vm4941 = vcmask 786112
      %4942 = vst.msk [vmem:[#allocation2] sm:$0xff] %vm4941, %v4894
      %4943 = vst.msk [vmem:[#allocation2 + $0x10] sm:$0xff] %vm4941, %v4896
      %4944 = vst.msk [vmem:[#allocation2 + $0x20] sm:$0xff] %vm4941, %v4898
      %4945 = vst.msk [vmem:[#allocation2 + $0x30] sm:$0xff] %vm4941, %v4900
      %4946 = vst.msk [vmem:[#allocation2 + $0x40] sm:$0xff] %vm4941, %v4902
      %4947 = vst.msk [vmem:[#allocation2 + $0x50] sm:$0xff] %vm4941, %v4904
      %4948 = vst.msk [vmem:[#allocation2 + $0x60] sm:$0xff] %vm4941, %v4906
      %4949 = vst.msk [vmem:[#allocation2 + $0x70] sm:$0xff] %vm4941, %v4908
      %4950 = vst.msk [vmem:[#allocation2 + $0x80] sm:$0xff] %vm4941, %v4910
      %4951 = vst.msk [vmem:[#allocation2 + $0x90] sm:$0xff] %vm4941, %v4912
      %4952 = vst.msk [vmem:[#allocation2 + $0xa0] sm:$0xff] %vm4941, %v4914
      %4953 = vst.msk [vmem:[#allocation2 + $0xb0] sm:$0xff] %vm4941, %v4916
      %4954 = vst.msk [vmem:[#allocation2 + $0xc0] sm:$0xff] %vm4941, %v4918
      %4955 = vst.msk [vmem:[#allocation2 + $0xd0] sm:$0xff] %vm4941, %v4920
      %4956 = vst.msk [vmem:[#allocation2 + $0xe0] sm:$0xff] %vm4941, %v4922
      %4957 = vst.msk [vmem:[#allocation2 + $0xf0] sm:$0xff] %vm4941, %v4924
      %s4958 = sadd.s32 2, %s3784
      %s4959 = smul.addr %s4958, 4
      %s4960 = scalar_lea.vmem %s260, %s4959
      %v4961 = vld [vmem:[%s4960] sm:$0xf]
      %v4962 = vld [vmem:[%s4960 + $0x8] sm:$0xf]
      %v4963 = vld [vmem:[%s4960 + $0x10] sm:$0xf]
      %v4964 = vld [vmem:[%s4960 + $0x18] sm:$0xf]
      %v4965 = vld [vmem:[%s4960 + $0x20] sm:$0xf]
      %v4966 = vld [vmem:[%s4960 + $0x28] sm:$0xf]
      %v4967 = vld [vmem:[%s4960 + $0x30] sm:$0xf]
      %v4968 = vld [vmem:[%s4960 + $0x38] sm:$0xf]
      %v4969 = vld [vmem:[%s4960 + $0x50] sm:$0xf]
      %v4970 = vld [vmem:[%s4960 + $0x58] sm:$0xf]
      %v4971 = vld [vmem:[%s4960 + $0x60] sm:$0xf]
      %v4972 = vld [vmem:[%s4960 + $0x68] sm:$0xf]
      %v4973 = vld [vmem:[%s4960 + $0x70] sm:$0xf]
      %v4974 = vld [vmem:[%s4960 + $0x78] sm:$0xf]
      %v4975 = vld [vmem:[%s4960 + $0x80] sm:$0xf]
      %v4976 = vld [vmem:[%s4960 + $0x88] sm:$0xf]
      %v4977 = vld [vmem:[%s4960 + $0xa0] sm:$0xf]
      %v4978 = vld [vmem:[%s4960 + $0xa8] sm:$0xf]
      %v4979 = vld [vmem:[%s4960 + $0xb0] sm:$0xf]
      %v4980 = vld [vmem:[%s4960 + $0xb8] sm:$0xf]
      %v4981 = vld [vmem:[%s4960 + $0xc0] sm:$0xf]
      %v4982 = vld [vmem:[%s4960 + $0xc8] sm:$0xf]
      %v4983 = vld [vmem:[%s4960 + $0xd0] sm:$0xf]
      %v4984 = vld [vmem:[%s4960 + $0xd8] sm:$0xf]
      %v4985 = vld [vmem:[%s4960 + $0xf0] sm:$0xf]
      %v4986 = vld [vmem:[%s4960 + $0xf8] sm:$0xf]
      %v4987 = vld [vmem:[%s4960 + $0x100] sm:$0xf]
      %v4988 = vld [vmem:[%s4960 + $0x108] sm:$0xf]
      %v4989 = vld [vmem:[%s4960 + $0x110] sm:$0xf]
      %v4990 = vld [vmem:[%s4960 + $0x118] sm:$0xf]
      %v4991 = vld [vmem:[%s4960 + $0x120] sm:$0xf]
      %v4992 = vld [vmem:[%s4960 + $0x128] sm:$0xf]
      %v5025 = vunpack.c.l.b16 %v4961
      %v5026 = vunpack.c.l.b16 %v4962
      %v5027 = vunpack.c.l.b16 %v4963
      %v5028 = vunpack.c.l.b16 %v4964
      %v5029 = vunpack.c.l.b16 %v4965
      %v5030 = vunpack.c.l.b16 %v4966
      %v5031 = vunpack.c.l.b16 %v4967
      %v5032 = vunpack.c.l.b16 %v4968
      %v5033 = vunpack.c.l.b16 %v4969
      %v5034 = vunpack.c.l.b16 %v4970
      %v5035 = vunpack.c.l.b16 %v4971
      %v5036 = vunpack.c.l.b16 %v4972
      %v5037 = vunpack.c.l.b16 %v4973
      %v5038 = vunpack.c.l.b16 %v4974
      %v5039 = vunpack.c.l.b16 %v4975
      %v5040 = vunpack.c.l.b16 %v4976
      %v5041 = vunpack.c.l.b16 %v4977
      %v5042 = vunpack.c.l.b16 %v4978
      %v5043 = vunpack.c.l.b16 %v4979
      %v5044 = vunpack.c.l.b16 %v4980
      %v5045 = vunpack.c.l.b16 %v4981
      %v5046 = vunpack.c.l.b16 %v4982
      %v5047 = vunpack.c.l.b16 %v4983
      %v5048 = vunpack.c.l.b16 %v4984
      %v5049 = vunpack.c.l.b16 %v4985
      %v5050 = vunpack.c.l.b16 %v4986
      %v5051 = vunpack.c.l.b16 %v4987
      %v5052 = vunpack.c.l.b16 %v4988
      %v5053 = vunpack.c.l.b16 %v4989
      %v5054 = vunpack.c.l.b16 %v4990
      %v5055 = vunpack.c.l.b16 %v4991
      %v5056 = vunpack.c.l.b16 %v4992
      %v5057 = vpack.c.b16 %v5026, %v5025
      %v5058 = vpack.c.b16 %v5028, %v5027
      %v5059 = vpack.c.b16 %v5030, %v5029
      %v5060 = vpack.c.b16 %v5032, %v5031
      %v5061 = vpack.c.b16 %v5034, %v5033
      %v5062 = vpack.c.b16 %v5036, %v5035
      %v5063 = vpack.c.b16 %v5038, %v5037
      %v5064 = vpack.c.b16 %v5040, %v5039
      %v5065 = vpack.c.b16 %v5042, %v5041
      %v5066 = vpack.c.b16 %v5044, %v5043
      %v5067 = vpack.c.b16 %v5046, %v5045
      %v5068 = vpack.c.b16 %v5048, %v5047
      %v5069 = vpack.c.b16 %v5050, %v5049
      %v5070 = vpack.c.b16 %v5052, %v5051
      %v5071 = vpack.c.b16 %v5054, %v5053
      %v5072 = vpack.c.b16 %v5056, %v5055
      %5073 = vrot.lane.b32.xlu0 %v5057, 96
      %v5074 = vpop.permute.xlu0 %5073
      %5075 = vrot.lane.b32.xlu0 %v5058, 96
      %v5076 = vpop.permute.xlu0 %5075
      %5077 = vrot.lane.b32.xlu0 %v5059, 96
      %v5078 = vpop.permute.xlu0 %5077
      %5079 = vrot.lane.b32.xlu0 %v5060, 96
      %v5080 = vpop.permute.xlu0 %5079
      %5081 = vrot.lane.b32.xlu0 %v5061, 96
      %v5082 = vpop.permute.xlu0 %5081
      %5083 = vrot.lane.b32.xlu0 %v5062, 96
      %v5084 = vpop.permute.xlu0 %5083
      %5085 = vrot.lane.b32.xlu0 %v5063, 96
      %v5086 = vpop.permute.xlu0 %5085
      %5087 = vrot.lane.b32.xlu0 %v5064, 96
      %v5088 = vpop.permute.xlu0 %5087
      %5089 = vrot.lane.b32.xlu0 %v5065, 96
      %v5090 = vpop.permute.xlu0 %5089
      %5091 = vrot.lane.b32.xlu0 %v5066, 96
      %v5092 = vpop.permute.xlu0 %5091
      %5093 = vrot.lane.b32.xlu0 %v5067, 96
      %v5094 = vpop.permute.xlu0 %5093
      %5095 = vrot.lane.b32.xlu0 %v5068, 96
      %v5096 = vpop.permute.xlu0 %5095
      %5097 = vrot.lane.b32.xlu0 %v5069, 96
      %v5098 = vpop.permute.xlu0 %5097
      %5099 = vrot.lane.b32.xlu0 %v5070, 96
      %v5100 = vpop.permute.xlu0 %5099
      %5101 = vrot.lane.b32.xlu0 %v5071, 96
      %v5102 = vpop.permute.xlu0 %5101
      %5103 = vrot.lane.b32.xlu0 %v5072, 96
      %v5104 = vpop.permute.xlu0 %5103
      %vm5121 = vcmask 851712
      %5122 = vst.msk [vmem:[#allocation2] sm:$0xff] %vm5121, %v5074
      %5123 = vst.msk [vmem:[#allocation2 + $0x10] sm:$0xff] %vm5121, %v5076
      %5124 = vst.msk [vmem:[#allocation2 + $0x20] sm:$0xff] %vm5121, %v5078
      %5125 = vst.msk [vmem:[#allocation2 + $0x30] sm:$0xff] %vm5121, %v5080
      %5126 = vst.msk [vmem:[#allocation2 + $0x40] sm:$0xff] %vm5121, %v5082
      %5127 = vst.msk [vmem:[#allocation2 + $0x50] sm:$0xff] %vm5121, %v5084
      %5128 = vst.msk [vmem:[#allocation2 + $0x60] sm:$0xff] %vm5121, %v5086
      %5129 = vst.msk [vmem:[#allocation2 + $0x70] sm:$0xff] %vm5121, %v5088
      %5130 = vst.msk [vmem:[#allocation2 + $0x80] sm:$0xff] %vm5121, %v5090
      %5131 = vst.msk [vmem:[#allocation2 + $0x90] sm:$0xff] %vm5121, %v5092
      %5132 = vst.msk [vmem:[#allocation2 + $0xa0] sm:$0xff] %vm5121, %v5094
      %5133 = vst.msk [vmem:[#allocation2 + $0xb0] sm:$0xff] %vm5121, %v5096
      %5134 = vst.msk [vmem:[#allocation2 + $0xc0] sm:$0xff] %vm5121, %v5098
      %5135 = vst.msk [vmem:[#allocation2 + $0xd0] sm:$0xff] %vm5121, %v5100
      %5136 = vst.msk [vmem:[#allocation2 + $0xe0] sm:$0xff] %vm5121, %v5102
      %5137 = vst.msk [vmem:[#allocation2 + $0xf0] sm:$0xff] %vm5121, %v5104
      %v5138 = vld [vmem:[%s4960] sm:$0xf]
      %v5139 = vld [vmem:[%s4960 + $0x4] sm:$0x1]
      %v5140 = vld [vmem:[%s4960 + $0x8] sm:$0xf]
      %v5141 = vld [vmem:[%s4960 + $0xc] sm:$0x1]
      %v5142 = vld [vmem:[%s4960 + $0x10] sm:$0xf]
      %v5143 = vld [vmem:[%s4960 + $0x14] sm:$0x1]
      %v5144 = vld [vmem:[%s4960 + $0x18] sm:$0xf]
      %v5145 = vld [vmem:[%s4960 + $0x1c] sm:$0x1]
      %v5146 = vld [vmem:[%s4960 + $0x20] sm:$0xf]
      %v5147 = vld [vmem:[%s4960 + $0x24] sm:$0x1]
      %v5148 = vld [vmem:[%s4960 + $0x28] sm:$0xf]
      %v5149 = vld [vmem:[%s4960 + $0x2c] sm:$0x1]
      %v5150 = vld [vmem:[%s4960 + $0x30] sm:$0xf]
      %v5151 = vld [vmem:[%s4960 + $0x34] sm:$0x1]
      %v5152 = vld [vmem:[%s4960 + $0x38] sm:$0xf]
      %v5153 = vld [vmem:[%s4960 + $0x3c] sm:$0x1]
      %v5154 = vld [vmem:[%s4960 + $0x50] sm:$0xf]
      %v5155 = vld [vmem:[%s4960 + $0x54] sm:$0x1]
      %v5156 = vld [vmem:[%s4960 + $0x58] sm:$0xf]
      %v5157 = vld [vmem:[%s4960 + $0x5c] sm:$0x1]
      %v5158 = vld [vmem:[%s4960 + $0x60] sm:$0xf]
      %v5159 = vld [vmem:[%s4960 + $0x64] sm:$0x1]
      %v5160 = vld [vmem:[%s4960 + $0x68] sm:$0xf]
      %v5161 = vld [vmem:[%s4960 + $0x6c] sm:$0x1]
      %v5162 = vld [vmem:[%s4960 + $0x70] sm:$0xf]
      %v5163 = vld [vmem:[%s4960 + $0x74] sm:$0x1]
      %v5164 = vld [vmem:[%s4960 + $0x78] sm:$0xf]
      %v5165 = vld [vmem:[%s4960 + $0x7c] sm:$0x1]
      %v5166 = vld [vmem:[%s4960 + $0x80] sm:$0xf]
      %v5167 = vld [vmem:[%s4960 + $0x84] sm:$0x1]
      %v5168 = vld [vmem:[%s4960 + $0x88] sm:$0xf]
      %v5169 = vld [vmem:[%s4960 + $0x8c] sm:$0x1]
      %v5170 = vld [vmem:[%s4960 + $0xa0] sm:$0xf]
      %v5171 = vld [vmem:[%s4960 + $0xa4] sm:$0x1]
      %v5172 = vld [vmem:[%s4960 + $0xa8] sm:$0xf]
      %v5173 = vld [vmem:[%s4960 + $0xac] sm:$0x1]
      %v5174 = vld [vmem:[%s4960 + $0xb0] sm:$0xf]
      %v5175 = vld [vmem:[%s4960 + $0xb4] sm:$0x1]
      %v5176 = vld [vmem:[%s4960 + $0xb8] sm:$0xf]
      %v5177 = vld [vmem:[%s4960 + $0xbc] sm:$0x1]
      %v5178 = vld [vmem:[%s4960 + $0xc0] sm:$0xf]
      %v5179 = vld [vmem:[%s4960 + $0xc4] sm:$0x1]
      %v5180 = vld [vmem:[%s4960 + $0xc8] sm:$0xf]
      %v5181 = vld [vmem:[%s4960 + $0xcc] sm:$0x1]
      %v5182 = vld [vmem:[%s4960 + $0xd0] sm:$0xf]
      %v5183 = vld [vmem:[%s4960 + $0xd4] sm:$0x1]
      %v5184 = vld [vmem:[%s4960 + $0xd8] sm:$0xf]
      %v5185 = vld [vmem:[%s4960 + $0xdc] sm:$0x1]
      %v5186 = vld [vmem:[%s4960 + $0xf0] sm:$0xf]
      %v5187 = vld [vmem:[%s4960 + $0xf4] sm:$0x1]
      %v5188 = vld [vmem:[%s4960 + $0xf8] sm:$0xf]
      %v5189 = vld [vmem:[%s4960 + $0xfc] sm:$0x1]
      %v5190 = vld [vmem:[%s4960 + $0x100] sm:$0xf]
      %v5191 = vld [vmem:[%s4960 + $0x104] sm:$0x1]
      %v5192 = vld [vmem:[%s4960 + $0x108] sm:$0xf]
      %v5193 = vld [vmem:[%s4960 + $0x10c] sm:$0x1]
      %v5194 = vld [vmem:[%s4960 + $0x110] sm:$0xf]
      %v5195 = vld [vmem:[%s4960 + $0x114] sm:$0x1]
      %v5196 = vld [vmem:[%s4960 + $0x118] sm:$0xf]
      %v5197 = vld [vmem:[%s4960 + $0x11c] sm:$0x1]
      %v5198 = vld [vmem:[%s4960 + $0x120] sm:$0xf]
      %v5199 = vld [vmem:[%s4960 + $0x124] sm:$0x1]
      %v5200 = vld [vmem:[%s4960 + $0x128] sm:$0xf]
      %v5201 = vld [vmem:[%s4960 + $0x12c] sm:$0x1]
      %v5203 = vshrl.u32 %v5138, 16
      %v5205 = vrot.slane %v5203, 4
      %v5206 = vshll.u32 %v5138, 16
      %v5208 = vrot.slane %v5206, 5
      %v5209 = vor.u32 %v5205, %v5208
      %v5210 = vrot.slane %v5209, 4
      %v5212 = vshll.u32 %v5139, 16
      %v5214 = vrot.slane %v5212, 5
      %v5215 = vsel %vm501, %v5210, %v5214
      %v5217 = vshrl.u32 %v5140, 16
      %v5219 = vrot.slane %v5217, 4
      %v5220 = vshll.u32 %v5140, 16
      %v5222 = vrot.slane %v5220, 5
      %v5223 = vor.u32 %v5219, %v5222
      %v5224 = vrot.slane %v5223, 4
      %v5226 = vshll.u32 %v5141, 16
      %v5228 = vrot.slane %v5226, 5
      %v5229 = vsel %vm501, %v5224, %v5228
      %v5231 = vshrl.u32 %v5142, 16
      %v5233 = vrot.slane %v5231, 4
      %v5234 = vshll.u32 %v5142, 16
      %v5236 = vrot.slane %v5234, 5
      %v5237 = vor.u32 %v5233, %v5236
      %v5238 = vrot.slane %v5237, 4
      %v5240 = vshll.u32 %v5143, 16
      %v5242 = vrot.slane %v5240, 5
      %v5243 = vsel %vm501, %v5238, %v5242
      %v5245 = vshrl.u32 %v5144, 16
      %v5247 = vrot.slane %v5245, 4
      %v5248 = vshll.u32 %v5144, 16
      %v5250 = vrot.slane %v5248, 5
      %v5251 = vor.u32 %v5247, %v5250
      %v5252 = vrot.slane %v5251, 4
      %v5254 = vshll.u32 %v5145, 16
      %v5256 = vrot.slane %v5254, 5
      %v5257 = vsel %vm501, %v5252, %v5256
      %v5259 = vshrl.u32 %v5146, 16
      %v5261 = vrot.slane %v5259, 4
      %v5262 = vshll.u32 %v5146, 16
      %v5264 = vrot.slane %v5262, 5
      %v5265 = vor.u32 %v5261, %v5264
      %v5266 = vrot.slane %v5265, 4
      %v5268 = vshll.u32 %v5147, 16
      %v5270 = vrot.slane %v5268, 5
      %v5271 = vsel %vm501, %v5266, %v5270
      %v5273 = vshrl.u32 %v5148, 16
      %v5275 = vrot.slane %v5273, 4
      %v5276 = vshll.u32 %v5148, 16
      %v5278 = vrot.slane %v5276, 5
      %v5279 = vor.u32 %v5275, %v5278
      %v5280 = vrot.slane %v5279, 4
      %v5282 = vshll.u32 %v5149, 16
      %v5284 = vrot.slane %v5282, 5
      %v5285 = vsel %vm501, %v5280, %v5284
      %v5287 = vshrl.u32 %v5150, 16
      %v5289 = vrot.slane %v5287, 4
      %v5290 = vshll.u32 %v5150, 16
      %v5292 = vrot.slane %v5290, 5
      %v5293 = vor.u32 %v5289, %v5292
      %v5294 = vrot.slane %v5293, 4
      %v5296 = vshll.u32 %v5151, 16
      %v5298 = vrot.slane %v5296, 5
      %v5299 = vsel %vm501, %v5294, %v5298
      %v5301 = vshrl.u32 %v5152, 16
      %v5303 = vrot.slane %v5301, 4
      %v5304 = vshll.u32 %v5152, 16
      %v5306 = vrot.slane %v5304, 5
      %v5307 = vor.u32 %v5303, %v5306
      %v5308 = vrot.slane %v5307, 4
      %v5310 = vshll.u32 %v5153, 16
      %v5312 = vrot.slane %v5310, 5
      %v5313 = vsel %vm501, %v5308, %v5312
      %v5315 = vshrl.u32 %v5154, 16
      %v5317 = vrot.slane %v5315, 4
      %v5318 = vshll.u32 %v5154, 16
      %v5320 = vrot.slane %v5318, 5
      %v5321 = vor.u32 %v5317, %v5320
      %v5322 = vrot.slane %v5321, 4
      %v5324 = vshll.u32 %v5155, 16
      %v5326 = vrot.slane %v5324, 5
      %v5327 = vsel %vm501, %v5322, %v5326
      %v5329 = vshrl.u32 %v5156, 16
      %v5331 = vrot.slane %v5329, 4
      %v5332 = vshll.u32 %v5156, 16
      %v5334 = vrot.slane %v5332, 5
      %v5335 = vor.u32 %v5331, %v5334
      %v5336 = vrot.slane %v5335, 4
      %v5338 = vshll.u32 %v5157, 16
      %v5340 = vrot.slane %v5338, 5
      %v5341 = vsel %vm501, %v5336, %v5340
      %v5343 = vshrl.u32 %v5158, 16
      %v5345 = vrot.slane %v5343, 4
      %v5346 = vshll.u32 %v5158, 16
      %v5348 = vrot.slane %v5346, 5
      %v5349 = vor.u32 %v5345, %v5348
      %v5350 = vrot.slane %v5349, 4
      %v5352 = vshll.u32 %v5159, 16
      %v5354 = vrot.slane %v5352, 5
      %v5355 = vsel %vm501, %v5350, %v5354
      %v5357 = vshrl.u32 %v5160, 16
      %v5359 = vrot.slane %v5357, 4
      %v5360 = vshll.u32 %v5160, 16
      %v5362 = vrot.slane %v5360, 5
      %v5363 = vor.u32 %v5359, %v5362
      %v5364 = vrot.slane %v5363, 4
      %v5366 = vshll.u32 %v5161, 16
      %v5368 = vrot.slane %v5366, 5
      %v5369 = vsel %vm501, %v5364, %v5368
      %v5371 = vshrl.u32 %v5162, 16
      %v5373 = vrot.slane %v5371, 4
      %v5374 = vshll.u32 %v5162, 16
      %v5376 = vrot.slane %v5374, 5
      %v5377 = vor.u32 %v5373, %v5376
      %v5378 = vrot.slane %v5377, 4
      %v5380 = vshll.u32 %v5163, 16
      %v5382 = vrot.slane %v5380, 5
      %v5383 = vsel %vm501, %v5378, %v5382
      %v5385 = vshrl.u32 %v5164, 16
      %v5387 = vrot.slane %v5385, 4
      %v5388 = vshll.u32 %v5164, 16
      %v5390 = vrot.slane %v5388, 5
      %v5391 = vor.u32 %v5387, %v5390
      %v5392 = vrot.slane %v5391, 4
      %v5394 = vshll.u32 %v5165, 16
      %v5396 = vrot.slane %v5394, 5
      %v5397 = vsel %vm501, %v5392, %v5396
      %v5399 = vshrl.u32 %v5166, 16
      %v5401 = vrot.slane %v5399, 4
      %v5402 = vshll.u32 %v5166, 16
      %v5404 = vrot.slane %v5402, 5
      %v5405 = vor.u32 %v5401, %v5404
      %v5406 = vrot.slane %v5405, 4
      %v5408 = vshll.u32 %v5167, 16
      %v5410 = vrot.slane %v5408, 5
      %v5411 = vsel %vm501, %v5406, %v5410
      %v5413 = vshrl.u32 %v5168, 16
      %v5415 = vrot.slane %v5413, 4
      %v5416 = vshll.u32 %v5168, 16
      %v5418 = vrot.slane %v5416, 5
      %v5419 = vor.u32 %v5415, %v5418
      %v5420 = vrot.slane %v5419, 4
      %v5422 = vshll.u32 %v5169, 16
      %v5424 = vrot.slane %v5422, 5
      %v5425 = vsel %vm501, %v5420, %v5424
      %v5427 = vshrl.u32 %v5170, 16
      %v5429 = vrot.slane %v5427, 4
      %v5430 = vshll.u32 %v5170, 16
      %v5432 = vrot.slane %v5430, 5
      %v5433 = vor.u32 %v5429, %v5432
      %v5434 = vrot.slane %v5433, 4
      %v5436 = vshll.u32 %v5171, 16
      %v5438 = vrot.slane %v5436, 5
      %v5439 = vsel %vm501, %v5434, %v5438
      %v5441 = vshrl.u32 %v5172, 16
      %v5443 = vrot.slane %v5441, 4
      %v5444 = vshll.u32 %v5172, 16
      %v5446 = vrot.slane %v5444, 5
      %v5447 = vor.u32 %v5443, %v5446
      %v5448 = vrot.slane %v5447, 4
      %v5450 = vshll.u32 %v5173, 16
      %v5452 = vrot.slane %v5450, 5
      %v5453 = vsel %vm501, %v5448, %v5452
      %v5455 = vshrl.u32 %v5174, 16
      %v5457 = vrot.slane %v5455, 4
      %v5458 = vshll.u32 %v5174, 16
      %v5460 = vrot.slane %v5458, 5
      %v5461 = vor.u32 %v5457, %v5460
      %v5462 = vrot.slane %v5461, 4
      %v5464 = vshll.u32 %v5175, 16
      %v5466 = vrot.slane %v5464, 5
      %v5467 = vsel %vm501, %v5462, %v5466
      %v5469 = vshrl.u32 %v5176, 16
      %v5471 = vrot.slane %v5469, 4
      %v5472 = vshll.u32 %v5176, 16
      %v5474 = vrot.slane %v5472, 5
      %v5475 = vor.u32 %v5471, %v5474
      %v5476 = vrot.slane %v5475, 4
      %v5478 = vshll.u32 %v5177, 16
      %v5480 = vrot.slane %v5478, 5
      %v5481 = vsel %vm501, %v5476, %v5480
      %v5483 = vshrl.u32 %v5178, 16
      %v5485 = vrot.slane %v5483, 4
      %v5486 = vshll.u32 %v5178, 16
      %v5488 = vrot.slane %v5486, 5
      %v5489 = vor.u32 %v5485, %v5488
      %v5490 = vrot.slane %v5489, 4
      %v5492 = vshll.u32 %v5179, 16
      %v5494 = vrot.slane %v5492, 5
      %v5495 = vsel %vm501, %v5490, %v5494
      %v5497 = vshrl.u32 %v5180, 16
      %v5499 = vrot.slane %v5497, 4
      %v5500 = vshll.u32 %v5180, 16
      %v5502 = vrot.slane %v5500, 5
      %v5503 = vor.u32 %v5499, %v5502
      %v5504 = vrot.slane %v5503, 4
      %v5506 = vshll.u32 %v5181, 16
      %v5508 = vrot.slane %v5506, 5
      %v5509 = vsel %vm501, %v5504, %v5508
      %v5511 = vshrl.u32 %v5182, 16
      %v5513 = vrot.slane %v5511, 4
      %v5514 = vshll.u32 %v5182, 16
      %v5516 = vrot.slane %v5514, 5
      %v5517 = vor.u32 %v5513, %v5516
      %v5518 = vrot.slane %v5517, 4
      %v5520 = vshll.u32 %v5183, 16
      %v5522 = vrot.slane %v5520, 5
      %v5523 = vsel %vm501, %v5518, %v5522
      %v5525 = vshrl.u32 %v5184, 16
      %v5527 = vrot.slane %v5525, 4
      %v5528 = vshll.u32 %v5184, 16
      %v5530 = vrot.slane %v5528, 5
      %v5531 = vor.u32 %v5527, %v5530
      %v5532 = vrot.slane %v5531, 4
      %v5534 = vshll.u32 %v5185, 16
      %v5536 = vrot.slane %v5534, 5
      %v5537 = vsel %vm501, %v5532, %v5536
      %v5539 = vshrl.u32 %v5186, 16
      %v5541 = vrot.slane %v5539, 4
      %v5542 = vshll.u32 %v5186, 16
      %v5544 = vrot.slane %v5542, 5
      %v5545 = vor.u32 %v5541, %v5544
      %v5546 = vrot.slane %v5545, 4
      %v5548 = vshll.u32 %v5187, 16
      %v5550 = vrot.slane %v5548, 5
      %v5551 = vsel %vm501, %v5546, %v5550
      %v5553 = vshrl.u32 %v5188, 16
      %v5555 = vrot.slane %v5553, 4
      %v5556 = vshll.u32 %v5188, 16
      %v5558 = vrot.slane %v5556, 5
      %v5559 = vor.u32 %v5555, %v5558
      %v5560 = vrot.slane %v5559, 4
      %v5562 = vshll.u32 %v5189, 16
      %v5564 = vrot.slane %v5562, 5
      %v5565 = vsel %vm501, %v5560, %v5564
      %v5567 = vshrl.u32 %v5190, 16
      %v5569 = vrot.slane %v5567, 4
      %v5570 = vshll.u32 %v5190, 16
      %v5572 = vrot.slane %v5570, 5
      %v5573 = vor.u32 %v5569, %v5572
      %v5574 = vrot.slane %v5573, 4
      %v5576 = vshll.u32 %v5191, 16
      %v5578 = vrot.slane %v5576, 5
      %v5579 = vsel %vm501, %v5574, %v5578
      %v5581 = vshrl.u32 %v5192, 16
      %v5583 = vrot.slane %v5581, 4
      %v5584 = vshll.u32 %v5192, 16
      %v5586 = vrot.slane %v5584, 5
      %v5587 = vor.u32 %v5583, %v5586
      %v5588 = vrot.slane %v5587, 4
      %v5590 = vshll.u32 %v5193, 16
      %v5592 = vrot.slane %v5590, 5
      %v5593 = vsel %vm501, %v5588, %v5592
      %v5595 = vshrl.u32 %v5194, 16
      %v5597 = vrot.slane %v5595, 4
      %v5598 = vshll.u32 %v5194, 16
      %v5600 = vrot.slane %v5598, 5
      %v5601 = vor.u32 %v5597, %v5600
      %v5602 = vrot.slane %v5601, 4
      %v5604 = vshll.u32 %v5195, 16
      %v5606 = vrot.slane %v5604, 5
      %v5607 = vsel %vm501, %v5602, %v5606
      %v5609 = vshrl.u32 %v5196, 16
      %v5611 = vrot.slane %v5609, 4
      %v5612 = vshll.u32 %v5196, 16
      %v5614 = vrot.slane %v5612, 5
      %v5615 = vor.u32 %v5611, %v5614
      %v5616 = vrot.slane %v5615, 4
      %v5618 = vshll.u32 %v5197, 16
      %v5620 = vrot.slane %v5618, 5
      %v5621 = vsel %vm501, %v5616, %v5620
      %v5623 = vshrl.u32 %v5198, 16
      %v5625 = vrot.slane %v5623, 4
      %v5626 = vshll.u32 %v5198, 16
      %v5628 = vrot.slane %v5626, 5
      %v5629 = vor.u32 %v5625, %v5628
      %v5630 = vrot.slane %v5629, 4
      %v5632 = vshll.u32 %v5199, 16
      %v5634 = vrot.slane %v5632, 5
      %v5635 = vsel %vm501, %v5630, %v5634
      %v5637 = vshrl.u32 %v5200, 16
      %v5639 = vrot.slane %v5637, 4
      %v5640 = vshll.u32 %v5200, 16
      %v5642 = vrot.slane %v5640, 5
      %v5643 = vor.u32 %v5639, %v5642
      %v5644 = vrot.slane %v5643, 4
      %v5646 = vshll.u32 %v5201, 16
      %v5648 = vrot.slane %v5646, 5
      %v5649 = vsel %vm501, %v5644, %v5648
      %v5650 = vunpack.c.l.b16 %v5215
      %v5651 = vunpack.c.l.b16 %v5229
      %v5652 = vunpack.c.l.b16 %v5243
      %v5653 = vunpack.c.l.b16 %v5257
      %v5654 = vunpack.c.l.b16 %v5271
      %v5655 = vunpack.c.l.b16 %v5285
      %v5656 = vunpack.c.l.b16 %v5299
      %v5657 = vunpack.c.l.b16 %v5313
      %v5658 = vunpack.c.l.b16 %v5327
      %v5659 = vunpack.c.l.b16 %v5341
      %v5660 = vunpack.c.l.b16 %v5355
      %v5661 = vunpack.c.l.b16 %v5369
      %v5662 = vunpack.c.l.b16 %v5383
      %v5663 = vunpack.c.l.b16 %v5397
      %v5664 = vunpack.c.l.b16 %v5411
      %v5665 = vunpack.c.l.b16 %v5425
      %v5666 = vunpack.c.l.b16 %v5439
      %v5667 = vunpack.c.l.b16 %v5453
      %v5668 = vunpack.c.l.b16 %v5467
      %v5669 = vunpack.c.l.b16 %v5481
      %v5670 = vunpack.c.l.b16 %v5495
      %v5671 = vunpack.c.l.b16 %v5509
      %v5672 = vunpack.c.l.b16 %v5523
      %v5673 = vunpack.c.l.b16 %v5537
      %v5674 = vunpack.c.l.b16 %v5551
      %v5675 = vunpack.c.l.b16 %v5565
      %v5676 = vunpack.c.l.b16 %v5579
      %v5677 = vunpack.c.l.b16 %v5593
      %v5678 = vunpack.c.l.b16 %v5607
      %v5679 = vunpack.c.l.b16 %v5621
      %v5680 = vunpack.c.l.b16 %v5635
      %v5681 = vunpack.c.l.b16 %v5649
      %v5682 = vpack.c.b16 %v5651, %v5650
      %v5683 = vpack.c.b16 %v5653, %v5652
      %v5684 = vpack.c.b16 %v5655, %v5654
      %v5685 = vpack.c.b16 %v5657, %v5656
      %v5686 = vpack.c.b16 %v5659, %v5658
      %v5687 = vpack.c.b16 %v5661, %v5660
      %v5688 = vpack.c.b16 %v5663, %v5662
      %v5689 = vpack.c.b16 %v5665, %v5664
      %v5690 = vpack.c.b16 %v5667, %v5666
      %v5691 = vpack.c.b16 %v5669, %v5668
      %v5692 = vpack.c.b16 %v5671, %v5670
      %v5693 = vpack.c.b16 %v5673, %v5672
      %v5694 = vpack.c.b16 %v5675, %v5674
      %v5695 = vpack.c.b16 %v5677, %v5676
      %v5696 = vpack.c.b16 %v5679, %v5678
      %v5697 = vpack.c.b16 %v5681, %v5680
      %5698 = vrot.lane.b32.xlu0 %v5682, 104
      %v5699 = vpop.permute.xlu0 %5698
      %5700 = vrot.lane.b32.xlu0 %v5683, 104
      %v5701 = vpop.permute.xlu0 %5700
      %5702 = vrot.lane.b32.xlu0 %v5684, 104
      %v5703 = vpop.permute.xlu0 %5702
      %5704 = vrot.lane.b32.xlu0 %v5685, 104
      %v5705 = vpop.permute.xlu0 %5704
      %5706 = vrot.lane.b32.xlu0 %v5686, 104
      %v5707 = vpop.permute.xlu0 %5706
      %5708 = vrot.lane.b32.xlu0 %v5687, 104
      %v5709 = vpop.permute.xlu0 %5708
      %5710 = vrot.lane.b32.xlu0 %v5688, 104
      %v5711 = vpop.permute.xlu0 %5710
      %5712 = vrot.lane.b32.xlu0 %v5689, 104
      %v5713 = vpop.permute.xlu0 %5712
      %5714 = vrot.lane.b32.xlu0 %v5690, 104
      %v5715 = vpop.permute.xlu0 %5714
      %5716 = vrot.lane.b32.xlu0 %v5691, 104
      %v5717 = vpop.permute.xlu0 %5716
      %5718 = vrot.lane.b32.xlu0 %v5692, 104
      %v5719 = vpop.permute.xlu0 %5718
      %5720 = vrot.lane.b32.xlu0 %v5693, 104
      %v5721 = vpop.permute.xlu0 %5720
      %5722 = vrot.lane.b32.xlu0 %v5694, 104
      %v5723 = vpop.permute.xlu0 %5722
      %5724 = vrot.lane.b32.xlu0 %v5695, 104
      %v5725 = vpop.permute.xlu0 %5724
      %5726 = vrot.lane.b32.xlu0 %v5696, 104
      %v5727 = vpop.permute.xlu0 %5726
      %5728 = vrot.lane.b32.xlu0 %v5697, 104
      %v5729 = vpop.permute.xlu0 %5728
      %vm5746 = vcmask 917312
      %5747 = vst.msk [vmem:[#allocation2] sm:$0xff] %vm5746, %v5699
      %5748 = vst.msk [vmem:[#allocation2 + $0x10] sm:$0xff] %vm5746, %v5701
      %5749 = vst.msk [vmem:[#allocation2 + $0x20] sm:$0xff] %vm5746, %v5703
      %5750 = vst.msk [vmem:[#allocation2 + $0x30] sm:$0xff] %vm5746, %v5705
      %5751 = vst.msk [vmem:[#allocation2 + $0x40] sm:$0xff] %vm5746, %v5707
      %5752 = vst.msk [vmem:[#allocation2 + $0x50] sm:$0xff] %vm5746, %v5709
      %5753 = vst.msk [vmem:[#allocation2 + $0x60] sm:$0xff] %vm5746, %v5711
      %5754 = vst.msk [vmem:[#allocation2 + $0x70] sm:$0xff] %vm5746, %v5713
      %5755 = vst.msk [vmem:[#allocation2 + $0x80] sm:$0xff] %vm5746, %v5715
      %5756 = vst.msk [vmem:[#allocation2 + $0x90] sm:$0xff] %vm5746, %v5717
      %5757 = vst.msk [vmem:[#allocation2 + $0xa0] sm:$0xff] %vm5746, %v5719
      %5758 = vst.msk [vmem:[#allocation2 + $0xb0] sm:$0xff] %vm5746, %v5721
      %5759 = vst.msk [vmem:[#allocation2 + $0xc0] sm:$0xff] %vm5746, %v5723
      %5760 = vst.msk [vmem:[#allocation2 + $0xd0] sm:$0xff] %vm5746, %v5725
      %5761 = vst.msk [vmem:[#allocation2 + $0xe0] sm:$0xff] %vm5746, %v5727
      %5762 = vst.msk [vmem:[#allocation2 + $0xf0] sm:$0xff] %vm5746, %v5729
      %v5763 = vld [vmem:[%s4960] sm:$0xe]
      %v5764 = vld [vmem:[%s4960 + $0x4] sm:$0x1]
      %v5765 = vld [vmem:[%s4960 + $0x8] sm:$0xe]
      %v5766 = vld [vmem:[%s4960 + $0xc] sm:$0x1]
      %v5767 = vld [vmem:[%s4960 + $0x10] sm:$0xe]
      %v5768 = vld [vmem:[%s4960 + $0x14] sm:$0x1]
      %v5769 = vld [vmem:[%s4960 + $0x18] sm:$0xe]
      %v5770 = vld [vmem:[%s4960 + $0x1c] sm:$0x1]
      %v5771 = vld [vmem:[%s4960 + $0x20] sm:$0xe]
      %v5772 = vld [vmem:[%s4960 + $0x24] sm:$0x1]
      %v5773 = vld [vmem:[%s4960 + $0x28] sm:$0xe]
      %v5774 = vld [vmem:[%s4960 + $0x2c] sm:$0x1]
      %v5775 = vld [vmem:[%s4960 + $0x30] sm:$0xe]
      %v5776 = vld [vmem:[%s4960 + $0x34] sm:$0x1]
      %v5777 = vld [vmem:[%s4960 + $0x38] sm:$0xe]
      %v5778 = vld [vmem:[%s4960 + $0x3c] sm:$0x1]
      %v5779 = vld [vmem:[%s4960 + $0x50] sm:$0xe]
      %v5780 = vld [vmem:[%s4960 + $0x54] sm:$0x1]
      %v5781 = vld [vmem:[%s4960 + $0x58] sm:$0xe]
      %v5782 = vld [vmem:[%s4960 + $0x5c] sm:$0x1]
      %v5783 = vld [vmem:[%s4960 + $0x60] sm:$0xe]
      %v5784 = vld [vmem:[%s4960 + $0x64] sm:$0x1]
      %v5785 = vld [vmem:[%s4960 + $0x68] sm:$0xe]
      %v5786 = vld [vmem:[%s4960 + $0x6c] sm:$0x1]
      %v5787 = vld [vmem:[%s4960 + $0x70] sm:$0xe]
      %v5788 = vld [vmem:[%s4960 + $0x74] sm:$0x1]
      %v5789 = vld [vmem:[%s4960 + $0x78] sm:$0xe]
      %v5790 = vld [vmem:[%s4960 + $0x7c] sm:$0x1]
      %v5791 = vld [vmem:[%s4960 + $0x80] sm:$0xe]
      %v5792 = vld [vmem:[%s4960 + $0x84] sm:$0x1]
      %v5793 = vld [vmem:[%s4960 + $0x88] sm:$0xe]
      %v5794 = vld [vmem:[%s4960 + $0x8c] sm:$0x1]
      %v5795 = vld [vmem:[%s4960 + $0xa0] sm:$0xe]
      %v5796 = vld [vmem:[%s4960 + $0xa4] sm:$0x1]
      %v5797 = vld [vmem:[%s4960 + $0xa8] sm:$0xe]
      %v5798 = vld [vmem:[%s4960 + $0xac] sm:$0x1]
      %v5799 = vld [vmem:[%s4960 + $0xb0] sm:$0xe]
      %v5800 = vld [vmem:[%s4960 + $0xb4] sm:$0x1]
      %v5801 = vld [vmem:[%s4960 + $0xb8] sm:$0xe]
      %v5802 = vld [vmem:[%s4960 + $0xbc] sm:$0x1]
      %v5803 = vld [vmem:[%s4960 + $0xc0] sm:$0xe]
      %v5804 = vld [vmem:[%s4960 + $0xc4] sm:$0x1]
      %v5805 = vld [vmem:[%s4960 + $0xc8] sm:$0xe]
      %v5806 = vld [vmem:[%s4960 + $0xcc] sm:$0x1]
      %v5807 = vld [vmem:[%s4960 + $0xd0] sm:$0xe]
      %v5808 = vld [vmem:[%s4960 + $0xd4] sm:$0x1]
      %v5809 = vld [vmem:[%s4960 + $0xd8] sm:$0xe]
      %v5810 = vld [vmem:[%s4960 + $0xdc] sm:$0x1]
      %v5811 = vld [vmem:[%s4960 + $0xf0] sm:$0xe]
      %v5812 = vld [vmem:[%s4960 + $0xf4] sm:$0x1]
      %v5813 = vld [vmem:[%s4960 + $0xf8] sm:$0xe]
      %v5814 = vld [vmem:[%s4960 + $0xfc] sm:$0x1]
      %v5815 = vld [vmem:[%s4960 + $0x100] sm:$0xe]
      %v5816 = vld [vmem:[%s4960 + $0x104] sm:$0x1]
      %v5817 = vld [vmem:[%s4960 + $0x108] sm:$0xe]
      %v5818 = vld [vmem:[%s4960 + $0x10c] sm:$0x1]
      %v5819 = vld [vmem:[%s4960 + $0x110] sm:$0xe]
      %v5820 = vld [vmem:[%s4960 + $0x114] sm:$0x1]
      %v5821 = vld [vmem:[%s4960 + $0x118] sm:$0xe]
      %v5822 = vld [vmem:[%s4960 + $0x11c] sm:$0x1]
      %v5823 = vld [vmem:[%s4960 + $0x120] sm:$0xe]
      %v5824 = vld [vmem:[%s4960 + $0x124] sm:$0x1]
      %v5825 = vld [vmem:[%s4960 + $0x128] sm:$0xe]
      %v5826 = vld [vmem:[%s4960 + $0x12c] sm:$0x1]
      %v5891 = vrot.slane %v5763, 5
      %v5892 = vrot.slane %v5891, 4
      %v5893 = vrot.slane %v5764, 5
      %v5894 = vsel %vm1193, %v5892, %v5893
      %v5895 = vrot.slane %v5765, 5
      %v5896 = vrot.slane %v5895, 4
      %v5897 = vrot.slane %v5766, 5
      %v5898 = vsel %vm1193, %v5896, %v5897
      %v5899 = vrot.slane %v5767, 5
      %v5900 = vrot.slane %v5899, 4
      %v5901 = vrot.slane %v5768, 5
      %v5902 = vsel %vm1193, %v5900, %v5901
      %v5903 = vrot.slane %v5769, 5
      %v5904 = vrot.slane %v5903, 4
      %v5905 = vrot.slane %v5770, 5
      %v5906 = vsel %vm1193, %v5904, %v5905
      %v5907 = vrot.slane %v5771, 5
      %v5908 = vrot.slane %v5907, 4
      %v5909 = vrot.slane %v5772, 5
      %v5910 = vsel %vm1193, %v5908, %v5909
      %v5911 = vrot.slane %v5773, 5
      %v5912 = vrot.slane %v5911, 4
      %v5913 = vrot.slane %v5774, 5
      %v5914 = vsel %vm1193, %v5912, %v5913
      %v5915 = vrot.slane %v5775, 5
      %v5916 = vrot.slane %v5915, 4
      %v5917 = vrot.slane %v5776, 5
      %v5918 = vsel %vm1193, %v5916, %v5917
      %v5919 = vrot.slane %v5777, 5
      %v5920 = vrot.slane %v5919, 4
      %v5921 = vrot.slane %v5778, 5
      %v5922 = vsel %vm1193, %v5920, %v5921
      %v5923 = vrot.slane %v5779, 5
      %v5924 = vrot.slane %v5923, 4
      %v5925 = vrot.slane %v5780, 5
      %v5926 = vsel %vm1193, %v5924, %v5925
      %v5927 = vrot.slane %v5781, 5
      %v5928 = vrot.slane %v5927, 4
      %v5929 = vrot.slane %v5782, 5
      %v5930 = vsel %vm1193, %v5928, %v5929
      %v5931 = vrot.slane %v5783, 5
      %v5932 = vrot.slane %v5931, 4
      %v5933 = vrot.slane %v5784, 5
      %v5934 = vsel %vm1193, %v5932, %v5933
      %v5935 = vrot.slane %v5785, 5
      %v5936 = vrot.slane %v5935, 4
      %v5937 = vrot.slane %v5786, 5
      %v5938 = vsel %vm1193, %v5936, %v5937
      %v5939 = vrot.slane %v5787, 5
      %v5940 = vrot.slane %v5939, 4
      %v5941 = vrot.slane %v5788, 5
      %v5942 = vsel %vm1193, %v5940, %v5941
      %v5943 = vrot.slane %v5789, 5
      %v5944 = vrot.slane %v5943, 4
      %v5945 = vrot.slane %v5790, 5
      %v5946 = vsel %vm1193, %v5944, %v5945
      %v5947 = vrot.slane %v5791, 5
      %v5948 = vrot.slane %v5947, 4
      %v5949 = vrot.slane %v5792, 5
      %v5950 = vsel %vm1193, %v5948, %v5949
      %v5951 = vrot.slane %v5793, 5
      %v5952 = vrot.slane %v5951, 4
      %v5953 = vrot.slane %v5794, 5
      %v5954 = vsel %vm1193, %v5952, %v5953
      %v5955 = vrot.slane %v5795, 5
      %v5956 = vrot.slane %v5955, 4
      %v5957 = vrot.slane %v5796, 5
      %v5958 = vsel %vm1193, %v5956, %v5957
      %v5959 = vrot.slane %v5797, 5
      %v5960 = vrot.slane %v5959, 4
      %v5961 = vrot.slane %v5798, 5
      %v5962 = vsel %vm1193, %v5960, %v5961
      %v5963 = vrot.slane %v5799, 5
      %v5964 = vrot.slane %v5963, 4
      %v5965 = vrot.slane %v5800, 5
      %v5966 = vsel %vm1193, %v5964, %v5965
      %v5967 = vrot.slane %v5801, 5
      %v5968 = vrot.slane %v5967, 4
      %v5969 = vrot.slane %v5802, 5
      %v5970 = vsel %vm1193, %v5968, %v5969
      %v5971 = vrot.slane %v5803, 5
      %v5972 = vrot.slane %v5971, 4
      %v5973 = vrot.slane %v5804, 5
      %v5974 = vsel %vm1193, %v5972, %v5973
      %v5975 = vrot.slane %v5805, 5
      %v5976 = vrot.slane %v5975, 4
      %v5977 = vrot.slane %v5806, 5
      %v5978 = vsel %vm1193, %v5976, %v5977
      %v5979 = vrot.slane %v5807, 5
      %v5980 = vrot.slane %v5979, 4
      %v5981 = vrot.slane %v5808, 5
      %v5982 = vsel %vm1193, %v5980, %v5981
      %v5983 = vrot.slane %v5809, 5
      %v5984 = vrot.slane %v5983, 4
      %v5985 = vrot.slane %v5810, 5
      %v5986 = vsel %vm1193, %v5984, %v5985
      %v5987 = vrot.slane %v5811, 5
      %v5988 = vrot.slane %v5987, 4
      %v5989 = vrot.slane %v5812, 5
      %v5990 = vsel %vm1193, %v5988, %v5989
      %v5991 = vrot.slane %v5813, 5
      %v5992 = vrot.slane %v5991, 4
      %v5993 = vrot.slane %v5814, 5
      %v5994 = vsel %vm1193, %v5992, %v5993
      %v5995 = vrot.slane %v5815, 5
      %v5996 = vrot.slane %v5995, 4
      %v5997 = vrot.slane %v5816, 5
      %v5998 = vsel %vm1193, %v5996, %v5997
      %v5999 = vrot.slane %v5817, 5
      %v6000 = vrot.slane %v5999, 4
      %v6001 = vrot.slane %v5818, 5
      %v6002 = vsel %vm1193, %v6000, %v6001
      %v6003 = vrot.slane %v5819, 5
      %v6004 = vrot.slane %v6003, 4
      %v6005 = vrot.slane %v5820, 5
      %v6006 = vsel %vm1193, %v6004, %v6005
      %v6007 = vrot.slane %v5821, 5
      %v6008 = vrot.slane %v6007, 4
      %v6009 = vrot.slane %v5822, 5
      %v6010 = vsel %vm1193, %v6008, %v6009
      %v6011 = vrot.slane %v5823, 5
      %v6012 = vrot.slane %v6011, 4
      %v6013 = vrot.slane %v5824, 5
      %v6014 = vsel %vm1193, %v6012, %v6013
      %v6015 = vrot.slane %v5825, 5
      %v6016 = vrot.slane %v6015, 4
      %v6017 = vrot.slane %v5826, 5
      %v6018 = vsel %vm1193, %v6016, %v6017
      %v6019 = vunpack.c.l.b16 %v5894
      %v6020 = vunpack.c.l.b16 %v5898
      %v6021 = vunpack.c.l.b16 %v5902
      %v6022 = vunpack.c.l.b16 %v5906
      %v6023 = vunpack.c.l.b16 %v5910
      %v6024 = vunpack.c.l.b16 %v5914
      %v6025 = vunpack.c.l.b16 %v5918
      %v6026 = vunpack.c.l.b16 %v5922
      %v6027 = vunpack.c.l.b16 %v5926
      %v6028 = vunpack.c.l.b16 %v5930
      %v6029 = vunpack.c.l.b16 %v5934
      %v6030 = vunpack.c.l.b16 %v5938
      %v6031 = vunpack.c.l.b16 %v5942
      %v6032 = vunpack.c.l.b16 %v5946
      %v6033 = vunpack.c.l.b16 %v5950
      %v6034 = vunpack.c.l.b16 %v5954
      %v6035 = vunpack.c.l.b16 %v5958
      %v6036 = vunpack.c.l.b16 %v5962
      %v6037 = vunpack.c.l.b16 %v5966
      %v6038 = vunpack.c.l.b16 %v5970
      %v6039 = vunpack.c.l.b16 %v5974
      %v6040 = vunpack.c.l.b16 %v5978
      %v6041 = vunpack.c.l.b16 %v5982
      %v6042 = vunpack.c.l.b16 %v5986
      %v6043 = vunpack.c.l.b16 %v5990
      %v6044 = vunpack.c.l.b16 %v5994
      %v6045 = vunpack.c.l.b16 %v5998
      %v6046 = vunpack.c.l.b16 %v6002
      %v6047 = vunpack.c.l.b16 %v6006
      %v6048 = vunpack.c.l.b16 %v6010
      %v6049 = vunpack.c.l.b16 %v6014
      %v6050 = vunpack.c.l.b16 %v6018
      %v6051 = vpack.c.b16 %v6020, %v6019
      %v6052 = vpack.c.b16 %v6022, %v6021
      %v6053 = vpack.c.b16 %v6024, %v6023
      %v6054 = vpack.c.b16 %v6026, %v6025
      %v6055 = vpack.c.b16 %v6028, %v6027
      %v6056 = vpack.c.b16 %v6030, %v6029
      %v6057 = vpack.c.b16 %v6032, %v6031
      %v6058 = vpack.c.b16 %v6034, %v6033
      %v6059 = vpack.c.b16 %v6036, %v6035
      %v6060 = vpack.c.b16 %v6038, %v6037
      %v6061 = vpack.c.b16 %v6040, %v6039
      %v6062 = vpack.c.b16 %v6042, %v6041
      %v6063 = vpack.c.b16 %v6044, %v6043
      %v6064 = vpack.c.b16 %v6046, %v6045
      %v6065 = vpack.c.b16 %v6048, %v6047
      %v6066 = vpack.c.b16 %v6050, %v6049
      %6067 = vrot.lane.b32.xlu0 %v6051, 112
      %v6068 = vpop.permute.xlu0 %6067
      %6069 = vrot.lane.b32.xlu0 %v6052, 112
      %v6070 = vpop.permute.xlu0 %6069
      %6071 = vrot.lane.b32.xlu0 %v6053, 112
      %v6072 = vpop.permute.xlu0 %6071
      %6073 = vrot.lane.b32.xlu0 %v6054, 112
      %v6074 = vpop.permute.xlu0 %6073
      %6075 = vrot.lane.b32.xlu0 %v6055, 112
      %v6076 = vpop.permute.xlu0 %6075
      %6077 = vrot.lane.b32.xlu0 %v6056, 112
      %v6078 = vpop.permute.xlu0 %6077
      %6079 = vrot.lane.b32.xlu0 %v6057, 112
      %v6080 = vpop.permute.xlu0 %6079
      %6081 = vrot.lane.b32.xlu0 %v6058, 112
      %v6082 = vpop.permute.xlu0 %6081
      %6083 = vrot.lane.b32.xlu0 %v6059, 112
      %v6084 = vpop.permute.xlu0 %6083
      %6085 = vrot.lane.b32.xlu0 %v6060, 112
      %v6086 = vpop.permute.xlu0 %6085
      %6087 = vrot.lane.b32.xlu0 %v6061, 112
      %v6088 = vpop.permute.xlu0 %6087
      %6089 = vrot.lane.b32.xlu0 %v6062, 112
      %v6090 = vpop.permute.xlu0 %6089
      %6091 = vrot.lane.b32.xlu0 %v6063, 112
      %v6092 = vpop.permute.xlu0 %6091
      %6093 = vrot.lane.b32.xlu0 %v6064, 112
      %v6094 = vpop.permute.xlu0 %6093
      %6095 = vrot.lane.b32.xlu0 %v6065, 112
      %v6096 = vpop.permute.xlu0 %6095
      %6097 = vrot.lane.b32.xlu0 %v6066, 112
      %v6098 = vpop.permute.xlu0 %6097
      %vm6115 = vcmask 982912
      %6116 = vst.msk [vmem:[#allocation2] sm:$0xff] %vm6115, %v6068
      %6117 = vst.msk [vmem:[#allocation2 + $0x10] sm:$0xff] %vm6115, %v6070
      %6118 = vst.msk [vmem:[#allocation2 + $0x20] sm:$0xff] %vm6115, %v6072
      %6119 = vst.msk [vmem:[#allocation2 + $0x30] sm:$0xff] %vm6115, %v6074
      %6120 = vst.msk [vmem:[#allocation2 + $0x40] sm:$0xff] %vm6115, %v6076
      %6121 = vst.msk [vmem:[#allocation2 + $0x50] sm:$0xff] %vm6115, %v6078
      %6122 = vst.msk [vmem:[#allocation2 + $0x60] sm:$0xff] %vm6115, %v6080
      %6123 = vst.msk [vmem:[#allocation2 + $0x70] sm:$0xff] %vm6115, %v6082
      %6124 = vst.msk [vmem:[#allocation2 + $0x80] sm:$0xff] %vm6115, %v6084
      %6125 = vst.msk [vmem:[#allocation2 + $0x90] sm:$0xff] %vm6115, %v6086
      %6126 = vst.msk [vmem:[#allocation2 + $0xa0] sm:$0xff] %vm6115, %v6088
      %6127 = vst.msk [vmem:[#allocation2 + $0xb0] sm:$0xff] %vm6115, %v6090
      %6128 = vst.msk [vmem:[#allocation2 + $0xc0] sm:$0xff] %vm6115, %v6092
      %6129 = vst.msk [vmem:[#allocation2 + $0xd0] sm:$0xff] %vm6115, %v6094
      %6130 = vst.msk [vmem:[#allocation2 + $0xe0] sm:$0xff] %vm6115, %v6096
      %6131 = vst.msk [vmem:[#allocation2 + $0xf0] sm:$0xff] %vm6115, %v6098
      %s6132 = sadd.s32 4, %s3784
      %s6133 = smul.addr %s6132, 4
      %s6134 = scalar_lea.vmem %s260, %s6133
      %v6135 = vld [vmem:[%s6134] sm:$0xf]
      %v6136 = vld [vmem:[%s6134 + $0x8] sm:$0xf]
      %v6137 = vld [vmem:[%s6134 + $0x10] sm:$0xf]
      %v6138 = vld [vmem:[%s6134 + $0x18] sm:$0xf]
      %v6139 = vld [vmem:[%s6134 + $0x20] sm:$0xf]
      %v6140 = vld [vmem:[%s6134 + $0x28] sm:$0xf]
      %v6141 = vld [vmem:[%s6134 + $0x30] sm:$0xf]
      %v6142 = vld [vmem:[%s6134 + $0x38] sm:$0xf]
      %v6143 = vld [vmem:[%s6134 + $0x50] sm:$0xf]
      %v6144 = vld [vmem:[%s6134 + $0x58] sm:$0xf]
      %v6145 = vld [vmem:[%s6134 + $0x60] sm:$0xf]
      %v6146 = vld [vmem:[%s6134 + $0x68] sm:$0xf]
      %v6147 = vld [vmem:[%s6134 + $0x70] sm:$0xf]
      %v6148 = vld [vmem:[%s6134 + $0x78] sm:$0xf]
      %v6149 = vld [vmem:[%s6134 + $0x80] sm:$0xf]
      %v6150 = vld [vmem:[%s6134 + $0x88] sm:$0xf]
      %v6151 = vld [vmem:[%s6134 + $0xa0] sm:$0xf]
      %v6152 = vld [vmem:[%s6134 + $0xa8] sm:$0xf]
      %v6153 = vld [vmem:[%s6134 + $0xb0] sm:$0xf]
      %v6154 = vld [vmem:[%s6134 + $0xb8] sm:$0xf]
      %v6155 = vld [vmem:[%s6134 + $0xc0] sm:$0xf]
      %v6156 = vld [vmem:[%s6134 + $0xc8] sm:$0xf]
      %v6157 = vld [vmem:[%s6134 + $0xd0] sm:$0xf]
      %v6158 = vld [vmem:[%s6134 + $0xd8] sm:$0xf]
      %v6159 = vld [vmem:[%s6134 + $0xf0] sm:$0xf]
      %v6160 = vld [vmem:[%s6134 + $0xf8] sm:$0xf]
      %v6161 = vld [vmem:[%s6134 + $0x100] sm:$0xf]
      %v6162 = vld [vmem:[%s6134 + $0x108] sm:$0xf]
      %v6163 = vld [vmem:[%s6134 + $0x110] sm:$0xf]
      %v6164 = vld [vmem:[%s6134 + $0x118] sm:$0xf]
      %v6165 = vld [vmem:[%s6134 + $0x120] sm:$0xf]
      %v6166 = vld [vmem:[%s6134 + $0x128] sm:$0xf]
      %v6199 = vunpack.c.l.b16 %v6135
      %v6200 = vunpack.c.l.b16 %v6136
      %v6201 = vunpack.c.l.b16 %v6137
      %v6202 = vunpack.c.l.b16 %v6138
      %v6203 = vunpack.c.l.b16 %v6139
      %v6204 = vunpack.c.l.b16 %v6140
      %v6205 = vunpack.c.l.b16 %v6141
      %v6206 = vunpack.c.l.b16 %v6142
      %v6207 = vunpack.c.l.b16 %v6143
      %v6208 = vunpack.c.l.b16 %v6144
      %v6209 = vunpack.c.l.b16 %v6145
      %v6210 = vunpack.c.l.b16 %v6146
      %v6211 = vunpack.c.l.b16 %v6147
      %v6212 = vunpack.c.l.b16 %v6148
      %v6213 = vunpack.c.l.b16 %v6149
      %v6214 = vunpack.c.l.b16 %v6150
      %v6215 = vunpack.c.l.b16 %v6151
      %v6216 = vunpack.c.l.b16 %v6152
      %v6217 = vunpack.c.l.b16 %v6153
      %v6218 = vunpack.c.l.b16 %v6154
      %v6219 = vunpack.c.l.b16 %v6155
      %v6220 = vunpack.c.l.b16 %v6156
      %v6221 = vunpack.c.l.b16 %v6157
      %v6222 = vunpack.c.l.b16 %v6158
      %v6223 = vunpack.c.l.b16 %v6159
      %v6224 = vunpack.c.l.b16 %v6160
      %v6225 = vunpack.c.l.b16 %v6161
      %v6226 = vunpack.c.l.b16 %v6162
      %v6227 = vunpack.c.l.b16 %v6163
      %v6228 = vunpack.c.l.b16 %v6164
      %v6229 = vunpack.c.l.b16 %v6165
      %v6230 = vunpack.c.l.b16 %v6166
      %v6231 = vpack.c.b16 %v6200, %v6199
      %v6232 = vpack.c.b16 %v6202, %v6201
      %v6233 = vpack.c.b16 %v6204, %v6203
      %v6234 = vpack.c.b16 %v6206, %v6205
      %v6235 = vpack.c.b16 %v6208, %v6207
      %v6236 = vpack.c.b16 %v6210, %v6209
      %v6237 = vpack.c.b16 %v6212, %v6211
      %v6238 = vpack.c.b16 %v6214, %v6213
      %v6239 = vpack.c.b16 %v6216, %v6215
      %v6240 = vpack.c.b16 %v6218, %v6217
      %v6241 = vpack.c.b16 %v6220, %v6219
      %v6242 = vpack.c.b16 %v6222, %v6221
      %v6243 = vpack.c.b16 %v6224, %v6223
      %v6244 = vpack.c.b16 %v6226, %v6225
      %v6245 = vpack.c.b16 %v6228, %v6227
      %v6246 = vpack.c.b16 %v6230, %v6229
      %6247 = vrot.lane.b32.xlu0 %v6231, 120
      %v6248 = vpop.permute.xlu0 %6247
      %6249 = vrot.lane.b32.xlu0 %v6232, 120
      %v6250 = vpop.permute.xlu0 %6249
      %6251 = vrot.lane.b32.xlu0 %v6233, 120
      %v6252 = vpop.permute.xlu0 %6251
      %6253 = vrot.lane.b32.xlu0 %v6234, 120
      %v6254 = vpop.permute.xlu0 %6253
      %6255 = vrot.lane.b32.xlu0 %v6235, 120
      %v6256 = vpop.permute.xlu0 %6255
      %6257 = vrot.lane.b32.xlu0 %v6236, 120
      %v6258 = vpop.permute.xlu0 %6257
      %6259 = vrot.lane.b32.xlu0 %v6237, 120
      %v6260 = vpop.permute.xlu0 %6259
      %6261 = vrot.lane.b32.xlu0 %v6238, 120
      %v6262 = vpop.permute.xlu0 %6261
      %6263 = vrot.lane.b32.xlu0 %v6239, 120
      %v6264 = vpop.permute.xlu0 %6263
      %6265 = vrot.lane.b32.xlu0 %v6240, 120
      %v6266 = vpop.permute.xlu0 %6265
      %6267 = vrot.lane.b32.xlu0 %v6241, 120
      %v6268 = vpop.permute.xlu0 %6267
      %6269 = vrot.lane.b32.xlu0 %v6242, 120
      %v6270 = vpop.permute.xlu0 %6269
      %6271 = vrot.lane.b32.xlu0 %v6243, 120
      %v6272 = vpop.permute.xlu0 %6271
      %6273 = vrot.lane.b32.xlu0 %v6244, 120
      %v6274 = vpop.permute.xlu0 %6273
      %6275 = vrot.lane.b32.xlu0 %v6245, 120
      %v6276 = vpop.permute.xlu0 %6275
      %6277 = vrot.lane.b32.xlu0 %v6246, 120
      %v6278 = vpop.permute.xlu0 %6277
      %vm6295 = vcmask 1048512
      %6296 = vst.msk [vmem:[#allocation2] sm:$0xff] %vm6295, %v6248
      %6297 = vst.msk [vmem:[#allocation2 + $0x10] sm:$0xff] %vm6295, %v6250
      %6298 = vst.msk [vmem:[#allocation2 + $0x20] sm:$0xff] %vm6295, %v6252
      %6299 = vst.msk [vmem:[#allocation2 + $0x30] sm:$0xff] %vm6295, %v6254
      %6300 = vst.msk [vmem:[#allocation2 + $0x40] sm:$0xff] %vm6295, %v6256
      %6301 = vst.msk [vmem:[#allocation2 + $0x50] sm:$0xff] %vm6295, %v6258
      %6302 = vst.msk [vmem:[#allocation2 + $0x60] sm:$0xff] %vm6295, %v6260
      %6303 = vst.msk [vmem:[#allocation2 + $0x70] sm:$0xff] %vm6295, %v6262
      %6304 = vst.msk [vmem:[#allocation2 + $0x80] sm:$0xff] %vm6295, %v6264
      %6305 = vst.msk [vmem:[#allocation2 + $0x90] sm:$0xff] %vm6295, %v6266
      %6306 = vst.msk [vmem:[#allocation2 + $0xa0] sm:$0xff] %vm6295, %v6268
      %6307 = vst.msk [vmem:[#allocation2 + $0xb0] sm:$0xff] %vm6295, %v6270
      %6308 = vst.msk [vmem:[#allocation2 + $0xc0] sm:$0xff] %vm6295, %v6272
      %6309 = vst.msk [vmem:[#allocation2 + $0xd0] sm:$0xff] %vm6295, %v6274
      %6310 = vst.msk [vmem:[#allocation2 + $0xe0] sm:$0xff] %vm6295, %v6276
      %6311 = vst.msk [vmem:[#allocation2 + $0xf0] sm:$0xff] %vm6295, %v6278
      %v6312 = vld [vmem:[%s6134] sm:$0xf]
      %v6313 = vld [vmem:[%s6134 + $0x4] sm:$0x1]
      %v6314 = vld [vmem:[%s6134 + $0x8] sm:$0xf]
      %v6315 = vld [vmem:[%s6134 + $0xc] sm:$0x1]
      %v6316 = vld [vmem:[%s6134 + $0x10] sm:$0xf]
      %v6317 = vld [vmem:[%s6134 + $0x14] sm:$0x1]
      %v6318 = vld [vmem:[%s6134 + $0x18] sm:$0xf]
      %v6319 = vld [vmem:[%s6134 + $0x1c] sm:$0x1]
      %v6320 = vld [vmem:[%s6134 + $0x20] sm:$0xf]
      %v6321 = vld [vmem:[%s6134 + $0x24] sm:$0x1]
      %v6322 = vld [vmem:[%s6134 + $0x28] sm:$0xf]
      %v6323 = vld [vmem:[%s6134 + $0x2c] sm:$0x1]
      %v6324 = vld [vmem:[%s6134 + $0x30] sm:$0xf]
      %v6325 = vld [vmem:[%s6134 + $0x34] sm:$0x1]
      %v6326 = vld [vmem:[%s6134 + $0x38] sm:$0xf]
      %v6327 = vld [vmem:[%s6134 + $0x3c] sm:$0x1]
      %v6328 = vld [vmem:[%s6134 + $0x50] sm:$0xf]
      %v6329 = vld [vmem:[%s6134 + $0x54] sm:$0x1]
      %v6330 = vld [vmem:[%s6134 + $0x58] sm:$0xf]
      %v6331 = vld [vmem:[%s6134 + $0x5c] sm:$0x1]
      %v6332 = vld [vmem:[%s6134 + $0x60] sm:$0xf]
      %v6333 = vld [vmem:[%s6134 + $0x64] sm:$0x1]
      %v6334 = vld [vmem:[%s6134 + $0x68] sm:$0xf]
      %v6335 = vld [vmem:[%s6134 + $0x6c] sm:$0x1]
      %v6336 = vld [vmem:[%s6134 + $0x70] sm:$0xf]
      %v6337 = vld [vmem:[%s6134 + $0x74] sm:$0x1]
      %v6338 = vld [vmem:[%s6134 + $0x78] sm:$0xf]
      %v6339 = vld [vmem:[%s6134 + $0x7c] sm:$0x1]
      %v6340 = vld [vmem:[%s6134 + $0x80] sm:$0xf]
      %v6341 = vld [vmem:[%s6134 + $0x84] sm:$0x1]
      %v6342 = vld [vmem:[%s6134 + $0x88] sm:$0xf]
      %v6343 = vld [vmem:[%s6134 + $0x8c] sm:$0x1]
      %v6344 = vld [vmem:[%s6134 + $0xa0] sm:$0xf]
      %v6345 = vld [vmem:[%s6134 + $0xa4] sm:$0x1]
      %v6346 = vld [vmem:[%s6134 + $0xa8] sm:$0xf]
      %v6347 = vld [vmem:[%s6134 + $0xac] sm:$0x1]
      %v6348 = vld [vmem:[%s6134 + $0xb0] sm:$0xf]
      %v6349 = vld [vmem:[%s6134 + $0xb4] sm:$0x1]
      %v6350 = vld [vmem:[%s6134 + $0xb8] sm:$0xf]
      %v6351 = vld [vmem:[%s6134 + $0xbc] sm:$0x1]
      %v6352 = vld [vmem:[%s6134 + $0xc0] sm:$0xf]
      %v6353 = vld [vmem:[%s6134 + $0xc4] sm:$0x1]
      %v6354 = vld [vmem:[%s6134 + $0xc8] sm:$0xf]
      %v6355 = vld [vmem:[%s6134 + $0xcc] sm:$0x1]
      %v6356 = vld [vmem:[%s6134 + $0xd0] sm:$0xf]
      %v6357 = vld [vmem:[%s6134 + $0xd4] sm:$0x1]
      %v6358 = vld [vmem:[%s6134 + $0xd8] sm:$0xf]
      %v6359 = vld [vmem:[%s6134 + $0xdc] sm:$0x1]
      %v6360 = vld [vmem:[%s6134 + $0xf0] sm:$0xf]
      %v6361 = vld [vmem:[%s6134 + $0xf4] sm:$0x1]
      %v6362 = vld [vmem:[%s6134 + $0xf8] sm:$0xf]
      %v6363 = vld [vmem:[%s6134 + $0xfc] sm:$0x1]
      %v6364 = vld [vmem:[%s6134 + $0x100] sm:$0xf]
      %v6365 = vld [vmem:[%s6134 + $0x104] sm:$0x1]
      %v6366 = vld [vmem:[%s6134 + $0x108] sm:$0xf]
      %v6367 = vld [vmem:[%s6134 + $0x10c] sm:$0x1]
      %v6368 = vld [vmem:[%s6134 + $0x110] sm:$0xf]
      %v6369 = vld [vmem:[%s6134 + $0x114] sm:$0x1]
      %v6370 = vld [vmem:[%s6134 + $0x118] sm:$0xf]
      %v6371 = vld [vmem:[%s6134 + $0x11c] sm:$0x1]
      %v6372 = vld [vmem:[%s6134 + $0x120] sm:$0xf]
      %v6373 = vld [vmem:[%s6134 + $0x124] sm:$0x1]
      %v6374 = vld [vmem:[%s6134 + $0x128] sm:$0xf]
      %v6375 = vld [vmem:[%s6134 + $0x12c] sm:$0x1]
      %v6377 = vshrl.u32 %v6312, 16
      %v6379 = vrot.slane %v6377, 4
      %v6380 = vshll.u32 %v6312, 16
      %v6382 = vrot.slane %v6380, 5
      %v6383 = vor.u32 %v6379, %v6382
      %v6384 = vrot.slane %v6383, 4
      %v6386 = vshll.u32 %v6313, 16
      %v6388 = vrot.slane %v6386, 5
      %v6389 = vsel %vm501, %v6384, %v6388
      %v6391 = vshrl.u32 %v6314, 16
      %v6393 = vrot.slane %v6391, 4
      %v6394 = vshll.u32 %v6314, 16
      %v6396 = vrot.slane %v6394, 5
      %v6397 = vor.u32 %v6393, %v6396
      %v6398 = vrot.slane %v6397, 4
      %v6400 = vshll.u32 %v6315, 16
      %v6402 = vrot.slane %v6400, 5
      %v6403 = vsel %vm501, %v6398, %v6402
      %v6405 = vshrl.u32 %v6316, 16
      %v6407 = vrot.slane %v6405, 4
      %v6408 = vshll.u32 %v6316, 16
      %v6410 = vrot.slane %v6408, 5
      %v6411 = vor.u32 %v6407, %v6410
      %v6412 = vrot.slane %v6411, 4
      %v6414 = vshll.u32 %v6317, 16
      %v6416 = vrot.slane %v6414, 5
      %v6417 = vsel %vm501, %v6412, %v6416
      %v6419 = vshrl.u32 %v6318, 16
      %v6421 = vrot.slane %v6419, 4
      %v6422 = vshll.u32 %v6318, 16
      %v6424 = vrot.slane %v6422, 5
      %v6425 = vor.u32 %v6421, %v6424
      %v6426 = vrot.slane %v6425, 4
      %v6428 = vshll.u32 %v6319, 16
      %v6430 = vrot.slane %v6428, 5
      %v6431 = vsel %vm501, %v6426, %v6430
      %v6433 = vshrl.u32 %v6320, 16
      %v6435 = vrot.slane %v6433, 4
      %v6436 = vshll.u32 %v6320, 16
      %v6438 = vrot.slane %v6436, 5
      %v6439 = vor.u32 %v6435, %v6438
      %v6440 = vrot.slane %v6439, 4
      %v6442 = vshll.u32 %v6321, 16
      %v6444 = vrot.slane %v6442, 5
      %v6445 = vsel %vm501, %v6440, %v6444
      %v6447 = vshrl.u32 %v6322, 16
      %v6449 = vrot.slane %v6447, 4
      %v6450 = vshll.u32 %v6322, 16
      %v6452 = vrot.slane %v6450, 5
      %v6453 = vor.u32 %v6449, %v6452
      %v6454 = vrot.slane %v6453, 4
      %v6456 = vshll.u32 %v6323, 16
      %v6458 = vrot.slane %v6456, 5
      %v6459 = vsel %vm501, %v6454, %v6458
      %v6461 = vshrl.u32 %v6324, 16
      %v6463 = vrot.slane %v6461, 4
      %v6464 = vshll.u32 %v6324, 16
      %v6466 = vrot.slane %v6464, 5
      %v6467 = vor.u32 %v6463, %v6466
      %v6468 = vrot.slane %v6467, 4
      %v6470 = vshll.u32 %v6325, 16
      %v6472 = vrot.slane %v6470, 5
      %v6473 = vsel %vm501, %v6468, %v6472
      %v6475 = vshrl.u32 %v6326, 16
      %v6477 = vrot.slane %v6475, 4
      %v6478 = vshll.u32 %v6326, 16
      %v6480 = vrot.slane %v6478, 5
      %v6481 = vor.u32 %v6477, %v6480
      %v6482 = vrot.slane %v6481, 4
      %v6484 = vshll.u32 %v6327, 16
      %v6486 = vrot.slane %v6484, 5
      %v6487 = vsel %vm501, %v6482, %v6486
      %v6489 = vshrl.u32 %v6328, 16
      %v6491 = vrot.slane %v6489, 4
      %v6492 = vshll.u32 %v6328, 16
      %v6494 = vrot.slane %v6492, 5
      %v6495 = vor.u32 %v6491, %v6494
      %v6496 = vrot.slane %v6495, 4
      %v6498 = vshll.u32 %v6329, 16
      %v6500 = vrot.slane %v6498, 5
      %v6501 = vsel %vm501, %v6496, %v6500
      %v6503 = vshrl.u32 %v6330, 16
      %v6505 = vrot.slane %v6503, 4
      %v6506 = vshll.u32 %v6330, 16
      %v6508 = vrot.slane %v6506, 5
      %v6509 = vor.u32 %v6505, %v6508
      %v6510 = vrot.slane %v6509, 4
      %v6512 = vshll.u32 %v6331, 16
      %v6514 = vrot.slane %v6512, 5
      %v6515 = vsel %vm501, %v6510, %v6514
      %v6517 = vshrl.u32 %v6332, 16
      %v6519 = vrot.slane %v6517, 4
      %v6520 = vshll.u32 %v6332, 16
      %v6522 = vrot.slane %v6520, 5
      %v6523 = vor.u32 %v6519, %v6522
      %v6524 = vrot.slane %v6523, 4
      %v6526 = vshll.u32 %v6333, 16
      %v6528 = vrot.slane %v6526, 5
      %v6529 = vsel %vm501, %v6524, %v6528
      %v6531 = vshrl.u32 %v6334, 16
      %v6533 = vrot.slane %v6531, 4
      %v6534 = vshll.u32 %v6334, 16
      %v6536 = vrot.slane %v6534, 5
      %v6537 = vor.u32 %v6533, %v6536
      %v6538 = vrot.slane %v6537, 4
      %v6540 = vshll.u32 %v6335, 16
      %v6542 = vrot.slane %v6540, 5
      %v6543 = vsel %vm501, %v6538, %v6542
      %v6545 = vshrl.u32 %v6336, 16
      %v6547 = vrot.slane %v6545, 4
      %v6548 = vshll.u32 %v6336, 16
      %v6550 = vrot.slane %v6548, 5
      %v6551 = vor.u32 %v6547, %v6550
      %v6552 = vrot.slane %v6551, 4
      %v6554 = vshll.u32 %v6337, 16
      %v6556 = vrot.slane %v6554, 5
      %v6557 = vsel %vm501, %v6552, %v6556
      %v6559 = vshrl.u32 %v6338, 16
      %v6561 = vrot.slane %v6559, 4
      %v6562 = vshll.u32 %v6338, 16
      %v6564 = vrot.slane %v6562, 5
      %v6565 = vor.u32 %v6561, %v6564
      %v6566 = vrot.slane %v6565, 4
      %v6568 = vshll.u32 %v6339, 16
      %v6570 = vrot.slane %v6568, 5
      %v6571 = vsel %vm501, %v6566, %v6570
      %v6573 = vshrl.u32 %v6340, 16
      %v6575 = vrot.slane %v6573, 4
      %v6576 = vshll.u32 %v6340, 16
      %v6578 = vrot.slane %v6576, 5
      %v6579 = vor.u32 %v6575, %v6578
      %v6580 = vrot.slane %v6579, 4
      %v6582 = vshll.u32 %v6341, 16
      %v6584 = vrot.slane %v6582, 5
      %v6585 = vsel %vm501, %v6580, %v6584
      %v6587 = vshrl.u32 %v6342, 16
      %v6589 = vrot.slane %v6587, 4
      %v6590 = vshll.u32 %v6342, 16
      %v6592 = vrot.slane %v6590, 5
      %v6593 = vor.u32 %v6589, %v6592
      %v6594 = vrot.slane %v6593, 4
      %v6596 = vshll.u32 %v6343, 16
      %v6598 = vrot.slane %v6596, 5
      %v6599 = vsel %vm501, %v6594, %v6598
      %v6601 = vshrl.u32 %v6344, 16
      %v6603 = vrot.slane %v6601, 4
      %v6604 = vshll.u32 %v6344, 16
      %v6606 = vrot.slane %v6604, 5
      %v6607 = vor.u32 %v6603, %v6606
      %v6608 = vrot.slane %v6607, 4
      %v6610 = vshll.u32 %v6345, 16
      %v6612 = vrot.slane %v6610, 5
      %v6613 = vsel %vm501, %v6608, %v6612
      %v6615 = vshrl.u32 %v6346, 16
      %v6617 = vrot.slane %v6615, 4
      %v6618 = vshll.u32 %v6346, 16
      %v6620 = vrot.slane %v6618, 5
      %v6621 = vor.u32 %v6617, %v6620
      %v6622 = vrot.slane %v6621, 4
      %v6624 = vshll.u32 %v6347, 16
      %v6626 = vrot.slane %v6624, 5
      %v6627 = vsel %vm501, %v6622, %v6626
      %v6629 = vshrl.u32 %v6348, 16
      %v6631 = vrot.slane %v6629, 4
      %v6632 = vshll.u32 %v6348, 16
      %v6634 = vrot.slane %v6632, 5
      %v6635 = vor.u32 %v6631, %v6634
      %v6636 = vrot.slane %v6635, 4
      %v6638 = vshll.u32 %v6349, 16
      %v6640 = vrot.slane %v6638, 5
      %v6641 = vsel %vm501, %v6636, %v6640
      %v6643 = vshrl.u32 %v6350, 16
      %v6645 = vrot.slane %v6643, 4
      %v6646 = vshll.u32 %v6350, 16
      %v6648 = vrot.slane %v6646, 5
      %v6649 = vor.u32 %v6645, %v6648
      %v6650 = vrot.slane %v6649, 4
      %v6652 = vshll.u32 %v6351, 16
      %v6654 = vrot.slane %v6652, 5
      %v6655 = vsel %vm501, %v6650, %v6654
      %v6657 = vshrl.u32 %v6352, 16
      %v6659 = vrot.slane %v6657, 4
      %v6660 = vshll.u32 %v6352, 16
      %v6662 = vrot.slane %v6660, 5
      %v6663 = vor.u32 %v6659, %v6662
      %v6664 = vrot.slane %v6663, 4
      %v6666 = vshll.u32 %v6353, 16
      %v6668 = vrot.slane %v6666, 5
      %v6669 = vsel %vm501, %v6664, %v6668
      %v6671 = vshrl.u32 %v6354, 16
      %v6673 = vrot.slane %v6671, 4
      %v6674 = vshll.u32 %v6354, 16
      %v6676 = vrot.slane %v6674, 5
      %v6677 = vor.u32 %v6673, %v6676
      %v6678 = vrot.slane %v6677, 4
      %v6680 = vshll.u32 %v6355, 16
      %v6682 = vrot.slane %v6680, 5
      %v6683 = vsel %vm501, %v6678, %v6682
      %v6685 = vshrl.u32 %v6356, 16
      %v6687 = vrot.slane %v6685, 4
      %v6688 = vshll.u32 %v6356, 16
      %v6690 = vrot.slane %v6688, 5
      %v6691 = vor.u32 %v6687, %v6690
      %v6692 = vrot.slane %v6691, 4
      %v6694 = vshll.u32 %v6357, 16
      %v6696 = vrot.slane %v6694, 5
      %v6697 = vsel %vm501, %v6692, %v6696
      %v6699 = vshrl.u32 %v6358, 16
      %v6701 = vrot.slane %v6699, 4
      %v6702 = vshll.u32 %v6358, 16
      %v6704 = vrot.slane %v6702, 5
      %v6705 = vor.u32 %v6701, %v6704
      %v6706 = vrot.slane %v6705, 4
      %v6708 = vshll.u32 %v6359, 16
      %v6710 = vrot.slane %v6708, 5
      %v6711 = vsel %vm501, %v6706, %v6710
      %v6713 = vshrl.u32 %v6360, 16
      %v6715 = vrot.slane %v6713, 4
      %v6716 = vshll.u32 %v6360, 16
      %v6718 = vrot.slane %v6716, 5
      %v6719 = vor.u32 %v6715, %v6718
      %v6720 = vrot.slane %v6719, 4
      %v6722 = vshll.u32 %v6361, 16
      %v6724 = vrot.slane %v6722, 5
      %v6725 = vsel %vm501, %v6720, %v6724
      %v6727 = vshrl.u32 %v6362, 16
      %v6729 = vrot.slane %v6727, 4
      %v6730 = vshll.u32 %v6362, 16
      %v6732 = vrot.slane %v6730, 5
      %v6733 = vor.u32 %v6729, %v6732
      %v6734 = vrot.slane %v6733, 4
      %v6736 = vshll.u32 %v6363, 16
      %v6738 = vrot.slane %v6736, 5
      %v6739 = vsel %vm501, %v6734, %v6738
      %v6741 = vshrl.u32 %v6364, 16
      %v6743 = vrot.slane %v6741, 4
      %v6744 = vshll.u32 %v6364, 16
      %v6746 = vrot.slane %v6744, 5
      %v6747 = vor.u32 %v6743, %v6746
      %v6748 = vrot.slane %v6747, 4
      %v6750 = vshll.u32 %v6365, 16
      %v6752 = vrot.slane %v6750, 5
      %v6753 = vsel %vm501, %v6748, %v6752
      %v6755 = vshrl.u32 %v6366, 16
      %v6757 = vrot.slane %v6755, 4
      %v6758 = vshll.u32 %v6366, 16
      %v6760 = vrot.slane %v6758, 5
      %v6761 = vor.u32 %v6757, %v6760
      %v6762 = vrot.slane %v6761, 4
      %v6764 = vshll.u32 %v6367, 16
      %v6766 = vrot.slane %v6764, 5
      %v6767 = vsel %vm501, %v6762, %v6766
      %v6769 = vshrl.u32 %v6368, 16
      %v6771 = vrot.slane %v6769, 4
      %v6772 = vshll.u32 %v6368, 16
      %v6774 = vrot.slane %v6772, 5
      %v6775 = vor.u32 %v6771, %v6774
      %v6776 = vrot.slane %v6775, 4
      %v6778 = vshll.u32 %v6369, 16
      %v6780 = vrot.slane %v6778, 5
      %v6781 = vsel %vm501, %v6776, %v6780
      %v6783 = vshrl.u32 %v6370, 16
      %v6785 = vrot.slane %v6783, 4
      %v6786 = vshll.u32 %v6370, 16
      %v6788 = vrot.slane %v6786, 5
      %v6789 = vor.u32 %v6785, %v6788
      %v6790 = vrot.slane %v6789, 4
      %v6792 = vshll.u32 %v6371, 16
      %v6794 = vrot.slane %v6792, 5
      %v6795 = vsel %vm501, %v6790, %v6794
      %v6797 = vshrl.u32 %v6372, 16
      %v6799 = vrot.slane %v6797, 4
      %v6800 = vshll.u32 %v6372, 16
      %v6802 = vrot.slane %v6800, 5
      %v6803 = vor.u32 %v6799, %v6802
      %v6804 = vrot.slane %v6803, 4
      %v6806 = vshll.u32 %v6373, 16
      %v6808 = vrot.slane %v6806, 5
      %v6809 = vsel %vm501, %v6804, %v6808
      %v6811 = vshrl.u32 %v6374, 16
      %v6813 = vrot.slane %v6811, 4
      %v6814 = vshll.u32 %v6374, 16
      %v6816 = vrot.slane %v6814, 5
      %v6817 = vor.u32 %v6813, %v6816
      %v6818 = vrot.slane %v6817, 4
      %v6820 = vshll.u32 %v6375, 16
      %v6822 = vrot.slane %v6820, 5
      %v6823 = vsel %vm501, %v6818, %v6822
      %v6824 = vunpack.c.l.b16 %v6389
      %v6825 = vunpack.c.l.b16 %v6403
      %v6826 = vunpack.c.l.b16 %v6417
      %v6827 = vunpack.c.l.b16 %v6431
      %v6828 = vunpack.c.l.b16 %v6445
      %v6829 = vunpack.c.l.b16 %v6459
      %v6830 = vunpack.c.l.b16 %v6473
      %v6831 = vunpack.c.l.b16 %v6487
      %v6832 = vunpack.c.l.b16 %v6501
      %v6833 = vunpack.c.l.b16 %v6515
      %v6834 = vunpack.c.l.b16 %v6529
      %v6835 = vunpack.c.l.b16 %v6543
      %v6836 = vunpack.c.l.b16 %v6557
      %v6837 = vunpack.c.l.b16 %v6571
      %v6838 = vunpack.c.l.b16 %v6585
      %v6839 = vunpack.c.l.b16 %v6599
      %v6840 = vunpack.c.l.b16 %v6613
      %v6841 = vunpack.c.l.b16 %v6627
      %v6842 = vunpack.c.l.b16 %v6641
      %v6843 = vunpack.c.l.b16 %v6655
      %v6844 = vunpack.c.l.b16 %v6669
      %v6845 = vunpack.c.l.b16 %v6683
      %v6846 = vunpack.c.l.b16 %v6697
      %v6847 = vunpack.c.l.b16 %v6711
      %v6848 = vunpack.c.l.b16 %v6725
      %v6849 = vunpack.c.l.b16 %v6739
      %v6850 = vunpack.c.l.b16 %v6753
      %v6851 = vunpack.c.l.b16 %v6767
      %v6852 = vunpack.c.l.b16 %v6781
      %v6853 = vunpack.c.l.b16 %v6795
      %v6854 = vunpack.c.l.b16 %v6809
      %v6855 = vunpack.c.l.b16 %v6823
      %v6856 = vpack.c.b16 %v6825, %v6824
      %v6857 = vpack.c.b16 %v6827, %v6826
      %v6858 = vpack.c.b16 %v6829, %v6828
      %v6859 = vpack.c.b16 %v6831, %v6830
      %v6860 = vpack.c.b16 %v6833, %v6832
      %v6861 = vpack.c.b16 %v6835, %v6834
      %v6862 = vpack.c.b16 %v6837, %v6836
      %v6863 = vpack.c.b16 %v6839, %v6838
      %v6864 = vpack.c.b16 %v6841, %v6840
      %v6865 = vpack.c.b16 %v6843, %v6842
      %v6866 = vpack.c.b16 %v6845, %v6844
      %v6867 = vpack.c.b16 %v6847, %v6846
      %v6868 = vpack.c.b16 %v6849, %v6848
      %v6869 = vpack.c.b16 %v6851, %v6850
      %v6870 = vpack.c.b16 %v6853, %v6852
      %v6871 = vpack.c.b16 %v6855, %v6854
      %6888 = vst.msk [vmem:[#allocation2 + $0x8] sm:$0xff] %vm418, %v6856
      %6889 = vst.msk [vmem:[#allocation2 + $0x18] sm:$0xff] %vm418, %v6857
      %6890 = vst.msk [vmem:[#allocation2 + $0x28] sm:$0xff] %vm418, %v6858
      %6891 = vst.msk [vmem:[#allocation2 + $0x38] sm:$0xff] %vm418, %v6859
      %6892 = vst.msk [vmem:[#allocation2 + $0x48] sm:$0xff] %vm418, %v6860
      %6893 = vst.msk [vmem:[#allocation2 + $0x58] sm:$0xff] %vm418, %v6861
      %6894 = vst.msk [vmem:[#allocation2 + $0x68] sm:$0xff] %vm418, %v6862
      %6895 = vst.msk [vmem:[#allocation2 + $0x78] sm:$0xff] %vm418, %v6863
      %6896 = vst.msk [vmem:[#allocation2 + $0x88] sm:$0xff] %vm418, %v6864
      %6897 = vst.msk [vmem:[#allocation2 + $0x98] sm:$0xff] %vm418, %v6865
      %6898 = vst.msk [vmem:[#allocation2 + $0xa8] sm:$0xff] %vm418, %v6866
      %6899 = vst.msk [vmem:[#allocation2 + $0xb8] sm:$0xff] %vm418, %v6867
      %6900 = vst.msk [vmem:[#allocation2 + $0xc8] sm:$0xff] %vm418, %v6868
      %6901 = vst.msk [vmem:[#allocation2 + $0xd8] sm:$0xff] %vm418, %v6869
      %6902 = vst.msk [vmem:[#allocation2 + $0xe8] sm:$0xff] %vm418, %v6870
      %6903 = vst.msk [vmem:[#allocation2 + $0xf8] sm:$0xff] %vm418, %v6871
      %v6904 = vld [vmem:[%s6134] sm:$0xe]
      %v6905 = vld [vmem:[%s6134 + $0x4] sm:$0x1]
      %v6906 = vld [vmem:[%s6134 + $0x8] sm:$0xe]
      %v6907 = vld [vmem:[%s6134 + $0xc] sm:$0x1]
      %v6908 = vld [vmem:[%s6134 + $0x10] sm:$0xe]
      %v6909 = vld [vmem:[%s6134 + $0x14] sm:$0x1]
      %v6910 = vld [vmem:[%s6134 + $0x18] sm:$0xe]
      %v6911 = vld [vmem:[%s6134 + $0x1c] sm:$0x1]
      %v6912 = vld [vmem:[%s6134 + $0x20] sm:$0xe]
      %v6913 = vld [vmem:[%s6134 + $0x24] sm:$0x1]
      %v6914 = vld [vmem:[%s6134 + $0x28] sm:$0xe]
      %v6915 = vld [vmem:[%s6134 + $0x2c] sm:$0x1]
      %v6916 = vld [vmem:[%s6134 + $0x30] sm:$0xe]
      %v6917 = vld [vmem:[%s6134 + $0x34] sm:$0x1]
      %v6918 = vld [vmem:[%s6134 + $0x38] sm:$0xe]
      %v6919 = vld [vmem:[%s6134 + $0x3c] sm:$0x1]
      %v6920 = vld [vmem:[%s6134 + $0x50] sm:$0xe]
      %v6921 = vld [vmem:[%s6134 + $0x54] sm:$0x1]
      %v6922 = vld [vmem:[%s6134 + $0x58] sm:$0xe]
      %v6923 = vld [vmem:[%s6134 + $0x5c] sm:$0x1]
      %v6924 = vld [vmem:[%s6134 + $0x60] sm:$0xe]
      %v6925 = vld [vmem:[%s6134 + $0x64] sm:$0x1]
      %v6926 = vld [vmem:[%s6134 + $0x68] sm:$0xe]
      %v6927 = vld [vmem:[%s6134 + $0x6c] sm:$0x1]
      %v6928 = vld [vmem:[%s6134 + $0x70] sm:$0xe]
      %v6929 = vld [vmem:[%s6134 + $0x74] sm:$0x1]
      %v6930 = vld [vmem:[%s6134 + $0x78] sm:$0xe]
      %v6931 = vld [vmem:[%s6134 + $0x7c] sm:$0x1]
      %v6932 = vld [vmem:[%s6134 + $0x80] sm:$0xe]
      %v6933 = vld [vmem:[%s6134 + $0x84] sm:$0x1]
      %v6934 = vld [vmem:[%s6134 + $0x88] sm:$0xe]
      %v6935 = vld [vmem:[%s6134 + $0x8c] sm:$0x1]
      %v6936 = vld [vmem:[%s6134 + $0xa0] sm:$0xe]
      %v6937 = vld [vmem:[%s6134 + $0xa4] sm:$0x1]
      %v6938 = vld [vmem:[%s6134 + $0xa8] sm:$0xe]
      %v6939 = vld [vmem:[%s6134 + $0xac] sm:$0x1]
      %v6940 = vld [vmem:[%s6134 + $0xb0] sm:$0xe]
      %v6941 = vld [vmem:[%s6134 + $0xb4] sm:$0x1]
      %v6942 = vld [vmem:[%s6134 + $0xb8] sm:$0xe]
      %v6943 = vld [vmem:[%s6134 + $0xbc] sm:$0x1]
      %v6944 = vld [vmem:[%s6134 + $0xc0] sm:$0xe]
      %v6945 = vld [vmem:[%s6134 + $0xc4] sm:$0x1]
      %v6946 = vld [vmem:[%s6134 + $0xc8] sm:$0xe]
      %v6947 = vld [vmem:[%s6134 + $0xcc] sm:$0x1]
      %v6948 = vld [vmem:[%s6134 + $0xd0] sm:$0xe]
      %v6949 = vld [vmem:[%s6134 + $0xd4] sm:$0x1]
      %v6950 = vld [vmem:[%s6134 + $0xd8] sm:$0xe]
      %v6951 = vld [vmem:[%s6134 + $0xdc] sm:$0x1]
      %v6952 = vld [vmem:[%s6134 + $0xf0] sm:$0xe]
      %v6953 = vld [vmem:[%s6134 + $0xf4] sm:$0x1]
      %v6954 = vld [vmem:[%s6134 + $0xf8] sm:$0xe]
      %v6955 = vld [vmem:[%s6134 + $0xfc] sm:$0x1]
      %v6956 = vld [vmem:[%s6134 + $0x100] sm:$0xe]
      %v6957 = vld [vmem:[%s6134 + $0x104] sm:$0x1]
      %v6958 = vld [vmem:[%s6134 + $0x108] sm:$0xe]
      %v6959 = vld [vmem:[%s6134 + $0x10c] sm:$0x1]
      %v6960 = vld [vmem:[%s6134 + $0x110] sm:$0xe]
      %v6961 = vld [vmem:[%s6134 + $0x114] sm:$0x1]
      %v6962 = vld [vmem:[%s6134 + $0x118] sm:$0xe]
      %v6963 = vld [vmem:[%s6134 + $0x11c] sm:$0x1]
      %v6964 = vld [vmem:[%s6134 + $0x120] sm:$0xe]
      %v6965 = vld [vmem:[%s6134 + $0x124] sm:$0x1]
      %v6966 = vld [vmem:[%s6134 + $0x128] sm:$0xe]
      %v6967 = vld [vmem:[%s6134 + $0x12c] sm:$0x1]
      %v7032 = vrot.slane %v6904, 5
      %v7033 = vrot.slane %v7032, 4
      %v7034 = vrot.slane %v6905, 5
      %v7035 = vsel %vm1193, %v7033, %v7034
      %v7036 = vrot.slane %v6906, 5
      %v7037 = vrot.slane %v7036, 4
      %v7038 = vrot.slane %v6907, 5
      %v7039 = vsel %vm1193, %v7037, %v7038
      %v7040 = vrot.slane %v6908, 5
      %v7041 = vrot.slane %v7040, 4
      %v7042 = vrot.slane %v6909, 5
      %v7043 = vsel %vm1193, %v7041, %v7042
      %v7044 = vrot.slane %v6910, 5
      %v7045 = vrot.slane %v7044, 4
      %v7046 = vrot.slane %v6911, 5
      %v7047 = vsel %vm1193, %v7045, %v7046
      %v7048 = vrot.slane %v6912, 5
      %v7049 = vrot.slane %v7048, 4
      %v7050 = vrot.slane %v6913, 5
      %v7051 = vsel %vm1193, %v7049, %v7050
      %v7052 = vrot.slane %v6914, 5
      %v7053 = vrot.slane %v7052, 4
      %v7054 = vrot.slane %v6915, 5
      %v7055 = vsel %vm1193, %v7053, %v7054
      %v7056 = vrot.slane %v6916, 5
      %v7057 = vrot.slane %v7056, 4
      %v7058 = vrot.slane %v6917, 5
      %v7059 = vsel %vm1193, %v7057, %v7058
      %v7060 = vrot.slane %v6918, 5
      %v7061 = vrot.slane %v7060, 4
      %v7062 = vrot.slane %v6919, 5
      %v7063 = vsel %vm1193, %v7061, %v7062
      %v7064 = vrot.slane %v6920, 5
      %v7065 = vrot.slane %v7064, 4
      %v7066 = vrot.slane %v6921, 5
      %v7067 = vsel %vm1193, %v7065, %v7066
      %v7068 = vrot.slane %v6922, 5
      %v7069 = vrot.slane %v7068, 4
      %v7070 = vrot.slane %v6923, 5
      %v7071 = vsel %vm1193, %v7069, %v7070
      %v7072 = vrot.slane %v6924, 5
      %v7073 = vrot.slane %v7072, 4
      %v7074 = vrot.slane %v6925, 5
      %v7075 = vsel %vm1193, %v7073, %v7074
      %v7076 = vrot.slane %v6926, 5
      %v7077 = vrot.slane %v7076, 4
      %v7078 = vrot.slane %v6927, 5
      %v7079 = vsel %vm1193, %v7077, %v7078
      %v7080 = vrot.slane %v6928, 5
      %v7081 = vrot.slane %v7080, 4
      %v7082 = vrot.slane %v6929, 5
      %v7083 = vsel %vm1193, %v7081, %v7082
      %v7084 = vrot.slane %v6930, 5
      %v7085 = vrot.slane %v7084, 4
      %v7086 = vrot.slane %v6931, 5
      %v7087 = vsel %vm1193, %v7085, %v7086
      %v7088 = vrot.slane %v6932, 5
      %v7089 = vrot.slane %v7088, 4
      %v7090 = vrot.slane %v6933, 5
      %v7091 = vsel %vm1193, %v7089, %v7090
      %v7092 = vrot.slane %v6934, 5
      %v7093 = vrot.slane %v7092, 4
      %v7094 = vrot.slane %v6935, 5
      %v7095 = vsel %vm1193, %v7093, %v7094
      %v7096 = vrot.slane %v6936, 5
      %v7097 = vrot.slane %v7096, 4
      %v7098 = vrot.slane %v6937, 5
      %v7099 = vsel %vm1193, %v7097, %v7098
      %v7100 = vrot.slane %v6938, 5
      %v7101 = vrot.slane %v7100, 4
      %v7102 = vrot.slane %v6939, 5
      %v7103 = vsel %vm1193, %v7101, %v7102
      %v7104 = vrot.slane %v6940, 5
      %v7105 = vrot.slane %v7104, 4
      %v7106 = vrot.slane %v6941, 5
      %v7107 = vsel %vm1193, %v7105, %v7106
      %v7108 = vrot.slane %v6942, 5
      %v7109 = vrot.slane %v7108, 4
      %v7110 = vrot.slane %v6943, 5
      %v7111 = vsel %vm1193, %v7109, %v7110
      %v7112 = vrot.slane %v6944, 5
      %v7113 = vrot.slane %v7112, 4
      %v7114 = vrot.slane %v6945, 5
      %v7115 = vsel %vm1193, %v7113, %v7114
      %v7116 = vrot.slane %v6946, 5
      %v7117 = vrot.slane %v7116, 4
      %v7118 = vrot.slane %v6947, 5
      %v7119 = vsel %vm1193, %v7117, %v7118
      %v7120 = vrot.slane %v6948, 5
      %v7121 = vrot.slane %v7120, 4
      %v7122 = vrot.slane %v6949, 5
      %v7123 = vsel %vm1193, %v7121, %v7122
      %v7124 = vrot.slane %v6950, 5
      %v7125 = vrot.slane %v7124, 4
      %v7126 = vrot.slane %v6951, 5
      %v7127 = vsel %vm1193, %v7125, %v7126
      %v7128 = vrot.slane %v6952, 5
      %v7129 = vrot.slane %v7128, 4
      %v7130 = vrot.slane %v6953, 5
      %v7131 = vsel %vm1193, %v7129, %v7130
      %v7132 = vrot.slane %v6954, 5
      %v7133 = vrot.slane %v7132, 4
      %v7134 = vrot.slane %v6955, 5
      %v7135 = vsel %vm1193, %v7133, %v7134
      %v7136 = vrot.slane %v6956, 5
      %v7137 = vrot.slane %v7136, 4
      %v7138 = vrot.slane %v6957, 5
      %v7139 = vsel %vm1193, %v7137, %v7138
      %v7140 = vrot.slane %v6958, 5
      %v7141 = vrot.slane %v7140, 4
      %v7142 = vrot.slane %v6959, 5
      %v7143 = vsel %vm1193, %v7141, %v7142
      %v7144 = vrot.slane %v6960, 5
      %v7145 = vrot.slane %v7144, 4
      %v7146 = vrot.slane %v6961, 5
      %v7147 = vsel %vm1193, %v7145, %v7146
      %v7148 = vrot.slane %v6962, 5
      %v7149 = vrot.slane %v7148, 4
      %v7150 = vrot.slane %v6963, 5
      %v7151 = vsel %vm1193, %v7149, %v7150
      %v7152 = vrot.slane %v6964, 5
      %v7153 = vrot.slane %v7152, 4
      %v7154 = vrot.slane %v6965, 5
      %v7155 = vsel %vm1193, %v7153, %v7154
      %v7156 = vrot.slane %v6966, 5
      %v7157 = vrot.slane %v7156, 4
      %v7158 = vrot.slane %v6967, 5
      %v7159 = vsel %vm1193, %v7157, %v7158
      %v7160 = vunpack.c.l.b16 %v7035
      %v7161 = vunpack.c.l.b16 %v7039
      %v7162 = vunpack.c.l.b16 %v7043
      %v7163 = vunpack.c.l.b16 %v7047
      %v7164 = vunpack.c.l.b16 %v7051
      %v7165 = vunpack.c.l.b16 %v7055
      %v7166 = vunpack.c.l.b16 %v7059
      %v7167 = vunpack.c.l.b16 %v7063
      %v7168 = vunpack.c.l.b16 %v7067
      %v7169 = vunpack.c.l.b16 %v7071
      %v7170 = vunpack.c.l.b16 %v7075
      %v7171 = vunpack.c.l.b16 %v7079
      %v7172 = vunpack.c.l.b16 %v7083
      %v7173 = vunpack.c.l.b16 %v7087
      %v7174 = vunpack.c.l.b16 %v7091
      %v7175 = vunpack.c.l.b16 %v7095
      %v7176 = vunpack.c.l.b16 %v7099
      %v7177 = vunpack.c.l.b16 %v7103
      %v7178 = vunpack.c.l.b16 %v7107
      %v7179 = vunpack.c.l.b16 %v7111
      %v7180 = vunpack.c.l.b16 %v7115
      %v7181 = vunpack.c.l.b16 %v7119
      %v7182 = vunpack.c.l.b16 %v7123
      %v7183 = vunpack.c.l.b16 %v7127
      %v7184 = vunpack.c.l.b16 %v7131
      %v7185 = vunpack.c.l.b16 %v7135
      %v7186 = vunpack.c.l.b16 %v7139
      %v7187 = vunpack.c.l.b16 %v7143
      %v7188 = vunpack.c.l.b16 %v7147
      %v7189 = vunpack.c.l.b16 %v7151
      %v7190 = vunpack.c.l.b16 %v7155
      %v7191 = vunpack.c.l.b16 %v7159
      %v7192 = vpack.c.b16 %v7161, %v7160
      %v7193 = vpack.c.b16 %v7163, %v7162
      %v7194 = vpack.c.b16 %v7165, %v7164
      %v7195 = vpack.c.b16 %v7167, %v7166
      %v7196 = vpack.c.b16 %v7169, %v7168
      %v7197 = vpack.c.b16 %v7171, %v7170
      %v7198 = vpack.c.b16 %v7173, %v7172
      %v7199 = vpack.c.b16 %v7175, %v7174
      %v7200 = vpack.c.b16 %v7177, %v7176
      %v7201 = vpack.c.b16 %v7179, %v7178
      %v7202 = vpack.c.b16 %v7181, %v7180
      %v7203 = vpack.c.b16 %v7183, %v7182
      %v7204 = vpack.c.b16 %v7185, %v7184
      %v7205 = vpack.c.b16 %v7187, %v7186
      %v7206 = vpack.c.b16 %v7189, %v7188
      %v7207 = vpack.c.b16 %v7191, %v7190
      %7208 = vrot.lane.b32.xlu0 %v7192, 8
      %v7209 = vpop.permute.xlu0 %7208
      %7210 = vrot.lane.b32.xlu0 %v7193, 8
      %v7211 = vpop.permute.xlu0 %7210
      %7212 = vrot.lane.b32.xlu0 %v7194, 8
      %v7213 = vpop.permute.xlu0 %7212
      %7214 = vrot.lane.b32.xlu0 %v7195, 8
      %v7215 = vpop.permute.xlu0 %7214
      %7216 = vrot.lane.b32.xlu0 %v7196, 8
      %v7217 = vpop.permute.xlu0 %7216
      %7218 = vrot.lane.b32.xlu0 %v7197, 8
      %v7219 = vpop.permute.xlu0 %7218
      %7220 = vrot.lane.b32.xlu0 %v7198, 8
      %v7221 = vpop.permute.xlu0 %7220
      %7222 = vrot.lane.b32.xlu0 %v7199, 8
      %v7223 = vpop.permute.xlu0 %7222
      %7224 = vrot.lane.b32.xlu0 %v7200, 8
      %v7225 = vpop.permute.xlu0 %7224
      %7226 = vrot.lane.b32.xlu0 %v7201, 8
      %v7227 = vpop.permute.xlu0 %7226
      %7228 = vrot.lane.b32.xlu0 %v7202, 8
      %v7229 = vpop.permute.xlu0 %7228
      %7230 = vrot.lane.b32.xlu0 %v7203, 8
      %v7231 = vpop.permute.xlu0 %7230
      %7232 = vrot.lane.b32.xlu0 %v7204, 8
      %v7233 = vpop.permute.xlu0 %7232
      %7234 = vrot.lane.b32.xlu0 %v7205, 8
      %v7235 = vpop.permute.xlu0 %7234
      %7236 = vrot.lane.b32.xlu0 %v7206, 8
      %v7237 = vpop.permute.xlu0 %7236
      %7238 = vrot.lane.b32.xlu0 %v7207, 8
      %v7239 = vpop.permute.xlu0 %7238
      %7256 = vst.msk [vmem:[#allocation2 + $0x8] sm:$0xff] %vm1046, %v7209
      %7257 = vst.msk [vmem:[#allocation2 + $0x18] sm:$0xff] %vm1046, %v7211
      %7258 = vst.msk [vmem:[#allocation2 + $0x28] sm:$0xff] %vm1046, %v7213
      %7259 = vst.msk [vmem:[#allocation2 + $0x38] sm:$0xff] %vm1046, %v7215
      %7260 = vst.msk [vmem:[#allocation2 + $0x48] sm:$0xff] %vm1046, %v7217
      %7261 = vst.msk [vmem:[#allocation2 + $0x58] sm:$0xff] %vm1046, %v7219
      %7262 = vst.msk [vmem:[#allocation2 + $0x68] sm:$0xff] %vm1046, %v7221
      %7263 = vst.msk [vmem:[#allocation2 + $0x78] sm:$0xff] %vm1046, %v7223
      %7264 = vst.msk [vmem:[#allocation2 + $0x88] sm:$0xff] %vm1046, %v7225
      %7265 = vst.msk [vmem:[#allocation2 + $0x98] sm:$0xff] %vm1046, %v7227
      %7266 = vst.msk [vmem:[#allocation2 + $0xa8] sm:$0xff] %vm1046, %v7229
      %7267 = vst.msk [vmem:[#allocation2 + $0xb8] sm:$0xff] %vm1046, %v7231
      %7268 = vst.msk [vmem:[#allocation2 + $0xc8] sm:$0xff] %vm1046, %v7233
      %7269 = vst.msk [vmem:[#allocation2 + $0xd8] sm:$0xff] %vm1046, %v7235
      %7270 = vst.msk [vmem:[#allocation2 + $0xe8] sm:$0xff] %vm1046, %v7237
      %7271 = vst.msk [vmem:[#allocation2 + $0xf8] sm:$0xff] %vm1046, %v7239
      %s7272 = sadd.s32 %s286, 2
      %s7273 = smul.u32 %s7272, 20
      %s7274 = smul.addr %s7273, 4
      %s7275 = scalar_lea.vmem %s260, %s7274
      %v7276 = vld [vmem:[%s7275] sm:$0xf]
      %v7277 = vld [vmem:[%s7275 + $0x8] sm:$0xf]
      %v7278 = vld [vmem:[%s7275 + $0x10] sm:$0xf]
      %v7279 = vld [vmem:[%s7275 + $0x18] sm:$0xf]
      %v7280 = vld [vmem:[%s7275 + $0x20] sm:$0xf]
      %v7281 = vld [vmem:[%s7275 + $0x28] sm:$0xf]
      %v7282 = vld [vmem:[%s7275 + $0x30] sm:$0xf]
      %v7283 = vld [vmem:[%s7275 + $0x38] sm:$0xf]
      %v7284 = vld [vmem:[%s7275 + $0x50] sm:$0xf]
      %v7285 = vld [vmem:[%s7275 + $0x58] sm:$0xf]
      %v7286 = vld [vmem:[%s7275 + $0x60] sm:$0xf]
      %v7287 = vld [vmem:[%s7275 + $0x68] sm:$0xf]
      %v7288 = vld [vmem:[%s7275 + $0x70] sm:$0xf]
      %v7289 = vld [vmem:[%s7275 + $0x78] sm:$0xf]
      %v7290 = vld [vmem:[%s7275 + $0x80] sm:$0xf]
      %v7291 = vld [vmem:[%s7275 + $0x88] sm:$0xf]
      %v7292 = vld [vmem:[%s7275 + $0xa0] sm:$0xf]
      %v7293 = vld [vmem:[%s7275 + $0xa8] sm:$0xf]
      %v7294 = vld [vmem:[%s7275 + $0xb0] sm:$0xf]
      %v7295 = vld [vmem:[%s7275 + $0xb8] sm:$0xf]
      %v7296 = vld [vmem:[%s7275 + $0xc0] sm:$0xf]
      %v7297 = vld [vmem:[%s7275 + $0xc8] sm:$0xf]
      %v7298 = vld [vmem:[%s7275 + $0xd0] sm:$0xf]
      %v7299 = vld [vmem:[%s7275 + $0xd8] sm:$0xf]
      %v7300 = vld [vmem:[%s7275 + $0xf0] sm:$0xf]
      %v7301 = vld [vmem:[%s7275 + $0xf8] sm:$0xf]
      %v7302 = vld [vmem:[%s7275 + $0x100] sm:$0xf]
      %v7303 = vld [vmem:[%s7275 + $0x108] sm:$0xf]
      %v7304 = vld [vmem:[%s7275 + $0x110] sm:$0xf]
      %v7305 = vld [vmem:[%s7275 + $0x118] sm:$0xf]
      %v7306 = vld [vmem:[%s7275 + $0x120] sm:$0xf]
      %v7307 = vld [vmem:[%s7275 + $0x128] sm:$0xf]
      %v7340 = vunpack.c.l.b16 %v7276
      %v7341 = vunpack.c.l.b16 %v7277
      %v7342 = vunpack.c.l.b16 %v7278
      %v7343 = vunpack.c.l.b16 %v7279
      %v7344 = vunpack.c.l.b16 %v7280
      %v7345 = vunpack.c.l.b16 %v7281
      %v7346 = vunpack.c.l.b16 %v7282
      %v7347 = vunpack.c.l.b16 %v7283
      %v7348 = vunpack.c.l.b16 %v7284
      %v7349 = vunpack.c.l.b16 %v7285
      %v7350 = vunpack.c.l.b16 %v7286
      %v7351 = vunpack.c.l.b16 %v7287
      %v7352 = vunpack.c.l.b16 %v7288
      %v7353 = vunpack.c.l.b16 %v7289
      %v7354 = vunpack.c.l.b16 %v7290
      %v7355 = vunpack.c.l.b16 %v7291
      %v7356 = vunpack.c.l.b16 %v7292
      %v7357 = vunpack.c.l.b16 %v7293
      %v7358 = vunpack.c.l.b16 %v7294
      %v7359 = vunpack.c.l.b16 %v7295
      %v7360 = vunpack.c.l.b16 %v7296
      %v7361 = vunpack.c.l.b16 %v7297
      %v7362 = vunpack.c.l.b16 %v7298
      %v7363 = vunpack.c.l.b16 %v7299
      %v7364 = vunpack.c.l.b16 %v7300
      %v7365 = vunpack.c.l.b16 %v7301
      %v7366 = vunpack.c.l.b16 %v7302
      %v7367 = vunpack.c.l.b16 %v7303
      %v7368 = vunpack.c.l.b16 %v7304
      %v7369 = vunpack.c.l.b16 %v7305
      %v7370 = vunpack.c.l.b16 %v7306
      %v7371 = vunpack.c.l.b16 %v7307
      %v7372 = vpack.c.b16 %v7341, %v7340
      %v7373 = vpack.c.b16 %v7343, %v7342
      %v7374 = vpack.c.b16 %v7345, %v7344
      %v7375 = vpack.c.b16 %v7347, %v7346
      %v7376 = vpack.c.b16 %v7349, %v7348
      %v7377 = vpack.c.b16 %v7351, %v7350
      %v7378 = vpack.c.b16 %v7353, %v7352
      %v7379 = vpack.c.b16 %v7355, %v7354
      %v7380 = vpack.c.b16 %v7357, %v7356
      %v7381 = vpack.c.b16 %v7359, %v7358
      %v7382 = vpack.c.b16 %v7361, %v7360
      %v7383 = vpack.c.b16 %v7363, %v7362
      %v7384 = vpack.c.b16 %v7365, %v7364
      %v7385 = vpack.c.b16 %v7367, %v7366
      %v7386 = vpack.c.b16 %v7369, %v7368
      %v7387 = vpack.c.b16 %v7371, %v7370
      %7388 = vrot.lane.b32.xlu0 %v7372, 16
      %v7389 = vpop.permute.xlu0 %7388
      %7390 = vrot.lane.b32.xlu0 %v7373, 16
      %v7391 = vpop.permute.xlu0 %7390
      %7392 = vrot.lane.b32.xlu0 %v7374, 16
      %v7393 = vpop.permute.xlu0 %7392
      %7394 = vrot.lane.b32.xlu0 %v7375, 16
      %v7395 = vpop.permute.xlu0 %7394
      %7396 = vrot.lane.b32.xlu0 %v7376, 16
      %v7397 = vpop.permute.xlu0 %7396
      %7398 = vrot.lane.b32.xlu0 %v7377, 16
      %v7399 = vpop.permute.xlu0 %7398
      %7400 = vrot.lane.b32.xlu0 %v7378, 16
      %v7401 = vpop.permute.xlu0 %7400
      %7402 = vrot.lane.b32.xlu0 %v7379, 16
      %v7403 = vpop.permute.xlu0 %7402
      %7404 = vrot.lane.b32.xlu0 %v7380, 16
      %v7405 = vpop.permute.xlu0 %7404
      %7406 = vrot.lane.b32.xlu0 %v7381, 16
      %v7407 = vpop.permute.xlu0 %7406
      %7408 = vrot.lane.b32.xlu0 %v7382, 16
      %v7409 = vpop.permute.xlu0 %7408
      %7410 = vrot.lane.b32.xlu0 %v7383, 16
      %v7411 = vpop.permute.xlu0 %7410
      %7412 = vrot.lane.b32.xlu0 %v7384, 16
      %v7413 = vpop.permute.xlu0 %7412
      %7414 = vrot.lane.b32.xlu0 %v7385, 16
      %v7415 = vpop.permute.xlu0 %7414
      %7416 = vrot.lane.b32.xlu0 %v7386, 16
      %v7417 = vpop.permute.xlu0 %7416
      %7418 = vrot.lane.b32.xlu0 %v7387, 16
      %v7419 = vpop.permute.xlu0 %7418
      %7436 = vst.msk [vmem:[#allocation2 + $0x8] sm:$0xff] %vm1418, %v7389
      %7437 = vst.msk [vmem:[#allocation2 + $0x18] sm:$0xff] %vm1418, %v7391
      %7438 = vst.msk [vmem:[#allocation2 + $0x28] sm:$0xff] %vm1418, %v7393
      %7439 = vst.msk [vmem:[#allocation2 + $0x38] sm:$0xff] %vm1418, %v7395
      %7440 = vst.msk [vmem:[#allocation2 + $0x48] sm:$0xff] %vm1418, %v7397
      %7441 = vst.msk [vmem:[#allocation2 + $0x58] sm:$0xff] %vm1418, %v7399
      %7442 = vst.msk [vmem:[#allocation2 + $0x68] sm:$0xff] %vm1418, %v7401
      %7443 = vst.msk [vmem:[#allocation2 + $0x78] sm:$0xff] %vm1418, %v7403
      %7444 = vst.msk [vmem:[#allocation2 + $0x88] sm:$0xff] %vm1418, %v7405
      %7445 = vst.msk [vmem:[#allocation2 + $0x98] sm:$0xff] %vm1418, %v7407
      %7446 = vst.msk [vmem:[#allocation2 + $0xa8] sm:$0xff] %vm1418, %v7409
      %7447 = vst.msk [vmem:[#allocation2 + $0xb8] sm:$0xff] %vm1418, %v7411
      %7448 = vst.msk [vmem:[#allocation2 + $0xc8] sm:$0xff] %vm1418, %v7413
      %7449 = vst.msk [vmem:[#allocation2 + $0xd8] sm:$0xff] %vm1418, %v7415
      %7450 = vst.msk [vmem:[#allocation2 + $0xe8] sm:$0xff] %vm1418, %v7417
      %7451 = vst.msk [vmem:[#allocation2 + $0xf8] sm:$0xff] %vm1418, %v7419
      %v7452 = vld [vmem:[%s7275] sm:$0xf]
      %v7453 = vld [vmem:[%s7275 + $0x4] sm:$0x1]
      %v7454 = vld [vmem:[%s7275 + $0x8] sm:$0xf]
      %v7455 = vld [vmem:[%s7275 + $0xc] sm:$0x1]
      %v7456 = vld [vmem:[%s7275 + $0x10] sm:$0xf]
      %v7457 = vld [vmem:[%s7275 + $0x14] sm:$0x1]
      %v7458 = vld [vmem:[%s7275 + $0x18] sm:$0xf]
      %v7459 = vld [vmem:[%s7275 + $0x1c] sm:$0x1]
      %v7460 = vld [vmem:[%s7275 + $0x20] sm:$0xf]
      %v7461 = vld [vmem:[%s7275 + $0x24] sm:$0x1]
      %v7462 = vld [vmem:[%s7275 + $0x28] sm:$0xf]
      %v7463 = vld [vmem:[%s7275 + $0x2c] sm:$0x1]
      %v7464 = vld [vmem:[%s7275 + $0x30] sm:$0xf]
      %v7465 = vld [vmem:[%s7275 + $0x34] sm:$0x1]
      %v7466 = vld [vmem:[%s7275 + $0x38] sm:$0xf]
      %v7467 = vld [vmem:[%s7275 + $0x3c] sm:$0x1]
      %v7468 = vld [vmem:[%s7275 + $0x50] sm:$0xf]
      %v7469 = vld [vmem:[%s7275 + $0x54] sm:$0x1]
      %v7470 = vld [vmem:[%s7275 + $0x58] sm:$0xf]
      %v7471 = vld [vmem:[%s7275 + $0x5c] sm:$0x1]
      %v7472 = vld [vmem:[%s7275 + $0x60] sm:$0xf]
      %v7473 = vld [vmem:[%s7275 + $0x64] sm:$0x1]
      %v7474 = vld [vmem:[%s7275 + $0x68] sm:$0xf]
      %v7475 = vld [vmem:[%s7275 + $0x6c] sm:$0x1]
      %v7476 = vld [vmem:[%s7275 + $0x70] sm:$0xf]
      %v7477 = vld [vmem:[%s7275 + $0x74] sm:$0x1]
      %v7478 = vld [vmem:[%s7275 + $0x78] sm:$0xf]
      %v7479 = vld [vmem:[%s7275 + $0x7c] sm:$0x1]
      %v7480 = vld [vmem:[%s7275 + $0x80] sm:$0xf]
      %v7481 = vld [vmem:[%s7275 + $0x84] sm:$0x1]
      %v7482 = vld [vmem:[%s7275 + $0x88] sm:$0xf]
      %v7483 = vld [vmem:[%s7275 + $0x8c] sm:$0x1]
      %v7484 = vld [vmem:[%s7275 + $0xa0] sm:$0xf]
      %v7485 = vld [vmem:[%s7275 + $0xa4] sm:$0x1]
      %v7486 = vld [vmem:[%s7275 + $0xa8] sm:$0xf]
      %v7487 = vld [vmem:[%s7275 + $0xac] sm:$0x1]
      %v7488 = vld [vmem:[%s7275 + $0xb0] sm:$0xf]
      %v7489 = vld [vmem:[%s7275 + $0xb4] sm:$0x1]
      %v7490 = vld [vmem:[%s7275 + $0xb8] sm:$0xf]
      %v7491 = vld [vmem:[%s7275 + $0xbc] sm:$0x1]
      %v7492 = vld [vmem:[%s7275 + $0xc0] sm:$0xf]
      %v7493 = vld [vmem:[%s7275 + $0xc4] sm:$0x1]
      %v7494 = vld [vmem:[%s7275 + $0xc8] sm:$0xf]
      %v7495 = vld [vmem:[%s7275 + $0xcc] sm:$0x1]
      %v7496 = vld [vmem:[%s7275 + $0xd0] sm:$0xf]
      %v7497 = vld [vmem:[%s7275 + $0xd4] sm:$0x1]
      %v7498 = vld [vmem:[%s7275 + $0xd8] sm:$0xf]
      %v7499 = vld [vmem:[%s7275 + $0xdc] sm:$0x1]
      %v7500 = vld [vmem:[%s7275 + $0xf0] sm:$0xf]
      %v7501 = vld [vmem:[%s7275 + $0xf4] sm:$0x1]
      %v7502 = vld [vmem:[%s7275 + $0xf8] sm:$0xf]
      %v7503 = vld [vmem:[%s7275 + $0xfc] sm:$0x1]
      %v7504 = vld [vmem:[%s7275 + $0x100] sm:$0xf]
      %v7505 = vld [vmem:[%s7275 + $0x104] sm:$0x1]
      %v7506 = vld [vmem:[%s7275 + $0x108] sm:$0xf]
      %v7507 = vld [vmem:[%s7275 + $0x10c] sm:$0x1]
      %v7508 = vld [vmem:[%s7275 + $0x110] sm:$0xf]
      %v7509 = vld [vmem:[%s7275 + $0x114] sm:$0x1]
      %v7510 = vld [vmem:[%s7275 + $0x118] sm:$0xf]
      %v7511 = vld [vmem:[%s7275 + $0x11c] sm:$0x1]
      %v7512 = vld [vmem:[%s7275 + $0x120] sm:$0xf]
      %v7513 = vld [vmem:[%s7275 + $0x124] sm:$0x1]
      %v7514 = vld [vmem:[%s7275 + $0x128] sm:$0xf]
      %v7515 = vld [vmem:[%s7275 + $0x12c] sm:$0x1]
      %v7517 = vshrl.u32 %v7452, 16
      %v7519 = vrot.slane %v7517, 4
      %v7520 = vshll.u32 %v7452, 16
      %v7522 = vrot.slane %v7520, 5
      %v7523 = vor.u32 %v7519, %v7522
      %v7524 = vrot.slane %v7523, 4
      %v7526 = vshll.u32 %v7453, 16
      %v7528 = vrot.slane %v7526, 5
      %v7529 = vsel %vm501, %v7524, %v7528
      %v7531 = vshrl.u32 %v7454, 16
      %v7533 = vrot.slane %v7531, 4
      %v7534 = vshll.u32 %v7454, 16
      %v7536 = vrot.slane %v7534, 5
      %v7537 = vor.u32 %v7533, %v7536
      %v7538 = vrot.slane %v7537, 4
      %v7540 = vshll.u32 %v7455, 16
      %v7542 = vrot.slane %v7540, 5
      %v7543 = vsel %vm501, %v7538, %v7542
      %v7545 = vshrl.u32 %v7456, 16
      %v7547 = vrot.slane %v7545, 4
      %v7548 = vshll.u32 %v7456, 16
      %v7550 = vrot.slane %v7548, 5
      %v7551 = vor.u32 %v7547, %v7550
      %v7552 = vrot.slane %v7551, 4
      %v7554 = vshll.u32 %v7457, 16
      %v7556 = vrot.slane %v7554, 5
      %v7557 = vsel %vm501, %v7552, %v7556
      %v7559 = vshrl.u32 %v7458, 16
      %v7561 = vrot.slane %v7559, 4
      %v7562 = vshll.u32 %v7458, 16
      %v7564 = vrot.slane %v7562, 5
      %v7565 = vor.u32 %v7561, %v7564
      %v7566 = vrot.slane %v7565, 4
      %v7568 = vshll.u32 %v7459, 16
      %v7570 = vrot.slane %v7568, 5
      %v7571 = vsel %vm501, %v7566, %v7570
      %v7573 = vshrl.u32 %v7460, 16
      %v7575 = vrot.slane %v7573, 4
      %v7576 = vshll.u32 %v7460, 16
      %v7578 = vrot.slane %v7576, 5
      %v7579 = vor.u32 %v7575, %v7578
      %v7580 = vrot.slane %v7579, 4
      %v7582 = vshll.u32 %v7461, 16
      %v7584 = vrot.slane %v7582, 5
      %v7585 = vsel %vm501, %v7580, %v7584
      %v7587 = vshrl.u32 %v7462, 16
      %v7589 = vrot.slane %v7587, 4
      %v7590 = vshll.u32 %v7462, 16
      %v7592 = vrot.slane %v7590, 5
      %v7593 = vor.u32 %v7589, %v7592
      %v7594 = vrot.slane %v7593, 4
      %v7596 = vshll.u32 %v7463, 16
      %v7598 = vrot.slane %v7596, 5
      %v7599 = vsel %vm501, %v7594, %v7598
      %v7601 = vshrl.u32 %v7464, 16
      %v7603 = vrot.slane %v7601, 4
      %v7604 = vshll.u32 %v7464, 16
      %v7606 = vrot.slane %v7604, 5
      %v7607 = vor.u32 %v7603, %v7606
      %v7608 = vrot.slane %v7607, 4
      %v7610 = vshll.u32 %v7465, 16
      %v7612 = vrot.slane %v7610, 5
      %v7613 = vsel %vm501, %v7608, %v7612
      %v7615 = vshrl.u32 %v7466, 16
      %v7617 = vrot.slane %v7615, 4
      %v7618 = vshll.u32 %v7466, 16
      %v7620 = vrot.slane %v7618, 5
      %v7621 = vor.u32 %v7617, %v7620
      %v7622 = vrot.slane %v7621, 4
      %v7624 = vshll.u32 %v7467, 16
      %v7626 = vrot.slane %v7624, 5
      %v7627 = vsel %vm501, %v7622, %v7626
      %v7629 = vshrl.u32 %v7468, 16
      %v7631 = vrot.slane %v7629, 4
      %v7632 = vshll.u32 %v7468, 16
      %v7634 = vrot.slane %v7632, 5
      %v7635 = vor.u32 %v7631, %v7634
      %v7636 = vrot.slane %v7635, 4
      %v7638 = vshll.u32 %v7469, 16
      %v7640 = vrot.slane %v7638, 5
      %v7641 = vsel %vm501, %v7636, %v7640
      %v7643 = vshrl.u32 %v7470, 16
      %v7645 = vrot.slane %v7643, 4
      %v7646 = vshll.u32 %v7470, 16
      %v7648 = vrot.slane %v7646, 5
      %v7649 = vor.u32 %v7645, %v7648
      %v7650 = vrot.slane %v7649, 4
      %v7652 = vshll.u32 %v7471, 16
      %v7654 = vrot.slane %v7652, 5
      %v7655 = vsel %vm501, %v7650, %v7654
      %v7657 = vshrl.u32 %v7472, 16
      %v7659 = vrot.slane %v7657, 4
      %v7660 = vshll.u32 %v7472, 16
      %v7662 = vrot.slane %v7660, 5
      %v7663 = vor.u32 %v7659, %v7662
      %v7664 = vrot.slane %v7663, 4
      %v7666 = vshll.u32 %v7473, 16
      %v7668 = vrot.slane %v7666, 5
      %v7669 = vsel %vm501, %v7664, %v7668
      %v7671 = vshrl.u32 %v7474, 16
      %v7673 = vrot.slane %v7671, 4
      %v7674 = vshll.u32 %v7474, 16
      %v7676 = vrot.slane %v7674, 5
      %v7677 = vor.u32 %v7673, %v7676
      %v7678 = vrot.slane %v7677, 4
      %v7680 = vshll.u32 %v7475, 16
      %v7682 = vrot.slane %v7680, 5
      %v7683 = vsel %vm501, %v7678, %v7682
      %v7685 = vshrl.u32 %v7476, 16
      %v7687 = vrot.slane %v7685, 4
      %v7688 = vshll.u32 %v7476, 16
      %v7690 = vrot.slane %v7688, 5
      %v7691 = vor.u32 %v7687, %v7690
      %v7692 = vrot.slane %v7691, 4
      %v7694 = vshll.u32 %v7477, 16
      %v7696 = vrot.slane %v7694, 5
      %v7697 = vsel %vm501, %v7692, %v7696
      %v7699 = vshrl.u32 %v7478, 16
      %v7701 = vrot.slane %v7699, 4
      %v7702 = vshll.u32 %v7478, 16
      %v7704 = vrot.slane %v7702, 5
      %v7705 = vor.u32 %v7701, %v7704
      %v7706 = vrot.slane %v7705, 4
      %v7708 = vshll.u32 %v7479, 16
      %v7710 = vrot.slane %v7708, 5
      %v7711 = vsel %vm501, %v7706, %v7710
      %v7713 = vshrl.u32 %v7480, 16
      %v7715 = vrot.slane %v7713, 4
      %v7716 = vshll.u32 %v7480, 16
      %v7718 = vrot.slane %v7716, 5
      %v7719 = vor.u32 %v7715, %v7718
      %v7720 = vrot.slane %v7719, 4
      %v7722 = vshll.u32 %v7481, 16
      %v7724 = vrot.slane %v7722, 5
      %v7725 = vsel %vm501, %v7720, %v7724
      %v7727 = vshrl.u32 %v7482, 16
      %v7729 = vrot.slane %v7727, 4
      %v7730 = vshll.u32 %v7482, 16
      %v7732 = vrot.slane %v7730, 5
      %v7733 = vor.u32 %v7729, %v7732
      %v7734 = vrot.slane %v7733, 4
      %v7736 = vshll.u32 %v7483, 16
      %v7738 = vrot.slane %v7736, 5
      %v7739 = vsel %vm501, %v7734, %v7738
      %v7741 = vshrl.u32 %v7484, 16
      %v7743 = vrot.slane %v7741, 4
      %v7744 = vshll.u32 %v7484, 16
      %v7746 = vrot.slane %v7744, 5
      %v7747 = vor.u32 %v7743, %v7746
      %v7748 = vrot.slane %v7747, 4
      %v7750 = vshll.u32 %v7485, 16
      %v7752 = vrot.slane %v7750, 5
      %v7753 = vsel %vm501, %v7748, %v7752
      %v7755 = vshrl.u32 %v7486, 16
      %v7757 = vrot.slane %v7755, 4
      %v7758 = vshll.u32 %v7486, 16
      %v7760 = vrot.slane %v7758, 5
      %v7761 = vor.u32 %v7757, %v7760
      %v7762 = vrot.slane %v7761, 4
      %v7764 = vshll.u32 %v7487, 16
      %v7766 = vrot.slane %v7764, 5
      %v7767 = vsel %vm501, %v7762, %v7766
      %v7769 = vshrl.u32 %v7488, 16
      %v7771 = vrot.slane %v7769, 4
      %v7772 = vshll.u32 %v7488, 16
      %v7774 = vrot.slane %v7772, 5
      %v7775 = vor.u32 %v7771, %v7774
      %v7776 = vrot.slane %v7775, 4
      %v7778 = vshll.u32 %v7489, 16
      %v7780 = vrot.slane %v7778, 5
      %v7781 = vsel %vm501, %v7776, %v7780
      %v7783 = vshrl.u32 %v7490, 16
      %v7785 = vrot.slane %v7783, 4
      %v7786 = vshll.u32 %v7490, 16
      %v7788 = vrot.slane %v7786, 5
      %v7789 = vor.u32 %v7785, %v7788
      %v7790 = vrot.slane %v7789, 4
      %v7792 = vshll.u32 %v7491, 16
      %v7794 = vrot.slane %v7792, 5
      %v7795 = vsel %vm501, %v7790, %v7794
      %v7797 = vshrl.u32 %v7492, 16
      %v7799 = vrot.slane %v7797, 4
      %v7800 = vshll.u32 %v7492, 16
      %v7802 = vrot.slane %v7800, 5
      %v7803 = vor.u32 %v7799, %v7802
      %v7804 = vrot.slane %v7803, 4
      %v7806 = vshll.u32 %v7493, 16
      %v7808 = vrot.slane %v7806, 5
      %v7809 = vsel %vm501, %v7804, %v7808
      %v7811 = vshrl.u32 %v7494, 16
      %v7813 = vrot.slane %v7811, 4
      %v7814 = vshll.u32 %v7494, 16
      %v7816 = vrot.slane %v7814, 5
      %v7817 = vor.u32 %v7813, %v7816
      %v7818 = vrot.slane %v7817, 4
      %v7820 = vshll.u32 %v7495, 16
      %v7822 = vrot.slane %v7820, 5
      %v7823 = vsel %vm501, %v7818, %v7822
      %v7825 = vshrl.u32 %v7496, 16
      %v7827 = vrot.slane %v7825, 4
      %v7828 = vshll.u32 %v7496, 16
      %v7830 = vrot.slane %v7828, 5
      %v7831 = vor.u32 %v7827, %v7830
      %v7832 = vrot.slane %v7831, 4
      %v7834 = vshll.u32 %v7497, 16
      %v7836 = vrot.slane %v7834, 5
      %v7837 = vsel %vm501, %v7832, %v7836
      %v7839 = vshrl.u32 %v7498, 16
      %v7841 = vrot.slane %v7839, 4
      %v7842 = vshll.u32 %v7498, 16
      %v7844 = vrot.slane %v7842, 5
      %v7845 = vor.u32 %v7841, %v7844
      %v7846 = vrot.slane %v7845, 4
      %v7848 = vshll.u32 %v7499, 16
      %v7850 = vrot.slane %v7848, 5
      %v7851 = vsel %vm501, %v7846, %v7850
      %v7853 = vshrl.u32 %v7500, 16
      %v7855 = vrot.slane %v7853, 4
      %v7856 = vshll.u32 %v7500, 16
      %v7858 = vrot.slane %v7856, 5
      %v7859 = vor.u32 %v7855, %v7858
      %v7860 = vrot.slane %v7859, 4
      %v7862 = vshll.u32 %v7501, 16
      %v7864 = vrot.slane %v7862, 5
      %v7865 = vsel %vm501, %v7860, %v7864
      %v7867 = vshrl.u32 %v7502, 16
      %v7869 = vrot.slane %v7867, 4
      %v7870 = vshll.u32 %v7502, 16
      %v7872 = vrot.slane %v7870, 5
      %v7873 = vor.u32 %v7869, %v7872
      %v7874 = vrot.slane %v7873, 4
      %v7876 = vshll.u32 %v7503, 16
      %v7878 = vrot.slane %v7876, 5
      %v7879 = vsel %vm501, %v7874, %v7878
      %v7881 = vshrl.u32 %v7504, 16
      %v7883 = vrot.slane %v7881, 4
      %v7884 = vshll.u32 %v7504, 16
      %v7886 = vrot.slane %v7884, 5
      %v7887 = vor.u32 %v7883, %v7886
      %v7888 = vrot.slane %v7887, 4
      %v7890 = vshll.u32 %v7505, 16
      %v7892 = vrot.slane %v7890, 5
      %v7893 = vsel %vm501, %v7888, %v7892
      %v7895 = vshrl.u32 %v7506, 16
      %v7897 = vrot.slane %v7895, 4
      %v7898 = vshll.u32 %v7506, 16
      %v7900 = vrot.slane %v7898, 5
      %v7901 = vor.u32 %v7897, %v7900
      %v7902 = vrot.slane %v7901, 4
      %v7904 = vshll.u32 %v7507, 16
      %v7906 = vrot.slane %v7904, 5
      %v7907 = vsel %vm501, %v7902, %v7906
      %v7909 = vshrl.u32 %v7508, 16
      %v7911 = vrot.slane %v7909, 4
      %v7912 = vshll.u32 %v7508, 16
      %v7914 = vrot.slane %v7912, 5
      %v7915 = vor.u32 %v7911, %v7914
      %v7916 = vrot.slane %v7915, 4
      %v7918 = vshll.u32 %v7509, 16
      %v7920 = vrot.slane %v7918, 5
      %v7921 = vsel %vm501, %v7916, %v7920
      %v7923 = vshrl.u32 %v7510, 16
      %v7925 = vrot.slane %v7923, 4
      %v7926 = vshll.u32 %v7510, 16
      %v7928 = vrot.slane %v7926, 5
      %v7929 = vor.u32 %v7925, %v7928
      %v7930 = vrot.slane %v7929, 4
      %v7932 = vshll.u32 %v7511, 16
      %v7934 = vrot.slane %v7932, 5
      %v7935 = vsel %vm501, %v7930, %v7934
      %v7937 = vshrl.u32 %v7512, 16
      %v7939 = vrot.slane %v7937, 4
      %v7940 = vshll.u32 %v7512, 16
      %v7942 = vrot.slane %v7940, 5
      %v7943 = vor.u32 %v7939, %v7942
      %v7944 = vrot.slane %v7943, 4
      %v7946 = vshll.u32 %v7513, 16
      %v7948 = vrot.slane %v7946, 5
      %v7949 = vsel %vm501, %v7944, %v7948
      %v7951 = vshrl.u32 %v7514, 16
      %v7953 = vrot.slane %v7951, 4
      %v7954 = vshll.u32 %v7514, 16
      %v7956 = vrot.slane %v7954, 5
      %v7957 = vor.u32 %v7953, %v7956
      %v7958 = vrot.slane %v7957, 4
      %v7960 = vshll.u32 %v7515, 16
      %v7962 = vrot.slane %v7960, 5
      %v7963 = vsel %vm501, %v7958, %v7962
      %v7964 = vunpack.c.l.b16 %v7529
      %v7965 = vunpack.c.l.b16 %v7543
      %v7966 = vunpack.c.l.b16 %v7557
      %v7967 = vunpack.c.l.b16 %v7571
      %v7968 = vunpack.c.l.b16 %v7585
      %v7969 = vunpack.c.l.b16 %v7599
      %v7970 = vunpack.c.l.b16 %v7613
      %v7971 = vunpack.c.l.b16 %v7627
      %v7972 = vunpack.c.l.b16 %v7641
      %v7973 = vunpack.c.l.b16 %v7655
      %v7974 = vunpack.c.l.b16 %v7669
      %v7975 = vunpack.c.l.b16 %v7683
      %v7976 = vunpack.c.l.b16 %v7697
      %v7977 = vunpack.c.l.b16 %v7711
      %v7978 = vunpack.c.l.b16 %v7725
      %v7979 = vunpack.c.l.b16 %v7739
      %v7980 = vunpack.c.l.b16 %v7753
      %v7981 = vunpack.c.l.b16 %v7767
      %v7982 = vunpack.c.l.b16 %v7781
      %v7983 = vunpack.c.l.b16 %v7795
      %v7984 = vunpack.c.l.b16 %v7809
      %v7985 = vunpack.c.l.b16 %v7823
      %v7986 = vunpack.c.l.b16 %v7837
      %v7987 = vunpack.c.l.b16 %v7851
      %v7988 = vunpack.c.l.b16 %v7865
      %v7989 = vunpack.c.l.b16 %v7879
      %v7990 = vunpack.c.l.b16 %v7893
      %v7991 = vunpack.c.l.b16 %v7907
      %v7992 = vunpack.c.l.b16 %v7921
      %v7993 = vunpack.c.l.b16 %v7935
      %v7994 = vunpack.c.l.b16 %v7949
      %v7995 = vunpack.c.l.b16 %v7963
      %v7996 = vpack.c.b16 %v7965, %v7964
      %v7997 = vpack.c.b16 %v7967, %v7966
      %v7998 = vpack.c.b16 %v7969, %v7968
      %v7999 = vpack.c.b16 %v7971, %v7970
      %v8000 = vpack.c.b16 %v7973, %v7972
      %v8001 = vpack.c.b16 %v7975, %v7974
      %v8002 = vpack.c.b16 %v7977, %v7976
      %v8003 = vpack.c.b16 %v7979, %v7978
      %v8004 = vpack.c.b16 %v7981, %v7980
      %v8005 = vpack.c.b16 %v7983, %v7982
      %v8006 = vpack.c.b16 %v7985, %v7984
      %v8007 = vpack.c.b16 %v7987, %v7986
      %v8008 = vpack.c.b16 %v7989, %v7988
      %v8009 = vpack.c.b16 %v7991, %v7990
      %v8010 = vpack.c.b16 %v7993, %v7992
      %v8011 = vpack.c.b16 %v7995, %v7994
      %8012 = vrot.lane.b32.xlu0 %v7996, 24
      %v8013 = vpop.permute.xlu0 %8012
      %8014 = vrot.lane.b32.xlu0 %v7997, 24
      %v8015 = vpop.permute.xlu0 %8014
      %8016 = vrot.lane.b32.xlu0 %v7998, 24
      %v8017 = vpop.permute.xlu0 %8016
      %8018 = vrot.lane.b32.xlu0 %v7999, 24
      %v8019 = vpop.permute.xlu0 %8018
      %8020 = vrot.lane.b32.xlu0 %v8000, 24
      %v8021 = vpop.permute.xlu0 %8020
      %8022 = vrot.lane.b32.xlu0 %v8001, 24
      %v8023 = vpop.permute.xlu0 %8022
      %8024 = vrot.lane.b32.xlu0 %v8002, 24
      %v8025 = vpop.permute.xlu0 %8024
      %8026 = vrot.lane.b32.xlu0 %v8003, 24
      %v8027 = vpop.permute.xlu0 %8026
      %8028 = vrot.lane.b32.xlu0 %v8004, 24
      %v8029 = vpop.permute.xlu0 %8028
      %8030 = vrot.lane.b32.xlu0 %v8005, 24
      %v8031 = vpop.permute.xlu0 %8030
      %8032 = vrot.lane.b32.xlu0 %v8006, 24
      %v8033 = vpop.permute.xlu0 %8032
      %8034 = vrot.lane.b32.xlu0 %v8007, 24
      %v8035 = vpop.permute.xlu0 %8034
      %8036 = vrot.lane.b32.xlu0 %v8008, 24
      %v8037 = vpop.permute.xlu0 %8036
      %8038 = vrot.lane.b32.xlu0 %v8009, 24
      %v8039 = vpop.permute.xlu0 %8038
      %8040 = vrot.lane.b32.xlu0 %v8010, 24
      %v8041 = vpop.permute.xlu0 %8040
      %8042 = vrot.lane.b32.xlu0 %v8011, 24
      %v8043 = vpop.permute.xlu0 %8042
      %8060 = vst.msk [vmem:[#allocation2 + $0x8] sm:$0xff] %vm1598, %v8013
      %8061 = vst.msk [vmem:[#allocation2 + $0x18] sm:$0xff] %vm1598, %v8015
      %8062 = vst.msk [vmem:[#allocation2 + $0x28] sm:$0xff] %vm1598, %v8017
      %8063 = vst.msk [vmem:[#allocation2 + $0x38] sm:$0xff] %vm1598, %v8019
      %8064 = vst.msk [vmem:[#allocation2 + $0x48] sm:$0xff] %vm1598, %v8021
      %8065 = vst.msk [vmem:[#allocation2 + $0x58] sm:$0xff] %vm1598, %v8023
      %8066 = vst.msk [vmem:[#allocation2 + $0x68] sm:$0xff] %vm1598, %v8025
      %8067 = vst.msk [vmem:[#allocation2 + $0x78] sm:$0xff] %vm1598, %v8027
      %8068 = vst.msk [vmem:[#allocation2 + $0x88] sm:$0xff] %vm1598, %v8029
      %8069 = vst.msk [vmem:[#allocation2 + $0x98] sm:$0xff] %vm1598, %v8031
      %8070 = vst.msk [vmem:[#allocation2 + $0xa8] sm:$0xff] %vm1598, %v8033
      %8071 = vst.msk [vmem:[#allocation2 + $0xb8] sm:$0xff] %vm1598, %v8035
      %8072 = vst.msk [vmem:[#allocation2 + $0xc8] sm:$0xff] %vm1598, %v8037
      %8073 = vst.msk [vmem:[#allocation2 + $0xd8] sm:$0xff] %vm1598, %v8039
      %8074 = vst.msk [vmem:[#allocation2 + $0xe8] sm:$0xff] %vm1598, %v8041
      %8075 = vst.msk [vmem:[#allocation2 + $0xf8] sm:$0xff] %vm1598, %v8043
      %v8076 = vld [vmem:[%s7275] sm:$0xe]
      %v8077 = vld [vmem:[%s7275 + $0x4] sm:$0x1]
      %v8078 = vld [vmem:[%s7275 + $0x8] sm:$0xe]
      %v8079 = vld [vmem:[%s7275 + $0xc] sm:$0x1]
      %v8080 = vld [vmem:[%s7275 + $0x10] sm:$0xe]
      %v8081 = vld [vmem:[%s7275 + $0x14] sm:$0x1]
      %v8082 = vld [vmem:[%s7275 + $0x18] sm:$0xe]
      %v8083 = vld [vmem:[%s7275 + $0x1c] sm:$0x1]
      %v8084 = vld [vmem:[%s7275 + $0x20] sm:$0xe]
      %v8085 = vld [vmem:[%s7275 + $0x24] sm:$0x1]
      %v8086 = vld [vmem:[%s7275 + $0x28] sm:$0xe]
      %v8087 = vld [vmem:[%s7275 + $0x2c] sm:$0x1]
      %v8088 = vld [vmem:[%s7275 + $0x30] sm:$0xe]
      %v8089 = vld [vmem:[%s7275 + $0x34] sm:$0x1]
      %v8090 = vld [vmem:[%s7275 + $0x38] sm:$0xe]
      %v8091 = vld [vmem:[%s7275 + $0x3c] sm:$0x1]
      %v8092 = vld [vmem:[%s7275 + $0x50] sm:$0xe]
      %v8093 = vld [vmem:[%s7275 + $0x54] sm:$0x1]
      %v8094 = vld [vmem:[%s7275 + $0x58] sm:$0xe]
      %v8095 = vld [vmem:[%s7275 + $0x5c] sm:$0x1]
      %v8096 = vld [vmem:[%s7275 + $0x60] sm:$0xe]
      %v8097 = vld [vmem:[%s7275 + $0x64] sm:$0x1]
      %v8098 = vld [vmem:[%s7275 + $0x68] sm:$0xe]
      %v8099 = vld [vmem:[%s7275 + $0x6c] sm:$0x1]
      %v8100 = vld [vmem:[%s7275 + $0x70] sm:$0xe]
      %v8101 = vld [vmem:[%s7275 + $0x74] sm:$0x1]
      %v8102 = vld [vmem:[%s7275 + $0x78] sm:$0xe]
      %v8103 = vld [vmem:[%s7275 + $0x7c] sm:$0x1]
      %v8104 = vld [vmem:[%s7275 + $0x80] sm:$0xe]
      %v8105 = vld [vmem:[%s7275 + $0x84] sm:$0x1]
      %v8106 = vld [vmem:[%s7275 + $0x88] sm:$0xe]
      %v8107 = vld [vmem:[%s7275 + $0x8c] sm:$0x1]
      %v8108 = vld [vmem:[%s7275 + $0xa0] sm:$0xe]
      %v8109 = vld [vmem:[%s7275 + $0xa4] sm:$0x1]
      %v8110 = vld [vmem:[%s7275 + $0xa8] sm:$0xe]
      %v8111 = vld [vmem:[%s7275 + $0xac] sm:$0x1]
      %v8112 = vld [vmem:[%s7275 + $0xb0] sm:$0xe]
      %v8113 = vld [vmem:[%s7275 + $0xb4] sm:$0x1]
      %v8114 = vld [vmem:[%s7275 + $0xb8] sm:$0xe]
      %v8115 = vld [vmem:[%s7275 + $0xbc] sm:$0x1]
      %v8116 = vld [vmem:[%s7275 + $0xc0] sm:$0xe]
      %v8117 = vld [vmem:[%s7275 + $0xc4] sm:$0x1]
      %v8118 = vld [vmem:[%s7275 + $0xc8] sm:$0xe]
      %v8119 = vld [vmem:[%s7275 + $0xcc] sm:$0x1]
      %v8120 = vld [vmem:[%s7275 + $0xd0] sm:$0xe]
      %v8121 = vld [vmem:[%s7275 + $0xd4] sm:$0x1]
      %v8122 = vld [vmem:[%s7275 + $0xd8] sm:$0xe]
      %v8123 = vld [vmem:[%s7275 + $0xdc] sm:$0x1]
      %v8124 = vld [vmem:[%s7275 + $0xf0] sm:$0xe]
      %v8125 = vld [vmem:[%s7275 + $0xf4] sm:$0x1]
      %v8126 = vld [vmem:[%s7275 + $0xf8] sm:$0xe]
      %v8127 = vld [vmem:[%s7275 + $0xfc] sm:$0x1]
      %v8128 = vld [vmem:[%s7275 + $0x100] sm:$0xe]
      %v8129 = vld [vmem:[%s7275 + $0x104] sm:$0x1]
      %v8130 = vld [vmem:[%s7275 + $0x108] sm:$0xe]
      %v8131 = vld [vmem:[%s7275 + $0x10c] sm:$0x1]
      %v8132 = vld [vmem:[%s7275 + $0x110] sm:$0xe]
      %v8133 = vld [vmem:[%s7275 + $0x114] sm:$0x1]
      %v8134 = vld [vmem:[%s7275 + $0x118] sm:$0xe]
      %v8135 = vld [vmem:[%s7275 + $0x11c] sm:$0x1]
      %v8136 = vld [vmem:[%s7275 + $0x120] sm:$0xe]
      %v8137 = vld [vmem:[%s7275 + $0x124] sm:$0x1]
      %v8138 = vld [vmem:[%s7275 + $0x128] sm:$0xe]
      %v8139 = vld [vmem:[%s7275 + $0x12c] sm:$0x1]
      %v8204 = vrot.slane %v8076, 5
      %v8205 = vrot.slane %v8204, 4
      %v8206 = vrot.slane %v8077, 5
      %v8207 = vsel %vm1193, %v8205, %v8206
      %v8208 = vrot.slane %v8078, 5
      %v8209 = vrot.slane %v8208, 4
      %v8210 = vrot.slane %v8079, 5
      %v8211 = vsel %vm1193, %v8209, %v8210
      %v8212 = vrot.slane %v8080, 5
      %v8213 = vrot.slane %v8212, 4
      %v8214 = vrot.slane %v8081, 5
      %v8215 = vsel %vm1193, %v8213, %v8214
      %v8216 = vrot.slane %v8082, 5
      %v8217 = vrot.slane %v8216, 4
      %v8218 = vrot.slane %v8083, 5
      %v8219 = vsel %vm1193, %v8217, %v8218
      %v8220 = vrot.slane %v8084, 5
      %v8221 = vrot.slane %v8220, 4
      %v8222 = vrot.slane %v8085, 5
      %v8223 = vsel %vm1193, %v8221, %v8222
      %v8224 = vrot.slane %v8086, 5
      %v8225 = vrot.slane %v8224, 4
      %v8226 = vrot.slane %v8087, 5
      %v8227 = vsel %vm1193, %v8225, %v8226
      %v8228 = vrot.slane %v8088, 5
      %v8229 = vrot.slane %v8228, 4
      %v8230 = vrot.slane %v8089, 5
      %v8231 = vsel %vm1193, %v8229, %v8230
      %v8232 = vrot.slane %v8090, 5
      %v8233 = vrot.slane %v8232, 4
      %v8234 = vrot.slane %v8091, 5
      %v8235 = vsel %vm1193, %v8233, %v8234
      %v8236 = vrot.slane %v8092, 5
      %v8237 = vrot.slane %v8236, 4
      %v8238 = vrot.slane %v8093, 5
      %v8239 = vsel %vm1193, %v8237, %v8238
      %v8240 = vrot.slane %v8094, 5
      %v8241 = vrot.slane %v8240, 4
      %v8242 = vrot.slane %v8095, 5
      %v8243 = vsel %vm1193, %v8241, %v8242
      %v8244 = vrot.slane %v8096, 5
      %v8245 = vrot.slane %v8244, 4
      %v8246 = vrot.slane %v8097, 5
      %v8247 = vsel %vm1193, %v8245, %v8246
      %v8248 = vrot.slane %v8098, 5
      %v8249 = vrot.slane %v8248, 4
      %v8250 = vrot.slane %v8099, 5
      %v8251 = vsel %vm1193, %v8249, %v8250
      %v8252 = vrot.slane %v8100, 5
      %v8253 = vrot.slane %v8252, 4
      %v8254 = vrot.slane %v8101, 5
      %v8255 = vsel %vm1193, %v8253, %v8254
      %v8256 = vrot.slane %v8102, 5
      %v8257 = vrot.slane %v8256, 4
      %v8258 = vrot.slane %v8103, 5
      %v8259 = vsel %vm1193, %v8257, %v8258
      %v8260 = vrot.slane %v8104, 5
      %v8261 = vrot.slane %v8260, 4
      %v8262 = vrot.slane %v8105, 5
      %v8263 = vsel %vm1193, %v8261, %v8262
      %v8264 = vrot.slane %v8106, 5
      %v8265 = vrot.slane %v8264, 4
      %v8266 = vrot.slane %v8107, 5
      %v8267 = vsel %vm1193, %v8265, %v8266
      %v8268 = vrot.slane %v8108, 5
      %v8269 = vrot.slane %v8268, 4
      %v8270 = vrot.slane %v8109, 5
      %v8271 = vsel %vm1193, %v8269, %v8270
      %v8272 = vrot.slane %v8110, 5
      %v8273 = vrot.slane %v8272, 4
      %v8274 = vrot.slane %v8111, 5
      %v8275 = vsel %vm1193, %v8273, %v8274
      %v8276 = vrot.slane %v8112, 5
      %v8277 = vrot.slane %v8276, 4
      %v8278 = vrot.slane %v8113, 5
      %v8279 = vsel %vm1193, %v8277, %v8278
      %v8280 = vrot.slane %v8114, 5
      %v8281 = vrot.slane %v8280, 4
      %v8282 = vrot.slane %v8115, 5
      %v8283 = vsel %vm1193, %v8281, %v8282
      %v8284 = vrot.slane %v8116, 5
      %v8285 = vrot.slane %v8284, 4
      %v8286 = vrot.slane %v8117, 5
      %v8287 = vsel %vm1193, %v8285, %v8286
      %v8288 = vrot.slane %v8118, 5
      %v8289 = vrot.slane %v8288, 4
      %v8290 = vrot.slane %v8119, 5
      %v8291 = vsel %vm1193, %v8289, %v8290
      %v8292 = vrot.slane %v8120, 5
      %v8293 = vrot.slane %v8292, 4
      %v8294 = vrot.slane %v8121, 5
      %v8295 = vsel %vm1193, %v8293, %v8294
      %v8296 = vrot.slane %v8122, 5
      %v8297 = vrot.slane %v8296, 4
      %v8298 = vrot.slane %v8123, 5
      %v8299 = vsel %vm1193, %v8297, %v8298
      %v8300 = vrot.slane %v8124, 5
      %v8301 = vrot.slane %v8300, 4
      %v8302 = vrot.slane %v8125, 5
      %v8303 = vsel %vm1193, %v8301, %v8302
      %v8304 = vrot.slane %v8126, 5
      %v8305 = vrot.slane %v8304, 4
      %v8306 = vrot.slane %v8127, 5
      %v8307 = vsel %vm1193, %v8305, %v8306
      %v8308 = vrot.slane %v8128, 5
      %v8309 = vrot.slane %v8308, 4
      %v8310 = vrot.slane %v8129, 5
      %v8311 = vsel %vm1193, %v8309, %v8310
      %v8312 = vrot.slane %v8130, 5
      %v8313 = vrot.slane %v8312, 4
      %v8314 = vrot.slane %v8131, 5
      %v8315 = vsel %vm1193, %v8313, %v8314
      %v8316 = vrot.slane %v8132, 5
      %v8317 = vrot.slane %v8316, 4
      %v8318 = vrot.slane %v8133, 5
      %v8319 = vsel %vm1193, %v8317, %v8318
      %v8320 = vrot.slane %v8134, 5
      %v8321 = vrot.slane %v8320, 4
      %v8322 = vrot.slane %v8135, 5
      %v8323 = vsel %vm1193, %v8321, %v8322
      %v8324 = vrot.slane %v8136, 5
      %v8325 = vrot.slane %v8324, 4
      %v8326 = vrot.slane %v8137, 5
      %v8327 = vsel %vm1193, %v8325, %v8326
      %v8328 = vrot.slane %v8138, 5
      %v8329 = vrot.slane %v8328, 4
      %v8330 = vrot.slane %v8139, 5
      %v8331 = vsel %vm1193, %v8329, %v8330
      %v8332 = vunpack.c.l.b16 %v8207
      %v8333 = vunpack.c.l.b16 %v8211
      %v8334 = vunpack.c.l.b16 %v8215
      %v8335 = vunpack.c.l.b16 %v8219
      %v8336 = vunpack.c.l.b16 %v8223
      %v8337 = vunpack.c.l.b16 %v8227
      %v8338 = vunpack.c.l.b16 %v8231
      %v8339 = vunpack.c.l.b16 %v8235
      %v8340 = vunpack.c.l.b16 %v8239
      %v8341 = vunpack.c.l.b16 %v8243
      %v8342 = vunpack.c.l.b16 %v8247
      %v8343 = vunpack.c.l.b16 %v8251
      %v8344 = vunpack.c.l.b16 %v8255
      %v8345 = vunpack.c.l.b16 %v8259
      %v8346 = vunpack.c.l.b16 %v8263
      %v8347 = vunpack.c.l.b16 %v8267
      %v8348 = vunpack.c.l.b16 %v8271
      %v8349 = vunpack.c.l.b16 %v8275
      %v8350 = vunpack.c.l.b16 %v8279
      %v8351 = vunpack.c.l.b16 %v8283
      %v8352 = vunpack.c.l.b16 %v8287
      %v8353 = vunpack.c.l.b16 %v8291
      %v8354 = vunpack.c.l.b16 %v8295
      %v8355 = vunpack.c.l.b16 %v8299
      %v8356 = vunpack.c.l.b16 %v8303
      %v8357 = vunpack.c.l.b16 %v8307
      %v8358 = vunpack.c.l.b16 %v8311
      %v8359 = vunpack.c.l.b16 %v8315
      %v8360 = vunpack.c.l.b16 %v8319
      %v8361 = vunpack.c.l.b16 %v8323
      %v8362 = vunpack.c.l.b16 %v8327
      %v8363 = vunpack.c.l.b16 %v8331
      %v8364 = vpack.c.b16 %v8333, %v8332
      %v8365 = vpack.c.b16 %v8335, %v8334
      %v8366 = vpack.c.b16 %v8337, %v8336
      %v8367 = vpack.c.b16 %v8339, %v8338
      %v8368 = vpack.c.b16 %v8341, %v8340
      %v8369 = vpack.c.b16 %v8343, %v8342
      %v8370 = vpack.c.b16 %v8345, %v8344
      %v8371 = vpack.c.b16 %v8347, %v8346
      %v8372 = vpack.c.b16 %v8349, %v8348
      %v8373 = vpack.c.b16 %v8351, %v8350
      %v8374 = vpack.c.b16 %v8353, %v8352
      %v8375 = vpack.c.b16 %v8355, %v8354
      %v8376 = vpack.c.b16 %v8357, %v8356
      %v8377 = vpack.c.b16 %v8359, %v8358
      %v8378 = vpack.c.b16 %v8361, %v8360
      %v8379 = vpack.c.b16 %v8363, %v8362
      %8380 = vrot.lane.b32.xlu0 %v8364, 32
      %v8381 = vpop.permute.xlu0 %8380
      %8382 = vrot.lane.b32.xlu0 %v8365, 32
      %v8383 = vpop.permute.xlu0 %8382
      %8384 = vrot.lane.b32.xlu0 %v8366, 32
      %v8385 = vpop.permute.xlu0 %8384
      %8386 = vrot.lane.b32.xlu0 %v8367, 32
      %v8387 = vpop.permute.xlu0 %8386
      %8388 = vrot.lane.b32.xlu0 %v8368, 32
      %v8389 = vpop.permute.xlu0 %8388
      %8390 = vrot.lane.b32.xlu0 %v8369, 32
      %v8391 = vpop.permute.xlu0 %8390
      %8392 = vrot.lane.b32.xlu0 %v8370, 32
      %v8393 = vpop.permute.xlu0 %8392
      %8394 = vrot.lane.b32.xlu0 %v8371, 32
      %v8395 = vpop.permute.xlu0 %8394
      %8396 = vrot.lane.b32.xlu0 %v8372, 32
      %v8397 = vpop.permute.xlu0 %8396
      %8398 = vrot.lane.b32.xlu0 %v8373, 32
      %v8399 = vpop.permute.xlu0 %8398
      %8400 = vrot.lane.b32.xlu0 %v8374, 32
      %v8401 = vpop.permute.xlu0 %8400
      %8402 = vrot.lane.b32.xlu0 %v8375, 32
      %v8403 = vpop.permute.xlu0 %8402
      %8404 = vrot.lane.b32.xlu0 %v8376, 32
      %v8405 = vpop.permute.xlu0 %8404
      %8406 = vrot.lane.b32.xlu0 %v8377, 32
      %v8407 = vpop.permute.xlu0 %8406
      %8408 = vrot.lane.b32.xlu0 %v8378, 32
      %v8409 = vpop.permute.xlu0 %8408
      %8410 = vrot.lane.b32.xlu0 %v8379, 32
      %v8411 = vpop.permute.xlu0 %8410
      %8428 = vst.msk [vmem:[#allocation2 + $0x8] sm:$0xff] %vm2223, %v8381
      %8429 = vst.msk [vmem:[#allocation2 + $0x18] sm:$0xff] %vm2223, %v8383
      %8430 = vst.msk [vmem:[#allocation2 + $0x28] sm:$0xff] %vm2223, %v8385
      %8431 = vst.msk [vmem:[#allocation2 + $0x38] sm:$0xff] %vm2223, %v8387
      %8432 = vst.msk [vmem:[#allocation2 + $0x48] sm:$0xff] %vm2223, %v8389
      %8433 = vst.msk [vmem:[#allocation2 + $0x58] sm:$0xff] %vm2223, %v8391
      %8434 = vst.msk [vmem:[#allocation2 + $0x68] sm:$0xff] %vm2223, %v8393
      %8435 = vst.msk [vmem:[#allocation2 + $0x78] sm:$0xff] %vm2223, %v8395
      %8436 = vst.msk [vmem:[#allocation2 + $0x88] sm:$0xff] %vm2223, %v8397
      %8437 = vst.msk [vmem:[#allocation2 + $0x98] sm:$0xff] %vm2223, %v8399
      %8438 = vst.msk [vmem:[#allocation2 + $0xa8] sm:$0xff] %vm2223, %v8401
      %8439 = vst.msk [vmem:[#allocation2 + $0xb8] sm:$0xff] %vm2223, %v8403
      %8440 = vst.msk [vmem:[#allocation2 + $0xc8] sm:$0xff] %vm2223, %v8405
      %8441 = vst.msk [vmem:[#allocation2 + $0xd8] sm:$0xff] %vm2223, %v8407
      %8442 = vst.msk [vmem:[#allocation2 + $0xe8] sm:$0xff] %vm2223, %v8409
      %8443 = vst.msk [vmem:[#allocation2 + $0xf8] sm:$0xff] %vm2223, %v8411
      %s8444 = sadd.s32 2, %s7273
      %s8445 = smul.addr %s8444, 4
      %s8446 = scalar_lea.vmem %s260, %s8445
      %v8447 = vld [vmem:[%s8446] sm:$0xf]
      %v8448 = vld [vmem:[%s8446 + $0x8] sm:$0xf]
      %v8449 = vld [vmem:[%s8446 + $0x10] sm:$0xf]
      %v8450 = vld [vmem:[%s8446 + $0x18] sm:$0xf]
      %v8451 = vld [vmem:[%s8446 + $0x20] sm:$0xf]
      %v8452 = vld [vmem:[%s8446 + $0x28] sm:$0xf]
      %v8453 = vld [vmem:[%s8446 + $0x30] sm:$0xf]
      %v8454 = vld [vmem:[%s8446 + $0x38] sm:$0xf]
      %v8455 = vld [vmem:[%s8446 + $0x50] sm:$0xf]
      %v8456 = vld [vmem:[%s8446 + $0x58] sm:$0xf]
      %v8457 = vld [vmem:[%s8446 + $0x60] sm:$0xf]
      %v8458 = vld [vmem:[%s8446 + $0x68] sm:$0xf]
      %v8459 = vld [vmem:[%s8446 + $0x70] sm:$0xf]
      %v8460 = vld [vmem:[%s8446 + $0x78] sm:$0xf]
      %v8461 = vld [vmem:[%s8446 + $0x80] sm:$0xf]
      %v8462 = vld [vmem:[%s8446 + $0x88] sm:$0xf]
      %v8463 = vld [vmem:[%s8446 + $0xa0] sm:$0xf]
      %v8464 = vld [vmem:[%s8446 + $0xa8] sm:$0xf]
      %v8465 = vld [vmem:[%s8446 + $0xb0] sm:$0xf]
      %v8466 = vld [vmem:[%s8446 + $0xb8] sm:$0xf]
      %v8467 = vld [vmem:[%s8446 + $0xc0] sm:$0xf]
      %v8468 = vld [vmem:[%s8446 + $0xc8] sm:$0xf]
      %v8469 = vld [vmem:[%s8446 + $0xd0] sm:$0xf]
      %v8470 = vld [vmem:[%s8446 + $0xd8] sm:$0xf]
      %v8471 = vld [vmem:[%s8446 + $0xf0] sm:$0xf]
      %v8472 = vld [vmem:[%s8446 + $0xf8] sm:$0xf]
      %v8473 = vld [vmem:[%s8446 + $0x100] sm:$0xf]
      %v8474 = vld [vmem:[%s8446 + $0x108] sm:$0xf]
      %v8475 = vld [vmem:[%s8446 + $0x110] sm:$0xf]
      %v8476 = vld [vmem:[%s8446 + $0x118] sm:$0xf]
      %v8477 = vld [vmem:[%s8446 + $0x120] sm:$0xf]
      %v8478 = vld [vmem:[%s8446 + $0x128] sm:$0xf]
      %v8511 = vunpack.c.l.b16 %v8447
      %v8512 = vunpack.c.l.b16 %v8448
      %v8513 = vunpack.c.l.b16 %v8449
      %v8514 = vunpack.c.l.b16 %v8450
      %v8515 = vunpack.c.l.b16 %v8451
      %v8516 = vunpack.c.l.b16 %v8452
      %v8517 = vunpack.c.l.b16 %v8453
      %v8518 = vunpack.c.l.b16 %v8454
      %v8519 = vunpack.c.l.b16 %v8455
      %v8520 = vunpack.c.l.b16 %v8456
      %v8521 = vunpack.c.l.b16 %v8457
      %v8522 = vunpack.c.l.b16 %v8458
      %v8523 = vunpack.c.l.b16 %v8459
      %v8524 = vunpack.c.l.b16 %v8460
      %v8525 = vunpack.c.l.b16 %v8461
      %v8526 = vunpack.c.l.b16 %v8462
      %v8527 = vunpack.c.l.b16 %v8463
      %v8528 = vunpack.c.l.b16 %v8464
      %v8529 = vunpack.c.l.b16 %v8465
      %v8530 = vunpack.c.l.b16 %v8466
      %v8531 = vunpack.c.l.b16 %v8467
      %v8532 = vunpack.c.l.b16 %v8468
      %v8533 = vunpack.c.l.b16 %v8469
      %v8534 = vunpack.c.l.b16 %v8470
      %v8535 = vunpack.c.l.b16 %v8471
      %v8536 = vunpack.c.l.b16 %v8472
      %v8537 = vunpack.c.l.b16 %v8473
      %v8538 = vunpack.c.l.b16 %v8474
      %v8539 = vunpack.c.l.b16 %v8475
      %v8540 = vunpack.c.l.b16 %v8476
      %v8541 = vunpack.c.l.b16 %v8477
      %v8542 = vunpack.c.l.b16 %v8478
      %v8543 = vpack.c.b16 %v8512, %v8511
      %v8544 = vpack.c.b16 %v8514, %v8513
      %v8545 = vpack.c.b16 %v8516, %v8515
      %v8546 = vpack.c.b16 %v8518, %v8517
      %v8547 = vpack.c.b16 %v8520, %v8519
      %v8548 = vpack.c.b16 %v8522, %v8521
      %v8549 = vpack.c.b16 %v8524, %v8523
      %v8550 = vpack.c.b16 %v8526, %v8525
      %v8551 = vpack.c.b16 %v8528, %v8527
      %v8552 = vpack.c.b16 %v8530, %v8529
      %v8553 = vpack.c.b16 %v8532, %v8531
      %v8554 = vpack.c.b16 %v8534, %v8533
      %v8555 = vpack.c.b16 %v8536, %v8535
      %v8556 = vpack.c.b16 %v8538, %v8537
      %v8557 = vpack.c.b16 %v8540, %v8539
      %v8558 = vpack.c.b16 %v8542, %v8541
      %8559 = vrot.lane.b32.xlu0 %v8543, 40
      %v8560 = vpop.permute.xlu0 %8559
      %8561 = vrot.lane.b32.xlu0 %v8544, 40
      %v8562 = vpop.permute.xlu0 %8561
      %8563 = vrot.lane.b32.xlu0 %v8545, 40
      %v8564 = vpop.permute.xlu0 %8563
      %8565 = vrot.lane.b32.xlu0 %v8546, 40
      %v8566 = vpop.permute.xlu0 %8565
      %8567 = vrot.lane.b32.xlu0 %v8547, 40
      %v8568 = vpop.permute.xlu0 %8567
      %8569 = vrot.lane.b32.xlu0 %v8548, 40
      %v8570 = vpop.permute.xlu0 %8569
      %8571 = vrot.lane.b32.xlu0 %v8549, 40
      %v8572 = vpop.permute.xlu0 %8571
      %8573 = vrot.lane.b32.xlu0 %v8550, 40
      %v8574 = vpop.permute.xlu0 %8573
      %8575 = vrot.lane.b32.xlu0 %v8551, 40
      %v8576 = vpop.permute.xlu0 %8575
      %8577 = vrot.lane.b32.xlu0 %v8552, 40
      %v8578 = vpop.permute.xlu0 %8577
      %8579 = vrot.lane.b32.xlu0 %v8553, 40
      %v8580 = vpop.permute.xlu0 %8579
      %8581 = vrot.lane.b32.xlu0 %v8554, 40
      %v8582 = vpop.permute.xlu0 %8581
      %8583 = vrot.lane.b32.xlu0 %v8555, 40
      %v8584 = vpop.permute.xlu0 %8583
      %8585 = vrot.lane.b32.xlu0 %v8556, 40
      %v8586 = vpop.permute.xlu0 %8585
      %8587 = vrot.lane.b32.xlu0 %v8557, 40
      %v8588 = vpop.permute.xlu0 %8587
      %8589 = vrot.lane.b32.xlu0 %v8558, 40
      %v8590 = vpop.permute.xlu0 %8589
      %8607 = vst.msk [vmem:[#allocation2 + $0x8] sm:$0xff] %vm2592, %v8560
      %8608 = vst.msk [vmem:[#allocation2 + $0x18] sm:$0xff] %vm2592, %v8562
      %8609 = vst.msk [vmem:[#allocation2 + $0x28] sm:$0xff] %vm2592, %v8564
      %8610 = vst.msk [vmem:[#allocation2 + $0x38] sm:$0xff] %vm2592, %v8566
      %8611 = vst.msk [vmem:[#allocation2 + $0x48] sm:$0xff] %vm2592, %v8568
      %8612 = vst.msk [vmem:[#allocation2 + $0x58] sm:$0xff] %vm2592, %v8570
      %8613 = vst.msk [vmem:[#allocation2 + $0x68] sm:$0xff] %vm2592, %v8572
      %8614 = vst.msk [vmem:[#allocation2 + $0x78] sm:$0xff] %vm2592, %v8574
      %8615 = vst.msk [vmem:[#allocation2 + $0x88] sm:$0xff] %vm2592, %v8576
      %8616 = vst.msk [vmem:[#allocation2 + $0x98] sm:$0xff] %vm2592, %v8578
      %8617 = vst.msk [vmem:[#allocation2 + $0xa8] sm:$0xff] %vm2592, %v8580
      %8618 = vst.msk [vmem:[#allocation2 + $0xb8] sm:$0xff] %vm2592, %v8582
      %8619 = vst.msk [vmem:[#allocation2 + $0xc8] sm:$0xff] %vm2592, %v8584
      %8620 = vst.msk [vmem:[#allocation2 + $0xd8] sm:$0xff] %vm2592, %v8586
      %8621 = vst.msk [vmem:[#allocation2 + $0xe8] sm:$0xff] %vm2592, %v8588
      %8622 = vst.msk [vmem:[#allocation2 + $0xf8] sm:$0xff] %vm2592, %v8590
      %v8623 = vld [vmem:[%s8446] sm:$0xf]
      %v8624 = vld [vmem:[%s8446 + $0x4] sm:$0x1]
      %v8625 = vld [vmem:[%s8446 + $0x8] sm:$0xf]
      %v8626 = vld [vmem:[%s8446 + $0xc] sm:$0x1]
      %v8627 = vld [vmem:[%s8446 + $0x10] sm:$0xf]
      %v8628 = vld [vmem:[%s8446 + $0x14] sm:$0x1]
      %v8629 = vld [vmem:[%s8446 + $0x18] sm:$0xf]
      %v8630 = vld [vmem:[%s8446 + $0x1c] sm:$0x1]
      %v8631 = vld [vmem:[%s8446 + $0x20] sm:$0xf]
      %v8632 = vld [vmem:[%s8446 + $0x24] sm:$0x1]
      %v8633 = vld [vmem:[%s8446 + $0x28] sm:$0xf]
      %v8634 = vld [vmem:[%s8446 + $0x2c] sm:$0x1]
      %v8635 = vld [vmem:[%s8446 + $0x30] sm:$0xf]
      %v8636 = vld [vmem:[%s8446 + $0x34] sm:$0x1]
      %v8637 = vld [vmem:[%s8446 + $0x38] sm:$0xf]
      %v8638 = vld [vmem:[%s8446 + $0x3c] sm:$0x1]
      %v8639 = vld [vmem:[%s8446 + $0x50] sm:$0xf]
      %v8640 = vld [vmem:[%s8446 + $0x54] sm:$0x1]
      %v8641 = vld [vmem:[%s8446 + $0x58] sm:$0xf]
      %v8642 = vld [vmem:[%s8446 + $0x5c] sm:$0x1]
      %v8643 = vld [vmem:[%s8446 + $0x60] sm:$0xf]
      %v8644 = vld [vmem:[%s8446 + $0x64] sm:$0x1]
      %v8645 = vld [vmem:[%s8446 + $0x68] sm:$0xf]
      %v8646 = vld [vmem:[%s8446 + $0x6c] sm:$0x1]
      %v8647 = vld [vmem:[%s8446 + $0x70] sm:$0xf]
      %v8648 = vld [vmem:[%s8446 + $0x74] sm:$0x1]
      %v8649 = vld [vmem:[%s8446 + $0x78] sm:$0xf]
      %v8650 = vld [vmem:[%s8446 + $0x7c] sm:$0x1]
      %v8651 = vld [vmem:[%s8446 + $0x80] sm:$0xf]
      %v8652 = vld [vmem:[%s8446 + $0x84] sm:$0x1]
      %v8653 = vld [vmem:[%s8446 + $0x88] sm:$0xf]
      %v8654 = vld [vmem:[%s8446 + $0x8c] sm:$0x1]
      %v8655 = vld [vmem:[%s8446 + $0xa0] sm:$0xf]
      %v8656 = vld [vmem:[%s8446 + $0xa4] sm:$0x1]
      %v8657 = vld [vmem:[%s8446 + $0xa8] sm:$0xf]
      %v8658 = vld [vmem:[%s8446 + $0xac] sm:$0x1]
      %v8659 = vld [vmem:[%s8446 + $0xb0] sm:$0xf]
      %v8660 = vld [vmem:[%s8446 + $0xb4] sm:$0x1]
      %v8661 = vld [vmem:[%s8446 + $0xb8] sm:$0xf]
      %v8662 = vld [vmem:[%s8446 + $0xbc] sm:$0x1]
      %v8663 = vld [vmem:[%s8446 + $0xc0] sm:$0xf]
      %v8664 = vld [vmem:[%s8446 + $0xc4] sm:$0x1]
      %v8665 = vld [vmem:[%s8446 + $0xc8] sm:$0xf]
      %v8666 = vld [vmem:[%s8446 + $0xcc] sm:$0x1]
      %v8667 = vld [vmem:[%s8446 + $0xd0] sm:$0xf]
      %v8668 = vld [vmem:[%s8446 + $0xd4] sm:$0x1]
      %v8669 = vld [vmem:[%s8446 + $0xd8] sm:$0xf]
      %v8670 = vld [vmem:[%s8446 + $0xdc] sm:$0x1]
      %v8671 = vld [vmem:[%s8446 + $0xf0] sm:$0xf]
      %v8672 = vld [vmem:[%s8446 + $0xf4] sm:$0x1]
      %v8673 = vld [vmem:[%s8446 + $0xf8] sm:$0xf]
      %v8674 = vld [vmem:[%s8446 + $0xfc] sm:$0x1]
      %v8675 = vld [vmem:[%s8446 + $0x100] sm:$0xf]
      %v8676 = vld [vmem:[%s8446 + $0x104] sm:$0x1]
      %v8677 = vld [vmem:[%s8446 + $0x108] sm:$0xf]
      %v8678 = vld [vmem:[%s8446 + $0x10c] sm:$0x1]
      %v8679 = vld [vmem:[%s8446 + $0x110] sm:$0xf]
      %v8680 = vld [vmem:[%s8446 + $0x114] sm:$0x1]
      %v8681 = vld [vmem:[%s8446 + $0x118] sm:$0xf]
      %v8682 = vld [vmem:[%s8446 + $0x11c] sm:$0x1]
      %v8683 = vld [vmem:[%s8446 + $0x120] sm:$0xf]
      %v8684 = vld [vmem:[%s8446 + $0x124] sm:$0x1]
      %v8685 = vld [vmem:[%s8446 + $0x128] sm:$0xf]
      %v8686 = vld [vmem:[%s8446 + $0x12c] sm:$0x1]
      %v8688 = vshrl.u32 %v8623, 16
      %v8690 = vrot.slane %v8688, 4
      %v8691 = vshll.u32 %v8623, 16
      %v8693 = vrot.slane %v8691, 5
      %v8694 = vor.u32 %v8690, %v8693
      %v8695 = vrot.slane %v8694, 4
      %v8697 = vshll.u32 %v8624, 16
      %v8699 = vrot.slane %v8697, 5
      %v8700 = vsel %vm501, %v8695, %v8699
      %v8702 = vshrl.u32 %v8625, 16
      %v8704 = vrot.slane %v8702, 4
      %v8705 = vshll.u32 %v8625, 16
      %v8707 = vrot.slane %v8705, 5
      %v8708 = vor.u32 %v8704, %v8707
      %v8709 = vrot.slane %v8708, 4
      %v8711 = vshll.u32 %v8626, 16
      %v8713 = vrot.slane %v8711, 5
      %v8714 = vsel %vm501, %v8709, %v8713
      %v8716 = vshrl.u32 %v8627, 16
      %v8718 = vrot.slane %v8716, 4
      %v8719 = vshll.u32 %v8627, 16
      %v8721 = vrot.slane %v8719, 5
      %v8722 = vor.u32 %v8718, %v8721
      %v8723 = vrot.slane %v8722, 4
      %v8725 = vshll.u32 %v8628, 16
      %v8727 = vrot.slane %v8725, 5
      %v8728 = vsel %vm501, %v8723, %v8727
      %v8730 = vshrl.u32 %v8629, 16
      %v8732 = vrot.slane %v8730, 4
      %v8733 = vshll.u32 %v8629, 16
      %v8735 = vrot.slane %v8733, 5
      %v8736 = vor.u32 %v8732, %v8735
      %v8737 = vrot.slane %v8736, 4
      %v8739 = vshll.u32 %v8630, 16
      %v8741 = vrot.slane %v8739, 5
      %v8742 = vsel %vm501, %v8737, %v8741
      %v8744 = vshrl.u32 %v8631, 16
      %v8746 = vrot.slane %v8744, 4
      %v8747 = vshll.u32 %v8631, 16
      %v8749 = vrot.slane %v8747, 5
      %v8750 = vor.u32 %v8746, %v8749
      %v8751 = vrot.slane %v8750, 4
      %v8753 = vshll.u32 %v8632, 16
      %v8755 = vrot.slane %v8753, 5
      %v8756 = vsel %vm501, %v8751, %v8755
      %v8758 = vshrl.u32 %v8633, 16
      %v8760 = vrot.slane %v8758, 4
      %v8761 = vshll.u32 %v8633, 16
      %v8763 = vrot.slane %v8761, 5
      %v8764 = vor.u32 %v8760, %v8763
      %v8765 = vrot.slane %v8764, 4
      %v8767 = vshll.u32 %v8634, 16
      %v8769 = vrot.slane %v8767, 5
      %v8770 = vsel %vm501, %v8765, %v8769
      %v8772 = vshrl.u32 %v8635, 16
      %v8774 = vrot.slane %v8772, 4
      %v8775 = vshll.u32 %v8635, 16
      %v8777 = vrot.slane %v8775, 5
      %v8778 = vor.u32 %v8774, %v8777
      %v8779 = vrot.slane %v8778, 4
      %v8781 = vshll.u32 %v8636, 16
      %v8783 = vrot.slane %v8781, 5
      %v8784 = vsel %vm501, %v8779, %v8783
      %v8786 = vshrl.u32 %v8637, 16
      %v8788 = vrot.slane %v8786, 4
      %v8789 = vshll.u32 %v8637, 16
      %v8791 = vrot.slane %v8789, 5
      %v8792 = vor.u32 %v8788, %v8791
      %v8793 = vrot.slane %v8792, 4
      %v8795 = vshll.u32 %v8638, 16
      %v8797 = vrot.slane %v8795, 5
      %v8798 = vsel %vm501, %v8793, %v8797
      %v8800 = vshrl.u32 %v8639, 16
      %v8802 = vrot.slane %v8800, 4
      %v8803 = vshll.u32 %v8639, 16
      %v8805 = vrot.slane %v8803, 5
      %v8806 = vor.u32 %v8802, %v8805
      %v8807 = vrot.slane %v8806, 4
      %v8809 = vshll.u32 %v8640, 16
      %v8811 = vrot.slane %v8809, 5
      %v8812 = vsel %vm501, %v8807, %v8811
      %v8814 = vshrl.u32 %v8641, 16
      %v8816 = vrot.slane %v8814, 4
      %v8817 = vshll.u32 %v8641, 16
      %v8819 = vrot.slane %v8817, 5
      %v8820 = vor.u32 %v8816, %v8819
      %v8821 = vrot.slane %v8820, 4
      %v8823 = vshll.u32 %v8642, 16
      %v8825 = vrot.slane %v8823, 5
      %v8826 = vsel %vm501, %v8821, %v8825
      %v8828 = vshrl.u32 %v8643, 16
      %v8830 = vrot.slane %v8828, 4
      %v8831 = vshll.u32 %v8643, 16
      %v8833 = vrot.slane %v8831, 5
      %v8834 = vor.u32 %v8830, %v8833
      %v8835 = vrot.slane %v8834, 4
      %v8837 = vshll.u32 %v8644, 16
      %v8839 = vrot.slane %v8837, 5
      %v8840 = vsel %vm501, %v8835, %v8839
      %v8842 = vshrl.u32 %v8645, 16
      %v8844 = vrot.slane %v8842, 4
      %v8845 = vshll.u32 %v8645, 16
      %v8847 = vrot.slane %v8845, 5
      %v8848 = vor.u32 %v8844, %v8847
      %v8849 = vrot.slane %v8848, 4
      %v8851 = vshll.u32 %v8646, 16
      %v8853 = vrot.slane %v8851, 5
      %v8854 = vsel %vm501, %v8849, %v8853
      %v8856 = vshrl.u32 %v8647, 16
      %v8858 = vrot.slane %v8856, 4
      %v8859 = vshll.u32 %v8647, 16
      %v8861 = vrot.slane %v8859, 5
      %v8862 = vor.u32 %v8858, %v8861
      %v8863 = vrot.slane %v8862, 4
      %v8865 = vshll.u32 %v8648, 16
      %v8867 = vrot.slane %v8865, 5
      %v8868 = vsel %vm501, %v8863, %v8867
      %v8870 = vshrl.u32 %v8649, 16
      %v8872 = vrot.slane %v8870, 4
      %v8873 = vshll.u32 %v8649, 16
      %v8875 = vrot.slane %v8873, 5
      %v8876 = vor.u32 %v8872, %v8875
      %v8877 = vrot.slane %v8876, 4
      %v8879 = vshll.u32 %v8650, 16
      %v8881 = vrot.slane %v8879, 5
      %v8882 = vsel %vm501, %v8877, %v8881
      %v8884 = vshrl.u32 %v8651, 16
      %v8886 = vrot.slane %v8884, 4
      %v8887 = vshll.u32 %v8651, 16
      %v8889 = vrot.slane %v8887, 5
      %v8890 = vor.u32 %v8886, %v8889
      %v8891 = vrot.slane %v8890, 4
      %v8893 = vshll.u32 %v8652, 16
      %v8895 = vrot.slane %v8893, 5
      %v8896 = vsel %vm501, %v8891, %v8895
      %v8898 = vshrl.u32 %v8653, 16
      %v8900 = vrot.slane %v8898, 4
      %v8901 = vshll.u32 %v8653, 16
      %v8903 = vrot.slane %v8901, 5
      %v8904 = vor.u32 %v8900, %v8903
      %v8905 = vrot.slane %v8904, 4
      %v8907 = vshll.u32 %v8654, 16
      %v8909 = vrot.slane %v8907, 5
      %v8910 = vsel %vm501, %v8905, %v8909
      %v8912 = vshrl.u32 %v8655, 16
      %v8914 = vrot.slane %v8912, 4
      %v8915 = vshll.u32 %v8655, 16
      %v8917 = vrot.slane %v8915, 5
      %v8918 = vor.u32 %v8914, %v8917
      %v8919 = vrot.slane %v8918, 4
      %v8921 = vshll.u32 %v8656, 16
      %v8923 = vrot.slane %v8921, 5
      %v8924 = vsel %vm501, %v8919, %v8923
      %v8926 = vshrl.u32 %v8657, 16
      %v8928 = vrot.slane %v8926, 4
      %v8929 = vshll.u32 %v8657, 16
      %v8931 = vrot.slane %v8929, 5
      %v8932 = vor.u32 %v8928, %v8931
      %v8933 = vrot.slane %v8932, 4
      %v8935 = vshll.u32 %v8658, 16
      %v8937 = vrot.slane %v8935, 5
      %v8938 = vsel %vm501, %v8933, %v8937
      %v8940 = vshrl.u32 %v8659, 16
      %v8942 = vrot.slane %v8940, 4
      %v8943 = vshll.u32 %v8659, 16
      %v8945 = vrot.slane %v8943, 5
      %v8946 = vor.u32 %v8942, %v8945
      %v8947 = vrot.slane %v8946, 4
      %v8949 = vshll.u32 %v8660, 16
      %v8951 = vrot.slane %v8949, 5
      %v8952 = vsel %vm501, %v8947, %v8951
      %v8954 = vshrl.u32 %v8661, 16
      %v8956 = vrot.slane %v8954, 4
      %v8957 = vshll.u32 %v8661, 16
      %v8959 = vrot.slane %v8957, 5
      %v8960 = vor.u32 %v8956, %v8959
      %v8961 = vrot.slane %v8960, 4
      %v8963 = vshll.u32 %v8662, 16
      %v8965 = vrot.slane %v8963, 5
      %v8966 = vsel %vm501, %v8961, %v8965
      %v8968 = vshrl.u32 %v8663, 16
      %v8970 = vrot.slane %v8968, 4
      %v8971 = vshll.u32 %v8663, 16
      %v8973 = vrot.slane %v8971, 5
      %v8974 = vor.u32 %v8970, %v8973
      %v8975 = vrot.slane %v8974, 4
      %v8977 = vshll.u32 %v8664, 16
      %v8979 = vrot.slane %v8977, 5
      %v8980 = vsel %vm501, %v8975, %v8979
      %v8982 = vshrl.u32 %v8665, 16
      %v8984 = vrot.slane %v8982, 4
      %v8985 = vshll.u32 %v8665, 16
      %v8987 = vrot.slane %v8985, 5
      %v8988 = vor.u32 %v8984, %v8987
      %v8989 = vrot.slane %v8988, 4
      %v8991 = vshll.u32 %v8666, 16
      %v8993 = vrot.slane %v8991, 5
      %v8994 = vsel %vm501, %v8989, %v8993
      %v8996 = vshrl.u32 %v8667, 16
      %v8998 = vrot.slane %v8996, 4
      %v8999 = vshll.u32 %v8667, 16
      %v9001 = vrot.slane %v8999, 5
      %v9002 = vor.u32 %v8998, %v9001
      %v9003 = vrot.slane %v9002, 4
      %v9005 = vshll.u32 %v8668, 16
      %v9007 = vrot.slane %v9005, 5
      %v9008 = vsel %vm501, %v9003, %v9007
      %v9010 = vshrl.u32 %v8669, 16
      %v9012 = vrot.slane %v9010, 4
      %v9013 = vshll.u32 %v8669, 16
      %v9015 = vrot.slane %v9013, 5
      %v9016 = vor.u32 %v9012, %v9015
      %v9017 = vrot.slane %v9016, 4
      %v9019 = vshll.u32 %v8670, 16
      %v9021 = vrot.slane %v9019, 5
      %v9022 = vsel %vm501, %v9017, %v9021
      %v9024 = vshrl.u32 %v8671, 16
      %v9026 = vrot.slane %v9024, 4
      %v9027 = vshll.u32 %v8671, 16
      %v9029 = vrot.slane %v9027, 5
      %v9030 = vor.u32 %v9026, %v9029
      %v9031 = vrot.slane %v9030, 4
      %v9033 = vshll.u32 %v8672, 16
      %v9035 = vrot.slane %v9033, 5
      %v9036 = vsel %vm501, %v9031, %v9035
      %v9038 = vshrl.u32 %v8673, 16
      %v9040 = vrot.slane %v9038, 4
      %v9041 = vshll.u32 %v8673, 16
      %v9043 = vrot.slane %v9041, 5
      %v9044 = vor.u32 %v9040, %v9043
      %v9045 = vrot.slane %v9044, 4
      %v9047 = vshll.u32 %v8674, 16
      %v9049 = vrot.slane %v9047, 5
      %v9050 = vsel %vm501, %v9045, %v9049
      %v9052 = vshrl.u32 %v8675, 16
      %v9054 = vrot.slane %v9052, 4
      %v9055 = vshll.u32 %v8675, 16
      %v9057 = vrot.slane %v9055, 5
      %v9058 = vor.u32 %v9054, %v9057
      %v9059 = vrot.slane %v9058, 4
      %v9061 = vshll.u32 %v8676, 16
      %v9063 = vrot.slane %v9061, 5
      %v9064 = vsel %vm501, %v9059, %v9063
      %v9066 = vshrl.u32 %v8677, 16
      %v9068 = vrot.slane %v9066, 4
      %v9069 = vshll.u32 %v8677, 16
      %v9071 = vrot.slane %v9069, 5
      %v9072 = vor.u32 %v9068, %v9071
      %v9073 = vrot.slane %v9072, 4
      %v9075 = vshll.u32 %v8678, 16
      %v9077 = vrot.slane %v9075, 5
      %v9078 = vsel %vm501, %v9073, %v9077
      %v9080 = vshrl.u32 %v8679, 16
      %v9082 = vrot.slane %v9080, 4
      %v9083 = vshll.u32 %v8679, 16
      %v9085 = vrot.slane %v9083, 5
      %v9086 = vor.u32 %v9082, %v9085
      %v9087 = vrot.slane %v9086, 4
      %v9089 = vshll.u32 %v8680, 16
      %v9091 = vrot.slane %v9089, 5
      %v9092 = vsel %vm501, %v9087, %v9091
      %v9094 = vshrl.u32 %v8681, 16
      %v9096 = vrot.slane %v9094, 4
      %v9097 = vshll.u32 %v8681, 16
      %v9099 = vrot.slane %v9097, 5
      %v9100 = vor.u32 %v9096, %v9099
      %v9101 = vrot.slane %v9100, 4
      %v9103 = vshll.u32 %v8682, 16
      %v9105 = vrot.slane %v9103, 5
      %v9106 = vsel %vm501, %v9101, %v9105
      %v9108 = vshrl.u32 %v8683, 16
      %v9110 = vrot.slane %v9108, 4
      %v9111 = vshll.u32 %v8683, 16
      %v9113 = vrot.slane %v9111, 5
      %v9114 = vor.u32 %v9110, %v9113
      %v9115 = vrot.slane %v9114, 4
      %v9117 = vshll.u32 %v8684, 16
      %v9119 = vrot.slane %v9117, 5
      %v9120 = vsel %vm501, %v9115, %v9119
      %v9122 = vshrl.u32 %v8685, 16
      %v9124 = vrot.slane %v9122, 4
      %v9125 = vshll.u32 %v8685, 16
      %v9127 = vrot.slane %v9125, 5
      %v9128 = vor.u32 %v9124, %v9127
      %v9129 = vrot.slane %v9128, 4
      %v9131 = vshll.u32 %v8686, 16
      %v9133 = vrot.slane %v9131, 5
      %v9134 = vsel %vm501, %v9129, %v9133
      %v9135 = vunpack.c.l.b16 %v8700
      %v9136 = vunpack.c.l.b16 %v8714
      %v9137 = vunpack.c.l.b16 %v8728
      %v9138 = vunpack.c.l.b16 %v8742
      %v9139 = vunpack.c.l.b16 %v8756
      %v9140 = vunpack.c.l.b16 %v8770
      %v9141 = vunpack.c.l.b16 %v8784
      %v9142 = vunpack.c.l.b16 %v8798
      %v9143 = vunpack.c.l.b16 %v8812
      %v9144 = vunpack.c.l.b16 %v8826
      %v9145 = vunpack.c.l.b16 %v8840
      %v9146 = vunpack.c.l.b16 %v8854
      %v9147 = vunpack.c.l.b16 %v8868
      %v9148 = vunpack.c.l.b16 %v8882
      %v9149 = vunpack.c.l.b16 %v8896
      %v9150 = vunpack.c.l.b16 %v8910
      %v9151 = vunpack.c.l.b16 %v8924
      %v9152 = vunpack.c.l.b16 %v8938
      %v9153 = vunpack.c.l.b16 %v8952
      %v9154 = vunpack.c.l.b16 %v8966
      %v9155 = vunpack.c.l.b16 %v8980
      %v9156 = vunpack.c.l.b16 %v8994
      %v9157 = vunpack.c.l.b16 %v9008
      %v9158 = vunpack.c.l.b16 %v9022
      %v9159 = vunpack.c.l.b16 %v9036
      %v9160 = vunpack.c.l.b16 %v9050
      %v9161 = vunpack.c.l.b16 %v9064
      %v9162 = vunpack.c.l.b16 %v9078
      %v9163 = vunpack.c.l.b16 %v9092
      %v9164 = vunpack.c.l.b16 %v9106
      %v9165 = vunpack.c.l.b16 %v9120
      %v9166 = vunpack.c.l.b16 %v9134
      %v9167 = vpack.c.b16 %v9136, %v9135
      %v9168 = vpack.c.b16 %v9138, %v9137
      %v9169 = vpack.c.b16 %v9140, %v9139
      %v9170 = vpack.c.b16 %v9142, %v9141
      %v9171 = vpack.c.b16 %v9144, %v9143
      %v9172 = vpack.c.b16 %v9146, %v9145
      %v9173 = vpack.c.b16 %v9148, %v9147
      %v9174 = vpack.c.b16 %v9150, %v9149
      %v9175 = vpack.c.b16 %v9152, %v9151
      %v9176 = vpack.c.b16 %v9154, %v9153
      %v9177 = vpack.c.b16 %v9156, %v9155
      %v9178 = vpack.c.b16 %v9158, %v9157
      %v9179 = vpack.c.b16 %v9160, %v9159
      %v9180 = vpack.c.b16 %v9162, %v9161
      %v9181 = vpack.c.b16 %v9164, %v9163
      %v9182 = vpack.c.b16 %v9166, %v9165
      %9183 = vrot.lane.b32.xlu0 %v9167, 48
      %v9184 = vpop.permute.xlu0 %9183
      %9185 = vrot.lane.b32.xlu0 %v9168, 48
      %v9186 = vpop.permute.xlu0 %9185
      %9187 = vrot.lane.b32.xlu0 %v9169, 48
      %v9188 = vpop.permute.xlu0 %9187
      %9189 = vrot.lane.b32.xlu0 %v9170, 48
      %v9190 = vpop.permute.xlu0 %9189
      %9191 = vrot.lane.b32.xlu0 %v9171, 48
      %v9192 = vpop.permute.xlu0 %9191
      %9193 = vrot.lane.b32.xlu0 %v9172, 48
      %v9194 = vpop.permute.xlu0 %9193
      %9195 = vrot.lane.b32.xlu0 %v9173, 48
      %v9196 = vpop.permute.xlu0 %9195
      %9197 = vrot.lane.b32.xlu0 %v9174, 48
      %v9198 = vpop.permute.xlu0 %9197
      %9199 = vrot.lane.b32.xlu0 %v9175, 48
      %v9200 = vpop.permute.xlu0 %9199
      %9201 = vrot.lane.b32.xlu0 %v9176, 48
      %v9202 = vpop.permute.xlu0 %9201
      %9203 = vrot.lane.b32.xlu0 %v9177, 48
      %v9204 = vpop.permute.xlu0 %9203
      %9205 = vrot.lane.b32.xlu0 %v9178, 48
      %v9206 = vpop.permute.xlu0 %9205
      %9207 = vrot.lane.b32.xlu0 %v9179, 48
      %v9208 = vpop.permute.xlu0 %9207
      %9209 = vrot.lane.b32.xlu0 %v9180, 48
      %v9210 = vpop.permute.xlu0 %9209
      %9211 = vrot.lane.b32.xlu0 %v9181, 48
      %v9212 = vpop.permute.xlu0 %9211
      %9213 = vrot.lane.b32.xlu0 %v9182, 48
      %v9214 = vpop.permute.xlu0 %9213
      %9231 = vst.msk [vmem:[#allocation2 + $0x8] sm:$0xff] %vm2772, %v9184
      %9232 = vst.msk [vmem:[#allocation2 + $0x18] sm:$0xff] %vm2772, %v9186
      %9233 = vst.msk [vmem:[#allocation2 + $0x28] sm:$0xff] %vm2772, %v9188
      %9234 = vst.msk [vmem:[#allocation2 + $0x38] sm:$0xff] %vm2772, %v9190
      %9235 = vst.msk [vmem:[#allocation2 + $0x48] sm:$0xff] %vm2772, %v9192
      %9236 = vst.msk [vmem:[#allocation2 + $0x58] sm:$0xff] %vm2772, %v9194
      %9237 = vst.msk [vmem:[#allocation2 + $0x68] sm:$0xff] %vm2772, %v9196
      %9238 = vst.msk [vmem:[#allocation2 + $0x78] sm:$0xff] %vm2772, %v9198
      %9239 = vst.msk [vmem:[#allocation2 + $0x88] sm:$0xff] %vm2772, %v9200
      %9240 = vst.msk [vmem:[#allocation2 + $0x98] sm:$0xff] %vm2772, %v9202
      %9241 = vst.msk [vmem:[#allocation2 + $0xa8] sm:$0xff] %vm2772, %v9204
      %9242 = vst.msk [vmem:[#allocation2 + $0xb8] sm:$0xff] %vm2772, %v9206
      %9243 = vst.msk [vmem:[#allocation2 + $0xc8] sm:$0xff] %vm2772, %v9208
      %9244 = vst.msk [vmem:[#allocation2 + $0xd8] sm:$0xff] %vm2772, %v9210
      %9245 = vst.msk [vmem:[#allocation2 + $0xe8] sm:$0xff] %vm2772, %v9212
      %9246 = vst.msk [vmem:[#allocation2 + $0xf8] sm:$0xff] %vm2772, %v9214
      %v9247 = vld [vmem:[%s8446] sm:$0xe]
      %v9248 = vld [vmem:[%s8446 + $0x4] sm:$0x1]
      %v9249 = vld [vmem:[%s8446 + $0x8] sm:$0xe]
      %v9250 = vld [vmem:[%s8446 + $0xc] sm:$0x1]
      %v9251 = vld [vmem:[%s8446 + $0x10] sm:$0xe]
      %v9252 = vld [vmem:[%s8446 + $0x14] sm:$0x1]
      %v9253 = vld [vmem:[%s8446 + $0x18] sm:$0xe]
      %v9254 = vld [vmem:[%s8446 + $0x1c] sm:$0x1]
      %v9255 = vld [vmem:[%s8446 + $0x20] sm:$0xe]
      %v9256 = vld [vmem:[%s8446 + $0x24] sm:$0x1]
      %v9257 = vld [vmem:[%s8446 + $0x28] sm:$0xe]
      %v9258 = vld [vmem:[%s8446 + $0x2c] sm:$0x1]
      %v9259 = vld [vmem:[%s8446 + $0x30] sm:$0xe]
      %v9260 = vld [vmem:[%s8446 + $0x34] sm:$0x1]
      %v9261 = vld [vmem:[%s8446 + $0x38] sm:$0xe]
      %v9262 = vld [vmem:[%s8446 + $0x3c] sm:$0x1]
      %v9263 = vld [vmem:[%s8446 + $0x50] sm:$0xe]
      %v9264 = vld [vmem:[%s8446 + $0x54] sm:$0x1]
      %v9265 = vld [vmem:[%s8446 + $0x58] sm:$0xe]
      %v9266 = vld [vmem:[%s8446 + $0x5c] sm:$0x1]
      %v9267 = vld [vmem:[%s8446 + $0x60] sm:$0xe]
      %v9268 = vld [vmem:[%s8446 + $0x64] sm:$0x1]
      %v9269 = vld [vmem:[%s8446 + $0x68] sm:$0xe]
      %v9270 = vld [vmem:[%s8446 + $0x6c] sm:$0x1]
      %v9271 = vld [vmem:[%s8446 + $0x70] sm:$0xe]
      %v9272 = vld [vmem:[%s8446 + $0x74] sm:$0x1]
      %v9273 = vld [vmem:[%s8446 + $0x78] sm:$0xe]
      %v9274 = vld [vmem:[%s8446 + $0x7c] sm:$0x1]
      %v9275 = vld [vmem:[%s8446 + $0x80] sm:$0xe]
      %v9276 = vld [vmem:[%s8446 + $0x84] sm:$0x1]
      %v9277 = vld [vmem:[%s8446 + $0x88] sm:$0xe]
      %v9278 = vld [vmem:[%s8446 + $0x8c] sm:$0x1]
      %v9279 = vld [vmem:[%s8446 + $0xa0] sm:$0xe]
      %v9280 = vld [vmem:[%s8446 + $0xa4] sm:$0x1]
      %v9281 = vld [vmem:[%s8446 + $0xa8] sm:$0xe]
      %v9282 = vld [vmem:[%s8446 + $0xac] sm:$0x1]
      %v9283 = vld [vmem:[%s8446 + $0xb0] sm:$0xe]
      %v9284 = vld [vmem:[%s8446 + $0xb4] sm:$0x1]
      %v9285 = vld [vmem:[%s8446 + $0xb8] sm:$0xe]
      %v9286 = vld [vmem:[%s8446 + $0xbc] sm:$0x1]
      %v9287 = vld [vmem:[%s8446 + $0xc0] sm:$0xe]
      %v9288 = vld [vmem:[%s8446 + $0xc4] sm:$0x1]
      %v9289 = vld [vmem:[%s8446 + $0xc8] sm:$0xe]
      %v9290 = vld [vmem:[%s8446 + $0xcc] sm:$0x1]
      %v9291 = vld [vmem:[%s8446 + $0xd0] sm:$0xe]
      %v9292 = vld [vmem:[%s8446 + $0xd4] sm:$0x1]
      %v9293 = vld [vmem:[%s8446 + $0xd8] sm:$0xe]
      %v9294 = vld [vmem:[%s8446 + $0xdc] sm:$0x1]
      %v9295 = vld [vmem:[%s8446 + $0xf0] sm:$0xe]
      %v9296 = vld [vmem:[%s8446 + $0xf4] sm:$0x1]
      %v9297 = vld [vmem:[%s8446 + $0xf8] sm:$0xe]
      %v9298 = vld [vmem:[%s8446 + $0xfc] sm:$0x1]
      %v9299 = vld [vmem:[%s8446 + $0x100] sm:$0xe]
      %v9300 = vld [vmem:[%s8446 + $0x104] sm:$0x1]
      %v9301 = vld [vmem:[%s8446 + $0x108] sm:$0xe]
      %v9302 = vld [vmem:[%s8446 + $0x10c] sm:$0x1]
      %v9303 = vld [vmem:[%s8446 + $0x110] sm:$0xe]
      %v9304 = vld [vmem:[%s8446 + $0x114] sm:$0x1]
      %v9305 = vld [vmem:[%s8446 + $0x118] sm:$0xe]
      %v9306 = vld [vmem:[%s8446 + $0x11c] sm:$0x1]
      %v9307 = vld [vmem:[%s8446 + $0x120] sm:$0xe]
      %v9308 = vld [vmem:[%s8446 + $0x124] sm:$0x1]
      %v9309 = vld [vmem:[%s8446 + $0x128] sm:$0xe]
      %v9310 = vld [vmem:[%s8446 + $0x12c] sm:$0x1]
      %v9375 = vrot.slane %v9247, 5
      %v9376 = vrot.slane %v9375, 4
      %v9377 = vrot.slane %v9248, 5
      %v9378 = vsel %vm1193, %v9376, %v9377
      %v9379 = vrot.slane %v9249, 5
      %v9380 = vrot.slane %v9379, 4
      %v9381 = vrot.slane %v9250, 5
      %v9382 = vsel %vm1193, %v9380, %v9381
      %v9383 = vrot.slane %v9251, 5
      %v9384 = vrot.slane %v9383, 4
      %v9385 = vrot.slane %v9252, 5
      %v9386 = vsel %vm1193, %v9384, %v9385
      %v9387 = vrot.slane %v9253, 5
      %v9388 = vrot.slane %v9387, 4
      %v9389 = vrot.slane %v9254, 5
      %v9390 = vsel %vm1193, %v9388, %v9389
      %v9391 = vrot.slane %v9255, 5
      %v9392 = vrot.slane %v9391, 4
      %v9393 = vrot.slane %v9256, 5
      %v9394 = vsel %vm1193, %v9392, %v9393
      %v9395 = vrot.slane %v9257, 5
      %v9396 = vrot.slane %v9395, 4
      %v9397 = vrot.slane %v9258, 5
      %v9398 = vsel %vm1193, %v9396, %v9397
      %v9399 = vrot.slane %v9259, 5
      %v9400 = vrot.slane %v9399, 4
      %v9401 = vrot.slane %v9260, 5
      %v9402 = vsel %vm1193, %v9400, %v9401
      %v9403 = vrot.slane %v9261, 5
      %v9404 = vrot.slane %v9403, 4
      %v9405 = vrot.slane %v9262, 5
      %v9406 = vsel %vm1193, %v9404, %v9405
      %v9407 = vrot.slane %v9263, 5
      %v9408 = vrot.slane %v9407, 4
      %v9409 = vrot.slane %v9264, 5
      %v9410 = vsel %vm1193, %v9408, %v9409
      %v9411 = vrot.slane %v9265, 5
      %v9412 = vrot.slane %v9411, 4
      %v9413 = vrot.slane %v9266, 5
      %v9414 = vsel %vm1193, %v9412, %v9413
      %v9415 = vrot.slane %v9267, 5
      %v9416 = vrot.slane %v9415, 4
      %v9417 = vrot.slane %v9268, 5
      %v9418 = vsel %vm1193, %v9416, %v9417
      %v9419 = vrot.slane %v9269, 5
      %v9420 = vrot.slane %v9419, 4
      %v9421 = vrot.slane %v9270, 5
      %v9422 = vsel %vm1193, %v9420, %v9421
      %v9423 = vrot.slane %v9271, 5
      %v9424 = vrot.slane %v9423, 4
      %v9425 = vrot.slane %v9272, 5
      %v9426 = vsel %vm1193, %v9424, %v9425
      %v9427 = vrot.slane %v9273, 5
      %v9428 = vrot.slane %v9427, 4
      %v9429 = vrot.slane %v9274, 5
      %v9430 = vsel %vm1193, %v9428, %v9429
      %v9431 = vrot.slane %v9275, 5
      %v9432 = vrot.slane %v9431, 4
      %v9433 = vrot.slane %v9276, 5
      %v9434 = vsel %vm1193, %v9432, %v9433
      %v9435 = vrot.slane %v9277, 5
      %v9436 = vrot.slane %v9435, 4
      %v9437 = vrot.slane %v9278, 5
      %v9438 = vsel %vm1193, %v9436, %v9437
      %v9439 = vrot.slane %v9279, 5
      %v9440 = vrot.slane %v9439, 4
      %v9441 = vrot.slane %v9280, 5
      %v9442 = vsel %vm1193, %v9440, %v9441
      %v9443 = vrot.slane %v9281, 5
      %v9444 = vrot.slane %v9443, 4
      %v9445 = vrot.slane %v9282, 5
      %v9446 = vsel %vm1193, %v9444, %v9445
      %v9447 = vrot.slane %v9283, 5
      %v9448 = vrot.slane %v9447, 4
      %v9449 = vrot.slane %v9284, 5
      %v9450 = vsel %vm1193, %v9448, %v9449
      %v9451 = vrot.slane %v9285, 5
      %v9452 = vrot.slane %v9451, 4
      %v9453 = vrot.slane %v9286, 5
      %v9454 = vsel %vm1193, %v9452, %v9453
      %v9455 = vrot.slane %v9287, 5
      %v9456 = vrot.slane %v9455, 4
      %v9457 = vrot.slane %v9288, 5
      %v9458 = vsel %vm1193, %v9456, %v9457
      %v9459 = vrot.slane %v9289, 5
      %v9460 = vrot.slane %v9459, 4
      %v9461 = vrot.slane %v9290, 5
      %v9462 = vsel %vm1193, %v9460, %v9461
      %v9463 = vrot.slane %v9291, 5
      %v9464 = vrot.slane %v9463, 4
      %v9465 = vrot.slane %v9292, 5
      %v9466 = vsel %vm1193, %v9464, %v9465
      %v9467 = vrot.slane %v9293, 5
      %v9468 = vrot.slane %v9467, 4
      %v9469 = vrot.slane %v9294, 5
      %v9470 = vsel %vm1193, %v9468, %v9469
      %v9471 = vrot.slane %v9295, 5
      %v9472 = vrot.slane %v9471, 4
      %v9473 = vrot.slane %v9296, 5
      %v9474 = vsel %vm1193, %v9472, %v9473
      %v9475 = vrot.slane %v9297, 5
      %v9476 = vrot.slane %v9475, 4
      %v9477 = vrot.slane %v9298, 5
      %v9478 = vsel %vm1193, %v9476, %v9477
      %v9479 = vrot.slane %v9299, 5
      %v9480 = vrot.slane %v9479, 4
      %v9481 = vrot.slane %v9300, 5
      %v9482 = vsel %vm1193, %v9480, %v9481
      %v9483 = vrot.slane %v9301, 5
      %v9484 = vrot.slane %v9483, 4
      %v9485 = vrot.slane %v9302, 5
      %v9486 = vsel %vm1193, %v9484, %v9485
      %v9487 = vrot.slane %v9303, 5
      %v9488 = vrot.slane %v9487, 4
      %v9489 = vrot.slane %v9304, 5
      %v9490 = vsel %vm1193, %v9488, %v9489
      %v9491 = vrot.slane %v9305, 5
      %v9492 = vrot.slane %v9491, 4
      %v9493 = vrot.slane %v9306, 5
      %v9494 = vsel %vm1193, %v9492, %v9493
      %v9495 = vrot.slane %v9307, 5
      %v9496 = vrot.slane %v9495, 4
      %v9497 = vrot.slane %v9308, 5
      %v9498 = vsel %vm1193, %v9496, %v9497
      %v9499 = vrot.slane %v9309, 5
      %v9500 = vrot.slane %v9499, 4
      %v9501 = vrot.slane %v9310, 5
      %v9502 = vsel %vm1193, %v9500, %v9501
      %v9503 = vunpack.c.l.b16 %v9378
      %v9504 = vunpack.c.l.b16 %v9382
      %v9505 = vunpack.c.l.b16 %v9386
      %v9506 = vunpack.c.l.b16 %v9390
      %v9507 = vunpack.c.l.b16 %v9394
      %v9508 = vunpack.c.l.b16 %v9398
      %v9509 = vunpack.c.l.b16 %v9402
      %v9510 = vunpack.c.l.b16 %v9406
      %v9511 = vunpack.c.l.b16 %v9410
      %v9512 = vunpack.c.l.b16 %v9414
      %v9513 = vunpack.c.l.b16 %v9418
      %v9514 = vunpack.c.l.b16 %v9422
      %v9515 = vunpack.c.l.b16 %v9426
      %v9516 = vunpack.c.l.b16 %v9430
      %v9517 = vunpack.c.l.b16 %v9434
      %v9518 = vunpack.c.l.b16 %v9438
      %v9519 = vunpack.c.l.b16 %v9442
      %v9520 = vunpack.c.l.b16 %v9446
      %v9521 = vunpack.c.l.b16 %v9450
      %v9522 = vunpack.c.l.b16 %v9454
      %v9523 = vunpack.c.l.b16 %v9458
      %v9524 = vunpack.c.l.b16 %v9462
      %v9525 = vunpack.c.l.b16 %v9466
      %v9526 = vunpack.c.l.b16 %v9470
      %v9527 = vunpack.c.l.b16 %v9474
      %v9528 = vunpack.c.l.b16 %v9478
      %v9529 = vunpack.c.l.b16 %v9482
      %v9530 = vunpack.c.l.b16 %v9486
      %v9531 = vunpack.c.l.b16 %v9490
      %v9532 = vunpack.c.l.b16 %v9494
      %v9533 = vunpack.c.l.b16 %v9498
      %v9534 = vunpack.c.l.b16 %v9502
      %v9535 = vpack.c.b16 %v9504, %v9503
      %v9536 = vpack.c.b16 %v9506, %v9505
      %v9537 = vpack.c.b16 %v9508, %v9507
      %v9538 = vpack.c.b16 %v9510, %v9509
      %v9539 = vpack.c.b16 %v9512, %v9511
      %v9540 = vpack.c.b16 %v9514, %v9513
      %v9541 = vpack.c.b16 %v9516, %v9515
      %v9542 = vpack.c.b16 %v9518, %v9517
      %v9543 = vpack.c.b16 %v9520, %v9519
      %v9544 = vpack.c.b16 %v9522, %v9521
      %v9545 = vpack.c.b16 %v9524, %v9523
      %v9546 = vpack.c.b16 %v9526, %v9525
      %v9547 = vpack.c.b16 %v9528, %v9527
      %v9548 = vpack.c.b16 %v9530, %v9529
      %v9549 = vpack.c.b16 %v9532, %v9531
      %v9550 = vpack.c.b16 %v9534, %v9533
      %9551 = vrot.lane.b32.xlu0 %v9535, 56
      %v9552 = vpop.permute.xlu0 %9551
      %9553 = vrot.lane.b32.xlu0 %v9536, 56
      %v9554 = vpop.permute.xlu0 %9553
      %9555 = vrot.lane.b32.xlu0 %v9537, 56
      %v9556 = vpop.permute.xlu0 %9555
      %9557 = vrot.lane.b32.xlu0 %v9538, 56
      %v9558 = vpop.permute.xlu0 %9557
      %9559 = vrot.lane.b32.xlu0 %v9539, 56
      %v9560 = vpop.permute.xlu0 %9559
      %9561 = vrot.lane.b32.xlu0 %v9540, 56
      %v9562 = vpop.permute.xlu0 %9561
      %9563 = vrot.lane.b32.xlu0 %v9541, 56
      %v9564 = vpop.permute.xlu0 %9563
      %9565 = vrot.lane.b32.xlu0 %v9542, 56
      %v9566 = vpop.permute.xlu0 %9565
      %9567 = vrot.lane.b32.xlu0 %v9543, 56
      %v9568 = vpop.permute.xlu0 %9567
      %9569 = vrot.lane.b32.xlu0 %v9544, 56
      %v9570 = vpop.permute.xlu0 %9569
      %9571 = vrot.lane.b32.xlu0 %v9545, 56
      %v9572 = vpop.permute.xlu0 %9571
      %9573 = vrot.lane.b32.xlu0 %v9546, 56
      %v9574 = vpop.permute.xlu0 %9573
      %9575 = vrot.lane.b32.xlu0 %v9547, 56
      %v9576 = vpop.permute.xlu0 %9575
      %9577 = vrot.lane.b32.xlu0 %v9548, 56
      %v9578 = vpop.permute.xlu0 %9577
      %9579 = vrot.lane.b32.xlu0 %v9549, 56
      %v9580 = vpop.permute.xlu0 %9579
      %9581 = vrot.lane.b32.xlu0 %v9550, 56
      %v9582 = vpop.permute.xlu0 %9581
      %9599 = vst.msk [vmem:[#allocation2 + $0x8] sm:$0xff] %vm3397, %v9552
      %9600 = vst.msk [vmem:[#allocation2 + $0x18] sm:$0xff] %vm3397, %v9554
      %9601 = vst.msk [vmem:[#allocation2 + $0x28] sm:$0xff] %vm3397, %v9556
      %9602 = vst.msk [vmem:[#allocation2 + $0x38] sm:$0xff] %vm3397, %v9558
      %9603 = vst.msk [vmem:[#allocation2 + $0x48] sm:$0xff] %vm3397, %v9560
      %9604 = vst.msk [vmem:[#allocation2 + $0x58] sm:$0xff] %vm3397, %v9562
      %9605 = vst.msk [vmem:[#allocation2 + $0x68] sm:$0xff] %vm3397, %v9564
      %9606 = vst.msk [vmem:[#allocation2 + $0x78] sm:$0xff] %vm3397, %v9566
      %9607 = vst.msk [vmem:[#allocation2 + $0x88] sm:$0xff] %vm3397, %v9568
      %9608 = vst.msk [vmem:[#allocation2 + $0x98] sm:$0xff] %vm3397, %v9570
      %9609 = vst.msk [vmem:[#allocation2 + $0xa8] sm:$0xff] %vm3397, %v9572
      %9610 = vst.msk [vmem:[#allocation2 + $0xb8] sm:$0xff] %vm3397, %v9574
      %9611 = vst.msk [vmem:[#allocation2 + $0xc8] sm:$0xff] %vm3397, %v9576
      %9612 = vst.msk [vmem:[#allocation2 + $0xd8] sm:$0xff] %vm3397, %v9578
      %9613 = vst.msk [vmem:[#allocation2 + $0xe8] sm:$0xff] %vm3397, %v9580
      %9614 = vst.msk [vmem:[#allocation2 + $0xf8] sm:$0xff] %vm3397, %v9582
      %s9615 = sadd.s32 4, %s7273
      %s9616 = smul.addr %s9615, 4
      %s9617 = scalar_lea.vmem %s260, %s9616
      %v9618 = vld [vmem:[%s9617] sm:$0xf]
      %v9619 = vld [vmem:[%s9617 + $0x8] sm:$0xf]
      %v9620 = vld [vmem:[%s9617 + $0x10] sm:$0xf]
      %v9621 = vld [vmem:[%s9617 + $0x18] sm:$0xf]
      %v9622 = vld [vmem:[%s9617 + $0x20] sm:$0xf]
      %v9623 = vld [vmem:[%s9617 + $0x28] sm:$0xf]
      %v9624 = vld [vmem:[%s9617 + $0x30] sm:$0xf]
      %v9625 = vld [vmem:[%s9617 + $0x38] sm:$0xf]
      %v9626 = vld [vmem:[%s9617 + $0x50] sm:$0xf]
      %v9627 = vld [vmem:[%s9617 + $0x58] sm:$0xf]
      %v9628 = vld [vmem:[%s9617 + $0x60] sm:$0xf]
      %v9629 = vld [vmem:[%s9617 + $0x68] sm:$0xf]
      %v9630 = vld [vmem:[%s9617 + $0x70] sm:$0xf]
      %v9631 = vld [vmem:[%s9617 + $0x78] sm:$0xf]
      %v9632 = vld [vmem:[%s9617 + $0x80] sm:$0xf]
      %v9633 = vld [vmem:[%s9617 + $0x88] sm:$0xf]
      %v9634 = vld [vmem:[%s9617 + $0xa0] sm:$0xf]
      %v9635 = vld [vmem:[%s9617 + $0xa8] sm:$0xf]
      %v9636 = vld [vmem:[%s9617 + $0xb0] sm:$0xf]
      %v9637 = vld [vmem:[%s9617 + $0xb8] sm:$0xf]
      %v9638 = vld [vmem:[%s9617 + $0xc0] sm:$0xf]
      %v9639 = vld [vmem:[%s9617 + $0xc8] sm:$0xf]
      %v9640 = vld [vmem:[%s9617 + $0xd0] sm:$0xf]
      %v9641 = vld [vmem:[%s9617 + $0xd8] sm:$0xf]
      %v9642 = vld [vmem:[%s9617 + $0xf0] sm:$0xf]
      %v9643 = vld [vmem:[%s9617 + $0xf8] sm:$0xf]
      %v9644 = vld [vmem:[%s9617 + $0x100] sm:$0xf]
      %v9645 = vld [vmem:[%s9617 + $0x108] sm:$0xf]
      %v9646 = vld [vmem:[%s9617 + $0x110] sm:$0xf]
      %v9647 = vld [vmem:[%s9617 + $0x118] sm:$0xf]
      %v9648 = vld [vmem:[%s9617 + $0x120] sm:$0xf]
      %v9649 = vld [vmem:[%s9617 + $0x128] sm:$0xf]
      %v9682 = vunpack.c.l.b16 %v9618
      %v9683 = vunpack.c.l.b16 %v9619
      %v9684 = vunpack.c.l.b16 %v9620
      %v9685 = vunpack.c.l.b16 %v9621
      %v9686 = vunpack.c.l.b16 %v9622
      %v9687 = vunpack.c.l.b16 %v9623
      %v9688 = vunpack.c.l.b16 %v9624
      %v9689 = vunpack.c.l.b16 %v9625
      %v9690 = vunpack.c.l.b16 %v9626
      %v9691 = vunpack.c.l.b16 %v9627
      %v9692 = vunpack.c.l.b16 %v9628
      %v9693 = vunpack.c.l.b16 %v9629
      %v9694 = vunpack.c.l.b16 %v9630
      %v9695 = vunpack.c.l.b16 %v9631
      %v9696 = vunpack.c.l.b16 %v9632
      %v9697 = vunpack.c.l.b16 %v9633
      %v9698 = vunpack.c.l.b16 %v9634
      %v9699 = vunpack.c.l.b16 %v9635
      %v9700 = vunpack.c.l.b16 %v9636
      %v9701 = vunpack.c.l.b16 %v9637
      %v9702 = vunpack.c.l.b16 %v9638
      %v9703 = vunpack.c.l.b16 %v9639
      %v9704 = vunpack.c.l.b16 %v9640
      %v9705 = vunpack.c.l.b16 %v9641
      %v9706 = vunpack.c.l.b16 %v9642
      %v9707 = vunpack.c.l.b16 %v9643
      %v9708 = vunpack.c.l.b16 %v9644
      %v9709 = vunpack.c.l.b16 %v9645
      %v9710 = vunpack.c.l.b16 %v9646
      %v9711 = vunpack.c.l.b16 %v9647
      %v9712 = vunpack.c.l.b16 %v9648
      %v9713 = vunpack.c.l.b16 %v9649
      %v9714 = vpack.c.b16 %v9683, %v9682
      %v9715 = vpack.c.b16 %v9685, %v9684
      %v9716 = vpack.c.b16 %v9687, %v9686
      %v9717 = vpack.c.b16 %v9689, %v9688
      %v9718 = vpack.c.b16 %v9691, %v9690
      %v9719 = vpack.c.b16 %v9693, %v9692
      %v9720 = vpack.c.b16 %v9695, %v9694
      %v9721 = vpack.c.b16 %v9697, %v9696
      %v9722 = vpack.c.b16 %v9699, %v9698
      %v9723 = vpack.c.b16 %v9701, %v9700
      %v9724 = vpack.c.b16 %v9703, %v9702
      %v9725 = vpack.c.b16 %v9705, %v9704
      %v9726 = vpack.c.b16 %v9707, %v9706
      %v9727 = vpack.c.b16 %v9709, %v9708
      %v9728 = vpack.c.b16 %v9711, %v9710
      %v9729 = vpack.c.b16 %v9713, %v9712
      %9730 = vrot.lane.b32.xlu0 %v9714, 64
      %v9731 = vpop.permute.xlu0 %9730
      %9732 = vrot.lane.b32.xlu0 %v9715, 64
      %v9733 = vpop.permute.xlu0 %9732
      %9734 = vrot.lane.b32.xlu0 %v9716, 64
      %v9735 = vpop.permute.xlu0 %9734
      %9736 = vrot.lane.b32.xlu0 %v9717, 64
      %v9737 = vpop.permute.xlu0 %9736
      %9738 = vrot.lane.b32.xlu0 %v9718, 64
      %v9739 = vpop.permute.xlu0 %9738
      %9740 = vrot.lane.b32.xlu0 %v9719, 64
      %v9741 = vpop.permute.xlu0 %9740
      %9742 = vrot.lane.b32.xlu0 %v9720, 64
      %v9743 = vpop.permute.xlu0 %9742
      %9744 = vrot.lane.b32.xlu0 %v9721, 64
      %v9745 = vpop.permute.xlu0 %9744
      %9746 = vrot.lane.b32.xlu0 %v9722, 64
      %v9747 = vpop.permute.xlu0 %9746
      %9748 = vrot.lane.b32.xlu0 %v9723, 64
      %v9749 = vpop.permute.xlu0 %9748
      %9750 = vrot.lane.b32.xlu0 %v9724, 64
      %v9751 = vpop.permute.xlu0 %9750
      %9752 = vrot.lane.b32.xlu0 %v9725, 64
      %v9753 = vpop.permute.xlu0 %9752
      %9754 = vrot.lane.b32.xlu0 %v9726, 64
      %v9755 = vpop.permute.xlu0 %9754
      %9756 = vrot.lane.b32.xlu0 %v9727, 64
      %v9757 = vpop.permute.xlu0 %9756
      %9758 = vrot.lane.b32.xlu0 %v9728, 64
      %v9759 = vpop.permute.xlu0 %9758
      %9760 = vrot.lane.b32.xlu0 %v9729, 64
      %v9761 = vpop.permute.xlu0 %9760
      %9778 = vst.msk [vmem:[#allocation2 + $0x8] sm:$0xff] %vm3766, %v9731
      %9779 = vst.msk [vmem:[#allocation2 + $0x18] sm:$0xff] %vm3766, %v9733
      %9780 = vst.msk [vmem:[#allocation2 + $0x28] sm:$0xff] %vm3766, %v9735
      %9781 = vst.msk [vmem:[#allocation2 + $0x38] sm:$0xff] %vm3766, %v9737
      %9782 = vst.msk [vmem:[#allocation2 + $0x48] sm:$0xff] %vm3766, %v9739
      %9783 = vst.msk [vmem:[#allocation2 + $0x58] sm:$0xff] %vm3766, %v9741
      %9784 = vst.msk [vmem:[#allocation2 + $0x68] sm:$0xff] %vm3766, %v9743
      %9785 = vst.msk [vmem:[#allocation2 + $0x78] sm:$0xff] %vm3766, %v9745
      %9786 = vst.msk [vmem:[#allocation2 + $0x88] sm:$0xff] %vm3766, %v9747
      %9787 = vst.msk [vmem:[#allocation2 + $0x98] sm:$0xff] %vm3766, %v9749
      %9788 = vst.msk [vmem:[#allocation2 + $0xa8] sm:$0xff] %vm3766, %v9751
      %9789 = vst.msk [vmem:[#allocation2 + $0xb8] sm:$0xff] %vm3766, %v9753
      %9790 = vst.msk [vmem:[#allocation2 + $0xc8] sm:$0xff] %vm3766, %v9755
      %9791 = vst.msk [vmem:[#allocation2 + $0xd8] sm:$0xff] %vm3766, %v9757
      %9792 = vst.msk [vmem:[#allocation2 + $0xe8] sm:$0xff] %vm3766, %v9759
      %9793 = vst.msk [vmem:[#allocation2 + $0xf8] sm:$0xff] %vm3766, %v9761
      %v9794 = vld [vmem:[%s9617] sm:$0xf]
      %v9795 = vld [vmem:[%s9617 + $0x4] sm:$0x1]
      %v9796 = vld [vmem:[%s9617 + $0x8] sm:$0xf]
      %v9797 = vld [vmem:[%s9617 + $0xc] sm:$0x1]
      %v9798 = vld [vmem:[%s9617 + $0x10] sm:$0xf]
      %v9799 = vld [vmem:[%s9617 + $0x14] sm:$0x1]
      %v9800 = vld [vmem:[%s9617 + $0x18] sm:$0xf]
      %v9801 = vld [vmem:[%s9617 + $0x1c] sm:$0x1]
      %v9802 = vld [vmem:[%s9617 + $0x20] sm:$0xf]
      %v9803 = vld [vmem:[%s9617 + $0x24] sm:$0x1]
      %v9804 = vld [vmem:[%s9617 + $0x28] sm:$0xf]
      %v9805 = vld [vmem:[%s9617 + $0x2c] sm:$0x1]
      %v9806 = vld [vmem:[%s9617 + $0x30] sm:$0xf]
      %v9807 = vld [vmem:[%s9617 + $0x34] sm:$0x1]
      %v9808 = vld [vmem:[%s9617 + $0x38] sm:$0xf]
      %v9809 = vld [vmem:[%s9617 + $0x3c] sm:$0x1]
      %v9810 = vld [vmem:[%s9617 + $0x50] sm:$0xf]
      %v9811 = vld [vmem:[%s9617 + $0x54] sm:$0x1]
      %v9812 = vld [vmem:[%s9617 + $0x58] sm:$0xf]
      %v9813 = vld [vmem:[%s9617 + $0x5c] sm:$0x1]
      %v9814 = vld [vmem:[%s9617 + $0x60] sm:$0xf]
      %v9815 = vld [vmem:[%s9617 + $0x64] sm:$0x1]
      %v9816 = vld [vmem:[%s9617 + $0x68] sm:$0xf]
      %v9817 = vld [vmem:[%s9617 + $0x6c] sm:$0x1]
      %v9818 = vld [vmem:[%s9617 + $0x70] sm:$0xf]
      %v9819 = vld [vmem:[%s9617 + $0x74] sm:$0x1]
      %v9820 = vld [vmem:[%s9617 + $0x78] sm:$0xf]
      %v9821 = vld [vmem:[%s9617 + $0x7c] sm:$0x1]
      %v9822 = vld [vmem:[%s9617 + $0x80] sm:$0xf]
      %v9823 = vld [vmem:[%s9617 + $0x84] sm:$0x1]
      %v9824 = vld [vmem:[%s9617 + $0x88] sm:$0xf]
      %v9825 = vld [vmem:[%s9617 + $0x8c] sm:$0x1]
      %v9826 = vld [vmem:[%s9617 + $0xa0] sm:$0xf]
      %v9827 = vld [vmem:[%s9617 + $0xa4] sm:$0x1]
      %v9828 = vld [vmem:[%s9617 + $0xa8] sm:$0xf]
      %v9829 = vld [vmem:[%s9617 + $0xac] sm:$0x1]
      %v9830 = vld [vmem:[%s9617 + $0xb0] sm:$0xf]
      %v9831 = vld [vmem:[%s9617 + $0xb4] sm:$0x1]
      %v9832 = vld [vmem:[%s9617 + $0xb8] sm:$0xf]
      %v9833 = vld [vmem:[%s9617 + $0xbc] sm:$0x1]
      %v9834 = vld [vmem:[%s9617 + $0xc0] sm:$0xf]
      %v9835 = vld [vmem:[%s9617 + $0xc4] sm:$0x1]
      %v9836 = vld [vmem:[%s9617 + $0xc8] sm:$0xf]
      %v9837 = vld [vmem:[%s9617 + $0xcc] sm:$0x1]
      %v9838 = vld [vmem:[%s9617 + $0xd0] sm:$0xf]
      %v9839 = vld [vmem:[%s9617 + $0xd4] sm:$0x1]
      %v9840 = vld [vmem:[%s9617 + $0xd8] sm:$0xf]
      %v9841 = vld [vmem:[%s9617 + $0xdc] sm:$0x1]
      %v9842 = vld [vmem:[%s9617 + $0xf0] sm:$0xf]
      %v9843 = vld [vmem:[%s9617 + $0xf4] sm:$0x1]
      %v9844 = vld [vmem:[%s9617 + $0xf8] sm:$0xf]
      %v9845 = vld [vmem:[%s9617 + $0xfc] sm:$0x1]
      %v9846 = vld [vmem:[%s9617 + $0x100] sm:$0xf]
      %v9847 = vld [vmem:[%s9617 + $0x104] sm:$0x1]
      %v9848 = vld [vmem:[%s9617 + $0x108] sm:$0xf]
      %v9849 = vld [vmem:[%s9617 + $0x10c] sm:$0x1]
      %v9850 = vld [vmem:[%s9617 + $0x110] sm:$0xf]
      %v9851 = vld [vmem:[%s9617 + $0x114] sm:$0x1]
      %v9852 = vld [vmem:[%s9617 + $0x118] sm:$0xf]
      %v9853 = vld [vmem:[%s9617 + $0x11c] sm:$0x1]
      %v9854 = vld [vmem:[%s9617 + $0x120] sm:$0xf]
      %v9855 = vld [vmem:[%s9617 + $0x124] sm:$0x1]
      %v9856 = vld [vmem:[%s9617 + $0x128] sm:$0xf]
      %v9857 = vld [vmem:[%s9617 + $0x12c] sm:$0x1]
      %v9859 = vshrl.u32 %v9794, 16
      %v9861 = vrot.slane %v9859, 4
      %v9862 = vshll.u32 %v9794, 16
      %v9864 = vrot.slane %v9862, 5
      %v9865 = vor.u32 %v9861, %v9864
      %v9866 = vrot.slane %v9865, 4
      %v9868 = vshll.u32 %v9795, 16
      %v9870 = vrot.slane %v9868, 5
      %v9871 = vsel %vm501, %v9866, %v9870
      %v9873 = vshrl.u32 %v9796, 16
      %v9875 = vrot.slane %v9873, 4
      %v9876 = vshll.u32 %v9796, 16
      %v9878 = vrot.slane %v9876, 5
      %v9879 = vor.u32 %v9875, %v9878
      %v9880 = vrot.slane %v9879, 4
      %v9882 = vshll.u32 %v9797, 16
      %v9884 = vrot.slane %v9882, 5
      %v9885 = vsel %vm501, %v9880, %v9884
      %v9887 = vshrl.u32 %v9798, 16
      %v9889 = vrot.slane %v9887, 4
      %v9890 = vshll.u32 %v9798, 16
      %v9892 = vrot.slane %v9890, 5
      %v9893 = vor.u32 %v9889, %v9892
      %v9894 = vrot.slane %v9893, 4
      %v9896 = vshll.u32 %v9799, 16
      %v9898 = vrot.slane %v9896, 5
      %v9899 = vsel %vm501, %v9894, %v9898
      %v9901 = vshrl.u32 %v9800, 16
      %v9903 = vrot.slane %v9901, 4
      %v9904 = vshll.u32 %v9800, 16
      %v9906 = vrot.slane %v9904, 5
      %v9907 = vor.u32 %v9903, %v9906
      %v9908 = vrot.slane %v9907, 4
      %v9910 = vshll.u32 %v9801, 16
      %v9912 = vrot.slane %v9910, 5
      %v9913 = vsel %vm501, %v9908, %v9912
      %v9915 = vshrl.u32 %v9802, 16
      %v9917 = vrot.slane %v9915, 4
      %v9918 = vshll.u32 %v9802, 16
      %v9920 = vrot.slane %v9918, 5
      %v9921 = vor.u32 %v9917, %v9920
      %v9922 = vrot.slane %v9921, 4
      %v9924 = vshll.u32 %v9803, 16
      %v9926 = vrot.slane %v9924, 5
      %v9927 = vsel %vm501, %v9922, %v9926
      %v9929 = vshrl.u32 %v9804, 16
      %v9931 = vrot.slane %v9929, 4
      %v9932 = vshll.u32 %v9804, 16
      %v9934 = vrot.slane %v9932, 5
      %v9935 = vor.u32 %v9931, %v9934
      %v9936 = vrot.slane %v9935, 4
      %v9938 = vshll.u32 %v9805, 16
      %v9940 = vrot.slane %v9938, 5
      %v9941 = vsel %vm501, %v9936, %v9940
      %v9943 = vshrl.u32 %v9806, 16
      %v9945 = vrot.slane %v9943, 4
      %v9946 = vshll.u32 %v9806, 16
      %v9948 = vrot.slane %v9946, 5
      %v9949 = vor.u32 %v9945, %v9948
      %v9950 = vrot.slane %v9949, 4
      %v9952 = vshll.u32 %v9807, 16
      %v9954 = vrot.slane %v9952, 5
      %v9955 = vsel %vm501, %v9950, %v9954
      %v9957 = vshrl.u32 %v9808, 16
      %v9959 = vrot.slane %v9957, 4
      %v9960 = vshll.u32 %v9808, 16
      %v9962 = vrot.slane %v9960, 5
      %v9963 = vor.u32 %v9959, %v9962
      %v9964 = vrot.slane %v9963, 4
      %v9966 = vshll.u32 %v9809, 16
      %v9968 = vrot.slane %v9966, 5
      %v9969 = vsel %vm501, %v9964, %v9968
      %v9971 = vshrl.u32 %v9810, 16
      %v9973 = vrot.slane %v9971, 4
      %v9974 = vshll.u32 %v9810, 16
      %v9976 = vrot.slane %v9974, 5
      %v9977 = vor.u32 %v9973, %v9976
      %v9978 = vrot.slane %v9977, 4
      %v9980 = vshll.u32 %v9811, 16
      %v9982 = vrot.slane %v9980, 5
      %v9983 = vsel %vm501, %v9978, %v9982
      %v9985 = vshrl.u32 %v9812, 16
      %v9987 = vrot.slane %v9985, 4
      %v9988 = vshll.u32 %v9812, 16
      %v9990 = vrot.slane %v9988, 5
      %v9991 = vor.u32 %v9987, %v9990
      %v9992 = vrot.slane %v9991, 4
      %v9994 = vshll.u32 %v9813, 16
      %v9996 = vrot.slane %v9994, 5
      %v9997 = vsel %vm501, %v9992, %v9996
      %v9999 = vshrl.u32 %v9814, 16
      %v10001 = vrot.slane %v9999, 4
      %v10002 = vshll.u32 %v9814, 16
      %v10004 = vrot.slane %v10002, 5
      %v10005 = vor.u32 %v10001, %v10004
      %v10006 = vrot.slane %v10005, 4
      %v10008 = vshll.u32 %v9815, 16
      %v10010 = vrot.slane %v10008, 5
      %v10011 = vsel %vm501, %v10006, %v10010
      %v10013 = vshrl.u32 %v9816, 16
      %v10015 = vrot.slane %v10013, 4
      %v10016 = vshll.u32 %v9816, 16
      %v10018 = vrot.slane %v10016, 5
      %v10019 = vor.u32 %v10015, %v10018
      %v10020 = vrot.slane %v10019, 4
      %v10022 = vshll.u32 %v9817, 16
      %v10024 = vrot.slane %v10022, 5
      %v10025 = vsel %vm501, %v10020, %v10024
      %v10027 = vshrl.u32 %v9818, 16
      %v10029 = vrot.slane %v10027, 4
      %v10030 = vshll.u32 %v9818, 16
      %v10032 = vrot.slane %v10030, 5
      %v10033 = vor.u32 %v10029, %v10032
      %v10034 = vrot.slane %v10033, 4
      %v10036 = vshll.u32 %v9819, 16
      %v10038 = vrot.slane %v10036, 5
      %v10039 = vsel %vm501, %v10034, %v10038
      %v10041 = vshrl.u32 %v9820, 16
      %v10043 = vrot.slane %v10041, 4
      %v10044 = vshll.u32 %v9820, 16
      %v10046 = vrot.slane %v10044, 5
      %v10047 = vor.u32 %v10043, %v10046
      %v10048 = vrot.slane %v10047, 4
      %v10050 = vshll.u32 %v9821, 16
      %v10052 = vrot.slane %v10050, 5
      %v10053 = vsel %vm501, %v10048, %v10052
      %v10055 = vshrl.u32 %v9822, 16
      %v10057 = vrot.slane %v10055, 4
      %v10058 = vshll.u32 %v9822, 16
      %v10060 = vrot.slane %v10058, 5
      %v10061 = vor.u32 %v10057, %v10060
      %v10062 = vrot.slane %v10061, 4
      %v10064 = vshll.u32 %v9823, 16
      %v10066 = vrot.slane %v10064, 5
      %v10067 = vsel %vm501, %v10062, %v10066
      %v10069 = vshrl.u32 %v9824, 16
      %v10071 = vrot.slane %v10069, 4
      %v10072 = vshll.u32 %v9824, 16
      %v10074 = vrot.slane %v10072, 5
      %v10075 = vor.u32 %v10071, %v10074
      %v10076 = vrot.slane %v10075, 4
      %v10078 = vshll.u32 %v9825, 16
      %v10080 = vrot.slane %v10078, 5
      %v10081 = vsel %vm501, %v10076, %v10080
      %v10083 = vshrl.u32 %v9826, 16
      %v10085 = vrot.slane %v10083, 4
      %v10086 = vshll.u32 %v9826, 16
      %v10088 = vrot.slane %v10086, 5
      %v10089 = vor.u32 %v10085, %v10088
      %v10090 = vrot.slane %v10089, 4
      %v10092 = vshll.u32 %v9827, 16
      %v10094 = vrot.slane %v10092, 5
      %v10095 = vsel %vm501, %v10090, %v10094
      %v10097 = vshrl.u32 %v9828, 16
      %v10099 = vrot.slane %v10097, 4
      %v10100 = vshll.u32 %v9828, 16
      %v10102 = vrot.slane %v10100, 5
      %v10103 = vor.u32 %v10099, %v10102
      %v10104 = vrot.slane %v10103, 4
      %v10106 = vshll.u32 %v9829, 16
      %v10108 = vrot.slane %v10106, 5
      %v10109 = vsel %vm501, %v10104, %v10108
      %v10111 = vshrl.u32 %v9830, 16
      %v10113 = vrot.slane %v10111, 4
      %v10114 = vshll.u32 %v9830, 16
      %v10116 = vrot.slane %v10114, 5
      %v10117 = vor.u32 %v10113, %v10116
      %v10118 = vrot.slane %v10117, 4
      %v10120 = vshll.u32 %v9831, 16
      %v10122 = vrot.slane %v10120, 5
      %v10123 = vsel %vm501, %v10118, %v10122
      %v10125 = vshrl.u32 %v9832, 16
      %v10127 = vrot.slane %v10125, 4
      %v10128 = vshll.u32 %v9832, 16
      %v10130 = vrot.slane %v10128, 5
      %v10131 = vor.u32 %v10127, %v10130
      %v10132 = vrot.slane %v10131, 4
      %v10134 = vshll.u32 %v9833, 16
      %v10136 = vrot.slane %v10134, 5
      %v10137 = vsel %vm501, %v10132, %v10136
      %v10139 = vshrl.u32 %v9834, 16
      %v10141 = vrot.slane %v10139, 4
      %v10142 = vshll.u32 %v9834, 16
      %v10144 = vrot.slane %v10142, 5
      %v10145 = vor.u32 %v10141, %v10144
      %v10146 = vrot.slane %v10145, 4
      %v10148 = vshll.u32 %v9835, 16
      %v10150 = vrot.slane %v10148, 5
      %v10151 = vsel %vm501, %v10146, %v10150
      %v10153 = vshrl.u32 %v9836, 16
      %v10155 = vrot.slane %v10153, 4
      %v10156 = vshll.u32 %v9836, 16
      %v10158 = vrot.slane %v10156, 5
      %v10159 = vor.u32 %v10155, %v10158
      %v10160 = vrot.slane %v10159, 4
      %v10162 = vshll.u32 %v9837, 16
      %v10164 = vrot.slane %v10162, 5
      %v10165 = vsel %vm501, %v10160, %v10164
      %v10167 = vshrl.u32 %v9838, 16
      %v10169 = vrot.slane %v10167, 4
      %v10170 = vshll.u32 %v9838, 16
      %v10172 = vrot.slane %v10170, 5
      %v10173 = vor.u32 %v10169, %v10172
      %v10174 = vrot.slane %v10173, 4
      %v10176 = vshll.u32 %v9839, 16
      %v10178 = vrot.slane %v10176, 5
      %v10179 = vsel %vm501, %v10174, %v10178
      %v10181 = vshrl.u32 %v9840, 16
      %v10183 = vrot.slane %v10181, 4
      %v10184 = vshll.u32 %v9840, 16
      %v10186 = vrot.slane %v10184, 5
      %v10187 = vor.u32 %v10183, %v10186
      %v10188 = vrot.slane %v10187, 4
      %v10190 = vshll.u32 %v9841, 16
      %v10192 = vrot.slane %v10190, 5
      %v10193 = vsel %vm501, %v10188, %v10192
      %v10195 = vshrl.u32 %v9842, 16
      %v10197 = vrot.slane %v10195, 4
      %v10198 = vshll.u32 %v9842, 16
      %v10200 = vrot.slane %v10198, 5
      %v10201 = vor.u32 %v10197, %v10200
      %v10202 = vrot.slane %v10201, 4
      %v10204 = vshll.u32 %v9843, 16
      %v10206 = vrot.slane %v10204, 5
      %v10207 = vsel %vm501, %v10202, %v10206
      %v10209 = vshrl.u32 %v9844, 16
      %v10211 = vrot.slane %v10209, 4
      %v10212 = vshll.u32 %v9844, 16
      %v10214 = vrot.slane %v10212, 5
      %v10215 = vor.u32 %v10211, %v10214
      %v10216 = vrot.slane %v10215, 4
      %v10218 = vshll.u32 %v9845, 16
      %v10220 = vrot.slane %v10218, 5
      %v10221 = vsel %vm501, %v10216, %v10220
      %v10223 = vshrl.u32 %v9846, 16
      %v10225 = vrot.slane %v10223, 4
      %v10226 = vshll.u32 %v9846, 16
      %v10228 = vrot.slane %v10226, 5
      %v10229 = vor.u32 %v10225, %v10228
      %v10230 = vrot.slane %v10229, 4
      %v10232 = vshll.u32 %v9847, 16
      %v10234 = vrot.slane %v10232, 5
      %v10235 = vsel %vm501, %v10230, %v10234
      %v10237 = vshrl.u32 %v9848, 16
      %v10239 = vrot.slane %v10237, 4
      %v10240 = vshll.u32 %v9848, 16
      %v10242 = vrot.slane %v10240, 5
      %v10243 = vor.u32 %v10239, %v10242
      %v10244 = vrot.slane %v10243, 4
      %v10246 = vshll.u32 %v9849, 16
      %v10248 = vrot.slane %v10246, 5
      %v10249 = vsel %vm501, %v10244, %v10248
      %v10251 = vshrl.u32 %v9850, 16
      %v10253 = vrot.slane %v10251, 4
      %v10254 = vshll.u32 %v9850, 16
      %v10256 = vrot.slane %v10254, 5
      %v10257 = vor.u32 %v10253, %v10256
      %v10258 = vrot.slane %v10257, 4
      %v10260 = vshll.u32 %v9851, 16
      %v10262 = vrot.slane %v10260, 5
      %v10263 = vsel %vm501, %v10258, %v10262
      %v10265 = vshrl.u32 %v9852, 16
      %v10267 = vrot.slane %v10265, 4
      %v10268 = vshll.u32 %v9852, 16
      %v10270 = vrot.slane %v10268, 5
      %v10271 = vor.u32 %v10267, %v10270
      %v10272 = vrot.slane %v10271, 4
      %v10274 = vshll.u32 %v9853, 16
      %v10276 = vrot.slane %v10274, 5
      %v10277 = vsel %vm501, %v10272, %v10276
      %v10279 = vshrl.u32 %v9854, 16
      %v10281 = vrot.slane %v10279, 4
      %v10282 = vshll.u32 %v9854, 16
      %v10284 = vrot.slane %v10282, 5
      %v10285 = vor.u32 %v10281, %v10284
      %v10286 = vrot.slane %v10285, 4
      %v10288 = vshll.u32 %v9855, 16
      %v10290 = vrot.slane %v10288, 5
      %v10291 = vsel %vm501, %v10286, %v10290
      %v10293 = vshrl.u32 %v9856, 16
      %v10295 = vrot.slane %v10293, 4
      %v10296 = vshll.u32 %v9856, 16
      %v10298 = vrot.slane %v10296, 5
      %v10299 = vor.u32 %v10295, %v10298
      %v10300 = vrot.slane %v10299, 4
      %v10302 = vshll.u32 %v9857, 16
      %v10304 = vrot.slane %v10302, 5
      %v10305 = vsel %vm501, %v10300, %v10304
      %v10306 = vunpack.c.l.b16 %v9871
      %v10307 = vunpack.c.l.b16 %v9885
      %v10308 = vunpack.c.l.b16 %v9899
      %v10309 = vunpack.c.l.b16 %v9913
      %v10310 = vunpack.c.l.b16 %v9927
      %v10311 = vunpack.c.l.b16 %v9941
      %v10312 = vunpack.c.l.b16 %v9955
      %v10313 = vunpack.c.l.b16 %v9969
      %v10314 = vunpack.c.l.b16 %v9983
      %v10315 = vunpack.c.l.b16 %v9997
      %v10316 = vunpack.c.l.b16 %v10011
      %v10317 = vunpack.c.l.b16 %v10025
      %v10318 = vunpack.c.l.b16 %v10039
      %v10319 = vunpack.c.l.b16 %v10053
      %v10320 = vunpack.c.l.b16 %v10067
      %v10321 = vunpack.c.l.b16 %v10081
      %v10322 = vunpack.c.l.b16 %v10095
      %v10323 = vunpack.c.l.b16 %v10109
      %v10324 = vunpack.c.l.b16 %v10123
      %v10325 = vunpack.c.l.b16 %v10137
      %v10326 = vunpack.c.l.b16 %v10151
      %v10327 = vunpack.c.l.b16 %v10165
      %v10328 = vunpack.c.l.b16 %v10179
      %v10329 = vunpack.c.l.b16 %v10193
      %v10330 = vunpack.c.l.b16 %v10207
      %v10331 = vunpack.c.l.b16 %v10221
      %v10332 = vunpack.c.l.b16 %v10235
      %v10333 = vunpack.c.l.b16 %v10249
      %v10334 = vunpack.c.l.b16 %v10263
      %v10335 = vunpack.c.l.b16 %v10277
      %v10336 = vunpack.c.l.b16 %v10291
      %v10337 = vunpack.c.l.b16 %v10305
      %v10338 = vpack.c.b16 %v10307, %v10306
      %v10339 = vpack.c.b16 %v10309, %v10308
      %v10340 = vpack.c.b16 %v10311, %v10310
      %v10341 = vpack.c.b16 %v10313, %v10312
      %v10342 = vpack.c.b16 %v10315, %v10314
      %v10343 = vpack.c.b16 %v10317, %v10316
      %v10344 = vpack.c.b16 %v10319, %v10318
      %v10345 = vpack.c.b16 %v10321, %v10320
      %v10346 = vpack.c.b16 %v10323, %v10322
      %v10347 = vpack.c.b16 %v10325, %v10324
      %v10348 = vpack.c.b16 %v10327, %v10326
      %v10349 = vpack.c.b16 %v10329, %v10328
      %v10350 = vpack.c.b16 %v10331, %v10330
      %v10351 = vpack.c.b16 %v10333, %v10332
      %v10352 = vpack.c.b16 %v10335, %v10334
      %v10353 = vpack.c.b16 %v10337, %v10336
      %10354 = vrot.lane.b32.xlu0 %v10338, 72
      %v10355 = vpop.permute.xlu0 %10354
      %10356 = vrot.lane.b32.xlu0 %v10339, 72
      %v10357 = vpop.permute.xlu0 %10356
      %10358 = vrot.lane.b32.xlu0 %v10340, 72
      %v10359 = vpop.permute.xlu0 %10358
      %10360 = vrot.lane.b32.xlu0 %v10341, 72
      %v10361 = vpop.permute.xlu0 %10360
      %10362 = vrot.lane.b32.xlu0 %v10342, 72
      %v10363 = vpop.permute.xlu0 %10362
      %10364 = vrot.lane.b32.xlu0 %v10343, 72
      %v10365 = vpop.permute.xlu0 %10364
      %10366 = vrot.lane.b32.xlu0 %v10344, 72
      %v10367 = vpop.permute.xlu0 %10366
      %10368 = vrot.lane.b32.xlu0 %v10345, 72
      %v10369 = vpop.permute.xlu0 %10368
      %10370 = vrot.lane.b32.xlu0 %v10346, 72
      %v10371 = vpop.permute.xlu0 %10370
      %10372 = vrot.lane.b32.xlu0 %v10347, 72
      %v10373 = vpop.permute.xlu0 %10372
      %10374 = vrot.lane.b32.xlu0 %v10348, 72
      %v10375 = vpop.permute.xlu0 %10374
      %10376 = vrot.lane.b32.xlu0 %v10349, 72
      %v10377 = vpop.permute.xlu0 %10376
      %10378 = vrot.lane.b32.xlu0 %v10350, 72
      %v10379 = vpop.permute.xlu0 %10378
      %10380 = vrot.lane.b32.xlu0 %v10351, 72
      %v10381 = vpop.permute.xlu0 %10380
      %10382 = vrot.lane.b32.xlu0 %v10352, 72
      %v10383 = vpop.permute.xlu0 %10382
      %10384 = vrot.lane.b32.xlu0 %v10353, 72
      %v10385 = vpop.permute.xlu0 %10384
      %10402 = vst.msk [vmem:[#allocation2 + $0x8] sm:$0xff] %vm3947, %v10355
      %10403 = vst.msk [vmem:[#allocation2 + $0x18] sm:$0xff] %vm3947, %v10357
      %10404 = vst.msk [vmem:[#allocation2 + $0x28] sm:$0xff] %vm3947, %v10359
      %10405 = vst.msk [vmem:[#allocation2 + $0x38] sm:$0xff] %vm3947, %v10361
      %10406 = vst.msk [vmem:[#allocation2 + $0x48] sm:$0xff] %vm3947, %v10363
      %10407 = vst.msk [vmem:[#allocation2 + $0x58] sm:$0xff] %vm3947, %v10365
      %10408 = vst.msk [vmem:[#allocation2 + $0x68] sm:$0xff] %vm3947, %v10367
      %10409 = vst.msk [vmem:[#allocation2 + $0x78] sm:$0xff] %vm3947, %v10369
      %10410 = vst.msk [vmem:[#allocation2 + $0x88] sm:$0xff] %vm3947, %v10371
      %10411 = vst.msk [vmem:[#allocation2 + $0x98] sm:$0xff] %vm3947, %v10373
      %10412 = vst.msk [vmem:[#allocation2 + $0xa8] sm:$0xff] %vm3947, %v10375
      %10413 = vst.msk [vmem:[#allocation2 + $0xb8] sm:$0xff] %vm3947, %v10377
      %10414 = vst.msk [vmem:[#allocation2 + $0xc8] sm:$0xff] %vm3947, %v10379
      %10415 = vst.msk [vmem:[#allocation2 + $0xd8] sm:$0xff] %vm3947, %v10381
      %10416 = vst.msk [vmem:[#allocation2 + $0xe8] sm:$0xff] %vm3947, %v10383
      %10417 = vst.msk [vmem:[#allocation2 + $0xf8] sm:$0xff] %vm3947, %v10385
      %v10418 = vld [vmem:[%s9617] sm:$0xe]
      %v10419 = vld [vmem:[%s9617 + $0x4] sm:$0x1]
      %v10420 = vld [vmem:[%s9617 + $0x8] sm:$0xe]
      %v10421 = vld [vmem:[%s9617 + $0xc] sm:$0x1]
      %v10422 = vld [vmem:[%s9617 + $0x10] sm:$0xe]
      %v10423 = vld [vmem:[%s9617 + $0x14] sm:$0x1]
      %v10424 = vld [vmem:[%s9617 + $0x18] sm:$0xe]
      %v10425 = vld [vmem:[%s9617 + $0x1c] sm:$0x1]
      %v10426 = vld [vmem:[%s9617 + $0x20] sm:$0xe]
      %v10427 = vld [vmem:[%s9617 + $0x24] sm:$0x1]
      %v10428 = vld [vmem:[%s9617 + $0x28] sm:$0xe]
      %v10429 = vld [vmem:[%s9617 + $0x2c] sm:$0x1]
      %v10430 = vld [vmem:[%s9617 + $0x30] sm:$0xe]
      %v10431 = vld [vmem:[%s9617 + $0x34] sm:$0x1]
      %v10432 = vld [vmem:[%s9617 + $0x38] sm:$0xe]
      %v10433 = vld [vmem:[%s9617 + $0x3c] sm:$0x1]
      %v10434 = vld [vmem:[%s9617 + $0x50] sm:$0xe]
      %v10435 = vld [vmem:[%s9617 + $0x54] sm:$0x1]
      %v10436 = vld [vmem:[%s9617 + $0x58] sm:$0xe]
      %v10437 = vld [vmem:[%s9617 + $0x5c] sm:$0x1]
      %v10438 = vld [vmem:[%s9617 + $0x60] sm:$0xe]
      %v10439 = vld [vmem:[%s9617 + $0x64] sm:$0x1]
      %v10440 = vld [vmem:[%s9617 + $0x68] sm:$0xe]
      %v10441 = vld [vmem:[%s9617 + $0x6c] sm:$0x1]
      %v10442 = vld [vmem:[%s9617 + $0x70] sm:$0xe]
      %v10443 = vld [vmem:[%s9617 + $0x74] sm:$0x1]
      %v10444 = vld [vmem:[%s9617 + $0x78] sm:$0xe]
      %v10445 = vld [vmem:[%s9617 + $0x7c] sm:$0x1]
      %v10446 = vld [vmem:[%s9617 + $0x80] sm:$0xe]
      %v10447 = vld [vmem:[%s9617 + $0x84] sm:$0x1]
      %v10448 = vld [vmem:[%s9617 + $0x88] sm:$0xe]
      %v10449 = vld [vmem:[%s9617 + $0x8c] sm:$0x1]
      %v10450 = vld [vmem:[%s9617 + $0xa0] sm:$0xe]
      %v10451 = vld [vmem:[%s9617 + $0xa4] sm:$0x1]
      %v10452 = vld [vmem:[%s9617 + $0xa8] sm:$0xe]
      %v10453 = vld [vmem:[%s9617 + $0xac] sm:$0x1]
      %v10454 = vld [vmem:[%s9617 + $0xb0] sm:$0xe]
      %v10455 = vld [vmem:[%s9617 + $0xb4] sm:$0x1]
      %v10456 = vld [vmem:[%s9617 + $0xb8] sm:$0xe]
      %v10457 = vld [vmem:[%s9617 + $0xbc] sm:$0x1]
      %v10458 = vld [vmem:[%s9617 + $0xc0] sm:$0xe]
      %v10459 = vld [vmem:[%s9617 + $0xc4] sm:$0x1]
      %v10460 = vld [vmem:[%s9617 + $0xc8] sm:$0xe]
      %v10461 = vld [vmem:[%s9617 + $0xcc] sm:$0x1]
      %v10462 = vld [vmem:[%s9617 + $0xd0] sm:$0xe]
      %v10463 = vld [vmem:[%s9617 + $0xd4] sm:$0x1]
      %v10464 = vld [vmem:[%s9617 + $0xd8] sm:$0xe]
      %v10465 = vld [vmem:[%s9617 + $0xdc] sm:$0x1]
      %v10466 = vld [vmem:[%s9617 + $0xf0] sm:$0xe]
      %v10467 = vld [vmem:[%s9617 + $0xf4] sm:$0x1]
      %v10468 = vld [vmem:[%s9617 + $0xf8] sm:$0xe]
      %v10469 = vld [vmem:[%s9617 + $0xfc] sm:$0x1]
      %v10470 = vld [vmem:[%s9617 + $0x100] sm:$0xe]
      %v10471 = vld [vmem:[%s9617 + $0x104] sm:$0x1]
      %v10472 = vld [vmem:[%s9617 + $0x108] sm:$0xe]
      %v10473 = vld [vmem:[%s9617 + $0x10c] sm:$0x1]
      %v10474 = vld [vmem:[%s9617 + $0x110] sm:$0xe]
      %v10475 = vld [vmem:[%s9617 + $0x114] sm:$0x1]
      %v10476 = vld [vmem:[%s9617 + $0x118] sm:$0xe]
      %v10477 = vld [vmem:[%s9617 + $0x11c] sm:$0x1]
      %v10478 = vld [vmem:[%s9617 + $0x120] sm:$0xe]
      %v10479 = vld [vmem:[%s9617 + $0x124] sm:$0x1]
      %v10480 = vld [vmem:[%s9617 + $0x128] sm:$0xe]
      %v10481 = vld [vmem:[%s9617 + $0x12c] sm:$0x1]
      %v10546 = vrot.slane %v10418, 5
      %v10547 = vrot.slane %v10546, 4
      %v10548 = vrot.slane %v10419, 5
      %v10549 = vsel %vm1193, %v10547, %v10548
      %v10550 = vrot.slane %v10420, 5
      %v10551 = vrot.slane %v10550, 4
      %v10552 = vrot.slane %v10421, 5
      %v10553 = vsel %vm1193, %v10551, %v10552
      %v10554 = vrot.slane %v10422, 5
      %v10555 = vrot.slane %v10554, 4
      %v10556 = vrot.slane %v10423, 5
      %v10557 = vsel %vm1193, %v10555, %v10556
      %v10558 = vrot.slane %v10424, 5
      %v10559 = vrot.slane %v10558, 4
      %v10560 = vrot.slane %v10425, 5
      %v10561 = vsel %vm1193, %v10559, %v10560
      %v10562 = vrot.slane %v10426, 5
      %v10563 = vrot.slane %v10562, 4
      %v10564 = vrot.slane %v10427, 5
      %v10565 = vsel %vm1193, %v10563, %v10564
      %v10566 = vrot.slane %v10428, 5
      %v10567 = vrot.slane %v10566, 4
      %v10568 = vrot.slane %v10429, 5
      %v10569 = vsel %vm1193, %v10567, %v10568
      %v10570 = vrot.slane %v10430, 5
      %v10571 = vrot.slane %v10570, 4
      %v10572 = vrot.slane %v10431, 5
      %v10573 = vsel %vm1193, %v10571, %v10572
      %v10574 = vrot.slane %v10432, 5
      %v10575 = vrot.slane %v10574, 4
      %v10576 = vrot.slane %v10433, 5
      %v10577 = vsel %vm1193, %v10575, %v10576
      %v10578 = vrot.slane %v10434, 5
      %v10579 = vrot.slane %v10578, 4
      %v10580 = vrot.slane %v10435, 5
      %v10581 = vsel %vm1193, %v10579, %v10580
      %v10582 = vrot.slane %v10436, 5
      %v10583 = vrot.slane %v10582, 4
      %v10584 = vrot.slane %v10437, 5
      %v10585 = vsel %vm1193, %v10583, %v10584
      %v10586 = vrot.slane %v10438, 5
      %v10587 = vrot.slane %v10586, 4
      %v10588 = vrot.slane %v10439, 5
      %v10589 = vsel %vm1193, %v10587, %v10588
      %v10590 = vrot.slane %v10440, 5
      %v10591 = vrot.slane %v10590, 4
      %v10592 = vrot.slane %v10441, 5
      %v10593 = vsel %vm1193, %v10591, %v10592
      %v10594 = vrot.slane %v10442, 5
      %v10595 = vrot.slane %v10594, 4
      %v10596 = vrot.slane %v10443, 5
      %v10597 = vsel %vm1193, %v10595, %v10596
      %v10598 = vrot.slane %v10444, 5
      %v10599 = vrot.slane %v10598, 4
      %v10600 = vrot.slane %v10445, 5
      %v10601 = vsel %vm1193, %v10599, %v10600
      %v10602 = vrot.slane %v10446, 5
      %v10603 = vrot.slane %v10602, 4
      %v10604 = vrot.slane %v10447, 5
      %v10605 = vsel %vm1193, %v10603, %v10604
      %v10606 = vrot.slane %v10448, 5
      %v10607 = vrot.slane %v10606, 4
      %v10608 = vrot.slane %v10449, 5
      %v10609 = vsel %vm1193, %v10607, %v10608
      %v10610 = vrot.slane %v10450, 5
      %v10611 = vrot.slane %v10610, 4
      %v10612 = vrot.slane %v10451, 5
      %v10613 = vsel %vm1193, %v10611, %v10612
      %v10614 = vrot.slane %v10452, 5
      %v10615 = vrot.slane %v10614, 4
      %v10616 = vrot.slane %v10453, 5
      %v10617 = vsel %vm1193, %v10615, %v10616
      %v10618 = vrot.slane %v10454, 5
      %v10619 = vrot.slane %v10618, 4
      %v10620 = vrot.slane %v10455, 5
      %v10621 = vsel %vm1193, %v10619, %v10620
      %v10622 = vrot.slane %v10456, 5
      %v10623 = vrot.slane %v10622, 4
      %v10624 = vrot.slane %v10457, 5
      %v10625 = vsel %vm1193, %v10623, %v10624
      %v10626 = vrot.slane %v10458, 5
      %v10627 = vrot.slane %v10626, 4
      %v10628 = vrot.slane %v10459, 5
      %v10629 = vsel %vm1193, %v10627, %v10628
      %v10630 = vrot.slane %v10460, 5
      %v10631 = vrot.slane %v10630, 4
      %v10632 = vrot.slane %v10461, 5
      %v10633 = vsel %vm1193, %v10631, %v10632
      %v10634 = vrot.slane %v10462, 5
      %v10635 = vrot.slane %v10634, 4
      %v10636 = vrot.slane %v10463, 5
      %v10637 = vsel %vm1193, %v10635, %v10636
      %v10638 = vrot.slane %v10464, 5
      %v10639 = vrot.slane %v10638, 4
      %v10640 = vrot.slane %v10465, 5
      %v10641 = vsel %vm1193, %v10639, %v10640
      %v10642 = vrot.slane %v10466, 5
      %v10643 = vrot.slane %v10642, 4
      %v10644 = vrot.slane %v10467, 5
      %v10645 = vsel %vm1193, %v10643, %v10644
      %v10646 = vrot.slane %v10468, 5
      %v10647 = vrot.slane %v10646, 4
      %v10648 = vrot.slane %v10469, 5
      %v10649 = vsel %vm1193, %v10647, %v10648
      %v10650 = vrot.slane %v10470, 5
      %v10651 = vrot.slane %v10650, 4
      %v10652 = vrot.slane %v10471, 5
      %v10653 = vsel %vm1193, %v10651, %v10652
      %v10654 = vrot.slane %v10472, 5
      %v10655 = vrot.slane %v10654, 4
      %v10656 = vrot.slane %v10473, 5
      %v10657 = vsel %vm1193, %v10655, %v10656
      %v10658 = vrot.slane %v10474, 5
      %v10659 = vrot.slane %v10658, 4
      %v10660 = vrot.slane %v10475, 5
      %v10661 = vsel %vm1193, %v10659, %v10660
      %v10662 = vrot.slane %v10476, 5
      %v10663 = vrot.slane %v10662, 4
      %v10664 = vrot.slane %v10477, 5
      %v10665 = vsel %vm1193, %v10663, %v10664
      %v10666 = vrot.slane %v10478, 5
      %v10667 = vrot.slane %v10666, 4
      %v10668 = vrot.slane %v10479, 5
      %v10669 = vsel %vm1193, %v10667, %v10668
      %v10670 = vrot.slane %v10480, 5
      %v10671 = vrot.slane %v10670, 4
      %v10672 = vrot.slane %v10481, 5
      %v10673 = vsel %vm1193, %v10671, %v10672
      %v10674 = vunpack.c.l.b16 %v10549
      %v10675 = vunpack.c.l.b16 %v10553
      %v10676 = vunpack.c.l.b16 %v10557
      %v10677 = vunpack.c.l.b16 %v10561
      %v10678 = vunpack.c.l.b16 %v10565
      %v10679 = vunpack.c.l.b16 %v10569
      %v10680 = vunpack.c.l.b16 %v10573
      %v10681 = vunpack.c.l.b16 %v10577
      %v10682 = vunpack.c.l.b16 %v10581
      %v10683 = vunpack.c.l.b16 %v10585
      %v10684 = vunpack.c.l.b16 %v10589
      %v10685 = vunpack.c.l.b16 %v10593
      %v10686 = vunpack.c.l.b16 %v10597
      %v10687 = vunpack.c.l.b16 %v10601
      %v10688 = vunpack.c.l.b16 %v10605
      %v10689 = vunpack.c.l.b16 %v10609
      %v10690 = vunpack.c.l.b16 %v10613
      %v10691 = vunpack.c.l.b16 %v10617
      %v10692 = vunpack.c.l.b16 %v10621
      %v10693 = vunpack.c.l.b16 %v10625
      %v10694 = vunpack.c.l.b16 %v10629
      %v10695 = vunpack.c.l.b16 %v10633
      %v10696 = vunpack.c.l.b16 %v10637
      %v10697 = vunpack.c.l.b16 %v10641
      %v10698 = vunpack.c.l.b16 %v10645
      %v10699 = vunpack.c.l.b16 %v10649
      %v10700 = vunpack.c.l.b16 %v10653
      %v10701 = vunpack.c.l.b16 %v10657
      %v10702 = vunpack.c.l.b16 %v10661
      %v10703 = vunpack.c.l.b16 %v10665
      %v10704 = vunpack.c.l.b16 %v10669
      %v10705 = vunpack.c.l.b16 %v10673
      %v10706 = vpack.c.b16 %v10675, %v10674
      %v10707 = vpack.c.b16 %v10677, %v10676
      %v10708 = vpack.c.b16 %v10679, %v10678
      %v10709 = vpack.c.b16 %v10681, %v10680
      %v10710 = vpack.c.b16 %v10683, %v10682
      %v10711 = vpack.c.b16 %v10685, %v10684
      %v10712 = vpack.c.b16 %v10687, %v10686
      %v10713 = vpack.c.b16 %v10689, %v10688
      %v10714 = vpack.c.b16 %v10691, %v10690
      %v10715 = vpack.c.b16 %v10693, %v10692
      %v10716 = vpack.c.b16 %v10695, %v10694
      %v10717 = vpack.c.b16 %v10697, %v10696
      %v10718 = vpack.c.b16 %v10699, %v10698
      %v10719 = vpack.c.b16 %v10701, %v10700
      %v10720 = vpack.c.b16 %v10703, %v10702
      %v10721 = vpack.c.b16 %v10705, %v10704
      %10722 = vrot.lane.b32.xlu0 %v10706, 80
      %v10723 = vpop.permute.xlu0 %10722
      %10724 = vrot.lane.b32.xlu0 %v10707, 80
      %v10725 = vpop.permute.xlu0 %10724
      %10726 = vrot.lane.b32.xlu0 %v10708, 80
      %v10727 = vpop.permute.xlu0 %10726
      %10728 = vrot.lane.b32.xlu0 %v10709, 80
      %v10729 = vpop.permute.xlu0 %10728
      %10730 = vrot.lane.b32.xlu0 %v10710, 80
      %v10731 = vpop.permute.xlu0 %10730
      %10732 = vrot.lane.b32.xlu0 %v10711, 80
      %v10733 = vpop.permute.xlu0 %10732
      %10734 = vrot.lane.b32.xlu0 %v10712, 80
      %v10735 = vpop.permute.xlu0 %10734
      %10736 = vrot.lane.b32.xlu0 %v10713, 80
      %v10737 = vpop.permute.xlu0 %10736
      %10738 = vrot.lane.b32.xlu0 %v10714, 80
      %v10739 = vpop.permute.xlu0 %10738
      %10740 = vrot.lane.b32.xlu0 %v10715, 80
      %v10741 = vpop.permute.xlu0 %10740
      %10742 = vrot.lane.b32.xlu0 %v10716, 80
      %v10743 = vpop.permute.xlu0 %10742
      %10744 = vrot.lane.b32.xlu0 %v10717, 80
      %v10745 = vpop.permute.xlu0 %10744
      %10746 = vrot.lane.b32.xlu0 %v10718, 80
      %v10747 = vpop.permute.xlu0 %10746
      %10748 = vrot.lane.b32.xlu0 %v10719, 80
      %v10749 = vpop.permute.xlu0 %10748
      %10750 = vrot.lane.b32.xlu0 %v10720, 80
      %v10751 = vpop.permute.xlu0 %10750
      %10752 = vrot.lane.b32.xlu0 %v10721, 80
      %v10753 = vpop.permute.xlu0 %10752
      %10770 = vst.msk [vmem:[#allocation2 + $0x8] sm:$0xff] %vm4572, %v10723
      %10771 = vst.msk [vmem:[#allocation2 + $0x18] sm:$0xff] %vm4572, %v10725
      %10772 = vst.msk [vmem:[#allocation2 + $0x28] sm:$0xff] %vm4572, %v10727
      %10773 = vst.msk [vmem:[#allocation2 + $0x38] sm:$0xff] %vm4572, %v10729
      %10774 = vst.msk [vmem:[#allocation2 + $0x48] sm:$0xff] %vm4572, %v10731
      %10775 = vst.msk [vmem:[#allocation2 + $0x58] sm:$0xff] %vm4572, %v10733
      %10776 = vst.msk [vmem:[#allocation2 + $0x68] sm:$0xff] %vm4572, %v10735
      %10777 = vst.msk [vmem:[#allocation2 + $0x78] sm:$0xff] %vm4572, %v10737
      %10778 = vst.msk [vmem:[#allocation2 + $0x88] sm:$0xff] %vm4572, %v10739
      %10779 = vst.msk [vmem:[#allocation2 + $0x98] sm:$0xff] %vm4572, %v10741
      %10780 = vst.msk [vmem:[#allocation2 + $0xa8] sm:$0xff] %vm4572, %v10743
      %10781 = vst.msk [vmem:[#allocation2 + $0xb8] sm:$0xff] %vm4572, %v10745
      %10782 = vst.msk [vmem:[#allocation2 + $0xc8] sm:$0xff] %vm4572, %v10747
      %10783 = vst.msk [vmem:[#allocation2 + $0xd8] sm:$0xff] %vm4572, %v10749
      %10784 = vst.msk [vmem:[#allocation2 + $0xe8] sm:$0xff] %vm4572, %v10751
      %10785 = vst.msk [vmem:[#allocation2 + $0xf8] sm:$0xff] %vm4572, %v10753
      %v10786 = vld [vmem:[#allocation2] sm:$0xff]
      %v10787 = vld [vmem:[#allocation2 + $0x8] sm:$0xff]
      %v10788 = vld [vmem:[#allocation2 + $0x10] sm:$0xff]
      %v10789 = vld [vmem:[#allocation2 + $0x18] sm:$0xff]
      %v10790 = vld [vmem:[#allocation2 + $0x20] sm:$0xff]
      %v10791 = vld [vmem:[#allocation2 + $0x28] sm:$0xff]
      %v10792 = vld [vmem:[#allocation2 + $0x30] sm:$0xff]
      %v10793 = vld [vmem:[#allocation2 + $0x38] sm:$0xff]
      %v10794 = vld [vmem:[#allocation2 + $0x40] sm:$0xff]
      %v10795 = vld [vmem:[#allocation2 + $0x48] sm:$0xff]
      %v10796 = vld [vmem:[#allocation2 + $0x50] sm:$0xff]
      %v10797 = vld [vmem:[#allocation2 + $0x58] sm:$0xff]
      %v10798 = vld [vmem:[#allocation2 + $0x60] sm:$0xff]
      %v10799 = vld [vmem:[#allocation2 + $0x68] sm:$0xff]
      %v10800 = vld [vmem:[#allocation2 + $0x70] sm:$0xff]
      %v10801 = vld [vmem:[#allocation2 + $0x78] sm:$0xff]
      %v10802 = vld [vmem:[#allocation2 + $0x80] sm:$0xff]
      %v10803 = vld [vmem:[#allocation2 + $0x88] sm:$0xff]
      %v10804 = vld [vmem:[#allocation2 + $0x90] sm:$0xff]
      %v10805 = vld [vmem:[#allocation2 + $0x98] sm:$0xff]
      %v10806 = vld [vmem:[#allocation2 + $0xa0] sm:$0xff]
      %v10807 = vld [vmem:[#allocation2 + $0xa8] sm:$0xff]
      %v10808 = vld [vmem:[#allocation2 + $0xb0] sm:$0xff]
      %v10809 = vld [vmem:[#allocation2 + $0xb8] sm:$0xff]
      %v10810 = vld [vmem:[#allocation2 + $0xc0] sm:$0xff]
      %v10811 = vld [vmem:[#allocation2 + $0xc8] sm:$0xff]
      %v10812 = vld [vmem:[#allocation2 + $0xd0] sm:$0xff]
      %v10813 = vld [vmem:[#allocation2 + $0xd8] sm:$0xff]
      %v10814 = vld [vmem:[#allocation2 + $0xe0] sm:$0xff]
      %v10815 = vld [vmem:[#allocation2 + $0xe8] sm:$0xff]
      %v10816 = vld [vmem:[#allocation2 + $0xf0] sm:$0xff]
      %v10817 = vld [vmem:[#allocation2 + $0xf8] sm:$0xff]
      %v10818 = vld [vmem:[%s1] sm:$0xf]
      %v10819 = vld [vmem:[%s1 + $0x4] sm:$0xf]
      %v10820 = vld [vmem:[%s1 + $0x8] sm:$0xf]
      %v10821 = vld [vmem:[%s1 + $0xc] sm:$0xf]
      %v10822 = vld [vmem:[%s1 + $0x10] sm:$0xf]
      %v10823 = vld [vmem:[%s1 + $0x14] sm:$0xf]
      %v10824 = vld [vmem:[%s1 + $0x18] sm:$0xf]
      %v10825 = vld [vmem:[%s1 + $0x1c] sm:$0xf]
      %v10826 = vld [vmem:[%s1 + $0x20] sm:$0xf]
      %v10827 = vld [vmem:[%s1 + $0x24] sm:$0xf]
      %v10828 = vld [vmem:[%s1 + $0x28] sm:$0xf]
      %v10829 = vld [vmem:[%s1 + $0x2c] sm:$0xf]
      %v10830 = vld [vmem:[%s1 + $0x30] sm:$0xf]
      %v10831 = vld [vmem:[%s1 + $0x34] sm:$0xf]
      %v10832 = vld [vmem:[%s1 + $0x38] sm:$0xf]
      %v10833 = vld [vmem:[%s1 + $0x3c] sm:$0xf]
      %v10834 = vld [vmem:[%s1 + $0x40] sm:$0xf]
      %v10835 = vld [vmem:[%s1 + $0x44] sm:$0xf]
      %v10836 = vld [vmem:[%s1 + $0x48] sm:$0xf]
      %v10837 = vld [vmem:[%s1 + $0x4c] sm:$0xf]
      %v10838 = vld [vmem:[%s1 + $0x50] sm:$0xf]
      %v10839 = vld [vmem:[%s1 + $0x54] sm:$0xf]
      %v10840 = vld [vmem:[%s1 + $0x58] sm:$0xf]
      %v10841 = vld [vmem:[%s1 + $0x5c] sm:$0xf]
      %v10842 = vld [vmem:[%s1 + $0x60] sm:$0xf]
      %v10843 = vld [vmem:[%s1 + $0x64] sm:$0xf]
      %v10844 = vld [vmem:[%s1 + $0x68] sm:$0xf]
      %v10872 = vunpack.c.l.b16 %v10818
      %v10873 = vunpack.c.l.b16 %v10819
      %v10874 = vunpack.c.l.b16 %v10820
      %v10875 = vunpack.c.l.b16 %v10821
      %v10876 = vunpack.c.l.b16 %v10822
      %v10877 = vunpack.c.l.b16 %v10823
      %v10878 = vunpack.c.l.b16 %v10824
      %v10879 = vunpack.c.l.b16 %v10825
      %v10880 = vunpack.c.l.b16 %v10826
      %v10881 = vunpack.c.l.b16 %v10827
      %v10882 = vunpack.c.l.b16 %v10828
      %v10883 = vunpack.c.l.b16 %v10829
      %v10884 = vunpack.c.l.b16 %v10830
      %v10885 = vunpack.c.l.b16 %v10831
      %v10886 = vunpack.c.l.b16 %v10832
      %v10887 = vunpack.c.l.b16 %v10833
      %v10888 = vunpack.c.l.b16 %v10834
      %v10889 = vunpack.c.l.b16 %v10835
      %v10890 = vunpack.c.l.b16 %v10836
      %v10891 = vunpack.c.l.b16 %v10837
      %v10892 = vunpack.c.l.b16 %v10838
      %v10893 = vunpack.c.l.b16 %v10839
      %v10894 = vunpack.c.l.b16 %v10840
      %v10895 = vunpack.c.l.b16 %v10841
      %v10896 = vunpack.c.l.b16 %v10842
      %v10897 = vunpack.c.l.b16 %v10843
      %v10898 = vunpack.c.l.b16 %v10844
      %v10899 = vpack.c.b16 %v10873, %v10872
      %v10900 = vpack.c.b16 %v10875, %v10874
      %v10901 = vpack.c.b16 %v10877, %v10876
      %v10902 = vpack.c.b16 %v10879, %v10878
      %v10903 = vpack.c.b16 %v10881, %v10880
      %v10904 = vpack.c.b16 %v10883, %v10882
      %v10905 = vpack.c.b16 %v10885, %v10884
      %v10906 = vpack.c.b16 %v10887, %v10886
      %v10907 = vpack.c.b16 %v10889, %v10888
      %v10908 = vpack.c.b16 %v10891, %v10890
      %v10909 = vpack.c.b16 %v10893, %v10892
      %v10910 = vpack.c.b16 %v10895, %v10894
      %v10911 = vpack.c.b16 %v10897, %v10896
      %v10912 = vpack.c.b16 %v10898, %v10898
      %vm10926 = vcmask 719872
      %v10928 = vsel %vm10926, %v10787, 0
      %v10931 = vsel %vm10926, %v10789, 0
      %v10934 = vsel %vm10926, %v10791, 0
      %v10937 = vsel %vm10926, %v10793, 0
      %v10940 = vsel %vm10926, %v10795, 0
      %v10943 = vsel %vm10926, %v10797, 0
      %v10946 = vsel %vm10926, %v10799, 0
      %v10949 = vsel %vm10926, %v10801, 0
      %v10952 = vsel %vm10926, %v10803, 0
      %v10955 = vsel %vm10926, %v10805, 0
      %v10958 = vsel %vm10926, %v10807, 0
      %v10961 = vsel %vm10926, %v10809, 0
      %v10964 = vsel %vm10926, %v10811, 0
      %v10967 = vsel %vm10926, %v10813, 0
      %v10970 = vsel %vm10926, %v10815, 0
      %v10973 = vsel %vm10926, %v10817, 0
      %vm10975 = vcmask 1043456
      %v10977 = vsel %vm10975, %v10912, 0
      %10979 = vmatprep.subr.bf16.mxu0 0
      %10980 = vmatpush1.bf16.msra.mxu0 %v10899
      %10981 = vmatprep.subr.bf16.mxu0 0
      %10982 = vmatpush1.bf16.msra.mxu0 %v10900
      %10983 = vmatprep.subr.bf16.mxu0 0
      %10984 = vmatpush1.bf16.msra.mxu0 %v10901
      %10985 = vmatprep.subr.bf16.mxu0 0
      %10986 = vmatpush1.bf16.msra.mxu0 %v10902
      %10987 = vmatprep.subr.bf16.mxu0 0
      %10988 = vmatpush1.bf16.msra.mxu0 %v10903
      %10989 = vmatprep.subr.bf16.mxu0 0
      %10990 = vmatpush1.bf16.msra.mxu0 %v10904
      %10991 = vmatprep.subr.bf16.mxu0 0
      %10992 = vmatpush1.bf16.msra.mxu0 %v10905
      %10993 = vmatprep.subr.bf16.mxu0 0
      %10994 = vmatpush1.bf16.msra.mxu0 %v10906
      %10995 = vmatprep.subr.bf16.mxu0 0
      %10996 = vmatpush1.bf16.msra.mxu0 %v10907
      %10997 = vmatprep.subr.bf16.mxu0 0
      %10998 = vmatpush1.bf16.msra.mxu0 %v10908
      %10999 = vmatprep.subr.bf16.mxu0 0
      %11000 = vmatpush1.bf16.msra.mxu0 %v10909
      %11001 = vmatprep.subr.bf16.mxu0 0
      %11002 = vmatpush1.bf16.msra.mxu0 %v10910
      %11003 = vmatprep.subr.bf16.mxu0 0
      %11004 = vmatpush1.bf16.msra.mxu0 %v10911
      %11005 = vmatprep.subr.bf16.mxu0 0
      %11006 = vmatpush1.bf16.msra.mxu0 %v10977
      %11007 = vmatprep.subr.bf16.mxu0 0
      %11008 = vmatpush1.bf16.msra.mxu0 0
      %11009 = vmatprep.subr.bf16.mxu0 0
      %11010 = vmatpush1.bf16.msra.mxu0 0
      %11011 = vmatprep.mubr.bf16.mxu0 %v10928
      %11012 = vmatmul.mubr.bf16.gmra.mrb[0].mxu0 %v10786
      %v11013 = vpop.f32.mrb[0].mxu0
      %v11014 = vadd.f32 0.0, %v11013
      %v11015 = vpop.f32.mrb[0].mxu0
      %v11016 = vpop.f32.mrb[0].mxu0
      %v11017 = vadd.f32 0.0, %v11016
      %v11018 = vpop.f32.mrb[0].mxu0
      %11019 = vmatprep.mubr.bf16.mxu0 %v10931
      %11020 = vmatmul.mubr.bf16.gmra.mrb[0].mxu0 %v10788
      %v11021 = vpop.f32.mrb[0].mxu0
      %v11022 = vadd.f32 0.0, %v11021
      %v11023 = vpop.f32.mrb[0].mxu0
      %v11024 = vpop.f32.mrb[0].mxu0
      %v11025 = vadd.f32 0.0, %v11024
      %v11026 = vpop.f32.mrb[0].mxu0
      %11027 = vmatprep.mubr.bf16.mxu0 %v10934
      %11028 = vmatmul.mubr.bf16.gmra.mrb[0].mxu0 %v10790
      %v11029 = vpop.f32.mrb[0].mxu0
      %v11030 = vadd.f32 0.0, %v11029
      %v11031 = vpop.f32.mrb[0].mxu0
      %v11032 = vpop.f32.mrb[0].mxu0
      %v11033 = vadd.f32 0.0, %v11032
      %v11034 = vpop.f32.mrb[0].mxu0
      %11035 = vmatprep.mubr.bf16.mxu0 %v10937
      %11036 = vmatmul.mubr.bf16.gmra.mrb[0].mxu0 %v10792
      %v11037 = vpop.f32.mrb[0].mxu0
      %v11038 = vadd.f32 0.0, %v11037
      %v11039 = vpop.f32.mrb[0].mxu0
      %v11040 = vpop.f32.mrb[0].mxu0
      %v11041 = vadd.f32 0.0, %v11040
      %v11042 = vpop.f32.mrb[0].mxu0
      %11043 = vmatprep.mubr.bf16.mxu0 %v10940
      %11044 = vmatmul.mubr.bf16.gmra.mrb[0].mxu0 %v10794
      %v11045 = vpop.f32.mrb[0].mxu0
      %v11046 = vadd.f32 0.0, %v11045
      %v11047 = vpop.f32.mrb[0].mxu0
      %v11048 = vpop.f32.mrb[0].mxu0
      %v11049 = vadd.f32 0.0, %v11048
      %v11050 = vpop.f32.mrb[0].mxu0
      %11051 = vmatprep.mubr.bf16.mxu0 %v10943
      %11052 = vmatmul.mubr.bf16.gmra.mrb[0].mxu0 %v10796
      %v11053 = vpop.f32.mrb[0].mxu0
      %v11054 = vadd.f32 0.0, %v11053
      %v11055 = vpop.f32.mrb[0].mxu0
      %v11056 = vpop.f32.mrb[0].mxu0
      %v11057 = vadd.f32 0.0, %v11056
      %v11058 = vpop.f32.mrb[0].mxu0
      %11059 = vmatprep.mubr.bf16.mxu0 %v10946
      %11060 = vmatmul.mubr.bf16.gmra.mrb[0].mxu0 %v10798
      %v11061 = vpop.f32.mrb[0].mxu0
      %v11062 = vadd.f32 0.0, %v11061
      %v11063 = vpop.f32.mrb[0].mxu0
      %v11064 = vpop.f32.mrb[0].mxu0
      %v11065 = vadd.f32 0.0, %v11064
      %v11066 = vpop.f32.mrb[0].mxu0
      %11067 = vmatprep.mubr.bf16.mxu0 %v10949
      %11068 = vmatmul.mubr.bf16.gmra.mrb[0].mxu0 %v10800
      %v11069 = vpop.f32.mrb[0].mxu0
      %v11070 = vadd.f32 0.0, %v11069
      %v11071 = vpop.f32.mrb[0].mxu0
      %v11072 = vpop.f32.mrb[0].mxu0
      %v11073 = vadd.f32 0.0, %v11072
      %v11074 = vpop.f32.mrb[0].mxu0
      %11075 = vmatprep.mubr.bf16.mxu0 %v10952
      %11076 = vmatmul.mubr.bf16.gmra.mrb[0].mxu0 %v10802
      %v11077 = vpop.f32.mrb[0].mxu0
      %v11078 = vadd.f32 0.0, %v11077
      %v11079 = vpop.f32.mrb[0].mxu0
      %v11080 = vpop.f32.mrb[0].mxu0
      %v11081 = vadd.f32 0.0, %v11080
      %v11082 = vpop.f32.mrb[0].mxu0
      %11083 = vmatprep.mubr.bf16.mxu0 %v10955
      %11084 = vmatmul.mubr.bf16.gmra.mrb[0].mxu0 %v10804
      %v11085 = vpop.f32.mrb[0].mxu0
      %v11086 = vadd.f32 0.0, %v11085
      %v11087 = vpop.f32.mrb[0].mxu0
      %v11088 = vpop.f32.mrb[0].mxu0
      %v11089 = vadd.f32 0.0, %v11088
      %v11090 = vpop.f32.mrb[0].mxu0
      %11091 = vmatprep.mubr.bf16.mxu0 %v10958
      %11092 = vmatmul.mubr.bf16.gmra.mrb[0].mxu0 %v10806
      %v11093 = vpop.f32.mrb[0].mxu0
      %v11094 = vadd.f32 0.0, %v11093
      %v11095 = vpop.f32.mrb[0].mxu0
      %v11096 = vpop.f32.mrb[0].mxu0
      %v11097 = vadd.f32 0.0, %v11096
      %v11098 = vpop.f32.mrb[0].mxu0
      %11099 = vmatprep.mubr.bf16.mxu0 %v10961
      %11100 = vmatmul.mubr.bf16.gmra.mrb[0].mxu0 %v10808
      %v11101 = vpop.f32.mrb[0].mxu0
      %v11102 = vadd.f32 0.0, %v11101
      %v11103 = vpop.f32.mrb[0].mxu0
      %v11104 = vpop.f32.mrb[0].mxu0
      %v11105 = vadd.f32 0.0, %v11104
      %v11106 = vpop.f32.mrb[0].mxu0
      %11107 = vmatprep.mubr.bf16.mxu0 %v10964
      %11108 = vmatmul.mubr.bf16.gmra.mrb[0].mxu0 %v10810
      %v11109 = vpop.f32.mrb[0].mxu0
      %v11110 = vadd.f32 0.0, %v11109
      %v11111 = vpop.f32.mrb[0].mxu0
      %v11112 = vpop.f32.mrb[0].mxu0
      %v11113 = vadd.f32 0.0, %v11112
      %v11114 = vpop.f32.mrb[0].mxu0
      %11115 = vmatprep.mubr.bf16.mxu0 %v10967
      %11116 = vmatmul.mubr.bf16.gmra.mrb[0].mxu0 %v10812
      %v11117 = vpop.f32.mrb[0].mxu0
      %v11118 = vadd.f32 0.0, %v11117
      %v11119 = vpop.f32.mrb[0].mxu0
      %v11120 = vpop.f32.mrb[0].mxu0
      %v11121 = vadd.f32 0.0, %v11120
      %v11122 = vpop.f32.mrb[0].mxu0
      %11123 = vmatprep.mubr.bf16.mxu0 %v10970
      %11124 = vmatmul.mubr.bf16.gmra.mrb[0].mxu0 %v10814
      %v11125 = vpop.f32.mrb[0].mxu0
      %v11126 = vadd.f32 0.0, %v11125
      %v11127 = vpop.f32.mrb[0].mxu0
      %v11128 = vpop.f32.mrb[0].mxu0
      %v11129 = vadd.f32 0.0, %v11128
      %v11130 = vpop.f32.mrb[0].mxu0
      %11131 = vmatprep.mubr.bf16.mxu0 %v10973
      %11132 = vmatmul.mubr.bf16.gmra.mrb[0].mxu0 %v10816
      %v11133 = vpop.f32.mrb[0].mxu0
      %v11134 = vadd.f32 0.0, %v11133
      %v11135 = vpop.f32.mrb[0].mxu0
      %v11136 = vpop.f32.mrb[0].mxu0
      %v11137 = vadd.f32 0.0, %v11136
      %v11138 = vpop.f32.mrb[0].mxu0
      %11139 = vdwg.mxu0
      %v11140 = vadd.f32 %v11014, %v11017
      %v11141 = vadd.f32 %v11140, %v11022
      %v11142 = vadd.f32 %v11141, %v11025
      %v11143 = vadd.f32 %v11142, %v11030
      %v11144 = vadd.f32 %v11143, %v11033
      %v11145 = vadd.f32 %v11144, %v11038
      %v11146 = vadd.f32 %v11145, %v11041
      %v11147 = vadd.f32 %v11146, %v11046
      %v11148 = vadd.f32 %v11147, %v11049
      %v11149 = vadd.f32 %v11148, %v11054
      %v11150 = vadd.f32 %v11149, %v11057
      %v11151 = vadd.f32 %v11150, %v11062
      %v11152 = vadd.f32 %v11151, %v11065
      %v11153 = vadd.f32 %v11152, %v11070
      %v11154 = vadd.f32 %v11153, %v11073
      %v11155 = vadd.f32 %v11154, %v11078
      %v11156 = vadd.f32 %v11155, %v11081
      %v11157 = vadd.f32 %v11156, %v11086
      %v11158 = vadd.f32 %v11157, %v11089
      %v11159 = vadd.f32 %v11158, %v11094
      %v11160 = vadd.f32 %v11159, %v11097
      %v11161 = vadd.f32 %v11160, %v11102
      %v11162 = vadd.f32 %v11161, %v11105
      %v11163 = vadd.f32 %v11162, %v11110
      %v11164 = vadd.f32 %v11163, %v11113
      %v11165 = vadd.f32 %v11164, %v11118
      %v11166 = vadd.f32 %v11165, %v11121
      %v11167 = vadd.f32 %v11166, %v11126
      %v11168 = vadd.f32 %v11167, %v11129
      %v11169 = vadd.f32 %v11168, %v11134
      %v11170 = vadd.f32 %v11169, %v11137
      %v11171 = vrot.slane %v11170, 4
      %v11172 = vadd.f32 %v11170, %v11171
      %v11173 = vrot.slane %v11172, 2
      %v11174 = vadd.f32 %v11172, %v11173
      %v11175 = vrot.slane %v11174, 1
      %v11176 = vadd.f32 %v11174, %v11175
      %11177 = vst [vmem:[%s277] sm:$0x1] %v11176
      %v11178 = vmul.f32 %v11014, %v11014
      %v11179 = vmul.f32 %v11017, %v11017
      %v11180 = vmul.f32 %v11022, %v11022
      %v11181 = vmul.f32 %v11025, %v11025
      %v11182 = vmul.f32 %v11030, %v11030
      %v11183 = vmul.f32 %v11033, %v11033
      %v11184 = vmul.f32 %v11038, %v11038
      %v11185 = vmul.f32 %v11041, %v11041
      %v11186 = vmul.f32 %v11046, %v11046
      %v11187 = vmul.f32 %v11049, %v11049
      %v11188 = vmul.f32 %v11054, %v11054
      %v11189 = vmul.f32 %v11057, %v11057
      %v11190 = vmul.f32 %v11062, %v11062
      %v11191 = vmul.f32 %v11065, %v11065
      %v11192 = vmul.f32 %v11070, %v11070
      %v11193 = vmul.f32 %v11073, %v11073
      %v11194 = vmul.f32 %v11078, %v11078
      %v11195 = vmul.f32 %v11081, %v11081
      %v11196 = vmul.f32 %v11086, %v11086
      %v11197 = vmul.f32 %v11089, %v11089
      %v11198 = vmul.f32 %v11094, %v11094
      %v11199 = vmul.f32 %v11097, %v11097
      %v11200 = vmul.f32 %v11102, %v11102
      %v11201 = vmul.f32 %v11105, %v11105
      %v11202 = vmul.f32 %v11110, %v11110
      %v11203 = vmul.f32 %v11113, %v11113
      %v11204 = vmul.f32 %v11118, %v11118
      %v11205 = vmul.f32 %v11121, %v11121
      %v11206 = vmul.f32 %v11126, %v11126
      %v11207 = vmul.f32 %v11129, %v11129
      %v11208 = vmul.f32 %v11134, %v11134
      %v11209 = vmul.f32 %v11137, %v11137
      %v11210 = vadd.f32 %v11178, %v11179
      %v11211 = vadd.f32 %v11210, %v11180
      %v11212 = vadd.f32 %v11211, %v11181
      %v11213 = vadd.f32 %v11212, %v11182
      %v11214 = vadd.f32 %v11213, %v11183
      %v11215 = vadd.f32 %v11214, %v11184
      %v11216 = vadd.f32 %v11215, %v11185
      %v11217 = vadd.f32 %v11216, %v11186
      %v11218 = vadd.f32 %v11217, %v11187
      %v11219 = vadd.f32 %v11218, %v11188
      %v11220 = vadd.f32 %v11219, %v11189
      %v11221 = vadd.f32 %v11220, %v11190
      %v11222 = vadd.f32 %v11221, %v11191
      %v11223 = vadd.f32 %v11222, %v11192
      %v11224 = vadd.f32 %v11223, %v11193
      %v11225 = vadd.f32 %v11224, %v11194
      %v11226 = vadd.f32 %v11225, %v11195
      %v11227 = vadd.f32 %v11226, %v11196
      %v11228 = vadd.f32 %v11227, %v11197
      %v11229 = vadd.f32 %v11228, %v11198
      %v11230 = vadd.f32 %v11229, %v11199
      %v11231 = vadd.f32 %v11230, %v11200
      %v11232 = vadd.f32 %v11231, %v11201
      %v11233 = vadd.f32 %v11232, %v11202
      %v11234 = vadd.f32 %v11233, %v11203
      %v11235 = vadd.f32 %v11234, %v11204
      %v11236 = vadd.f32 %v11235, %v11205
      %v11237 = vadd.f32 %v11236, %v11206
      %v11238 = vadd.f32 %v11237, %v11207
      %v11239 = vadd.f32 %v11238, %v11208
      %v11240 = vadd.f32 %v11239, %v11209
      %v11241 = vrot.slane %v11240, 4
      %v11242 = vadd.f32 %v11240, %v11241
      %v11243 = vrot.slane %v11242, 2
      %v11244 = vadd.f32 %v11242, %v11243
      %v11245 = vrot.slane %v11244, 1
      %v11246 = vadd.f32 %v11244, %v11245
      %11247 = vst [vmem:[%s284] sm:$0x1] %v11246
      %v11248 = vld [vmem:[%s2] sm:$0x1]
      %v11250 = vlaneseq
      %v11251 = vshrl.u32 %v11250, 7
      %v11252 = vsub.s32 0, %v11251
      %v11253 = vrot.slane %v11248, %v11252
      %v11255 = vadd.f32 %v11014, %v11253
      %v11256 = vadd.f32 %v11017, %v11253
      %v11257 = vadd.f32 %v11022, %v11253
      %v11258 = vadd.f32 %v11025, %v11253
      %v11259 = vadd.f32 %v11030, %v11253
      %v11260 = vadd.f32 %v11033, %v11253
      %v11261 = vadd.f32 %v11038, %v11253
      %v11262 = vadd.f32 %v11041, %v11253
      %v11263 = vadd.f32 %v11046, %v11253
      %v11264 = vadd.f32 %v11049, %v11253
      %v11265 = vadd.f32 %v11054, %v11253
      %v11266 = vadd.f32 %v11057, %v11253
      %v11267 = vadd.f32 %v11062, %v11253
      %v11268 = vadd.f32 %v11065, %v11253
      %v11269 = vadd.f32 %v11070, %v11253
      %v11270 = vadd.f32 %v11073, %v11253
      %v11271 = vadd.f32 %v11078, %v11253
      %v11272 = vadd.f32 %v11081, %v11253
      %v11273 = vadd.f32 %v11086, %v11253
      %v11274 = vadd.f32 %v11089, %v11253
      %v11275 = vadd.f32 %v11094, %v11253
      %v11276 = vadd.f32 %v11097, %v11253
      %v11277 = vadd.f32 %v11102, %v11253
      %v11278 = vadd.f32 %v11105, %v11253
      %v11279 = vadd.f32 %v11110, %v11253
      %v11280 = vadd.f32 %v11113, %v11253
      %v11281 = vadd.f32 %v11118, %v11253
      %v11282 = vadd.f32 %v11121, %v11253
      %v11283 = vadd.f32 %v11126, %v11253
      %v11284 = vadd.f32 %v11129, %v11253
      %v11285 = vadd.f32 %v11134, %v11253
      %v11286 = vadd.f32 %v11137, %v11253
      %v11287 = vpack.c.bf16 %v11256, %v11255
      %v11288 = vpack.c.bf16 %v11258, %v11257
      %v11289 = vpack.c.bf16 %v11260, %v11259
      %v11290 = vpack.c.bf16 %v11262, %v11261
      %v11291 = vpack.c.bf16 %v11264, %v11263
      %v11292 = vpack.c.bf16 %v11266, %v11265
      %v11293 = vpack.c.bf16 %v11268, %v11267
      %v11294 = vpack.c.bf16 %v11270, %v11269
      %v11295 = vpack.c.bf16 %v11272, %v11271
      %v11296 = vpack.c.bf16 %v11274, %v11273
      %v11297 = vpack.c.bf16 %v11276, %v11275
      %v11298 = vpack.c.bf16 %v11278, %v11277
      %v11299 = vpack.c.bf16 %v11280, %v11279
      %v11300 = vpack.c.bf16 %v11282, %v11281
      %v11301 = vpack.c.bf16 %v11284, %v11283
      %v11302 = vpack.c.bf16 %v11286, %v11285
      %v11319 = vunpack.c.l.b16 %v11287
      %v11320 = vunpack.c.h.b16 %v11287
      %v11321 = vunpack.c.l.b16 %v11288
      %v11322 = vunpack.c.h.b16 %v11288
      %v11323 = vunpack.c.l.b16 %v11289
      %v11324 = vunpack.c.h.b16 %v11289
      %v11325 = vunpack.c.l.b16 %v11290
      %v11326 = vunpack.c.h.b16 %v11290
      %v11327 = vunpack.c.l.b16 %v11291
      %v11328 = vunpack.c.h.b16 %v11291
      %v11329 = vunpack.c.l.b16 %v11292
      %v11330 = vunpack.c.h.b16 %v11292
      %v11331 = vunpack.c.l.b16 %v11293
      %v11332 = vunpack.c.h.b16 %v11293
      %v11333 = vunpack.c.l.b16 %v11294
      %v11334 = vunpack.c.h.b16 %v11294
      %v11335 = vunpack.c.l.b16 %v11295
      %v11336 = vunpack.c.h.b16 %v11295
      %v11337 = vunpack.c.l.b16 %v11296
      %v11338 = vunpack.c.h.b16 %v11296
      %v11339 = vunpack.c.l.b16 %v11297
      %v11340 = vunpack.c.h.b16 %v11297
      %v11341 = vunpack.c.l.b16 %v11298
      %v11342 = vunpack.c.h.b16 %v11298
      %v11343 = vunpack.c.l.b16 %v11299
      %v11344 = vunpack.c.h.b16 %v11299
      %v11345 = vunpack.c.l.b16 %v11300
      %v11346 = vunpack.c.h.b16 %v11300
      %v11347 = vunpack.c.l.b16 %v11301
      %v11348 = vunpack.c.h.b16 %v11301
      %v11349 = vunpack.c.l.b16 %v11302
      %v11350 = vunpack.c.h.b16 %v11302
      %v11351 = vpack.c.b16 %v11319, %v11319
      %v11352 = vpack.c.b16 %v11320, %v11320
      %v11353 = vpack.c.b16 %v11321, %v11321
      %v11354 = vpack.c.b16 %v11322, %v11322
      %v11355 = vpack.c.b16 %v11323, %v11323
      %v11356 = vpack.c.b16 %v11324, %v11324
      %v11357 = vpack.c.b16 %v11325, %v11325
      %v11358 = vpack.c.b16 %v11326, %v11326
      %v11359 = vpack.c.b16 %v11327, %v11327
      %v11360 = vpack.c.b16 %v11328, %v11328
      %v11361 = vpack.c.b16 %v11329, %v11329
      %v11362 = vpack.c.b16 %v11330, %v11330
      %v11363 = vpack.c.b16 %v11331, %v11331
      %v11364 = vpack.c.b16 %v11332, %v11332
      %v11365 = vpack.c.b16 %v11333, %v11333
      %v11366 = vpack.c.b16 %v11334, %v11334
      %v11367 = vpack.c.b16 %v11335, %v11335
      %v11368 = vpack.c.b16 %v11336, %v11336
      %v11369 = vpack.c.b16 %v11337, %v11337
      %v11370 = vpack.c.b16 %v11338, %v11338
      %v11371 = vpack.c.b16 %v11339, %v11339
      %v11372 = vpack.c.b16 %v11340, %v11340
      %v11373 = vpack.c.b16 %v11341, %v11341
      %v11374 = vpack.c.b16 %v11342, %v11342
      %v11375 = vpack.c.b16 %v11343, %v11343
      %v11376 = vpack.c.b16 %v11344, %v11344
      %v11377 = vpack.c.b16 %v11345, %v11345
      %v11378 = vpack.c.b16 %v11346, %v11346
      %v11379 = vpack.c.b16 %v11347, %v11347
      %v11380 = vpack.c.b16 %v11348, %v11348
      %v11381 = vpack.c.b16 %v11349, %v11349
      %v11382 = vpack.c.b16 %v11350, %v11350
      %11415 = vst [vmem:[%s269] sm:$0xf] %v11351
      %11416 = vst [vmem:[%s269 + $0x4] sm:$0xf] %v11352
      %11417 = vst [vmem:[%s269 + $0x8] sm:$0xf] %v11353
      %11418 = vst [vmem:[%s269 + $0xc] sm:$0xf] %v11354
      %11419 = vst [vmem:[%s269 + $0x10] sm:$0xf] %v11355
      %11420 = vst [vmem:[%s269 + $0x14] sm:$0xf] %v11356
      %11421 = vst [vmem:[%s269 + $0x18] sm:$0xf] %v11357
      %11422 = vst [vmem:[%s269 + $0x1c] sm:$0xf] %v11358
      %11423 = vst [vmem:[%s269 + $0x20] sm:$0xf] %v11359
      %11424 = vst [vmem:[%s269 + $0x24] sm:$0xf] %v11360
      %11425 = vst [vmem:[%s269 + $0x28] sm:$0xf] %v11361
      %11426 = vst [vmem:[%s269 + $0x2c] sm:$0xf] %v11362
      %11427 = vst [vmem:[%s269 + $0x30] sm:$0xf] %v11363
      %11428 = vst [vmem:[%s269 + $0x34] sm:$0xf] %v11364
      %11429 = vst [vmem:[%s269 + $0x38] sm:$0xf] %v11365
      %11430 = vst [vmem:[%s269 + $0x3c] sm:$0xf] %v11366
      %11431 = vst [vmem:[%s269 + $0x40] sm:$0xf] %v11367
      %11432 = vst [vmem:[%s269 + $0x44] sm:$0xf] %v11368
      %11433 = vst [vmem:[%s269 + $0x48] sm:$0xf] %v11369
      %11434 = vst [vmem:[%s269 + $0x4c] sm:$0xf] %v11370
      %11435 = vst [vmem:[%s269 + $0x50] sm:$0xf] %v11371
      %11436 = vst [vmem:[%s269 + $0x54] sm:$0xf] %v11372
      %11437 = vst [vmem:[%s269 + $0x58] sm:$0xf] %v11373
      %11438 = vst [vmem:[%s269 + $0x5c] sm:$0xf] %v11374
      %11439 = vst [vmem:[%s269 + $0x60] sm:$0xf] %v11375
      %11440 = vst [vmem:[%s269 + $0x64] sm:$0xf] %v11376
      %11441 = vst [vmem:[%s269 + $0x68] sm:$0xf] %v11377
      %11442 = vst [vmem:[%s269 + $0x6c] sm:$0xf] %v11378
      %11443 = vst [vmem:[%s269 + $0x70] sm:$0xf] %v11379
      %11444 = vst [vmem:[%s269 + $0x74] sm:$0xf] %v11380
      %11445 = vst [vmem:[%s269 + $0x78] sm:$0xf] %v11381
      %11446 = vst [vmem:[%s269 + $0x7c] sm:$0xf] %v11382
      %s11447 = smul.u32 32, %s22
      %p11448 = scmp.lt.s32.totalorder %s21, 1
      %s11449 = scalar_select %p11448, %s21, 1
      %p11450 = scmp.lt.s32.totalorder %s11447, 63
      %s11451 = scalar_select %p11450, %s11447, 63
      %s11452 = smul.addr %s11449, 64
      %s11453 = sadd.s32 %s11451, %s11452
      %s11454 = smul.addr %s11453, 4
      %s11455 = scalar_lea.vmem %s3, %s11454
      %p11456 = scmp.lt.s32.totalorder %s21, 1
      %s11457 = scalar_select %p11456, %s21, 1
      %p11458 = scmp.lt.s32.totalorder %s22, 1
      %s11459 = scalar_select %p11458, %s22, 1
      %s11460 = smul.addr %s11457, 2
      %s11461 = sadd.s32 %s11459, %s11460
      %s11462 = scalar_lea.vmem %s4, %s11461
      %p11463 = scmp.lt.s32.totalorder %s21, 1
      %s11464 = scalar_select %p11463, %s21, 1
      %p11465 = scmp.lt.s32.totalorder %s22, 1
      %s11466 = scalar_select %p11465, %s22, 1
      %s11467 = smul.addr %s11464, 2
      %s11468 = sadd.s32 %s11466, %s11467
      %s11469 = scalar_lea.vmem %s5, %s11468
      // Predicated region
      $region33: #{unit_forward.2} parent=31 // pred_check
        %p11470 = pneg %p117
      $region34: #{unit_forward.2} parent=31 // pred_check_branch
        %11472 = sbr.rel (%p11470) target = $region36
      $region35: #{unit_forward.2} parent=31 // pred_region
        %s11473 = smul.u32 32, %s22
      $region36: #{unit_forward.2} parent=31 // pred_fallthru
        _
      // Predicated region
      $region37: #{unit_forward.2} parent=31 // pred_check
        %p11474 = pneg %p145
      $region38: #{unit_forward.2} parent=31 // pred_check_branch
        %11476 = sbr.rel (%p11474) target = $region40
      $region39: #{unit_forward.2} parent=31 // pred_region
        _
      $region40: #{unit_forward.2} parent=31 // pred_fallthru
        _
      // Predicated region
      $region41: #{unit_forward.2} parent=31 // pred_check
        %p11477 = pneg %p173
      $region42: #{unit_forward.2} parent=31 // pred_check_branch
        %11479 = sbr.rel (%p11477) target = $region44
      $region43: #{unit_forward.2} parent=31 // pred_region
        _
      $region44: #{unit_forward.2} parent=31 // pred_fallthru
        _
    $region32: #{unit_forward.2} parent=5 // pred_fallthru
      _
    %p11480 = scmp.le.s32.totalorder 2, %s12
    // Predicated region
    $region45: #{unit_forward.2} parent=5 // pred_check
      %p11481 = pneg %p11480
    $region46: #{unit_forward.2} parent=5 // pred_check_branch
      %11483 = sbr.rel (%p11481) target = $region48
    $region47: #{unit_forward.2} parent=5 // pred_region
      %s11484 = ssub.s32 %s12, 2
      // Predicated region
      $region49: #{unit_forward.2} parent=47 // pred_check
        %p11485 = pneg %p123
      $region50: #{unit_forward.2} parent=47 // pred_check_branch
        %11487 = sbr.rel (%p11485) target = $region52
      $region51: #{unit_forward.2} parent=47 // pred_region
        %s11488 = smul.u32 32, %s24
        %p11489 = scmp.lt.s32.totalorder %s23, 1
        %s11490 = scalar_select %p11489, %s23, 1
        %p11491 = scmp.lt.s32.totalorder %s11488, 63
        %s11492 = scalar_select %p11491, %s11488, 63
        %s11493 = smul.addr %s11490, 64
        %s11494 = sadd.s32 %s11492, %s11493
        %s11495 = smul.addr %s11494, 4
        %s11496 = scalar_lea.vmem %s3, %s11495
      $region52: #{unit_forward.2} parent=47 // pred_fallthru
        _
      // Predicated region
      $region53: #{unit_forward.2} parent=47 // pred_check
        %p11497 = pneg %p151
      $region54: #{unit_forward.2} parent=47 // pred_check_branch
        %11499 = sbr.rel (%p11497) target = $region56
      $region55: #{unit_forward.2} parent=47 // pred_region
        %p11500 = scmp.lt.s32.totalorder %s23, 1
        %s11501 = scalar_select %p11500, %s23, 1
        %p11502 = scmp.lt.s32.totalorder %s24, 1
        %s11503 = scalar_select %p11502, %s24, 1
        %s11504 = smul.addr %s11501, 2
        %s11505 = sadd.s32 %s11503, %s11504
        %s11506 = scalar_lea.vmem %s4, %s11505
      $region56: #{unit_forward.2} parent=47 // pred_fallthru
        _
      // Predicated region
      $region57: #{unit_forward.2} parent=47 // pred_check
        %p11507 = pneg %p179
      $region58: #{unit_forward.2} parent=47 // pred_check_branch
        %11509 = sbr.rel (%p11507) target = $region60
      $region59: #{unit_forward.2} parent=47 // pred_region
        %p11510 = scmp.lt.s32.totalorder %s23, 1
        %s11511 = scalar_select %p11510, %s23, 1
        %p11512 = scmp.lt.s32.totalorder %s24, 1
        %s11513 = scalar_select %p11512, %s24, 1
        %s11514 = smul.addr %s11511, 2
        %s11515 = sadd.s32 %s11513, %s11514
        %s11516 = scalar_lea.vmem %s5, %s11515
      $region60: #{unit_forward.2} parent=47 // pred_fallthru
        _
    $region48: #{unit_forward.2} parent=5 // pred_fallthru
      _
  $region6: #{unit_forward.2} parent=0 // loop_footer
    %s16 = sadd.s32 1, %s12
  $region7: #{unit_forward.2} parent=0 // loop_footer_branch
    %11 = sbr.rel target = $region3
  $region8: #{unit_forward.2} parent=0 // loop_exit
    _

</llo_original>
